<compile_context>
chip_gen: v7x
topology: tpu7x:2x2x1
jax: 0.10.0
libtpu: 0.0.40
codegen_flags: <defaults>
</compile_context>

<pallas_src>
import math
import functools

import jax
import jax.numpy as jnp
from jax import lax
from jax.experimental import pallas as pl
from jax.experimental.pallas import tpu as pltpu

# ---------------------------------------------------------------------------
# Shared in-kernel helpers
# ---------------------------------------------------------------------------

_SQRT_2_OVER_PI = 0.7978845608028654


def _gelu_tanh(x):
    # matches torch.nn.functional.gelu(x, approximate='tanh')
    return 0.5 * x * (1.0 + jnp.tanh(_SQRT_2_OVER_PI * (x + 0.044715 * x * x * x)))


def _softmax_rows(s):
    # exact fp32 row softmax (matches the PyTorch reference numerics)
    s = s - jnp.max(s, axis=-1, keepdims=True)
    p = jnp.exp(s)
    return p / jnp.sum(p, axis=-1, keepdims=True)


def _layernorm(x, g, b, eps):
    mu = jnp.mean(x, axis=-1, keepdims=True)
    var = jnp.mean((x - mu) * (x - mu), axis=-1, keepdims=True)
    return (x - mu) * lax.rsqrt(var + eps) * g + b


def _rmsnorm(x, w, eps):
    # GemmaRMSNorm: x * rsqrt(mean(x^2)+eps) * (1 + w), computed in fp32
    return x * lax.rsqrt(jnp.mean(x * x, axis=-1, keepdims=True) + eps) * (1.0 + w)


def _nt_dot(a, b):
    # a(M,K) @ b(N,K)^T contracting the last axes — no explicit transpose op
    return lax.dot_general(a, b, (((1,), (1,)), ((), ())),
                           preferred_element_type=jnp.float32)


def _whole(a):
    # whole array as one block, constant across the grid (weight-resident)
    return pl.BlockSpec(a.shape, lambda i: (0,) * a.ndim)


def _cparams():
    # weights here are <1 MiB; 32 MiB leaves headroom on every generation
    # (v7x has only 64 MiB physical VMEM per TensorCore).
    return pltpu.CompilerParams(
        dimension_semantics=("parallel",),
        vmem_limit_bytes=32 * 1024 * 1024)


# ---------------------------------------------------------------------------
# Fused vision stack kernel: patch embed + all SigLIP layers + post-LN +
# multimodal projector + 1/sqrt(hidden) scale.   Grid: (B,)
# ---------------------------------------------------------------------------

def _vision_stack_kernel(patches_ref, pw_ref, pb_ref, pos_ref,
                         ln1g_ref, ln1b_ref, wqkv_ref, bqkv_ref, wo_ref, bo_ref,
                         ln2g_ref, ln2b_ref, w1_ref, b1_ref, w2_ref, b2_ref,
                         postg_ref, postb_ref, wproj_ref, bproj_ref, o_ref,
                         *, n_layers, nh, hd, eps, out_scale):
    hsz = nh * hd
    # Conv2d(kernel=P, stride=P) == patch-flatten + matmul; pos-embed add fused.
    x = (jnp.dot(patches_ref[0], pw_ref[...], preferred_element_type=jnp.float32)
         + pb_ref[...] + pos_ref[...])                                  # (NP, VH)

    for l in range(n_layers):
        # pre-attention LayerNorm + fused Q|K|V projection (one MXU matmul)
        y = _layernorm(x, ln1g_ref[l], ln1b_ref[l], eps)
        qkv = (jnp.dot(y, wqkv_ref[l], preferred_element_type=jnp.float32)
               + bqkv_ref[l])

        # all heads; 1/sqrt(head_dim) is pre-folded into the Q weight/bias
        outs = []
        for i in range(nh):
            qi = qkv[:, i * hd:(i + 1) * hd]
            ki = qkv[:, hsz + i * hd: hsz + (i + 1) * hd]
            vi = qkv[:, 2 * hsz + i * hd: 2 * hsz + (i + 1) * hd]
            p = _softmax_rows(_nt_dot(qi, ki))
            outs.append(jnp.dot(p, vi, preferred_element_type=jnp.float32))
        # single wide o_proj matmul (contraction nh*hd) instead of per-head adds
        attn = (jnp.dot(jnp.concatenate(outs, axis=-1), wo_ref[l],
                        preferred_element_type=jnp.float32) + bo_ref[l])
        x = x + attn

        # post-attention LayerNorm + MLP (gelu-tanh)
        y2 = _layernorm(x, ln2g_ref[l], ln2b_ref[l], eps)
        mid = _gelu_tanh(jnp.dot(y2, w1_ref[l],
                                 preferred_element_type=jnp.float32) + b1_ref[l])
        x = x + jnp.dot(mid, w2_ref[l],
                        preferred_element_type=jnp.float32) + b2_ref[l]

    # final LayerNorm + multimodal projector + 1/sqrt(text hidden) scaling
    y = _layernorm(x, postg_ref[...], postb_ref[...], eps)
    proj = (jnp.dot(y, wproj_ref[...], preferred_element_type=jnp.float32)
            + bproj_ref[...])
    o_ref[0] = (proj * out_scale).astype(o_ref.dtype)


def vision_stack_pallas(patches, vp, proj, vc, out_scale):
    B, NP, CPP = patches.shape
    VH = vc.hidden_size
    PD = proj["w"].shape[1]
    nh = vc.num_attention_heads
    hd = VH // nh
    st = vp["stacked"]
    args = [patches, vp["patch_w"], vp["patch_b"].reshape(1, VH), vp["pos_embed"],
            st["ln1_g"], st["ln1_b"], st["wqkv"], st["bqkv"], st["wo"], st["bo"],
            st["ln2_g"], st["ln2_b"], st["w1"], st["b1"], st["w2"], st["b2"],
            vp["post_g"].reshape(1, VH), vp["post_b"].reshape(1, VH),
            proj["w"], proj["b"].reshape(1, PD)]
    kernel = functools.partial(_vision_stack_kernel,
                               n_layers=vc.num_hidden_layers, nh=nh, hd=hd,
                               eps=vc.layer_norm_eps, out_scale=out_scale)
    return pl.pallas_call(
        kernel,
        grid=(B,),
        in_specs=[pl.BlockSpec((1, NP, CPP), lambda i: (i, 0, 0))]
                 + [_whole(a) for a in args[1:]],
        out_specs=pl.BlockSpec((1, NP, PD), lambda i: (i, 0, 0)),
        out_shape=jax.ShapeDtypeStruct((B, NP, PD), patches.dtype),
        compiler_params=_cparams(),
    )(*args)


# ---------------------------------------------------------------------------
# Fused Gemma stack kernel: embed scaling + all decoder layers + final RMSNorm
# + lm_head (bias, fp32 logits).   Grid: (B,)
# ---------------------------------------------------------------------------

def _gemma_stack_kernel(x_ref, cs_ref, ln_in_ref, wqkv_ref, wo_ref, ln_post_ref,
                        wgu_ref, wd_ref, normw_ref, wlm_ref, blm_ref, o_ref,
                        *, n_layers, nh, nkv, hd, eps, inter, normalizer):
    h = x_ref[0].astype(jnp.float32) * normalizer        # sqrt(hidden) scale fused
    cs = cs_ref[0].astype(jnp.float32)                    # (S, 2*hd) = [cos | signed sin]
    cos = cs[:, :hd]
    sin_s = cs[:, hd:]
    half = hd // 2
    n_rep = nh // nkv
    qs, ks = nh * hd, nkv * hd

    def rope(t):
        # reference rotate_half(x) = cat(-x1, x1), x1 = first half; the minus sign
        # is pre-folded into sin_s so the rotation is a first-half duplication.
        t1 = t[:, :half]
        return t * cos + jnp.concatenate([t1, t1], axis=-1) * sin_s

    for l in range(n_layers):
        # input RMSNorm + fused [Q|K|V] projection (1/sqrt(head_dim) folded in Q)
        y = _rmsnorm(h, ln_in_ref[l], eps)
        qkv = jnp.dot(y, wqkv_ref[l], preferred_element_type=jnp.float32)

        # shared KV heads (GQA: no repeat_kv materialization)
        k_heads = [rope(qkv[:, qs + j * hd: qs + (j + 1) * hd]) for j in range(nkv)]
        v_heads = [qkv[:, qs + ks + j * hd: qs + ks + (j + 1) * hd]
                   for j in range(nkv)]

        # all query heads; prefill additive mask is all zeros in the reference
        outs = []
        for i in range(nh):
            q_emb = rope(qkv[:, i * hd:(i + 1) * hd])
            p = _softmax_rows(_nt_dot(q_emb, k_heads[i // n_rep]))
            outs.append(jnp.dot(p, v_heads[i // n_rep],
                                preferred_element_type=jnp.float32))
        # single wide o_proj matmul (no per-head accumulation chain)
        attn = jnp.dot(jnp.concatenate(outs, axis=-1), wo_ref[l],
                       preferred_element_type=jnp.float32)
        h = h + attn

        # post-attention RMSNorm + fused gate|up MLP + down proj + residual
        y2 = _rmsnorm(h, ln_post_ref[l], eps)
        gu = jnp.dot(y2, wgu_ref[l], preferred_element_type=jnp.float32)
        act = _gelu_tanh(gu[:, :inter]) * gu[:, inter:]
        h = h + jnp.dot(act, wd_ref[l], preferred_element_type=jnp.float32)

    # final RMSNorm + lm_head (bias); vocab=128 -> lane-dense fp32 output
    n = _rmsnorm(h, normw_ref[...], eps)
    logits = (jnp.dot(n, wlm_ref[...], preferred_element_type=jnp.float32)
              + blm_ref[...])
    o_ref[0] = logits.astype(jnp.float32)


def gemma_stack_pallas(x, cossin, lm, tc):
    B, S, H = x.shape
    V = tc.vocab_size
    nh, nkv, hd = tc.num_attention_heads, tc.num_key_value_heads, tc.head_dim
    st = lm["stacked"]
    args = [x, cossin, st["input_ln"], st["wqkv"], st["wo"], st["post_ln"],
            st["wgu"], st["wd"], lm["norm_w"].reshape(1, H),
            lm["lm_head_w"], lm["lm_head_b"].reshape(1, V)]
    kernel = functools.partial(_gemma_stack_kernel,
                               n_layers=tc.num_hidden_layers, nh=nh, nkv=nkv,
                               hd=hd, eps=tc.rms_norm_eps,
                               inter=tc.intermediate_size,
                               normalizer=float(tc.hidden_size ** 0.5))
    return pl.pallas_call(
        kernel,
        grid=(B,),
        in_specs=[pl.BlockSpec((1, S, H), lambda i: (i, 0, 0)),
                  pl.BlockSpec((1, S, 2 * hd), lambda i: (i, 0, 0))]
                 + [_whole(a) for a in args[2:]],
        out_specs=pl.BlockSpec((1, S, V), lambda i: (i, 0, 0)),
        out_shape=jax.ShapeDtypeStruct((B, S, V), jnp.float32),
        compiler_params=_cparams(),
    )(*args)


# ---------------------------------------------------------------------------
# Configs
# ---------------------------------------------------------------------------

class VisionConfig:
    def __init__(self):
        self.hidden_size = 32
        self.intermediate_size = 64
        self.num_hidden_layers = 2
        self.num_attention_heads = 4
        self.num_channels = 3
        self.image_size = 16
        self.patch_size = 8
        self.layer_norm_eps = 1e-6
        self.projection_dim = 32          # == text hidden_size


class TextConfig:
    def __init__(self):
        self.vocab_size = 128
        self.hidden_size = 32
        self.intermediate_size = 64
        self.num_hidden_layers = 2
        self.num_attention_heads = 4
        self.num_key_value_heads = 2
        self.head_dim = 8
        self.max_position_embeddings = 64
        self.rms_norm_eps = 1e-6
        self.rope_theta = 10000.0
        self.attention_bias = False
        self.attention_dropout = 0.0
        self.pad_token_id = 0


class PaliGemmaConfig:
    def __init__(self):
        self.vision_config = VisionConfig()
        self.text_config = TextConfig()
        self.vocab_size = self.text_config.vocab_size
        self.hidden_size = self.text_config.hidden_size
        self.image_token_index = 3
        self.pad_token_id = 0


# ---------------------------------------------------------------------------
# Parameter init (deterministic, synthetic).  Per-layer weights are stacked
# along a leading L axis so each fused stack kernel takes one set of resident
# weight blocks.  Q|K|V and gate|up are concatenated along N; the 1/sqrt(hd)
# attention scale is folded into the Q columns.  (bf16 weights recommended for
# real v6e/v7x-scale models; kept f32 here for reference numerics.)
# ---------------------------------------------------------------------------

def init_params(key, cfg):
    tc, vc = cfg.text_config, cfg.vision_config
    keys = iter(jax.random.split(key, 256))

    def nrm(shape, std=0.02):
        return jax.random.normal(next(keys), shape, dtype=jnp.float32) * std

    P = vc.patch_size
    NP = (vc.image_size // P) ** 2
    VH, VI = vc.hidden_size, vc.intermediate_size
    vhd = VH // vc.num_attention_heads
    v_scale = 1.0 / math.sqrt(vhd)

    vacc = {k: [] for k in ("ln1_g", "ln1_b", "wqkv", "bqkv", "wo", "bo",
                            "ln2_g", "ln2_b", "w1", "b1", "w2", "b2")}
    for _ in range(vc.num_hidden_layers):
        wq, wk, wv = nrm((VH, VH)), nrm((VH, VH)), nrm((VH, VH))
        bq, bk, bv = nrm((VH,)), nrm((VH,)), nrm((VH,))
        vacc["ln1_g"].append(jnp.ones((1, VH), jnp.float32))
        vacc["ln1_b"].append(jnp.zeros((1, VH), jnp.float32))
        vacc["wqkv"].append(jnp.concatenate([wq * v_scale, wk, wv], axis=1))
        vacc["bqkv"].append(jnp.concatenate([bq * v_scale, bk, bv]).reshape(1, 3 * VH))
        vacc["wo"].append(nrm((VH, VH)))
        vacc["bo"].append(nrm((VH,)).reshape(1, VH))
        vacc["ln2_g"].append(jnp.ones((1, VH), jnp.float32))
        vacc["ln2_b"].append(jnp.zeros((1, VH), jnp.float32))
        vacc["w1"].append(nrm((VH, VI)))
        vacc["b1"].append(nrm((VI,)).reshape(1, VI))
        vacc["w2"].append(nrm((VI, VH)))
        vacc["b2"].append(nrm((VH,)).reshape(1, VH))

    vision = {
        "patch_w": nrm((vc.num_channels * P * P, VH)),
        "patch_b": nrm((VH,)),
        "pos_embed": nrm((NP, VH)),
        "stacked": {k: jnp.stack(v, axis=0) for k, v in vacc.items()},
        "post_g": jnp.ones((VH,), jnp.float32),
        "post_b": jnp.zeros((VH,), jnp.float32),
    }

    projector = {"w": nrm((VH, vc.projection_dim)), "b": nrm((vc.projection_dim,))}

    H, TI = tc.hidden_size, tc.intermediate_size
    nh, nkv, hd = tc.num_attention_heads, tc.num_key_value_heads, tc.head_dim
    t_scale = 1.0 / math.sqrt(hd)
    lacc = {k: [] for k in ("input_ln", "wqkv", "wo", "post_ln", "wgu", "wd")}
    for _ in range(tc.num_hidden_layers):
        wq, wk, wv = nrm((H, nh * hd)), nrm((H, nkv * hd)), nrm((H, nkv * hd))
        lacc["input_ln"].append(jnp.zeros((1, H), jnp.float32))   # GemmaRMSNorm init
        lacc["post_ln"].append(jnp.zeros((1, H), jnp.float32))
        lacc["wqkv"].append(jnp.concatenate([wq * t_scale, wk, wv], axis=1))
        lacc["wo"].append(nrm((nh * hd, H)))
        lacc["wgu"].append(jnp.concatenate([nrm((H, TI)), nrm((H, TI))], axis=1))
        lacc["wd"].append(nrm((TI, H)))

    lm = {
        "embed_tokens": nrm((tc.vocab_size, H)),
        "stacked": {k: jnp.stack(v, axis=0) for k, v in lacc.items()},
        "norm_w": jnp.zeros((H,), jnp.float32),           # GemmaRMSNorm init = zeros
        "lm_head_w": nrm((H, tc.vocab_size)),
        "lm_head_b": nrm((tc.vocab_size,)),
    }
    return {"vision": vision, "projector": projector, "lm": lm}


# ---------------------------------------------------------------------------
# Rotary tables, packed as one (B, S, 2*hd) tensor = [cos | sign-folded sin].
# NOTE: reference rotate_half returns cat((-x1, x1)) with x1 = first half (its
# x2 is computed from shape[1]//2 and never used) -> sign folded into sin here.
# ---------------------------------------------------------------------------

def compute_rotary_packed(head_dim, base, position_ids, dtype):
    inv_freq = 1.0 / (base ** (jnp.arange(0, head_dim, 2, dtype=jnp.float32) / head_dim))
    freqs = inv_freq[None, :, None] * position_ids[:, None, :].astype(jnp.float32)
    freqs = jnp.transpose(freqs, (0, 2, 1))                       # (B, S, hd/2)
    emb = jnp.concatenate([freqs, freqs], axis=-1)                # (B, S, hd)
    cos, sin = jnp.cos(emb), jnp.sin(emb)
    half = head_dim // 2
    sin_signed = jnp.concatenate([-sin[..., :half], sin[..., half:]], axis=-1)
    return jnp.concatenate([cos, sin_signed], axis=-1).astype(dtype)   # (B, S, 2*hd)


# ---------------------------------------------------------------------------
# PaliGemma forward (prefill path; kv_cache decode path not implemented)
# TODO(synk): SigLipVisionModel definition not supplied in the reference source;
#             implemented as a standard SigLIP-style ViT (patch-conv embed +
#             learned pos embed + pre-LN encoder + final LayerNorm).
# TODO(synk): kv_cache / single-token decode path not implemented (prefill only).
# ---------------------------------------------------------------------------

def paligemma_forward(params, cfg, input_ids, pixel_values, attention_mask):
    tc, vc = cfg.text_config, cfg.vision_config
    B, S = input_ids.shape
    H = tc.hidden_size

    # 1) token embeddings (gather kept at XLA level)
    inputs_embeds = params["lm"]["embed_tokens"][input_ids]       # (B, S, H)

    # 2) vision tower + post-LN + projector + 1/sqrt(hidden) scale: ONE kernel
    P = vc.patch_size
    nHW = vc.image_size // P
    NP = nHW * nHW
    pix = pixel_values.astype(inputs_embeds.dtype)
    patches = pix.reshape(B, vc.num_channels, nHW, P, nHW, P)
    patches = patches.transpose(0, 2, 4, 1, 3, 5).reshape(B, NP, vc.num_channels * P * P)
    scaled = vision_stack_pallas(patches, params["vision"], params["projector"],
                                 vc, 1.0 / math.sqrt(cfg.hidden_size))

    # 3) merge image features with text embeddings (masked_scatter equivalent;
    #    tiny (B,S,H) ops, kept at XLA level)
    text_mask = (input_ids != cfg.image_token_index) & (input_ids != cfg.pad_token_id)
    image_mask = input_ids == cfg.image_token_index
    pad_mask = input_ids == cfg.pad_token_id
    img_pos = jnp.clip(jnp.cumsum(image_mask.astype(jnp.int32), axis=-1) - 1, 0, NP - 1)
    gathered = jnp.take_along_axis(scaled,
                                   jnp.broadcast_to(img_pos[..., None], (B, S, H)),
                                   axis=1)
    final = jnp.where(text_mask[..., None], inputs_embeds, jnp.zeros_like(inputs_embeds))
    final = jnp.where(image_mask[..., None], gathered, final)
    final = jnp.where(pad_mask[..., None], jnp.zeros_like(final), final)

    # 4) position ids (prefill additive mask is all zeros -> never materialized)
    position_ids = jnp.cumsum(attention_mask, axis=-1)
    position_ids = jnp.where(attention_mask == 0, 1, position_ids)
    cossin = compute_rotary_packed(tc.head_dim, tc.rope_theta, position_ids, final.dtype)

    # 5) full language model (all layers + final norm + lm_head): ONE kernel
    logits = gemma_stack_pallas(final, cossin, params["lm"], tc)
    return {"logits": logits}


# ---------------------------------------------------------------------------
# Main
# ---------------------------------------------------------------------------

if __name__ == "__main__":
    cfg = PaliGemmaConfig()
    key = jax.random.PRNGKey(0)
    k_params, k_pix, k_ids = jax.random.split(key, 3)

    params = init_params(k_params, cfg)

    B = 2
    num_patches = (cfg.vision_config.image_size // cfg.vision_config.patch_size) ** 2  # 4
    num_text = 4
    S = num_patches + num_text                                                          # 8

    pixel_values = jax.random.normal(
        k_pix, (B, cfg.vision_config.num_channels,
                cfg.vision_config.image_size, cfg.vision_config.image_size),
        dtype=jnp.float32)

    text_ids = jax.random.randint(k_ids, (B, num_text), 4, cfg.vocab_size, dtype=jnp.int32)
    image_tokens = jnp.full((B, num_patches), cfg.image_token_index, dtype=jnp.int32)
    input_ids = jnp.concatenate([image_tokens, text_ids], axis=1)       # (B, S)
    attention_mask = jnp.ones((B, S), dtype=jnp.int32)

    assert bool(jnp.all(attention_mask == 1)), "The input cannot be padded"

    fwd = jax.jit(paligemma_forward, static_argnums=(1,))
    out = fwd(params, cfg, input_ids, pixel_values, attention_mask)
    logits = jax.block_until_ready(out["logits"])
    assert logits.shape == (B, S, cfg.vocab_size)
    assert logits.dtype == jnp.float32
    print("KERNEL_OK")
</pallas_src>

<mosaic_0001>
module attributes {stable_mosaic.version = 11 : i64} {
  func.func @_vision_stack_kernel(%arg0: i32, %arg1: memref<1x4x192xf32, #tpu.memory_space<vmem>>, %arg2: memref<192x32xf32, #tpu.memory_space<vmem>>, %arg3: memref<1x32xf32, #tpu.memory_space<vmem>>, %arg4: memref<4x32xf32, #tpu.memory_space<vmem>>, %arg5: memref<2x1x32xf32, #tpu.memory_space<vmem>>, %arg6: memref<2x1x32xf32, #tpu.memory_space<vmem>>, %arg7: memref<2x32x96xf32, #tpu.memory_space<vmem>>, %arg8: memref<2x1x96xf32, #tpu.memory_space<vmem>>, %arg9: memref<2x32x32xf32, #tpu.memory_space<vmem>>, %arg10: memref<2x1x32xf32, #tpu.memory_space<vmem>>, %arg11: memref<2x1x32xf32, #tpu.memory_space<vmem>>, %arg12: memref<2x1x32xf32, #tpu.memory_space<vmem>>, %arg13: memref<2x32x64xf32, #tpu.memory_space<vmem>>, %arg14: memref<2x1x64xf32, #tpu.memory_space<vmem>>, %arg15: memref<2x64x32xf32, #tpu.memory_space<vmem>>, %arg16: memref<2x1x32xf32, #tpu.memory_space<vmem>>, %arg17: memref<1x32xf32, #tpu.memory_space<vmem>>, %arg18: memref<1x32xf32, #tpu.memory_space<vmem>>, %arg19: memref<32x32xf32, #tpu.memory_space<vmem>>, %arg20: memref<1x32xf32, #tpu.memory_space<vmem>>, %arg21: memref<1x4x32xf32, #tpu.memory_space<vmem>>) attributes {dimension_semantics = [#tpu.dimension_semantics<parallel>], iteration_bounds = array<i64: 2>, scalar_prefetch = 0 : i64, scratch_operands = 0 : i64, tpu.core_type = #tpu.core_type<tc>, window_params = [{transform_indices = @transform_0, window_bounds = array<i64: 1, 4, 192>}, {pipeline_mode = #tpu.pipeline_mode<synchronous>, transform_indices = @transform_1, window_bounds = array<i64: 192, 32>}, {pipeline_mode = #tpu.pipeline_mode<synchronous>, transform_indices = @transform_2, window_bounds = array<i64: 1, 32>}, {pipeline_mode = #tpu.pipeline_mode<synchronous>, transform_indices = @transform_3, window_bounds = array<i64: 4, 32>}, {pipeline_mode = #tpu.pipeline_mode<synchronous>, transform_indices = @transform_4, window_bounds = array<i64: 2, 1, 32>}, {pipeline_mode = #tpu.pipeline_mode<synchronous>, transform_indices = @transform_5, window_bounds = array<i64: 2, 1, 32>}, {pipeline_mode = #tpu.pipeline_mode<synchronous>, transform_indices = @transform_6, window_bounds = array<i64: 2, 32, 96>}, {pipeline_mode = #tpu.pipeline_mode<synchronous>, transform_indices = @transform_7, window_bounds = array<i64: 2, 1, 96>}, {pipeline_mode = #tpu.pipeline_mode<synchronous>, transform_indices = @transform_8, window_bounds = array<i64: 2, 32, 32>}, {pipeline_mode = #tpu.pipeline_mode<synchronous>, transform_indices = @transform_9, window_bounds = array<i64: 2, 1, 32>}, {pipeline_mode = #tpu.pipeline_mode<synchronous>, transform_indices = @transform_10, window_bounds = array<i64: 2, 1, 32>}, {pipeline_mode = #tpu.pipeline_mode<synchronous>, transform_indices = @transform_11, window_bounds = array<i64: 2, 1, 32>}, {pipeline_mode = #tpu.pipeline_mode<synchronous>, transform_indices = @transform_12, window_bounds = array<i64: 2, 32, 64>}, {pipeline_mode = #tpu.pipeline_mode<synchronous>, transform_indices = @transform_13, window_bounds = array<i64: 2, 1, 64>}, {pipeline_mode = #tpu.pipeline_mode<synchronous>, transform_indices = @transform_14, window_bounds = array<i64: 2, 64, 32>}, {pipeline_mode = #tpu.pipeline_mode<synchronous>, transform_indices = @transform_15, window_bounds = array<i64: 2, 1, 32>}, {pipeline_mode = #tpu.pipeline_mode<synchronous>, transform_indices = @transform_16, window_bounds = array<i64: 1, 32>}, {pipeline_mode = #tpu.pipeline_mode<synchronous>, transform_indices = @transform_17, window_bounds = array<i64: 1, 32>}, {pipeline_mode = #tpu.pipeline_mode<synchronous>, transform_indices = @transform_18, window_bounds = array<i64: 32, 32>}, {pipeline_mode = #tpu.pipeline_mode<synchronous>, transform_indices = @transform_19, window_bounds = array<i64: 1, 32>}, {transform_indices = @transform_20, window_bounds = array<i64: 1, 4, 32>}]} {
    %c0 = arith.constant 0 : index
    %c0_0 = arith.constant 0 : index
    %c0_1 = arith.constant 0 : index
    %0 = vector.load %arg1[%c0, %c0_0, %c0_1] : memref<1x4x192xf32, #tpu.memory_space<vmem>>, vector<1x4x192xf32>
    %1 = vector.shape_cast %0 : vector<1x4x192xf32> to vector<4x192xf32>
    %c0_2 = arith.constant 0 : index
    %c0_3 = arith.constant 0 : index
    %2 = vector.load %arg2[%c0_2, %c0_3] : memref<192x32xf32, #tpu.memory_space<vmem>>, vector<192x32xf32>
    %cst = arith.constant dense<0.000000e+00> : vector<4x32xf32>
    %3 = tpu.matmul %1, %2, %cst {dimension_numbers = #tpu.dot_dimension_numbers<[1], [0], [0], [1], [0, 0, 1, 1], [], []>} : vector<4x192xf32>, vector<192x32xf32>, vector<4x32xf32> -> vector<4x32xf32>
    %c0_4 = arith.constant 0 : index
    %c0_5 = arith.constant 0 : index
    %4 = vector.load %arg3[%c0_4, %c0_5] : memref<1x32xf32, #tpu.memory_space<vmem>>, vector<1x32xf32>
    %5 = vector.broadcast %4 : vector<1x32xf32> to vector<4x32xf32>
    %6 = arith.addf %3, %5 : vector<4x32xf32>
    %c0_6 = arith.constant 0 : index
    %c0_7 = arith.constant 0 : index
    %7 = vector.load %arg4[%c0_6, %c0_7] : memref<4x32xf32, #tpu.memory_space<vmem>>, vector<4x32xf32>
    %8 = arith.addf %6, %7 : vector<4x32xf32>
    %c0_8 = arith.constant 0 : index
    %c0_9 = arith.constant 0 : index
    %c0_10 = arith.constant 0 : index
    %9 = vector.load %arg5[%c0_8, %c0_9, %c0_10] : memref<2x1x32xf32, #tpu.memory_space<vmem>>, vector<1x1x32xf32>
    %10 = vector.shape_cast %9 : vector<1x1x32xf32> to vector<1x32xf32>
    %c0_11 = arith.constant 0 : index
    %c0_12 = arith.constant 0 : index
    %c0_13 = arith.constant 0 : index
    %11 = vector.load %arg6[%c0_11, %c0_12, %c0_13] : memref<2x1x32xf32, #tpu.memory_space<vmem>>, vector<1x1x32xf32>
    %12 = vector.shape_cast %11 : vector<1x1x32xf32> to vector<1x32xf32>
    %cst_14 = arith.constant dense<0.000000e+00> : vector<4xf32>
    %13 = vector.multi_reduction <add>, %8, %cst_14 [1] : vector<4x32xf32> to vector<4xf32>
    %14 = vector.shape_cast %13 : vector<4xf32> to vector<4x1xf32>
    %cst_15 = arith.constant 3.200000e+01 : f32
    %15 = vector.broadcast %cst_15 : f32 to vector<4x1xf32>
    %16 = arith.divf %14, %15 : vector<4x1xf32>
    %17 = vector.broadcast %16 : vector<4x1xf32> to vector<4x32xf32>
    %18 = arith.subf %8, %17 : vector<4x32xf32>
    %19 = vector.broadcast %16 : vector<4x1xf32> to vector<4x32xf32>
    %20 = arith.subf %8, %19 : vector<4x32xf32>
    %21 = arith.mulf %18, %20 : vector<4x32xf32>
    %cst_16 = arith.constant dense<0.000000e+00> : vector<4xf32>
    %22 = vector.multi_reduction <add>, %21, %cst_16 [1] : vector<4x32xf32> to vector<4xf32>
    %23 = vector.shape_cast %22 : vector<4xf32> to vector<4x1xf32>
    %cst_17 = arith.constant 3.200000e+01 : f32
    %24 = vector.broadcast %cst_17 : f32 to vector<4x1xf32>
    %25 = arith.divf %23, %24 : vector<4x1xf32>
    %26 = vector.broadcast %16 : vector<4x1xf32> to vector<4x32xf32>
    %27 = arith.subf %8, %26 : vector<4x32xf32>
    %cst_18 = arith.constant 9.99999997E-7 : f32
    %28 = vector.broadcast %cst_18 : f32 to vector<4x1xf32>
    %29 = arith.addf %25, %28 : vector<4x1xf32>
    %30 = math.rsqrt %29 : vector<4x1xf32>
    %31 = vector.broadcast %30 : vector<4x1xf32> to vector<4x32xf32>
    %32 = arith.mulf %27, %31 : vector<4x32xf32>
    %33 = vector.broadcast %10 : vector<1x32xf32> to vector<4x32xf32>
    %34 = arith.mulf %32, %33 : vector<4x32xf32>
    %35 = vector.broadcast %12 : vector<1x32xf32> to vector<4x32xf32>
    %36 = arith.addf %34, %35 : vector<4x32xf32>
    %c0_19 = arith.constant 0 : index
    %c0_20 = arith.constant 0 : index
    %c0_21 = arith.constant 0 : index
    %37 = vector.load %arg7[%c0_19, %c0_20, %c0_21] : memref<2x32x96xf32, #tpu.memory_space<vmem>>, vector<1x32x96xf32>
    %38 = vector.shape_cast %37 : vector<1x32x96xf32> to vector<32x96xf32>
    %cst_22 = arith.constant dense<0.000000e+00> : vector<4x96xf32>
    %39 = tpu.matmul %36, %38, %cst_22 {dimension_numbers = #tpu.dot_dimension_numbers<[1], [0], [0], [1], [0, 0, 1, 1], [], []>} : vector<4x32xf32>, vector<32x96xf32>, vector<4x96xf32> -> vector<4x96xf32>
    %c0_23 = arith.constant 0 : index
    %c0_24 = arith.constant 0 : index
    %c0_25 = arith.constant 0 : index
    %40 = vector.load %arg8[%c0_23, %c0_24, %c0_25] : memref<2x1x96xf32, #tpu.memory_space<vmem>>, vector<1x1x96xf32>
    %41 = vector.shape_cast %40 : vector<1x1x96xf32> to vector<1x96xf32>
    %42 = vector.broadcast %41 : vector<1x96xf32> to vector<4x96xf32>
    %43 = arith.addf %39, %42 : vector<4x96xf32>
    %44 = vector.extract_strided_slice %43 {offsets = [0, 0], sizes = [4, 8], strides = [1, 1]} : vector<4x96xf32> to vector<4x8xf32>
    %45 = vector.extract_strided_slice %43 {offsets = [0, 32], sizes = [4, 8], strides = [1, 1]} : vector<4x96xf32> to vector<4x8xf32>
    %46 = vector.extract_strided_slice %43 {offsets = [0, 64], sizes = [4, 8], strides = [1, 1]} : vector<4x96xf32> to vector<4x8xf32>
    %cst_26 = arith.constant dense<0.000000e+00> : vector<4x4xf32>
    %47 = tpu.matmul %44, %45, %cst_26 {dimension_numbers = #tpu.dot_dimension_numbers<[1], [1], [0], [0], [0, 0, 1, 0], [], []>} : vector<4x8xf32>, vector<4x8xf32>, vector<4x4xf32> -> vector<4x4xf32>
    %cst_27 = arith.constant dense<0xFF800000> : vector<4xf32>
    %48 = vector.multi_reduction <maximumf>, %47, %cst_27 [1] : vector<4x4xf32> to vector<4xf32>
    %49 = vector.shape_cast %48 : vector<4xf32> to vector<4x1xf32>
    %50 = vector.broadcast %49 : vector<4x1xf32> to vector<4x4xf32>
    %51 = arith.subf %47, %50 : vector<4x4xf32>
    %52 = math.exp %51 : vector<4x4xf32>
    %cst_28 = arith.constant dense<0.000000e+00> : vector<4xf32>
    %53 = vector.multi_reduction <add>, %52, %cst_28 [1] : vector<4x4xf32> to vector<4xf32>
    %54 = vector.shape_cast %53 : vector<4xf32> to vector<4x1xf32>
    %55 = vector.broadcast %54 : vector<4x1xf32> to vector<4x4xf32>
    %56 = arith.divf %52, %55 : vector<4x4xf32>
    %cst_29 = arith.constant dense<0.000000e+00> : vector<4x8xf32>
    %57 = tpu.matmul %56, %46, %cst_29 {dimension_numbers = #tpu.dot_dimension_numbers<[1], [0], [0], [1], [0, 0, 1, 1], [], []>} : vector<4x4xf32>, vector<4x8xf32>, vector<4x8xf32> -> vector<4x8xf32>
    %58 = vector.extract_strided_slice %43 {offsets = [0, 8], sizes = [4, 8], strides = [1, 1]} : vector<4x96xf32> to vector<4x8xf32>
    %59 = vector.extract_strided_slice %43 {offsets = [0, 40], sizes = [4, 8], strides = [1, 1]} : vector<4x96xf32> to vector<4x8xf32>
    %60 = vector.extract_strided_slice %43 {offsets = [0, 72], sizes = [4, 8], strides = [1, 1]} : vector<4x96xf32> to vector<4x8xf32>
    %cst_30 = arith.constant dense<0.000000e+00> : vector<4x4xf32>
    %61 = tpu.matmul %58, %59, %cst_30 {dimension_numbers = #tpu.dot_dimension_numbers<[1], [1], [0], [0], [0, 0, 1, 0], [], []>} : vector<4x8xf32>, vector<4x8xf32>, vector<4x4xf32> -> vector<4x4xf32>
    %cst_31 = arith.constant dense<0xFF800000> : vector<4xf32>
    %62 = vector.multi_reduction <maximumf>, %61, %cst_31 [1] : vector<4x4xf32> to vector<4xf32>
    %63 = vector.shape_cast %62 : vector<4xf32> to vector<4x1xf32>
    %64 = vector.broadcast %63 : vector<4x1xf32> to vector<4x4xf32>
    %65 = arith.subf %61, %64 : vector<4x4xf32>
    %66 = math.exp %65 : vector<4x4xf32>
    %cst_32 = arith.constant dense<0.000000e+00> : vector<4xf32>
    %67 = vector.multi_reduction <add>, %66, %cst_32 [1] : vector<4x4xf32> to vector<4xf32>
    %68 = vector.shape_cast %67 : vector<4xf32> to vector<4x1xf32>
    %69 = vector.broadcast %68 : vector<4x1xf32> to vector<4x4xf32>
    %70 = arith.divf %66, %69 : vector<4x4xf32>
    %cst_33 = arith.constant dense<0.000000e+00> : vector<4x8xf32>
    %71 = tpu.matmul %70, %60, %cst_33 {dimension_numbers = #tpu.dot_dimension_numbers<[1], [0], [0], [1], [0, 0, 1, 1], [], []>} : vector<4x4xf32>, vector<4x8xf32>, vector<4x8xf32> -> vector<4x8xf32>
    %72 = vector.extract_strided_slice %43 {offsets = [0, 16], sizes = [4, 8], strides = [1, 1]} : vector<4x96xf32> to vector<4x8xf32>
    %73 = vector.extract_strided_slice %43 {offsets = [0, 48], sizes = [4, 8], strides = [1, 1]} : vector<4x96xf32> to vector<4x8xf32>
    %74 = vector.extract_strided_slice %43 {offsets = [0, 80], sizes = [4, 8], strides = [1, 1]} : vector<4x96xf32> to vector<4x8xf32>
    %cst_34 = arith.constant dense<0.000000e+00> : vector<4x4xf32>
    %75 = tpu.matmul %72, %73, %cst_34 {dimension_numbers = #tpu.dot_dimension_numbers<[1], [1], [0], [0], [0, 0, 1, 0], [], []>} : vector<4x8xf32>, vector<4x8xf32>, vector<4x4xf32> -> vector<4x4xf32>
    %cst_35 = arith.constant dense<0xFF800000> : vector<4xf32>
    %76 = vector.multi_reduction <maximumf>, %75, %cst_35 [1] : vector<4x4xf32> to vector<4xf32>
    %77 = vector.shape_cast %76 : vector<4xf32> to vector<4x1xf32>
    %78 = vector.broadcast %77 : vector<4x1xf32> to vector<4x4xf32>
    %79 = arith.subf %75, %78 : vector<4x4xf32>
    %80 = math.exp %79 : vector<4x4xf32>
    %cst_36 = arith.constant dense<0.000000e+00> : vector<4xf32>
    %81 = vector.multi_reduction <add>, %80, %cst_36 [1] : vector<4x4xf32> to vector<4xf32>
    %82 = vector.shape_cast %81 : vector<4xf32> to vector<4x1xf32>
    %83 = vector.broadcast %82 : vector<4x1xf32> to vector<4x4xf32>
    %84 = arith.divf %80, %83 : vector<4x4xf32>
    %cst_37 = arith.constant dense<0.000000e+00> : vector<4x8xf32>
    %85 = tpu.matmul %84, %74, %cst_37 {dimension_numbers = #tpu.dot_dimension_numbers<[1], [0], [0], [1], [0, 0, 1, 1], [], []>} : vector<4x4xf32>, vector<4x8xf32>, vector<4x8xf32> -> vector<4x8xf32>
    %86 = vector.extract_strided_slice %43 {offsets = [0, 24], sizes = [4, 8], strides = [1, 1]} : vector<4x96xf32> to vector<4x8xf32>
    %87 = vector.extract_strided_slice %43 {offsets = [0, 56], sizes = [4, 8], strides = [1, 1]} : vector<4x96xf32> to vector<4x8xf32>
    %88 = vector.extract_strided_slice %43 {offsets = [0, 88], sizes = [4, 8], strides = [1, 1]} : vector<4x96xf32> to vector<4x8xf32>
    %cst_38 = arith.constant dense<0.000000e+00> : vector<4x4xf32>
    %89 = tpu.matmul %86, %87, %cst_38 {dimension_numbers = #tpu.dot_dimension_numbers<[1], [1], [0], [0], [0, 0, 1, 0], [], []>} : vector<4x8xf32>, vector<4x8xf32>, vector<4x4xf32> -> vector<4x4xf32>
    %cst_39 = arith.constant dense<0xFF800000> : vector<4xf32>
    %90 = vector.multi_reduction <maximumf>, %89, %cst_39 [1] : vector<4x4xf32> to vector<4xf32>
    %91 = vector.shape_cast %90 : vector<4xf32> to vector<4x1xf32>
    %92 = vector.broadcast %91 : vector<4x1xf32> to vector<4x4xf32>
    %93 = arith.subf %89, %92 : vector<4x4xf32>
    %94 = math.exp %93 : vector<4x4xf32>
    %cst_40 = arith.constant dense<0.000000e+00> : vector<4xf32>
    %95 = vector.multi_reduction <add>, %94, %cst_40 [1] : vector<4x4xf32> to vector<4xf32>
    %96 = vector.shape_cast %95 : vector<4xf32> to vector<4x1xf32>
    %97 = vector.broadcast %96 : vector<4x1xf32> to vector<4x4xf32>
    %98 = arith.divf %94, %97 : vector<4x4xf32>
    %cst_41 = arith.constant dense<0.000000e+00> : vector<4x8xf32>
    %99 = tpu.matmul %98, %88, %cst_41 {dimension_numbers = #tpu.dot_dimension_numbers<[1], [0], [0], [1], [0, 0, 1, 1], [], []>} : vector<4x4xf32>, vector<4x8xf32>, vector<4x8xf32> -> vector<4x8xf32>
    %100 = tpu.concatenate %57, %71, %85, %99 in 1 : vector<4x8xf32>, vector<4x8xf32>, vector<4x8xf32>, vector<4x8xf32> -> vector<4x32xf32>
    %c0_42 = arith.constant 0 : index
    %c0_43 = arith.constant 0 : index
    %c0_44 = arith.constant 0 : index
    %101 = vector.load %arg9[%c0_42, %c0_43, %c0_44] : memref<2x32x32xf32, #tpu.memory_space<vmem>>, vector<1x32x32xf32>
    %102 = vector.shape_cast %101 : vector<1x32x32xf32> to vector<32x32xf32>
    %cst_45 = arith.constant dense<0.000000e+00> : vector<4x32xf32>
    %103 = tpu.matmul %100, %102, %cst_45 {dimension_numbers = #tpu.dot_dimension_numbers<[1], [0], [0], [1], [0, 0, 1, 1], [], []>} : vector<4x32xf32>, vector<32x32xf32>, vector<4x32xf32> -> vector<4x32xf32>
    %c0_46 = arith.constant 0 : index
    %c0_47 = arith.constant 0 : index
    %c0_48 = arith.constant 0 : index
    %104 = vector.load %arg10[%c0_46, %c0_47, %c0_48] : memref<2x1x32xf32, #tpu.memory_space<vmem>>, vector<1x1x32xf32>
    %105 = vector.shape_cast %104 : vector<1x1x32xf32> to vector<1x32xf32>
    %106 = vector.broadcast %105 : vector<1x32xf32> to vector<4x32xf32>
    %107 = arith.addf %103, %106 : vector<4x32xf32>
    %108 = arith.addf %8, %107 : vector<4x32xf32>
    %c0_49 = arith.constant 0 : index
    %c0_50 = arith.constant 0 : index
    %c0_51 = arith.constant 0 : index
    %109 = vector.load %arg11[%c0_49, %c0_50, %c0_51] : memref<2x1x32xf32, #tpu.memory_space<vmem>>, vector<1x1x32xf32>
    %110 = vector.shape_cast %109 : vector<1x1x32xf32> to vector<1x32xf32>
    %c0_52 = arith.constant 0 : index
    %c0_53 = arith.constant 0 : index
    %c0_54 = arith.constant 0 : index
    %111 = vector.load %arg12[%c0_52, %c0_53, %c0_54] : memref<2x1x32xf32, #tpu.memory_space<vmem>>, vector<1x1x32xf32>
    %112 = vector.shape_cast %111 : vector<1x1x32xf32> to vector<1x32xf32>
    %cst_55 = arith.constant dense<0.000000e+00> : vector<4xf32>
    %113 = vector.multi_reduction <add>, %108, %cst_55 [1] : vector<4x32xf32> to vector<4xf32>
    %114 = vector.shape_cast %113 : vector<4xf32> to vector<4x1xf32>
    %cst_56 = arith.constant 3.200000e+01 : f32
    %115 = vector.broadcast %cst_56 : f32 to vector<4x1xf32>
    %116 = arith.divf %114, %115 : vector<4x1xf32>
    %117 = vector.broadcast %116 : vector<4x1xf32> to vector<4x32xf32>
    %118 = arith.subf %108, %117 : vector<4x32xf32>
    %119 = vector.broadcast %116 : vector<4x1xf32> to vector<4x32xf32>
    %120 = arith.subf %108, %119 : vector<4x32xf32>
    %121 = arith.mulf %118, %120 : vector<4x32xf32>
    %cst_57 = arith.constant dense<0.000000e+00> : vector<4xf32>
    %122 = vector.multi_reduction <add>, %121, %cst_57 [1] : vector<4x32xf32> to vector<4xf32>
    %123 = vector.shape_cast %122 : vector<4xf32> to vector<4x1xf32>
    %cst_58 = arith.constant 3.200000e+01 : f32
    %124 = vector.broadcast %cst_58 : f32 to vector<4x1xf32>
    %125 = arith.divf %123, %124 : vector<4x1xf32>
    %126 = vector.broadcast %116 : vector<4x1xf32> to vector<4x32xf32>
    %127 = arith.subf %108, %126 : vector<4x32xf32>
    %cst_59 = arith.constant 9.99999997E-7 : f32
    %128 = vector.broadcast %cst_59 : f32 to vector<4x1xf32>
    %129 = arith.addf %125, %128 : vector<4x1xf32>
    %130 = math.rsqrt %129 : vector<4x1xf32>
    %131 = vector.broadcast %130 : vector<4x1xf32> to vector<4x32xf32>
    %132 = arith.mulf %127, %131 : vector<4x32xf32>
    %133 = vector.broadcast %110 : vector<1x32xf32> to vector<4x32xf32>
    %134 = arith.mulf %132, %133 : vector<4x32xf32>
    %135 = vector.broadcast %112 : vector<1x32xf32> to vector<4x32xf32>
    %136 = arith.addf %134, %135 : vector<4x32xf32>
    %c0_60 = arith.constant 0 : index
    %c0_61 = arith.constant 0 : index
    %c0_62 = arith.constant 0 : index
    %137 = vector.load %arg13[%c0_60, %c0_61, %c0_62] : memref<2x32x64xf32, #tpu.memory_space<vmem>>, vector<1x32x64xf32>
    %138 = vector.shape_cast %137 : vector<1x32x64xf32> to vector<32x64xf32>
    %cst_63 = arith.constant dense<0.000000e+00> : vector<4x64xf32>
    %139 = tpu.matmul %136, %138, %cst_63 {dimension_numbers = #tpu.dot_dimension_numbers<[1], [0], [0], [1], [0, 0, 1, 1], [], []>} : vector<4x32xf32>, vector<32x64xf32>, vector<4x64xf32> -> vector<4x64xf32>
    %c0_64 = arith.constant 0 : index
    %c0_65 = arith.constant 0 : index
    %c0_66 = arith.constant 0 : index
    %140 = vector.load %arg14[%c0_64, %c0_65, %c0_66] : memref<2x1x64xf32, #tpu.memory_space<vmem>>, vector<1x1x64xf32>
    %141 = vector.shape_cast %140 : vector<1x1x64xf32> to vector<1x64xf32>
    %142 = vector.broadcast %141 : vector<1x64xf32> to vector<4x64xf32>
    %143 = arith.addf %139, %142 : vector<4x64xf32>
    %cst_67 = arith.constant 5.000000e-01 : f32
    %144 = vector.broadcast %cst_67 : f32 to vector<4x64xf32>
    %145 = arith.mulf %144, %143 : vector<4x64xf32>
    %cst_68 = arith.constant 4.471500e-02 : f32
    %146 = vector.broadcast %cst_68 : f32 to vector<4x64xf32>
    %147 = arith.mulf %146, %143 : vector<4x64xf32>
    %148 = arith.mulf %147, %143 : vector<4x64xf32>
    %149 = arith.mulf %148, %143 : vector<4x64xf32>
    %150 = arith.addf %143, %149 : vector<4x64xf32>
    %cst_69 = arith.constant 0.797884583 : f32
    %151 = vector.broadcast %cst_69 : f32 to vector<4x64xf32>
    %152 = arith.mulf %151, %150 : vector<4x64xf32>
    %153 = math.tanh %152 : vector<4x64xf32>
    %cst_70 = arith.constant 1.000000e+00 : f32
    %154 = vector.broadcast %cst_70 : f32 to vector<4x64xf32>
    %155 = arith.addf %154, %153 : vector<4x64xf32>
    %156 = arith.mulf %145, %155 : vector<4x64xf32>
    %c0_71 = arith.constant 0 : index
    %c0_72 = arith.constant 0 : index
    %c0_73 = arith.constant 0 : index
    %157 = vector.load %arg15[%c0_71, %c0_72, %c0_73] : memref<2x64x32xf32, #tpu.memory_space<vmem>>, vector<1x64x32xf32>
    %158 = vector.shape_cast %157 : vector<1x64x32xf32> to vector<64x32xf32>
    %cst_74 = arith.constant dense<0.000000e+00> : vector<4x32xf32>
    %159 = tpu.matmul %156, %158, %cst_74 {dimension_numbers = #tpu.dot_dimension_numbers<[1], [0], [0], [1], [0, 0, 1, 1], [], []>} : vector<4x64xf32>, vector<64x32xf32>, vector<4x32xf32> -> vector<4x32xf32>
    %160 = arith.addf %108, %159 : vector<4x32xf32>
    %c0_75 = arith.constant 0 : index
    %c0_76 = arith.constant 0 : index
    %c0_77 = arith.constant 0 : index
    %161 = vector.load %arg16[%c0_75, %c0_76, %c0_77] : memref<2x1x32xf32, #tpu.memory_space<vmem>>, vector<1x1x32xf32>
    %162 = vector.shape_cast %161 : vector<1x1x32xf32> to vector<1x32xf32>
    %163 = vector.broadcast %162 : vector<1x32xf32> to vector<4x32xf32>
    %164 = arith.addf %160, %163 : vector<4x32xf32>
    %c1 = arith.constant 1 : index
    %c0_78 = arith.constant 0 : index
    %c0_79 = arith.constant 0 : index
    %165 = vector.load %arg5[%c1, %c0_78, %c0_79] : memref<2x1x32xf32, #tpu.memory_space<vmem>>, vector<1x1x32xf32>
    %166 = vector.shape_cast %165 : vector<1x1x32xf32> to vector<1x32xf32>
    %c1_80 = arith.constant 1 : index
    %c0_81 = arith.constant 0 : index
    %c0_82 = arith.constant 0 : index
    %167 = vector.load %arg6[%c1_80, %c0_81, %c0_82] : memref<2x1x32xf32, #tpu.memory_space<vmem>>, vector<1x1x32xf32>
    %168 = vector.shape_cast %167 : vector<1x1x32xf32> to vector<1x32xf32>
    %cst_83 = arith.constant dense<0.000000e+00> : vector<4xf32>
    %169 = vector.multi_reduction <add>, %164, %cst_83 [1] : vector<4x32xf32> to vector<4xf32>
    %170 = vector.shape_cast %169 : vector<4xf32> to vector<4x1xf32>
    %cst_84 = arith.constant 3.200000e+01 : f32
    %171 = vector.broadcast %cst_84 : f32 to vector<4x1xf32>
    %172 = arith.divf %170, %171 : vector<4x1xf32>
    %173 = vector.broadcast %172 : vector<4x1xf32> to vector<4x32xf32>
    %174 = arith.subf %164, %173 : vector<4x32xf32>
    %175 = vector.broadcast %172 : vector<4x1xf32> to vector<4x32xf32>
    %176 = arith.subf %164, %175 : vector<4x32xf32>
    %177 = arith.mulf %174, %176 : vector<4x32xf32>
    %cst_85 = arith.constant dense<0.000000e+00> : vector<4xf32>
    %178 = vector.multi_reduction <add>, %177, %cst_85 [1] : vector<4x32xf32> to vector<4xf32>
    %179 = vector.shape_cast %178 : vector<4xf32> to vector<4x1xf32>
    %cst_86 = arith.constant 3.200000e+01 : f32
    %180 = vector.broadcast %cst_86 : f32 to vector<4x1xf32>
    %181 = arith.divf %179, %180 : vector<4x1xf32>
    %182 = vector.broadcast %172 : vector<4x1xf32> to vector<4x32xf32>
    %183 = arith.subf %164, %182 : vector<4x32xf32>
    %cst_87 = arith.constant 9.99999997E-7 : f32
    %184 = vector.broadcast %cst_87 : f32 to vector<4x1xf32>
    %185 = arith.addf %181, %184 : vector<4x1xf32>
    %186 = math.rsqrt %185 : vector<4x1xf32>
    %187 = vector.broadcast %186 : vector<4x1xf32> to vector<4x32xf32>
    %188 = arith.mulf %183, %187 : vector<4x32xf32>
    %189 = vector.broadcast %166 : vector<1x32xf32> to vector<4x32xf32>
    %190 = arith.mulf %188, %189 : vector<4x32xf32>
    %191 = vector.broadcast %168 : vector<1x32xf32> to vector<4x32xf32>
    %192 = arith.addf %190, %191 : vector<4x32xf32>
    %c1_88 = arith.constant 1 : index
    %c0_89 = arith.constant 0 : index
    %c0_90 = arith.constant 0 : index
    %193 = vector.load %arg7[%c1_88, %c0_89, %c0_90] : memref<2x32x96xf32, #tpu.memory_space<vmem>>, vector<1x32x96xf32>
    %194 = vector.shape_cast %193 : vector<1x32x96xf32> to vector<32x96xf32>
    %cst_91 = arith.constant dense<0.000000e+00> : vector<4x96xf32>
    %195 = tpu.matmul %192, %194, %cst_91 {dimension_numbers = #tpu.dot_dimension_numbers<[1], [0], [0], [1], [0, 0, 1, 1], [], []>} : vector<4x32xf32>, vector<32x96xf32>, vector<4x96xf32> -> vector<4x96xf32>
    %c1_92 = arith.constant 1 : index
    %c0_93 = arith.constant 0 : index
    %c0_94 = arith.constant 0 : index
    %196 = vector.load %arg8[%c1_92, %c0_93, %c0_94] : memref<2x1x96xf32, #tpu.memory_space<vmem>>, vector<1x1x96xf32>
    %197 = vector.shape_cast %196 : vector<1x1x96xf32> to vector<1x96xf32>
    %198 = vector.broadcast %197 : vector<1x96xf32> to vector<4x96xf32>
    %199 = arith.addf %195, %198 : vector<4x96xf32>
    %200 = vector.extract_strided_slice %199 {offsets = [0, 0], sizes = [4, 8], strides = [1, 1]} : vector<4x96xf32> to vector<4x8xf32>
    %201 = vector.extract_strided_slice %199 {offsets = [0, 32], sizes = [4, 8], strides = [1, 1]} : vector<4x96xf32> to vector<4x8xf32>
    %202 = vector.extract_strided_slice %199 {offsets = [0, 64], sizes = [4, 8], strides = [1, 1]} : vector<4x96xf32> to vector<4x8xf32>
    %cst_95 = arith.constant dense<0.000000e+00> : vector<4x4xf32>
    %203 = tpu.matmul %200, %201, %cst_95 {dimension_numbers = #tpu.dot_dimension_numbers<[1], [1], [0], [0], [0, 0, 1, 0], [], []>} : vector<4x8xf32>, vector<4x8xf32>, vector<4x4xf32> -> vector<4x4xf32>
    %cst_96 = arith.constant dense<0xFF800000> : vector<4xf32>
    %204 = vector.multi_reduction <maximumf>, %203, %cst_96 [1] : vector<4x4xf32> to vector<4xf32>
    %205 = vector.shape_cast %204 : vector<4xf32> to vector<4x1xf32>
    %206 = vector.broadcast %205 : vector<4x1xf32> to vector<4x4xf32>
    %207 = arith.subf %203, %206 : vector<4x4xf32>
    %208 = math.exp %207 : vector<4x4xf32>
    %cst_97 = arith.constant dense<0.000000e+00> : vector<4xf32>
    %209 = vector.multi_reduction <add>, %208, %cst_97 [1] : vector<4x4xf32> to vector<4xf32>
    %210 = vector.shape_cast %209 : vector<4xf32> to vector<4x1xf32>
    %211 = vector.broadcast %210 : vector<4x1xf32> to vector<4x4xf32>
    %212 = arith.divf %208, %211 : vector<4x4xf32>
    %cst_98 = arith.constant dense<0.000000e+00> : vector<4x8xf32>
    %213 = tpu.matmul %212, %202, %cst_98 {dimension_numbers = #tpu.dot_dimension_numbers<[1], [0], [0], [1], [0, 0, 1, 1], [], []>} : vector<4x4xf32>, vector<4x8xf32>, vector<4x8xf32> -> vector<4x8xf32>
    %214 = vector.extract_strided_slice %199 {offsets = [0, 8], sizes = [4, 8], strides = [1, 1]} : vector<4x96xf32> to vector<4x8xf32>
    %215 = vector.extract_strided_slice %199 {offsets = [0, 40], sizes = [4, 8], strides = [1, 1]} : vector<4x96xf32> to vector<4x8xf32>
    %216 = vector.extract_strided_slice %199 {offsets = [0, 72], sizes = [4, 8], strides = [1, 1]} : vector<4x96xf32> to vector<4x8xf32>
    %cst_99 = arith.constant dense<0.000000e+00> : vector<4x4xf32>
    %217 = tpu.matmul %214, %215, %cst_99 {dimension_numbers = #tpu.dot_dimension_numbers<[1], [1], [0], [0], [0, 0, 1, 0], [], []>} : vector<4x8xf32>, vector<4x8xf32>, vector<4x4xf32> -> vector<4x4xf32>
    %cst_100 = arith.constant dense<0xFF800000> : vector<4xf32>
    %218 = vector.multi_reduction <maximumf>, %217, %cst_100 [1] : vector<4x4xf32> to vector<4xf32>
    %219 = vector.shape_cast %218 : vector<4xf32> to vector<4x1xf32>
    %220 = vector.broadcast %219 : vector<4x1xf32> to vector<4x4xf32>
    %221 = arith.subf %217, %220 : vector<4x4xf32>
    %222 = math.exp %221 : vector<4x4xf32>
    %cst_101 = arith.constant dense<0.000000e+00> : vector<4xf32>
    %223 = vector.multi_reduction <add>, %222, %cst_101 [1] : vector<4x4xf32> to vector<4xf32>
    %224 = vector.shape_cast %223 : vector<4xf32> to vector<4x1xf32>
    %225 = vector.broadcast %224 : vector<4x1xf32> to vector<4x4xf32>
    %226 = arith.divf %222, %225 : vector<4x4xf32>
    %cst_102 = arith.constant dense<0.000000e+00> : vector<4x8xf32>
    %227 = tpu.matmul %226, %216, %cst_102 {dimension_numbers = #tpu.dot_dimension_numbers<[1], [0], [0], [1], [0, 0, 1, 1], [], []>} : vector<4x4xf32>, vector<4x8xf32>, vector<4x8xf32> -> vector<4x8xf32>
    %228 = vector.extract_strided_slice %199 {offsets = [0, 16], sizes = [4, 8], strides = [1, 1]} : vector<4x96xf32> to vector<4x8xf32>
    %229 = vector.extract_strided_slice %199 {offsets = [0, 48], sizes = [4, 8], strides = [1, 1]} : vector<4x96xf32> to vector<4x8xf32>
    %230 = vector.extract_strided_slice %199 {offsets = [0, 80], sizes = [4, 8], strides = [1, 1]} : vector<4x96xf32> to vector<4x8xf32>
    %cst_103 = arith.constant dense<0.000000e+00> : vector<4x4xf32>
    %231 = tpu.matmul %228, %229, %cst_103 {dimension_numbers = #tpu.dot_dimension_numbers<[1], [1], [0], [0], [0, 0, 1, 0], [], []>} : vector<4x8xf32>, vector<4x8xf32>, vector<4x4xf32> -> vector<4x4xf32>
    %cst_104 = arith.constant dense<0xFF800000> : vector<4xf32>
    %232 = vector.multi_reduction <maximumf>, %231, %cst_104 [1] : vector<4x4xf32> to vector<4xf32>
    %233 = vector.shape_cast %232 : vector<4xf32> to vector<4x1xf32>
    %234 = vector.broadcast %233 : vector<4x1xf32> to vector<4x4xf32>
    %235 = arith.subf %231, %234 : vector<4x4xf32>
    %236 = math.exp %235 : vector<4x4xf32>
    %cst_105 = arith.constant dense<0.000000e+00> : vector<4xf32>
    %237 = vector.multi_reduction <add>, %236, %cst_105 [1] : vector<4x4xf32> to vector<4xf32>
    %238 = vector.shape_cast %237 : vector<4xf32> to vector<4x1xf32>
    %239 = vector.broadcast %238 : vector<4x1xf32> to vector<4x4xf32>
    %240 = arith.divf %236, %239 : vector<4x4xf32>
    %cst_106 = arith.constant dense<0.000000e+00> : vector<4x8xf32>
    %241 = tpu.matmul %240, %230, %cst_106 {dimension_numbers = #tpu.dot_dimension_numbers<[1], [0], [0], [1], [0, 0, 1, 1], [], []>} : vector<4x4xf32>, vector<4x8xf32>, vector<4x8xf32> -> vector<4x8xf32>
    %242 = vector.extract_strided_slice %199 {offsets = [0, 24], sizes = [4, 8], strides = [1, 1]} : vector<4x96xf32> to vector<4x8xf32>
    %243 = vector.extract_strided_slice %199 {offsets = [0, 56], sizes = [4, 8], strides = [1, 1]} : vector<4x96xf32> to vector<4x8xf32>
    %244 = vector.extract_strided_slice %199 {offsets = [0, 88], sizes = [4, 8], strides = [1, 1]} : vector<4x96xf32> to vector<4x8xf32>
    %cst_107 = arith.constant dense<0.000000e+00> : vector<4x4xf32>
    %245 = tpu.matmul %242, %243, %cst_107 {dimension_numbers = #tpu.dot_dimension_numbers<[1], [1], [0], [0], [0, 0, 1, 0], [], []>} : vector<4x8xf32>, vector<4x8xf32>, vector<4x4xf32> -> vector<4x4xf32>
    %cst_108 = arith.constant dense<0xFF800000> : vector<4xf32>
    %246 = vector.multi_reduction <maximumf>, %245, %cst_108 [1] : vector<4x4xf32> to vector<4xf32>
    %247 = vector.shape_cast %246 : vector<4xf32> to vector<4x1xf32>
    %248 = vector.broadcast %247 : vector<4x1xf32> to vector<4x4xf32>
    %249 = arith.subf %245, %248 : vector<4x4xf32>
    %250 = math.exp %249 : vector<4x4xf32>
    %cst_109 = arith.constant dense<0.000000e+00> : vector<4xf32>
    %251 = vector.multi_reduction <add>, %250, %cst_109 [1] : vector<4x4xf32> to vector<4xf32>
    %252 = vector.shape_cast %251 : vector<4xf32> to vector<4x1xf32>
    %253 = vector.broadcast %252 : vector<4x1xf32> to vector<4x4xf32>
    %254 = arith.divf %250, %253 : vector<4x4xf32>
    %cst_110 = arith.constant dense<0.000000e+00> : vector<4x8xf32>
    %255 = tpu.matmul %254, %244, %cst_110 {dimension_numbers = #tpu.dot_dimension_numbers<[1], [0], [0], [1], [0, 0, 1, 1], [], []>} : vector<4x4xf32>, vector<4x8xf32>, vector<4x8xf32> -> vector<4x8xf32>
    %256 = tpu.concatenate %213, %227, %241, %255 in 1 : vector<4x8xf32>, vector<4x8xf32>, vector<4x8xf32>, vector<4x8xf32> -> vector<4x32xf32>
    %c1_111 = arith.constant 1 : index
    %c0_112 = arith.constant 0 : index
    %c0_113 = arith.constant 0 : index
    %257 = vector.load %arg9[%c1_111, %c0_112, %c0_113] : memref<2x32x32xf32, #tpu.memory_space<vmem>>, vector<1x32x32xf32>
    %258 = vector.shape_cast %257 : vector<1x32x32xf32> to vector<32x32xf32>
    %cst_114 = arith.constant dense<0.000000e+00> : vector<4x32xf32>
    %259 = tpu.matmul %256, %258, %cst_114 {dimension_numbers = #tpu.dot_dimension_numbers<[1], [0], [0], [1], [0, 0, 1, 1], [], []>} : vector<4x32xf32>, vector<32x32xf32>, vector<4x32xf32> -> vector<4x32xf32>
    %c1_115 = arith.constant 1 : index
    %c0_116 = arith.constant 0 : index
    %c0_117 = arith.constant 0 : index
    %260 = vector.load %arg10[%c1_115, %c0_116, %c0_117] : memref<2x1x32xf32, #tpu.memory_space<vmem>>, vector<1x1x32xf32>
    %261 = vector.shape_cast %260 : vector<1x1x32xf32> to vector<1x32xf32>
    %262 = vector.broadcast %261 : vector<1x32xf32> to vector<4x32xf32>
    %263 = arith.addf %259, %262 : vector<4x32xf32>
    %264 = arith.addf %164, %263 : vector<4x32xf32>
    %c1_118 = arith.constant 1 : index
    %c0_119 = arith.constant 0 : index
    %c0_120 = arith.constant 0 : index
    %265 = vector.load %arg11[%c1_118, %c0_119, %c0_120] : memref<2x1x32xf32, #tpu.memory_space<vmem>>, vector<1x1x32xf32>
    %266 = vector.shape_cast %265 : vector<1x1x32xf32> to vector<1x32xf32>
    %c1_121 = arith.constant 1 : index
    %c0_122 = arith.constant 0 : index
    %c0_123 = arith.constant 0 : index
    %267 = vector.load %arg12[%c1_121, %c0_122, %c0_123] : memref<2x1x32xf32, #tpu.memory_space<vmem>>, vector<1x1x32xf32>
    %268 = vector.shape_cast %267 : vector<1x1x32xf32> to vector<1x32xf32>
    %cst_124 = arith.constant dense<0.000000e+00> : vector<4xf32>
    %269 = vector.multi_reduction <add>, %264, %cst_124 [1] : vector<4x32xf32> to vector<4xf32>
    %270 = vector.shape_cast %269 : vector<4xf32> to vector<4x1xf32>
    %cst_125 = arith.constant 3.200000e+01 : f32
    %271 = vector.broadcast %cst_125 : f32 to vector<4x1xf32>
    %272 = arith.divf %270, %271 : vector<4x1xf32>
    %273 = vector.broadcast %272 : vector<4x1xf32> to vector<4x32xf32>
    %274 = arith.subf %264, %273 : vector<4x32xf32>
    %275 = vector.broadcast %272 : vector<4x1xf32> to vector<4x32xf32>
    %276 = arith.subf %264, %275 : vector<4x32xf32>
    %277 = arith.mulf %274, %276 : vector<4x32xf32>
    %cst_126 = arith.constant dense<0.000000e+00> : vector<4xf32>
    %278 = vector.multi_reduction <add>, %277, %cst_126 [1] : vector<4x32xf32> to vector<4xf32>
    %279 = vector.shape_cast %278 : vector<4xf32> to vector<4x1xf32>
    %cst_127 = arith.constant 3.200000e+01 : f32
    %280 = vector.broadcast %cst_127 : f32 to vector<4x1xf32>
    %281 = arith.divf %279, %280 : vector<4x1xf32>
    %282 = vector.broadcast %272 : vector<4x1xf32> to vector<4x32xf32>
    %283 = arith.subf %264, %282 : vector<4x32xf32>
    %cst_128 = arith.constant 9.99999997E-7 : f32
    %284 = vector.broadcast %cst_128 : f32 to vector<4x1xf32>
    %285 = arith.addf %281, %284 : vector<4x1xf32>
    %286 = math.rsqrt %285 : vector<4x1xf32>
    %287 = vector.broadcast %286 : vector<4x1xf32> to vector<4x32xf32>
    %288 = arith.mulf %283, %287 : vector<4x32xf32>
    %289 = vector.broadcast %266 : vector<1x32xf32> to vector<4x32xf32>
    %290 = arith.mulf %288, %289 : vector<4x32xf32>
    %291 = vector.broadcast %268 : vector<1x32xf32> to vector<4x32xf32>
    %292 = arith.addf %290, %291 : vector<4x32xf32>
    %c1_129 = arith.constant 1 : index
    %c0_130 = arith.constant 0 : index
    %c0_131 = arith.constant 0 : index
    %293 = vector.load %arg13[%c1_129, %c0_130, %c0_131] : memref<2x32x64xf32, #tpu.memory_space<vmem>>, vector<1x32x64xf32>
    %294 = vector.shape_cast %293 : vector<1x32x64xf32> to vector<32x64xf32>
    %cst_132 = arith.constant dense<0.000000e+00> : vector<4x64xf32>
    %295 = tpu.matmul %292, %294, %cst_132 {dimension_numbers = #tpu.dot_dimension_numbers<[1], [0], [0], [1], [0, 0, 1, 1], [], []>} : vector<4x32xf32>, vector<32x64xf32>, vector<4x64xf32> -> vector<4x64xf32>
    %c1_133 = arith.constant 1 : index
    %c0_134 = arith.constant 0 : index
    %c0_135 = arith.constant 0 : index
    %296 = vector.load %arg14[%c1_133, %c0_134, %c0_135] : memref<2x1x64xf32, #tpu.memory_space<vmem>>, vector<1x1x64xf32>
    %297 = vector.shape_cast %296 : vector<1x1x64xf32> to vector<1x64xf32>
    %298 = vector.broadcast %297 : vector<1x64xf32> to vector<4x64xf32>
    %299 = arith.addf %295, %298 : vector<4x64xf32>
    %cst_136 = arith.constant 5.000000e-01 : f32
    %300 = vector.broadcast %cst_136 : f32 to vector<4x64xf32>
    %301 = arith.mulf %300, %299 : vector<4x64xf32>
    %cst_137 = arith.constant 4.471500e-02 : f32
    %302 = vector.broadcast %cst_137 : f32 to vector<4x64xf32>
    %303 = arith.mulf %302, %299 : vector<4x64xf32>
    %304 = arith.mulf %303, %299 : vector<4x64xf32>
    %305 = arith.mulf %304, %299 : vector<4x64xf32>
    %306 = arith.addf %299, %305 : vector<4x64xf32>
    %cst_138 = arith.constant 0.797884583 : f32
    %307 = vector.broadcast %cst_138 : f32 to vector<4x64xf32>
    %308 = arith.mulf %307, %306 : vector<4x64xf32>
    %309 = math.tanh %308 : vector<4x64xf32>
    %cst_139 = arith.constant 1.000000e+00 : f32
    %310 = vector.broadcast %cst_139 : f32 to vector<4x64xf32>
    %311 = arith.addf %310, %309 : vector<4x64xf32>
    %312 = arith.mulf %301, %311 : vector<4x64xf32>
    %c1_140 = arith.constant 1 : index
    %c0_141 = arith.constant 0 : index
    %c0_142 = arith.constant 0 : index
    %313 = vector.load %arg15[%c1_140, %c0_141, %c0_142] : memref<2x64x32xf32, #tpu.memory_space<vmem>>, vector<1x64x32xf32>
    %314 = vector.shape_cast %313 : vector<1x64x32xf32> to vector<64x32xf32>
    %cst_143 = arith.constant dense<0.000000e+00> : vector<4x32xf32>
    %315 = tpu.matmul %312, %314, %cst_143 {dimension_numbers = #tpu.dot_dimension_numbers<[1], [0], [0], [1], [0, 0, 1, 1], [], []>} : vector<4x64xf32>, vector<64x32xf32>, vector<4x32xf32> -> vector<4x32xf32>
    %316 = arith.addf %264, %315 : vector<4x32xf32>
    %c1_144 = arith.constant 1 : index
    %c0_145 = arith.constant 0 : index
    %c0_146 = arith.constant 0 : index
    %317 = vector.load %arg16[%c1_144, %c0_145, %c0_146] : memref<2x1x32xf32, #tpu.memory_space<vmem>>, vector<1x1x32xf32>
    %318 = vector.shape_cast %317 : vector<1x1x32xf32> to vector<1x32xf32>
    %319 = vector.broadcast %318 : vector<1x32xf32> to vector<4x32xf32>
    %320 = arith.addf %316, %319 : vector<4x32xf32>
    %c0_147 = arith.constant 0 : index
    %c0_148 = arith.constant 0 : index
    %321 = vector.load %arg17[%c0_147, %c0_148] : memref<1x32xf32, #tpu.memory_space<vmem>>, vector<1x32xf32>
    %c0_149 = arith.constant 0 : index
    %c0_150 = arith.constant 0 : index
    %322 = vector.load %arg18[%c0_149, %c0_150] : memref<1x32xf32, #tpu.memory_space<vmem>>, vector<1x32xf32>
    %cst_151 = arith.constant dense<0.000000e+00> : vector<4xf32>
    %323 = vector.multi_reduction <add>, %320, %cst_151 [1] : vector<4x32xf32> to vector<4xf32>
    %324 = vector.shape_cast %323 : vector<4xf32> to vector<4x1xf32>
    %cst_152 = arith.constant 3.200000e+01 : f32
    %325 = vector.broadcast %cst_152 : f32 to vector<4x1xf32>
    %326 = arith.divf %324, %325 : vector<4x1xf32>
    %327 = vector.broadcast %326 : vector<4x1xf32> to vector<4x32xf32>
    %328 = arith.subf %320, %327 : vector<4x32xf32>
    %329 = vector.broadcast %326 : vector<4x1xf32> to vector<4x32xf32>
    %330 = arith.subf %320, %329 : vector<4x32xf32>
    %331 = arith.mulf %328, %330 : vector<4x32xf32>
    %cst_153 = arith.constant dense<0.000000e+00> : vector<4xf32>
    %332 = vector.multi_reduction <add>, %331, %cst_153 [1] : vector<4x32xf32> to vector<4xf32>
    %333 = vector.shape_cast %332 : vector<4xf32> to vector<4x1xf32>
    %cst_154 = arith.constant 3.200000e+01 : f32
    %334 = vector.broadcast %cst_154 : f32 to vector<4x1xf32>
    %335 = arith.divf %333, %334 : vector<4x1xf32>
    %336 = vector.broadcast %326 : vector<4x1xf32> to vector<4x32xf32>
    %337 = arith.subf %320, %336 : vector<4x32xf32>
    %cst_155 = arith.constant 9.99999997E-7 : f32
    %338 = vector.broadcast %cst_155 : f32 to vector<4x1xf32>
    %339 = arith.addf %335, %338 : vector<4x1xf32>
    %340 = math.rsqrt %339 : vector<4x1xf32>
    %341 = vector.broadcast %340 : vector<4x1xf32> to vector<4x32xf32>
    %342 = arith.mulf %337, %341 : vector<4x32xf32>
    %343 = vector.broadcast %321 : vector<1x32xf32> to vector<4x32xf32>
    %344 = arith.mulf %342, %343 : vector<4x32xf32>
    %345 = vector.broadcast %322 : vector<1x32xf32> to vector<4x32xf32>
    %346 = arith.addf %344, %345 : vector<4x32xf32>
    %c0_156 = arith.constant 0 : index
    %c0_157 = arith.constant 0 : index
    %347 = vector.load %arg19[%c0_156, %c0_157] : memref<32x32xf32, #tpu.memory_space<vmem>>, vector<32x32xf32>
    %cst_158 = arith.constant dense<0.000000e+00> : vector<4x32xf32>
    %348 = tpu.matmul %346, %347, %cst_158 {dimension_numbers = #tpu.dot_dimension_numbers<[1], [0], [0], [1], [0, 0, 1, 1], [], []>} : vector<4x32xf32>, vector<32x32xf32>, vector<4x32xf32> -> vector<4x32xf32>
    %c0_159 = arith.constant 0 : index
    %c0_160 = arith.constant 0 : index
    %349 = vector.load %arg20[%c0_159, %c0_160] : memref<1x32xf32, #tpu.memory_space<vmem>>, vector<1x32xf32>
    %350 = vector.broadcast %349 : vector<1x32xf32> to vector<4x32xf32>
    %351 = arith.addf %348, %350 : vector<4x32xf32>
    %cst_161 = arith.constant 0.176776692 : f32
    %352 = vector.broadcast %cst_161 : f32 to vector<4x32xf32>
    %353 = arith.mulf %351, %352 : vector<4x32xf32>
    %c0_162 = arith.constant 0 : index
    %c0_163 = arith.constant 0 : index
    %c0_164 = arith.constant 0 : index
    %354 = vector.load %arg21[%c0_162, %c0_163, %c0_164] : memref<1x4x32xf32, #tpu.memory_space<vmem>>, vector<1x4x32xf32>
    %355 = vector.shape_cast %354 : vector<1x4x32xf32> to vector<4x32xf32>
    %356 = vector.shape_cast %353 : vector<4x32xf32> to vector<1x4x32xf32>
    tpu.vector_store %arg21[%c0_162, %c0_163, %c0_164], %356 {strides = array<i32>} : memref<1x4x32xf32, #tpu.memory_space<vmem>>, vector<1x4x32xf32>,
    return
  }
  func.func @transform_0(%arg0: i32) -> (i32, i32, i32) {
    %c0_i32 = arith.constant 0 : i32
    %c0_i32_0 = arith.constant 0 : i32
    %c0_i32_1 = arith.constant 0 : i32
    return %arg0, %c0_i32, %c0_i32_0 : i32, i32, i32
  }
  func.func @transform_1(%arg0: i32) -> (i32, i32) {
    %c0_i32 = arith.constant 0 : i32
    %c0_i32_0 = arith.constant 0 : i32
    %c0_i32_1 = arith.constant 0 : i32
    return %c0_i32, %c0_i32_0 : i32, i32
  }
  func.func @transform_2(%arg0: i32) -> (i32, i32) {
    %c0_i32 = arith.constant 0 : i32
    %c0_i32_0 = arith.constant 0 : i32
    %c0_i32_1 = arith.constant 0 : i32
    return %c0_i32, %c0_i32_0 : i32, i32
  }
  func.func @transform_3(%arg0: i32) -> (i32, i32) {
    %c0_i32 = arith.constant 0 : i32
    %c0_i32_0 = arith.constant 0 : i32
    %c0_i32_1 = arith.constant 0 : i32
    return %c0_i32, %c0_i32_0 : i32, i32
  }
  func.func @transform_4(%arg0: i32) -> (i32, i32, i32) {
    %c0_i32 = arith.constant 0 : i32
    %c0_i32_0 = arith.constant 0 : i32
    %c0_i32_1 = arith.constant 0 : i32
    %c0_i32_2 = arith.constant 0 : i32
    return %c0_i32, %c0_i32_0, %c0_i32_1 : i32, i32, i32
  }
  func.func @transform_5(%arg0: i32) -> (i32, i32, i32) {
    %c0_i32 = arith.constant 0 : i32
    %c0_i32_0 = arith.constant 0 : i32
    %c0_i32_1 = arith.constant 0 : i32
    %c0_i32_2 = arith.constant 0 : i32
    return %c0_i32, %c0_i32_0, %c0_i32_1 : i32, i32, i32
  }
  func.func @transform_6(%arg0: i32) -> (i32, i32, i32) {
    %c0_i32 = arith.constant 0 : i32
    %c0_i32_0 = arith.constant 0 : i32
    %c0_i32_1 = arith.constant 0 : i32
    %c0_i32_2 = arith.constant 0 : i32
    return %c0_i32, %c0_i32_0, %c0_i32_1 : i32, i32, i32
  }
  func.func @transform_7(%arg0: i32) -> (i32, i32, i32) {
    %c0_i32 = arith.constant 0 : i32
    %c0_i32_0 = arith.constant 0 : i32
    %c0_i32_1 = arith.constant 0 : i32
    %c0_i32_2 = arith.constant 0 : i32
    return %c0_i32, %c0_i32_0, %c0_i32_1 : i32, i32, i32
  }
  func.func @transform_8(%arg0: i32) -> (i32, i32, i32) {
    %c0_i32 = arith.constant 0 : i32
    %c0_i32_0 = arith.constant 0 : i32
    %c0_i32_1 = arith.constant 0 : i32
    %c0_i32_2 = arith.constant 0 : i32
    return %c0_i32, %c0_i32_0, %c0_i32_1 : i32, i32, i32
  }
  func.func @transform_9(%arg0: i32) -> (i32, i32, i32) {
    %c0_i32 = arith.constant 0 : i32
    %c0_i32_0 = arith.constant 0 : i32
    %c0_i32_1 = arith.constant 0 : i32
    %c0_i32_2 = arith.constant 0 : i32
    return %c0_i32, %c0_i32_0, %c0_i32_1 : i32, i32, i32
  }
  func.func @transform_10(%arg0: i32) -> (i32, i32, i32) {
    %c0_i32 = arith.constant 0 : i32
    %c0_i32_0 = arith.constant 0 : i32
    %c0_i32_1 = arith.constant 0 : i32
    %c0_i32_2 = arith.constant 0 : i32
    return %c0_i32, %c0_i32_0, %c0_i32_1 : i32, i32, i32
  }
  func.func @transform_11(%arg0: i32) -> (i32, i32, i32) {
    %c0_i32 = arith.constant 0 : i32
    %c0_i32_0 = arith.constant 0 : i32
    %c0_i32_1 = arith.constant 0 : i32
    %c0_i32_2 = arith.constant 0 : i32
    return %c0_i32, %c0_i32_0, %c0_i32_1 : i32, i32, i32
  }
  func.func @transform_12(%arg0: i32) -> (i32, i32, i32) {
    %c0_i32 = arith.constant 0 : i32
    %c0_i32_0 = arith.constant 0 : i32
    %c0_i32_1 = arith.constant 0 : i32
    %c0_i32_2 = arith.constant 0 : i32
    return %c0_i32, %c0_i32_0, %c0_i32_1 : i32, i32, i32
  }
  func.func @transform_13(%arg0: i32) -> (i32, i32, i32) {
    %c0_i32 = arith.constant 0 : i32
    %c0_i32_0 = arith.constant 0 : i32
    %c0_i32_1 = arith.constant 0 : i32
    %c0_i32_2 = arith.constant 0 : i32
    return %c0_i32, %c0_i32_0, %c0_i32_1 : i32, i32, i32
  }
  func.func @transform_14(%arg0: i32) -> (i32, i32, i32) {
    %c0_i32 = arith.constant 0 : i32
    %c0_i32_0 = arith.constant 0 : i32
    %c0_i32_1 = arith.constant 0 : i32
    %c0_i32_2 = arith.constant 0 : i32
    return %c0_i32, %c0_i32_0, %c0_i32_1 : i32, i32, i32
  }
  func.func @transform_15(%arg0: i32) -> (i32, i32, i32) {
    %c0_i32 = arith.constant 0 : i32
    %c0_i32_0 = arith.constant 0 : i32
    %c0_i32_1 = arith.constant 0 : i32
    %c0_i32_2 = arith.constant 0 : i32
    return %c0_i32, %c0_i32_0, %c0_i32_1 : i32, i32, i32
  }
  func.func @transform_16(%arg0: i32) -> (i32, i32) {
    %c0_i32 = arith.constant 0 : i32
    %c0_i32_0 = arith.constant 0 : i32
    %c0_i32_1 = arith.constant 0 : i32
    return %c0_i32, %c0_i32_0 : i32, i32
  }
  func.func @transform_17(%arg0: i32) -> (i32, i32) {
    %c0_i32 = arith.constant 0 : i32
    %c0_i32_0 = arith.constant 0 : i32
    %c0_i32_1 = arith.constant 0 : i32
    return %c0_i32, %c0_i32_0 : i32, i32
  }
  func.func @transform_18(%arg0: i32) -> (i32, i32) {
    %c0_i32 = arith.constant 0 : i32
    %c0_i32_0 = arith.constant 0 : i32
    %c0_i32_1 = arith.constant 0 : i32
    return %c0_i32, %c0_i32_0 : i32, i32
  }
  func.func @transform_19(%arg0: i32) -> (i32, i32) {
    %c0_i32 = arith.constant 0 : i32
    %c0_i32_0 = arith.constant 0 : i32
    %c0_i32_1 = arith.constant 0 : i32
    return %c0_i32, %c0_i32_0 : i32, i32
  }
  func.func @transform_20(%arg0: i32) -> (i32, i32, i32) {
    %c0_i32 = arith.constant 0 : i32
    %c0_i32_0 = arith.constant 0 : i32
    %c0_i32_1 = arith.constant 0 : i32
    return %arg0, %c0_i32, %c0_i32_0 : i32, i32, i32
  }
}

module attributes {stable_mosaic.version = 11 : i64} {
  func.func @_gemma_stack_kernel(%arg0: i32, %arg1: memref<1x8x32xf32, #tpu.memory_space<vmem>>, %arg2: memref<1x8x16xf32, #tpu.memory_space<vmem>>, %arg3: memref<2x1x32xf32, #tpu.memory_space<vmem>>, %arg4: memref<2x32x64xf32, #tpu.memory_space<vmem>>, %arg5: memref<2x32x32xf32, #tpu.memory_space<vmem>>, %arg6: memref<2x1x32xf32, #tpu.memory_space<vmem>>, %arg7: memref<2x32x128xf32, #tpu.memory_space<vmem>>, %arg8: memref<2x64x32xf32, #tpu.memory_space<vmem>>, %arg9: memref<1x32xf32, #tpu.memory_space<vmem>>, %arg10: memref<32x128xf32, #tpu.memory_space<vmem>>, %arg11: memref<1x128xf32, #tpu.memory_space<vmem>>, %arg12: memref<1x8x128xf32, #tpu.memory_space<vmem>>) attributes {dimension_semantics = [#tpu.dimension_semantics<parallel>], iteration_bounds = array<i64: 2>, scalar_prefetch = 0 : i64, scratch_operands = 0 : i64, tpu.core_type = #tpu.core_type<tc>, window_params = [{transform_indices = @transform_0, window_bounds = array<i64: 1, 8, 32>}, {transform_indices = @transform_1, window_bounds = array<i64: 1, 8, 16>}, {pipeline_mode = #tpu.pipeline_mode<synchronous>, transform_indices = @transform_2, window_bounds = array<i64: 2, 1, 32>}, {pipeline_mode = #tpu.pipeline_mode<synchronous>, transform_indices = @transform_3, window_bounds = array<i64: 2, 32, 64>}, {pipeline_mode = #tpu.pipeline_mode<synchronous>, transform_indices = @transform_4, window_bounds = array<i64: 2, 32, 32>}, {pipeline_mode = #tpu.pipeline_mode<synchronous>, transform_indices = @transform_5, window_bounds = array<i64: 2, 1, 32>}, {pipeline_mode = #tpu.pipeline_mode<synchronous>, transform_indices = @transform_6, window_bounds = array<i64: 2, 32, 128>}, {pipeline_mode = #tpu.pipeline_mode<synchronous>, transform_indices = @transform_7, window_bounds = array<i64: 2, 64, 32>}, {pipeline_mode = #tpu.pipeline_mode<synchronous>, transform_indices = @transform_8, window_bounds = array<i64: 1, 32>}, {pipeline_mode = #tpu.pipeline_mode<synchronous>, transform_indices = @transform_9, window_bounds = array<i64: 32, 128>}, {pipeline_mode = #tpu.pipeline_mode<synchronous>, transform_indices = @transform_10, window_bounds = array<i64: 1, 128>}, {transform_indices = @transform_11, window_bounds = array<i64: 1, 8, 128>}]} {
    %c0 = arith.constant 0 : index
    %c0_0 = arith.constant 0 : index
    %c0_1 = arith.constant 0 : index
    %0 = vector.load %arg1[%c0, %c0_0, %c0_1] : memref<1x8x32xf32, #tpu.memory_space<vmem>>, vector<1x8x32xf32>
    %1 = vector.shape_cast %0 : vector<1x8x32xf32> to vector<8x32xf32>
    %cst = arith.constant 5.65685415 : f32
    %2 = vector.broadcast %cst : f32 to vector<8x32xf32>
    %3 = arith.mulf %1, %2 : vector<8x32xf32>
    %c0_2 = arith.constant 0 : index
    %c0_3 = arith.constant 0 : index
    %c0_4 = arith.constant 0 : index
    %4 = vector.load %arg2[%c0_2, %c0_3, %c0_4] : memref<1x8x16xf32, #tpu.memory_space<vmem>>, vector<1x8x16xf32>
    %5 = vector.shape_cast %4 : vector<1x8x16xf32> to vector<8x16xf32>
    %6 = vector.extract_strided_slice %5 {offsets = [0, 0], sizes = [8, 8], strides = [1, 1]} : vector<8x16xf32> to vector<8x8xf32>
    %7 = vector.extract_strided_slice %5 {offsets = [0, 8], sizes = [8, 8], strides = [1, 1]} : vector<8x16xf32> to vector<8x8xf32>
    %c0_5 = arith.constant 0 : index
    %c0_6 = arith.constant 0 : index
    %c0_7 = arith.constant 0 : index
    %8 = vector.load %arg3[%c0_5, %c0_6, %c0_7] : memref<2x1x32xf32, #tpu.memory_space<vmem>>, vector<1x1x32xf32>
    %9 = vector.shape_cast %8 : vector<1x1x32xf32> to vector<1x32xf32>
    %10 = arith.mulf %3, %3 : vector<8x32xf32>
    %cst_8 = arith.constant dense<0.000000e+00> : vector<8xf32>
    %11 = vector.multi_reduction <add>, %10, %cst_8 [1] : vector<8x32xf32> to vector<8xf32>
    %12 = vector.shape_cast %11 : vector<8xf32> to vector<8x1xf32>
    %cst_9 = arith.constant 3.200000e+01 : f32
    %13 = vector.broadcast %cst_9 : f32 to vector<8x1xf32>
    %14 = arith.divf %12, %13 : vector<8x1xf32>
    %cst_10 = arith.constant 9.99999997E-7 : f32
    %15 = vector.broadcast %cst_10 : f32 to vector<8x1xf32>
    %16 = arith.addf %14, %15 : vector<8x1xf32>
    %17 = math.rsqrt %16 : vector<8x1xf32>
    %18 = vector.broadcast %17 : vector<8x1xf32> to vector<8x32xf32>
    %19 = arith.mulf %3, %18 : vector<8x32xf32>
    %cst_11 = arith.constant 1.000000e+00 : f32
    %20 = vector.broadcast %cst_11 : f32 to vector<1x32xf32>
    %21 = arith.addf %20, %9 : vector<1x32xf32>
    %22 = vector.broadcast %21 : vector<1x32xf32> to vector<8x32xf32>
    %23 = arith.mulf %19, %22 : vector<8x32xf32>
    %c0_12 = arith.constant 0 : index
    %c0_13 = arith.constant 0 : index
    %c0_14 = arith.constant 0 : index
    %24 = vector.load %arg4[%c0_12, %c0_13, %c0_14] : memref<2x32x64xf32, #tpu.memory_space<vmem>>, vector<1x32x64xf32>
    %25 = vector.shape_cast %24 : vector<1x32x64xf32> to vector<32x64xf32>
    %cst_15 = arith.constant dense<0.000000e+00> : vector<8x64xf32>
    %26 = tpu.matmul %23, %25, %cst_15 {dimension_numbers = #tpu.dot_dimension_numbers<[1], [0], [0], [1], [0, 0, 1, 1], [], []>} : vector<8x32xf32>, vector<32x64xf32>, vector<8x64xf32> -> vector<8x64xf32>
    %27 = vector.extract_strided_slice %26 {offsets = [0, 32], sizes = [8, 8], strides = [1, 1]} : vector<8x64xf32> to vector<8x8xf32>
    %28 = vector.extract_strided_slice %27 {offsets = [0, 0], sizes = [8, 4], strides = [1, 1]} : vector<8x8xf32> to vector<8x4xf32>
    %29 = arith.mulf %27, %6 : vector<8x8xf32>
    %30 = tpu.concatenate %28, %28 in 1 : vector<8x4xf32>, vector<8x4xf32> -> vector<8x8xf32>
    %31 = arith.mulf %30, %7 : vector<8x8xf32>
    %32 = arith.addf %29, %31 : vector<8x8xf32>
    %33 = vector.extract_strided_slice %26 {offsets = [0, 40], sizes = [8, 8], strides = [1, 1]} : vector<8x64xf32> to vector<8x8xf32>
    %34 = vector.extract_strided_slice %33 {offsets = [0, 0], sizes = [8, 4], strides = [1, 1]} : vector<8x8xf32> to vector<8x4xf32>
    %35 = arith.mulf %33, %6 : vector<8x8xf32>
    %36 = tpu.concatenate %34, %34 in 1 : vector<8x4xf32>, vector<8x4xf32> -> vector<8x8xf32>
    %37 = arith.mulf %36, %7 : vector<8x8xf32>
    %38 = arith.addf %35, %37 : vector<8x8xf32>
    %39 = vector.extract_strided_slice %26 {offsets = [0, 48], sizes = [8, 8], strides = [1, 1]} : vector<8x64xf32> to vector<8x8xf32>
    %40 = vector.extract_strided_slice %26 {offsets = [0, 56], sizes = [8, 8], strides = [1, 1]} : vector<8x64xf32> to vector<8x8xf32>
    %41 = vector.extract_strided_slice %26 {offsets = [0, 0], sizes = [8, 8], strides = [1, 1]} : vector<8x64xf32> to vector<8x8xf32>
    %42 = vector.extract_strided_slice %41 {offsets = [0, 0], sizes = [8, 4], strides = [1, 1]} : vector<8x8xf32> to vector<8x4xf32>
    %43 = arith.mulf %41, %6 : vector<8x8xf32>
    %44 = tpu.concatenate %42, %42 in 1 : vector<8x4xf32>, vector<8x4xf32> -> vector<8x8xf32>
    %45 = arith.mulf %44, %7 : vector<8x8xf32>
    %46 = arith.addf %43, %45 : vector<8x8xf32>
    %cst_16 = arith.constant dense<0.000000e+00> : vector<8x8xf32>
    %47 = tpu.matmul %46, %32, %cst_16 {dimension_numbers = #tpu.dot_dimension_numbers<[1], [1], [0], [0], [0, 0, 1, 0], [], []>} : vector<8x8xf32>, vector<8x8xf32>, vector<8x8xf32> -> vector<8x8xf32>
    %cst_17 = arith.constant dense<0xFF800000> : vector<8xf32>
    %48 = vector.multi_reduction <maximumf>, %47, %cst_17 [1] : vector<8x8xf32> to vector<8xf32>
    %49 = vector.shape_cast %48 : vector<8xf32> to vector<8x1xf32>
    %50 = vector.broadcast %49 : vector<8x1xf32> to vector<8x8xf32>
    %51 = arith.subf %47, %50 : vector<8x8xf32>
    %52 = math.exp %51 : vector<8x8xf32>
    %cst_18 = arith.constant dense<0.000000e+00> : vector<8xf32>
    %53 = vector.multi_reduction <add>, %52, %cst_18 [1] : vector<8x8xf32> to vector<8xf32>
    %54 = vector.shape_cast %53 : vector<8xf32> to vector<8x1xf32>
    %55 = vector.broadcast %54 : vector<8x1xf32> to vector<8x8xf32>
    %56 = arith.divf %52, %55 : vector<8x8xf32>
    %cst_19 = arith.constant dense<0.000000e+00> : vector<8x8xf32>
    %57 = tpu.matmul %56, %39, %cst_19 {dimension_numbers = #tpu.dot_dimension_numbers<[1], [0], [0], [1], [0, 0, 1, 1], [], []>} : vector<8x8xf32>, vector<8x8xf32>, vector<8x8xf32> -> vector<8x8xf32>
    %58 = vector.extract_strided_slice %26 {offsets = [0, 8], sizes = [8, 8], strides = [1, 1]} : vector<8x64xf32> to vector<8x8xf32>
    %59 = vector.extract_strided_slice %58 {offsets = [0, 0], sizes = [8, 4], strides = [1, 1]} : vector<8x8xf32> to vector<8x4xf32>
    %60 = arith.mulf %58, %6 : vector<8x8xf32>
    %61 = tpu.concatenate %59, %59 in 1 : vector<8x4xf32>, vector<8x4xf32> -> vector<8x8xf32>
    %62 = arith.mulf %61, %7 : vector<8x8xf32>
    %63 = arith.addf %60, %62 : vector<8x8xf32>
    %cst_20 = arith.constant dense<0.000000e+00> : vector<8x8xf32>
    %64 = tpu.matmul %63, %32, %cst_20 {dimension_numbers = #tpu.dot_dimension_numbers<[1], [1], [0], [0], [0, 0, 1, 0], [], []>} : vector<8x8xf32>, vector<8x8xf32>, vector<8x8xf32> -> vector<8x8xf32>
    %cst_21 = arith.constant dense<0xFF800000> : vector<8xf32>
    %65 = vector.multi_reduction <maximumf>, %64, %cst_21 [1] : vector<8x8xf32> to vector<8xf32>
    %66 = vector.shape_cast %65 : vector<8xf32> to vector<8x1xf32>
    %67 = vector.broadcast %66 : vector<8x1xf32> to vector<8x8xf32>
    %68 = arith.subf %64, %67 : vector<8x8xf32>
    %69 = math.exp %68 : vector<8x8xf32>
    %cst_22 = arith.constant dense<0.000000e+00> : vector<8xf32>
    %70 = vector.multi_reduction <add>, %69, %cst_22 [1] : vector<8x8xf32> to vector<8xf32>
    %71 = vector.shape_cast %70 : vector<8xf32> to vector<8x1xf32>
    %72 = vector.broadcast %71 : vector<8x1xf32> to vector<8x8xf32>
    %73 = arith.divf %69, %72 : vector<8x8xf32>
    %cst_23 = arith.constant dense<0.000000e+00> : vector<8x8xf32>
    %74 = tpu.matmul %73, %39, %cst_23 {dimension_numbers = #tpu.dot_dimension_numbers<[1], [0], [0], [1], [0, 0, 1, 1], [], []>} : vector<8x8xf32>, vector<8x8xf32>, vector<8x8xf32> -> vector<8x8xf32>
    %75 = vector.extract_strided_slice %26 {offsets = [0, 16], sizes = [8, 8], strides = [1, 1]} : vector<8x64xf32> to vector<8x8xf32>
    %76 = vector.extract_strided_slice %75 {offsets = [0, 0], sizes = [8, 4], strides = [1, 1]} : vector<8x8xf32> to vector<8x4xf32>
    %77 = arith.mulf %75, %6 : vector<8x8xf32>
    %78 = tpu.concatenate %76, %76 in 1 : vector<8x4xf32>, vector<8x4xf32> -> vector<8x8xf32>
    %79 = arith.mulf %78, %7 : vector<8x8xf32>
    %80 = arith.addf %77, %79 : vector<8x8xf32>
    %cst_24 = arith.constant dense<0.000000e+00> : vector<8x8xf32>
    %81 = tpu.matmul %80, %38, %cst_24 {dimension_numbers = #tpu.dot_dimension_numbers<[1], [1], [0], [0], [0, 0, 1, 0], [], []>} : vector<8x8xf32>, vector<8x8xf32>, vector<8x8xf32> -> vector<8x8xf32>
    %cst_25 = arith.constant dense<0xFF800000> : vector<8xf32>
    %82 = vector.multi_reduction <maximumf>, %81, %cst_25 [1] : vector<8x8xf32> to vector<8xf32>
    %83 = vector.shape_cast %82 : vector<8xf32> to vector<8x1xf32>
    %84 = vector.broadcast %83 : vector<8x1xf32> to vector<8x8xf32>
    %85 = arith.subf %81, %84 : vector<8x8xf32>
    %86 = math.exp %85 : vector<8x8xf32>
    %cst_26 = arith.constant dense<0.000000e+00> : vector<8xf32>
    %87 = vector.multi_reduction <add>, %86, %cst_26 [1] : vector<8x8xf32> to vector<8xf32>
    %88 = vector.shape_cast %87 : vector<8xf32> to vector<8x1xf32>
    %89 = vector.broadcast %88 : vector<8x1xf32> to vector<8x8xf32>
    %90 = arith.divf %86, %89 : vector<8x8xf32>
    %cst_27 = arith.constant dense<0.000000e+00> : vector<8x8xf32>
    %91 = tpu.matmul %90, %40, %cst_27 {dimension_numbers = #tpu.dot_dimension_numbers<[1], [0], [0], [1], [0, 0, 1, 1], [], []>} : vector<8x8xf32>, vector<8x8xf32>, vector<8x8xf32> -> vector<8x8xf32>
    %92 = vector.extract_strided_slice %26 {offsets = [0, 24], sizes = [8, 8], strides = [1, 1]} : vector<8x64xf32> to vector<8x8xf32>
    %93 = vector.extract_strided_slice %92 {offsets = [0, 0], sizes = [8, 4], strides = [1, 1]} : vector<8x8xf32> to vector<8x4xf32>
    %94 = arith.mulf %92, %6 : vector<8x8xf32>
    %95 = tpu.concatenate %93, %93 in 1 : vector<8x4xf32>, vector<8x4xf32> -> vector<8x8xf32>
    %96 = arith.mulf %95, %7 : vector<8x8xf32>
    %97 = arith.addf %94, %96 : vector<8x8xf32>
    %cst_28 = arith.constant dense<0.000000e+00> : vector<8x8xf32>
    %98 = tpu.matmul %97, %38, %cst_28 {dimension_numbers = #tpu.dot_dimension_numbers<[1], [1], [0], [0], [0, 0, 1, 0], [], []>} : vector<8x8xf32>, vector<8x8xf32>, vector<8x8xf32> -> vector<8x8xf32>
    %cst_29 = arith.constant dense<0xFF800000> : vector<8xf32>
    %99 = vector.multi_reduction <maximumf>, %98, %cst_29 [1] : vector<8x8xf32> to vector<8xf32>
    %100 = vector.shape_cast %99 : vector<8xf32> to vector<8x1xf32>
    %101 = vector.broadcast %100 : vector<8x1xf32> to vector<8x8xf32>
    %102 = arith.subf %98, %101 : vector<8x8xf32>
    %103 = math.exp %102 : vector<8x8xf32>
    %cst_30 = arith.constant dense<0.000000e+00> : vector<8xf32>
    %104 = vector.multi_reduction <add>, %103, %cst_30 [1] : vector<8x8xf32> to vector<8xf32>
    %105 = vector.shape_cast %104 : vector<8xf32> to vector<8x1xf32>
    %106 = vector.broadcast %105 : vector<8x1xf32> to vector<8x8xf32>
    %107 = arith.divf %103, %106 : vector<8x8xf32>
    %cst_31 = arith.constant dense<0.000000e+00> : vector<8x8xf32>
    %108 = tpu.matmul %107, %40, %cst_31 {dimension_numbers = #tpu.dot_dimension_numbers<[1], [0], [0], [1], [0, 0, 1, 1], [], []>} : vector<8x8xf32>, vector<8x8xf32>, vector<8x8xf32> -> vector<8x8xf32>
    %109 = tpu.concatenate %57, %74, %91, %108 in 1 : vector<8x8xf32>, vector<8x8xf32>, vector<8x8xf32>, vector<8x8xf32> -> vector<8x32xf32>
    %c0_32 = arith.constant 0 : index
    %c0_33 = arith.constant 0 : index
    %c0_34 = arith.constant 0 : index
    %110 = vector.load %arg5[%c0_32, %c0_33, %c0_34] : memref<2x32x32xf32, #tpu.memory_space<vmem>>, vector<1x32x32xf32>
    %111 = vector.shape_cast %110 : vector<1x32x32xf32> to vector<32x32xf32>
    %cst_35 = arith.constant dense<0.000000e+00> : vector<8x32xf32>
    %112 = tpu.matmul %109, %111, %cst_35 {dimension_numbers = #tpu.dot_dimension_numbers<[1], [0], [0], [1], [0, 0, 1, 1], [], []>} : vector<8x32xf32>, vector<32x32xf32>, vector<8x32xf32> -> vector<8x32xf32>
    %113 = arith.addf %3, %112 : vector<8x32xf32>
    %c0_36 = arith.constant 0 : index
    %c0_37 = arith.constant 0 : index
    %c0_38 = arith.constant 0 : index
    %114 = vector.load %arg6[%c0_36, %c0_37, %c0_38] : memref<2x1x32xf32, #tpu.memory_space<vmem>>, vector<1x1x32xf32>
    %115 = vector.shape_cast %114 : vector<1x1x32xf32> to vector<1x32xf32>
    %116 = arith.mulf %113, %113 : vector<8x32xf32>
    %cst_39 = arith.constant dense<0.000000e+00> : vector<8xf32>
    %117 = vector.multi_reduction <add>, %116, %cst_39 [1] : vector<8x32xf32> to vector<8xf32>
    %118 = vector.shape_cast %117 : vector<8xf32> to vector<8x1xf32>
    %cst_40 = arith.constant 3.200000e+01 : f32
    %119 = vector.broadcast %cst_40 : f32 to vector<8x1xf32>
    %120 = arith.divf %118, %119 : vector<8x1xf32>
    %cst_41 = arith.constant 9.99999997E-7 : f32
    %121 = vector.broadcast %cst_41 : f32 to vector<8x1xf32>
    %122 = arith.addf %120, %121 : vector<8x1xf32>
    %123 = math.rsqrt %122 : vector<8x1xf32>
    %124 = vector.broadcast %123 : vector<8x1xf32> to vector<8x32xf32>
    %125 = arith.mulf %113, %124 : vector<8x32xf32>
    %cst_42 = arith.constant 1.000000e+00 : f32
    %126 = vector.broadcast %cst_42 : f32 to vector<1x32xf32>
    %127 = arith.addf %126, %115 : vector<1x32xf32>
    %128 = vector.broadcast %127 : vector<1x32xf32> to vector<8x32xf32>
    %129 = arith.mulf %125, %128 : vector<8x32xf32>
    %c0_43 = arith.constant 0 : index
    %c0_44 = arith.constant 0 : index
    %c0_45 = arith.constant 0 : index
    %130 = vector.load %arg7[%c0_43, %c0_44, %c0_45] : memref<2x32x128xf32, #tpu.memory_space<vmem>>, vector<1x32x128xf32>
    %131 = vector.shape_cast %130 : vector<1x32x128xf32> to vector<32x128xf32>
    %cst_46 = arith.constant dense<0.000000e+00> : vector<8x128xf32>
    %132 = tpu.matmul %129, %131, %cst_46 {dimension_numbers = #tpu.dot_dimension_numbers<[1], [0], [0], [1], [0, 0, 1, 1], [], []>} : vector<8x32xf32>, vector<32x128xf32>, vector<8x128xf32> -> vector<8x128xf32>
    %133 = vector.extract_strided_slice %132 {offsets = [0, 0], sizes = [8, 64], strides = [1, 1]} : vector<8x128xf32> to vector<8x64xf32>
    %cst_47 = arith.constant 5.000000e-01 : f32
    %134 = vector.broadcast %cst_47 : f32 to vector<8x64xf32>
    %135 = arith.mulf %134, %133 : vector<8x64xf32>
    %cst_48 = arith.constant 4.471500e-02 : f32
    %136 = vector.broadcast %cst_48 : f32 to vector<8x64xf32>
    %137 = arith.mulf %136, %133 : vector<8x64xf32>
    %138 = arith.mulf %137, %133 : vector<8x64xf32>
    %139 = arith.mulf %138, %133 : vector<8x64xf32>
    %140 = arith.addf %133, %139 : vector<8x64xf32>
    %cst_49 = arith.constant 0.797884583 : f32
    %141 = vector.broadcast %cst_49 : f32 to vector<8x64xf32>
    %142 = arith.mulf %141, %140 : vector<8x64xf32>
    %143 = math.tanh %142 : vector<8x64xf32>
    %cst_50 = arith.constant 1.000000e+00 : f32
    %144 = vector.broadcast %cst_50 : f32 to vector<8x64xf32>
    %145 = arith.addf %144, %143 : vector<8x64xf32>
    %146 = arith.mulf %135, %145 : vector<8x64xf32>
    %147 = vector.extract_strided_slice %132 {offsets = [0, 64], sizes = [8, 64], strides = [1, 1]} : vector<8x128xf32> to vector<8x64xf32>
    %148 = arith.mulf %146, %147 : vector<8x64xf32>
    %c0_51 = arith.constant 0 : index
    %c0_52 = arith.constant 0 : index
    %c0_53 = arith.constant 0 : index
    %149 = vector.load %arg8[%c0_51, %c0_52, %c0_53] : memref<2x64x32xf32, #tpu.memory_space<vmem>>, vector<1x64x32xf32>
    %150 = vector.shape_cast %149 : vector<1x64x32xf32> to vector<64x32xf32>
    %cst_54 = arith.constant dense<0.000000e+00> : vector<8x32xf32>
    %151 = tpu.matmul %148, %150, %cst_54 {dimension_numbers = #tpu.dot_dimension_numbers<[1], [0], [0], [1], [0, 0, 1, 1], [], []>} : vector<8x64xf32>, vector<64x32xf32>, vector<8x32xf32> -> vector<8x32xf32>
    %152 = arith.addf %113, %151 : vector<8x32xf32>
    %c1 = arith.constant 1 : index
    %c0_55 = arith.constant 0 : index
    %c0_56 = arith.constant 0 : index
    %153 = vector.load %arg3[%c1, %c0_55, %c0_56] : memref<2x1x32xf32, #tpu.memory_space<vmem>>, vector<1x1x32xf32>
    %154 = vector.shape_cast %153 : vector<1x1x32xf32> to vector<1x32xf32>
    %155 = arith.mulf %152, %152 : vector<8x32xf32>
    %cst_57 = arith.constant dense<0.000000e+00> : vector<8xf32>
    %156 = vector.multi_reduction <add>, %155, %cst_57 [1] : vector<8x32xf32> to vector<8xf32>
    %157 = vector.shape_cast %156 : vector<8xf32> to vector<8x1xf32>
    %cst_58 = arith.constant 3.200000e+01 : f32
    %158 = vector.broadcast %cst_58 : f32 to vector<8x1xf32>
    %159 = arith.divf %157, %158 : vector<8x1xf32>
    %cst_59 = arith.constant 9.99999997E-7 : f32
    %160 = vector.broadcast %cst_59 : f32 to vector<8x1xf32>
    %161 = arith.addf %159, %160 : vector<8x1xf32>
    %162 = math.rsqrt %161 : vector<8x1xf32>
    %163 = vector.broadcast %162 : vector<8x1xf32> to vector<8x32xf32>
    %164 = arith.mulf %152, %163 : vector<8x32xf32>
    %cst_60 = arith.constant 1.000000e+00 : f32
    %165 = vector.broadcast %cst_60 : f32 to vector<1x32xf32>
    %166 = arith.addf %165, %154 : vector<1x32xf32>
    %167 = vector.broadcast %166 : vector<1x32xf32> to vector<8x32xf32>
    %168 = arith.mulf %164, %167 : vector<8x32xf32>
    %c1_61 = arith.constant 1 : index
    %c0_62 = arith.constant 0 : index
    %c0_63 = arith.constant 0 : index
    %169 = vector.load %arg4[%c1_61, %c0_62, %c0_63] : memref<2x32x64xf32, #tpu.memory_space<vmem>>, vector<1x32x64xf32>
    %170 = vector.shape_cast %169 : vector<1x32x64xf32> to vector<32x64xf32>
    %cst_64 = arith.constant dense<0.000000e+00> : vector<8x64xf32>
    %171 = tpu.matmul %168, %170, %cst_64 {dimension_numbers = #tpu.dot_dimension_numbers<[1], [0], [0], [1], [0, 0, 1, 1], [], []>} : vector<8x32xf32>, vector<32x64xf32>, vector<8x64xf32> -> vector<8x64xf32>
    %172 = vector.extract_strided_slice %171 {offsets = [0, 32], sizes = [8, 8], strides = [1, 1]} : vector<8x64xf32> to vector<8x8xf32>
    %173 = vector.extract_strided_slice %172 {offsets = [0, 0], sizes = [8, 4], strides = [1, 1]} : vector<8x8xf32> to vector<8x4xf32>
    %174 = arith.mulf %172, %6 : vector<8x8xf32>
    %175 = tpu.concatenate %173, %173 in 1 : vector<8x4xf32>, vector<8x4xf32> -> vector<8x8xf32>
    %176 = arith.mulf %175, %7 : vector<8x8xf32>
    %177 = arith.addf %174, %176 : vector<8x8xf32>
    %178 = vector.extract_strided_slice %171 {offsets = [0, 40], sizes = [8, 8], strides = [1, 1]} : vector<8x64xf32> to vector<8x8xf32>
    %179 = vector.extract_strided_slice %178 {offsets = [0, 0], sizes = [8, 4], strides = [1, 1]} : vector<8x8xf32> to vector<8x4xf32>
    %180 = arith.mulf %178, %6 : vector<8x8xf32>
    %181 = tpu.concatenate %179, %179 in 1 : vector<8x4xf32>, vector<8x4xf32> -> vector<8x8xf32>
    %182 = arith.mulf %181, %7 : vector<8x8xf32>
    %183 = arith.addf %180, %182 : vector<8x8xf32>
    %184 = vector.extract_strided_slice %171 {offsets = [0, 48], sizes = [8, 8], strides = [1, 1]} : vector<8x64xf32> to vector<8x8xf32>
    %185 = vector.extract_strided_slice %171 {offsets = [0, 56], sizes = [8, 8], strides = [1, 1]} : vector<8x64xf32> to vector<8x8xf32>
    %186 = vector.extract_strided_slice %171 {offsets = [0, 0], sizes = [8, 8], strides = [1, 1]} : vector<8x64xf32> to vector<8x8xf32>
    %187 = vector.extract_strided_slice %186 {offsets = [0, 0], sizes = [8, 4], strides = [1, 1]} : vector<8x8xf32> to vector<8x4xf32>
    %188 = arith.mulf %186, %6 : vector<8x8xf32>
    %189 = tpu.concatenate %187, %187 in 1 : vector<8x4xf32>, vector<8x4xf32> -> vector<8x8xf32>
    %190 = arith.mulf %189, %7 : vector<8x8xf32>
    %191 = arith.addf %188, %190 : vector<8x8xf32>
    %cst_65 = arith.constant dense<0.000000e+00> : vector<8x8xf32>
    %192 = tpu.matmul %191, %177, %cst_65 {dimension_numbers = #tpu.dot_dimension_numbers<[1], [1], [0], [0], [0, 0, 1, 0], [], []>} : vector<8x8xf32>, vector<8x8xf32>, vector<8x8xf32> -> vector<8x8xf32>
    %cst_66 = arith.constant dense<0xFF800000> : vector<8xf32>
    %193 = vector.multi_reduction <maximumf>, %192, %cst_66 [1] : vector<8x8xf32> to vector<8xf32>
    %194 = vector.shape_cast %193 : vector<8xf32> to vector<8x1xf32>
    %195 = vector.broadcast %194 : vector<8x1xf32> to vector<8x8xf32>
    %196 = arith.subf %192, %195 : vector<8x8xf32>
    %197 = math.exp %196 : vector<8x8xf32>
    %cst_67 = arith.constant dense<0.000000e+00> : vector<8xf32>
    %198 = vector.multi_reduction <add>, %197, %cst_67 [1] : vector<8x8xf32> to vector<8xf32>
    %199 = vector.shape_cast %198 : vector<8xf32> to vector<8x1xf32>
    %200 = vector.broadcast %199 : vector<8x1xf32> to vector<8x8xf32>
    %201 = arith.divf %197, %200 : vector<8x8xf32>
    %cst_68 = arith.constant dense<0.000000e+00> : vector<8x8xf32>
    %202 = tpu.matmul %201, %184, %cst_68 {dimension_numbers = #tpu.dot_dimension_numbers<[1], [0], [0], [1], [0, 0, 1, 1], [], []>} : vector<8x8xf32>, vector<8x8xf32>, vector<8x8xf32> -> vector<8x8xf32>
    %203 = vector.extract_strided_slice %171 {offsets = [0, 8], sizes = [8, 8], strides = [1, 1]} : vector<8x64xf32> to vector<8x8xf32>
    %204 = vector.extract_strided_slice %203 {offsets = [0, 0], sizes = [8, 4], strides = [1, 1]} : vector<8x8xf32> to vector<8x4xf32>
    %205 = arith.mulf %203, %6 : vector<8x8xf32>
    %206 = tpu.concatenate %204, %204 in 1 : vector<8x4xf32>, vector<8x4xf32> -> vector<8x8xf32>
    %207 = arith.mulf %206, %7 : vector<8x8xf32>
    %208 = arith.addf %205, %207 : vector<8x8xf32>
    %cst_69 = arith.constant dense<0.000000e+00> : vector<8x8xf32>
    %209 = tpu.matmul %208, %177, %cst_69 {dimension_numbers = #tpu.dot_dimension_numbers<[1], [1], [0], [0], [0, 0, 1, 0], [], []>} : vector<8x8xf32>, vector<8x8xf32>, vector<8x8xf32> -> vector<8x8xf32>
    %cst_70 = arith.constant dense<0xFF800000> : vector<8xf32>
    %210 = vector.multi_reduction <maximumf>, %209, %cst_70 [1] : vector<8x8xf32> to vector<8xf32>
    %211 = vector.shape_cast %210 : vector<8xf32> to vector<8x1xf32>
    %212 = vector.broadcast %211 : vector<8x1xf32> to vector<8x8xf32>
    %213 = arith.subf %209, %212 : vector<8x8xf32>
    %214 = math.exp %213 : vector<8x8xf32>
    %cst_71 = arith.constant dense<0.000000e+00> : vector<8xf32>
    %215 = vector.multi_reduction <add>, %214, %cst_71 [1] : vector<8x8xf32> to vector<8xf32>
    %216 = vector.shape_cast %215 : vector<8xf32> to vector<8x1xf32>
    %217 = vector.broadcast %216 : vector<8x1xf32> to vector<8x8xf32>
    %218 = arith.divf %214, %217 : vector<8x8xf32>
    %cst_72 = arith.constant dense<0.000000e+00> : vector<8x8xf32>
    %219 = tpu.matmul %218, %184, %cst_72 {dimension_numbers = #tpu.dot_dimension_numbers<[1], [0], [0], [1], [0, 0, 1, 1], [], []>} : vector<8x8xf32>, vector<8x8xf32>, vector<8x8xf32> -> vector<8x8xf32>
    %220 = vector.extract_strided_slice %171 {offsets = [0, 16], sizes = [8, 8], strides = [1, 1]} : vector<8x64xf32> to vector<8x8xf32>
    %221 = vector.extract_strided_slice %220 {offsets = [0, 0], sizes = [8, 4], strides = [1, 1]} : vector<8x8xf32> to vector<8x4xf32>
    %222 = arith.mulf %220, %6 : vector<8x8xf32>
    %223 = tpu.concatenate %221, %221 in 1 : vector<8x4xf32>, vector<8x4xf32> -> vector<8x8xf32>
    %224 = arith.mulf %223, %7 : vector<8x8xf32>
    %225 = arith.addf %222, %224 : vector<8x8xf32>
    %cst_73 = arith.constant dense<0.000000e+00> : vector<8x8xf32>
    %226 = tpu.matmul %225, %183, %cst_73 {dimension_numbers = #tpu.dot_dimension_numbers<[1], [1], [0], [0], [0, 0, 1, 0], [], []>} : vector<8x8xf32>, vector<8x8xf32>, vector<8x8xf32> -> vector<8x8xf32>
    %cst_74 = arith.constant dense<0xFF800000> : vector<8xf32>
    %227 = vector.multi_reduction <maximumf>, %226, %cst_74 [1] : vector<8x8xf32> to vector<8xf32>
    %228 = vector.shape_cast %227 : vector<8xf32> to vector<8x1xf32>
    %229 = vector.broadcast %228 : vector<8x1xf32> to vector<8x8xf32>
    %230 = arith.subf %226, %229 : vector<8x8xf32>
    %231 = math.exp %230 : vector<8x8xf32>
    %cst_75 = arith.constant dense<0.000000e+00> : vector<8xf32>
    %232 = vector.multi_reduction <add>, %231, %cst_75 [1] : vector<8x8xf32> to vector<8xf32>
    %233 = vector.shape_cast %232 : vector<8xf32> to vector<8x1xf32>
    %234 = vector.broadcast %233 : vector<8x1xf32> to vector<8x8xf32>
    %235 = arith.divf %231, %234 : vector<8x8xf32>
    %cst_76 = arith.constant dense<0.000000e+00> : vector<8x8xf32>
    %236 = tpu.matmul %235, %185, %cst_76 {dimension_numbers = #tpu.dot_dimension_numbers<[1], [0], [0], [1], [0, 0, 1, 1], [], []>} : vector<8x8xf32>, vector<8x8xf32>, vector<8x8xf32> -> vector<8x8xf32>
    %237 = vector.extract_strided_slice %171 {offsets = [0, 24], sizes = [8, 8], strides = [1, 1]} : vector<8x64xf32> to vector<8x8xf32>
    %238 = vector.extract_strided_slice %237 {offsets = [0, 0], sizes = [8, 4], strides = [1, 1]} : vector<8x8xf32> to vector<8x4xf32>
    %239 = arith.mulf %237, %6 : vector<8x8xf32>
    %240 = tpu.concatenate %238, %238 in 1 : vector<8x4xf32>, vector<8x4xf32> -> vector<8x8xf32>
    %241 = arith.mulf %240, %7 : vector<8x8xf32>
    %242 = arith.addf %239, %241 : vector<8x8xf32>
    %cst_77 = arith.constant dense<0.000000e+00> : vector<8x8xf32>
    %243 = tpu.matmul %242, %183, %cst_77 {dimension_numbers = #tpu.dot_dimension_numbers<[1], [1], [0], [0], [0, 0, 1, 0], [], []>} : vector<8x8xf32>, vector<8x8xf32>, vector<8x8xf32> -> vector<8x8xf32>
    %cst_78 = arith.constant dense<0xFF800000> : vector<8xf32>
    %244 = vector.multi_reduction <maximumf>, %243, %cst_78 [1] : vector<8x8xf32> to vector<8xf32>
    %245 = vector.shape_cast %244 : vector<8xf32> to vector<8x1xf32>
    %246 = vector.broadcast %245 : vector<8x1xf32> to vector<8x8xf32>
    %247 = arith.subf %243, %246 : vector<8x8xf32>
    %248 = math.exp %247 : vector<8x8xf32>
    %cst_79 = arith.constant dense<0.000000e+00> : vector<8xf32>
    %249 = vector.multi_reduction <add>, %248, %cst_79 [1] : vector<8x8xf32> to vector<8xf32>
    %250 = vector.shape_cast %249 : vector<8xf32> to vector<8x1xf32>
    %251 = vector.broadcast %250 : vector<8x1xf32> to vector<8x8xf32>
    %252 = arith.divf %248, %251 : vector<8x8xf32>
    %cst_80 = arith.constant dense<0.000000e+00> : vector<8x8xf32>
    %253 = tpu.matmul %252, %185, %cst_80 {dimension_numbers = #tpu.dot_dimension_numbers<[1], [0], [0], [1], [0, 0, 1, 1], [], []>} : vector<8x8xf32>, vector<8x8xf32>, vector<8x8xf32> -> vector<8x8xf32>
    %254 = tpu.concatenate %202, %219, %236, %253 in 1 : vector<8x8xf32>, vector<8x8xf32>, vector<8x8xf32>, vector<8x8xf32> -> vector<8x32xf32>
    %c1_81 = arith.constant 1 : index
    %c0_82 = arith.constant 0 : index
    %c0_83 = arith.constant 0 : index
    %255 = vector.load %arg5[%c1_81, %c0_82, %c0_83] : memref<2x32x32xf32, #tpu.memory_space<vmem>>, vector<1x32x32xf32>
    %256 = vector.shape_cast %255 : vector<1x32x32xf32> to vector<32x32xf32>
    %cst_84 = arith.constant dense<0.000000e+00> : vector<8x32xf32>
    %257 = tpu.matmul %254, %256, %cst_84 {dimension_numbers = #tpu.dot_dimension_numbers<[1], [0], [0], [1], [0, 0, 1, 1], [], []>} : vector<8x32xf32>, vector<32x32xf32>, vector<8x32xf32> -> vector<8x32xf32>
    %258 = arith.addf %152, %257 : vector<8x32xf32>
    %c1_85 = arith.constant 1 : index
    %c0_86 = arith.constant 0 : index
    %c0_87 = arith.constant 0 : index
    %259 = vector.load %arg6[%c1_85, %c0_86, %c0_87] : memref<2x1x32xf32, #tpu.memory_space<vmem>>, vector<1x1x32xf32>
    %260 = vector.shape_cast %259 : vector<1x1x32xf32> to vector<1x32xf32>
    %261 = arith.mulf %258, %258 : vector<8x32xf32>
    %cst_88 = arith.constant dense<0.000000e+00> : vector<8xf32>
    %262 = vector.multi_reduction <add>, %261, %cst_88 [1] : vector<8x32xf32> to vector<8xf32>
    %263 = vector.shape_cast %262 : vector<8xf32> to vector<8x1xf32>
    %cst_89 = arith.constant 3.200000e+01 : f32
    %264 = vector.broadcast %cst_89 : f32 to vector<8x1xf32>
    %265 = arith.divf %263, %264 : vector<8x1xf32>
    %cst_90 = arith.constant 9.99999997E-7 : f32
    %266 = vector.broadcast %cst_90 : f32 to vector<8x1xf32>
    %267 = arith.addf %265, %266 : vector<8x1xf32>
    %268 = math.rsqrt %267 : vector<8x1xf32>
    %269 = vector.broadcast %268 : vector<8x1xf32> to vector<8x32xf32>
    %270 = arith.mulf %258, %269 : vector<8x32xf32>
    %cst_91 = arith.constant 1.000000e+00 : f32
    %271 = vector.broadcast %cst_91 : f32 to vector<1x32xf32>
    %272 = arith.addf %271, %260 : vector<1x32xf32>
    %273 = vector.broadcast %272 : vector<1x32xf32> to vector<8x32xf32>
    %274 = arith.mulf %270, %273 : vector<8x32xf32>
    %c1_92 = arith.constant 1 : index
    %c0_93 = arith.constant 0 : index
    %c0_94 = arith.constant 0 : index
    %275 = vector.load %arg7[%c1_92, %c0_93, %c0_94] : memref<2x32x128xf32, #tpu.memory_space<vmem>>, vector<1x32x128xf32>
    %276 = vector.shape_cast %275 : vector<1x32x128xf32> to vector<32x128xf32>
    %cst_95 = arith.constant dense<0.000000e+00> : vector<8x128xf32>
    %277 = tpu.matmul %274, %276, %cst_95 {dimension_numbers = #tpu.dot_dimension_numbers<[1], [0], [0], [1], [0, 0, 1, 1], [], []>} : vector<8x32xf32>, vector<32x128xf32>, vector<8x128xf32> -> vector<8x128xf32>
    %278 = vector.extract_strided_slice %277 {offsets = [0, 0], sizes = [8, 64], strides = [1, 1]} : vector<8x128xf32> to vector<8x64xf32>
    %cst_96 = arith.constant 5.000000e-01 : f32
    %279 = vector.broadcast %cst_96 : f32 to vector<8x64xf32>
    %280 = arith.mulf %279, %278 : vector<8x64xf32>
    %cst_97 = arith.constant 4.471500e-02 : f32
    %281 = vector.broadcast %cst_97 : f32 to vector<8x64xf32>
    %282 = arith.mulf %281, %278 : vector<8x64xf32>
    %283 = arith.mulf %282, %278 : vector<8x64xf32>
    %284 = arith.mulf %283, %278 : vector<8x64xf32>
    %285 = arith.addf %278, %284 : vector<8x64xf32>
    %cst_98 = arith.constant 0.797884583 : f32
    %286 = vector.broadcast %cst_98 : f32 to vector<8x64xf32>
    %287 = arith.mulf %286, %285 : vector<8x64xf32>
    %288 = math.tanh %287 : vector<8x64xf32>
    %cst_99 = arith.constant 1.000000e+00 : f32
    %289 = vector.broadcast %cst_99 : f32 to vector<8x64xf32>
    %290 = arith.addf %289, %288 : vector<8x64xf32>
    %291 = arith.mulf %280, %290 : vector<8x64xf32>
    %292 = vector.extract_strided_slice %277 {offsets = [0, 64], sizes = [8, 64], strides = [1, 1]} : vector<8x128xf32> to vector<8x64xf32>
    %293 = arith.mulf %291, %292 : vector<8x64xf32>
    %c1_100 = arith.constant 1 : index
    %c0_101 = arith.constant 0 : index
    %c0_102 = arith.constant 0 : index
    %294 = vector.load %arg8[%c1_100, %c0_101, %c0_102] : memref<2x64x32xf32, #tpu.memory_space<vmem>>, vector<1x64x32xf32>
    %295 = vector.shape_cast %294 : vector<1x64x32xf32> to vector<64x32xf32>
    %cst_103 = arith.constant dense<0.000000e+00> : vector<8x32xf32>
    %296 = tpu.matmul %293, %295, %cst_103 {dimension_numbers = #tpu.dot_dimension_numbers<[1], [0], [0], [1], [0, 0, 1, 1], [], []>} : vector<8x64xf32>, vector<64x32xf32>, vector<8x32xf32> -> vector<8x32xf32>
    %297 = arith.addf %258, %296 : vector<8x32xf32>
    %c0_104 = arith.constant 0 : index
    %c0_105 = arith.constant 0 : index
    %298 = vector.load %arg9[%c0_104, %c0_105] : memref<1x32xf32, #tpu.memory_space<vmem>>, vector<1x32xf32>
    %299 = arith.mulf %297, %297 : vector<8x32xf32>
    %cst_106 = arith.constant dense<0.000000e+00> : vector<8xf32>
    %300 = vector.multi_reduction <add>, %299, %cst_106 [1] : vector<8x32xf32> to vector<8xf32>
    %301 = vector.shape_cast %300 : vector<8xf32> to vector<8x1xf32>
    %cst_107 = arith.constant 3.200000e+01 : f32
    %302 = vector.broadcast %cst_107 : f32 to vector<8x1xf32>
    %303 = arith.divf %301, %302 : vector<8x1xf32>
    %cst_108 = arith.constant 9.99999997E-7 : f32
    %304 = vector.broadcast %cst_108 : f32 to vector<8x1xf32>
    %305 = arith.addf %303, %304 : vector<8x1xf32>
    %306 = math.rsqrt %305 : vector<8x1xf32>
    %307 = vector.broadcast %306 : vector<8x1xf32> to vector<8x32xf32>
    %308 = arith.mulf %297, %307 : vector<8x32xf32>
    %cst_109 = arith.constant 1.000000e+00 : f32
    %309 = vector.broadcast %cst_109 : f32 to vector<1x32xf32>
    %310 = arith.addf %309, %298 : vector<1x32xf32>
    %311 = vector.broadcast %310 : vector<1x32xf32> to vector<8x32xf32>
    %312 = arith.mulf %308, %311 : vector<8x32xf32>
    %c0_110 = arith.constant 0 : index
    %c0_111 = arith.constant 0 : index
    %313 = vector.load %arg10[%c0_110, %c0_111] : memref<32x128xf32, #tpu.memory_space<vmem>>, vector<32x128xf32>
    %cst_112 = arith.constant dense<0.000000e+00> : vector<8x128xf32>
    %314 = tpu.matmul %312, %313, %cst_112 {dimension_numbers = #tpu.dot_dimension_numbers<[1], [0], [0], [1], [0, 0, 1, 1], [], []>} : vector<8x32xf32>, vector<32x128xf32>, vector<8x128xf32> -> vector<8x128xf32>
    %c0_113 = arith.constant 0 : index
    %c0_114 = arith.constant 0 : index
    %315 = vector.load %arg11[%c0_113, %c0_114] : memref<1x128xf32, #tpu.memory_space<vmem>>, vector<1x128xf32>
    %316 = vector.broadcast %315 : vector<1x128xf32> to vector<8x128xf32>
    %317 = arith.addf %314, %316 : vector<8x128xf32>
    %c0_115 = arith.constant 0 : index
    %c0_116 = arith.constant 0 : index
    %c0_117 = arith.constant 0 : index
    %318 = vector.load %arg12[%c0_115, %c0_116, %c0_117] : memref<1x8x128xf32, #tpu.memory_space<vmem>>, vector<1x8x128xf32>
    %319 = vector.shape_cast %318 : vector<1x8x128xf32> to vector<8x128xf32>
    %320 = vector.shape_cast %317 : vector<8x128xf32> to vector<1x8x128xf32>
    tpu.vector_store %arg12[%c0_115, %c0_116, %c0_117], %320 {strides = array<i32>} : memref<1x8x128xf32, #tpu.memory_space<vmem>>, vector<1x8x128xf32>,
    return
  }
  func.func @transform_0(%arg0: i32) -> (i32, i32, i32) {
    %c0_i32 = arith.constant 0 : i32
    %c0_i32_0 = arith.constant 0 : i32
    %c0_i32_1 = arith.constant 0 : i32
    return %arg0, %c0_i32, %c0_i32_0 : i32, i32, i32
  }
  func.func @transform_1(%arg0: i32) -> (i32, i32, i32) {
    %c0_i32 = arith.constant 0 : i32
    %c0_i32_0 = arith.constant 0 : i32
    %c0_i32_1 = arith.constant 0 : i32
    return %arg0, %c0_i32, %c0_i32_0 : i32, i32, i32
  }
  func.func @transform_2(%arg0: i32) -> (i32, i32, i32) {
    %c0_i32 = arith.constant 0 : i32
    %c0_i32_0 = arith.constant 0 : i32
    %c0_i32_1 = arith.constant 0 : i32
    %c0_i32_2 = arith.constant 0 : i32
    return %c0_i32, %c0_i32_0, %c0_i32_1 : i32, i32, i32
  }
  func.func @transform_3(%arg0: i32) -> (i32, i32, i32) {
    %c0_i32 = arith.constant 0 : i32
    %c0_i32_0 = arith.constant 0 : i32
    %c0_i32_1 = arith.constant 0 : i32
    %c0_i32_2 = arith.constant 0 : i32
    return %c0_i32, %c0_i32_0, %c0_i32_1 : i32, i32, i32
  }
  func.func @transform_4(%arg0: i32) -> (i32, i32, i32) {
    %c0_i32 = arith.constant 0 : i32
    %c0_i32_0 = arith.constant 0 : i32
    %c0_i32_1 = arith.constant 0 : i32
    %c0_i32_2 = arith.constant 0 : i32
    return %c0_i32, %c0_i32_0, %c0_i32_1 : i32, i32, i32
  }
  func.func @transform_5(%arg0: i32) -> (i32, i32, i32) {
    %c0_i32 = arith.constant 0 : i32
    %c0_i32_0 = arith.constant 0 : i32
    %c0_i32_1 = arith.constant 0 : i32
    %c0_i32_2 = arith.constant 0 : i32
    return %c0_i32, %c0_i32_0, %c0_i32_1 : i32, i32, i32
  }
  func.func @transform_6(%arg0: i32) -> (i32, i32, i32) {
    %c0_i32 = arith.constant 0 : i32
    %c0_i32_0 = arith.constant 0 : i32
    %c0_i32_1 = arith.constant 0 : i32
    %c0_i32_2 = arith.constant 0 : i32
    return %c0_i32, %c0_i32_0, %c0_i32_1 : i32, i32, i32
  }
  func.func @transform_7(%arg0: i32) -> (i32, i32, i32) {
    %c0_i32 = arith.constant 0 : i32
    %c0_i32_0 = arith.constant 0 : i32
    %c0_i32_1 = arith.constant 0 : i32
    %c0_i32_2 = arith.constant 0 : i32
    return %c0_i32, %c0_i32_0, %c0_i32_1 : i32, i32, i32
  }
  func.func @transform_8(%arg0: i32) -> (i32, i32) {
    %c0_i32 = arith.constant 0 : i32
    %c0_i32_0 = arith.constant 0 : i32
    %c0_i32_1 = arith.constant 0 : i32
    return %c0_i32, %c0_i32_0 : i32, i32
  }
  func.func @transform_9(%arg0: i32) -> (i32, i32) {
    %c0_i32 = arith.constant 0 : i32
    %c0_i32_0 = arith.constant 0 : i32
    %c0_i32_1 = arith.constant 0 : i32
    return %c0_i32, %c0_i32_0 : i32, i32
  }
  func.func @transform_10(%arg0: i32) -> (i32, i32) {
    %c0_i32 = arith.constant 0 : i32
    %c0_i32_0 = arith.constant 0 : i32
    %c0_i32_1 = arith.constant 0 : i32
    return %c0_i32, %c0_i32_0 : i32, i32
  }
  func.func @transform_11(%arg0: i32) -> (i32, i32, i32) {
    %c0_i32 = arith.constant 0 : i32
    %c0_i32_0 = arith.constant 0 : i32
    %c0_i32_1 = arith.constant 0 : i32
    return %arg0, %c0_i32, %c0_i32_0 : i32, i32, i32
  }
}

</mosaic_0001>

<llo_original>
// kernel: paligemma_forward.2
$region0: #{paligemma_forward.2}
  #allocation0 [shape = 'u32[]', space=smem, size = 0x4, offset = 0x4, fixed_abs, tag = 'smem constant byte address 0x4 - core index']
  #allocation1 [shape = 'u32[144,128]{1,0:T(1,128)}', space=vmem, size = 0x12000, scoped, tag = 'internal scratch']
  %s0 = inlined_call_operand.vmem [shape: f32[2,4,192], index: 0, kind: input, shape index: {}]
  %s1 = inlined_call_operand.vmem [shape: f32[192,32], index: 1, kind: input, shape index: {}]
  %s2 = inlined_call_operand.vmem [shape: f32[1,32], index: 2, kind: input, shape index: {}]
  %s3 = inlined_call_operand.vmem [shape: f32[4,32], index: 3, kind: input, shape index: {}]
  %s4 = inlined_call_operand.vmem [shape: f32[2,1,32], index: 4, kind: input, shape index: {}]
  %s5 = inlined_call_operand.vmem [shape: f32[2,1,32], index: 5, kind: input, shape index: {}]
  %s6 = inlined_call_operand.vmem [shape: f32[2,32,96], index: 6, kind: input, shape index: {}]
  %s7 = inlined_call_operand.vmem [shape: f32[2,1,96], index: 7, kind: input, shape index: {}]
  %s8 = inlined_call_operand.vmem [shape: f32[2,32,32], index: 8, kind: input, shape index: {}]
  %s9 = inlined_call_operand.vmem [shape: f32[2,1,32], index: 9, kind: input, shape index: {}]
  %s10 = inlined_call_operand.vmem [shape: f32[2,1,32], index: 10, kind: input, shape index: {}]
  %s11 = inlined_call_operand.vmem [shape: f32[2,1,32], index: 11, kind: input, shape index: {}]
  %s12 = inlined_call_operand.vmem [shape: f32[2,32,64], index: 12, kind: input, shape index: {}]
  %s13 = inlined_call_operand.vmem [shape: f32[2,1,64], index: 13, kind: input, shape index: {}]
  %s14 = inlined_call_operand.vmem [shape: f32[2,64,32], index: 14, kind: input, shape index: {}]
  %s15 = inlined_call_operand.vmem [shape: f32[2,1,32], index: 15, kind: input, shape index: {}]
  %s16 = inlined_call_operand.vmem [shape: f32[1,32], index: 16, kind: input, shape index: {}]
  %s17 = inlined_call_operand.vmem [shape: f32[1,32], index: 17, kind: input, shape index: {}]
  %s18 = inlined_call_operand.vmem [shape: f32[32,32], index: 18, kind: input, shape index: {}]
  %s19 = inlined_call_operand.vmem [shape: f32[1,32], index: 19, kind: input, shape index: {}]
  %s20 = inlined_call_operand.vmem [shape: f32[2,4,32], index: 20, kind: output, shape index: {}]
  %s21 = sld [smem:[#allocation0]]
  $region113: #{paligemma_forward.2} parent=0
    _
  %s23 = ssub.s32 1, %s21
  %s24 = scalar_select 0, %s23, %s21
  loop: start=0, step=1, limit=4
  $region2: #{paligemma_forward.2} parent=0 // loop_pre_header
    _
  $region3: #{paligemma_forward.2} parent=0 // loop_header
    %s26 = sphi 0, %s30
    %p27 = scmp.ge.s32.totalorder %s26, 4
    %s36 = sphi 0, %s38
    %s39 = sphi 0, %s36
    %s40 = sphi 0, %s39
    %s56 = sphi 0, %s40
    %s60 = sphi 0, %s60
    %s62 = sphi 0, %s60
    %s63 = sphi 0, %s62
    %s77 = sphi 0, %s63
    %s81 = sphi 0, %s81
    %s83 = sphi 0, %s81
    %s84 = sphi 0, %s83
    %s98 = sphi 0, %s84
    %s102 = sphi 0, %s102
    %s104 = sphi 0, %s102
    %s105 = sphi 0, %s104
    %s119 = sphi 0, %s105
    %s123 = sphi 0, %s123
    %s125 = sphi 0, %s123
    %s126 = sphi 0, %s125
    %s140 = sphi 0, %s126
    %s144 = sphi 0, %s144
    %s146 = sphi 0, %s144
    %s147 = sphi 0, %s146
    %s161 = sphi 0, %s147
    %s165 = sphi 0, %s165
    %s167 = sphi 0, %s165
    %s168 = sphi 0, %s167
    %s182 = sphi 0, %s168
    %s186 = sphi 0, %s186
    %s188 = sphi 0, %s186
    %s189 = sphi 0, %s188
    %s203 = sphi 0, %s189
    %s207 = sphi 0, %s207
    %s209 = sphi 0, %s207
    %s210 = sphi 0, %s209
    %s224 = sphi 0, %s210
    %s228 = sphi 0, %s228
    %s230 = sphi 0, %s228
    %s231 = sphi 0, %s230
    %s245 = sphi 0, %s231
    %s249 = sphi 0, %s249
    %s251 = sphi 0, %s249
    %s252 = sphi 0, %s251
    %s266 = sphi 0, %s252
    %s270 = sphi 0, %s270
    %s272 = sphi 0, %s270
    %s273 = sphi 0, %s272
    %s287 = sphi 0, %s273
    %s291 = sphi 0, %s291
    %s293 = sphi 0, %s291
    %s294 = sphi 0, %s293
    %s308 = sphi 0, %s294
    %s312 = sphi 0, %s312
    %s314 = sphi 0, %s312
    %s315 = sphi 0, %s314
    %s329 = sphi 0, %s315
    %s333 = sphi 0, %s333
    %s335 = sphi 0, %s333
    %s336 = sphi 0, %s335
    %s350 = sphi 0, %s336
    %s354 = sphi 0, %s354
    %s356 = sphi 0, %s354
    %s357 = sphi 0, %s356
    %s371 = sphi 0, %s357
    %s375 = sphi 0, %s375
    %s377 = sphi 0, %s375
    %s378 = sphi 0, %s377
    %s392 = sphi 0, %s378
    %s396 = sphi 0, %s396
    %s398 = sphi 0, %s396
    %s399 = sphi 0, %s398
    %s413 = sphi 0, %s399
    %s417 = sphi 0, %s417
    %s419 = sphi 0, %s417
    %s420 = sphi 0, %s419
    %s434 = sphi 0, %s420
    %s438 = sphi 0, %s438
    %s440 = sphi 0, %s438
    %s441 = sphi 0, %s440
    %s455 = sphi 0, %s441
    %s461 = sphi 0, %s463
    %s464 = sphi 0, %s461
    %s465 = sphi 0, %s464
    %s481 = sphi 0, %s465
  $region4: #{paligemma_forward.2} parent=0 // loop_header_branch
    %29 = sbr.rel (%p27) target = $region8
  $region5: #{paligemma_forward.2} parent=0 // loop_body
    %s31 = ssub.s32 %s26, 1
    %s32 = ssub.s32 %s26, 2
    %s33 = sadd.s32 %s26, 1
    %s34 = ssub.s32 %s26, %s33
    %p35 = scmp.eq.s32.totalorder %s34, 0
    %s37 = sadd.s32 %s36, 1
    %s38 = scalar_select %p35, %s36, %s37
    %p41 = pneg %p35
    %p42 = scmp.eq.s32.totalorder %s26, 1
    %p43 = por %p41, %p42
    %p44 = scmp.ne.s32.totalorder %s36, %s39
    %p45 = scmp.eq.s32.totalorder %s26, 0
    %p46 = por %p44, %p45
    %p47 = scmp.ne.s32.totalorder %s36, %s39
    %p48 = scmp.eq.s32.totalorder %s31, 1
    %p49 = por %p47, %p48
    %p50 = scmp.ne.s32.totalorder %s39, %s40
    %p51 = scmp.eq.s32.totalorder %s31, 0
    %p52 = por %p50, %p51
    %p53 = scmp.ne.s32.totalorder %s39, %s40
    %p54 = scmp.eq.s32.totalorder %s32, 1
    %p55 = por %p53, %p54
    %p57 = scmp.ne.s32.totalorder %s40, %s56
    %p58 = scmp.eq.s32.totalorder %s32, 0
    %p59 = por %p57, %p58
    %s61 = sadd.s32 %s60, 1
    %p64 = scmp.eq.s32.totalorder %s26, 1
    %p65 = scmp.ne.s32.totalorder %s60, %s62
    %p66 = scmp.eq.s32.totalorder %s26, 0
    %p67 = por %p65, %p66
    %p68 = scmp.ne.s32.totalorder %s60, %s62
    %p69 = scmp.eq.s32.totalorder %s31, 1
    %p70 = por %p68, %p69
    %p71 = scmp.ne.s32.totalorder %s62, %s63
    %p72 = scmp.eq.s32.totalorder %s31, 0
    %p73 = por %p71, %p72
    %p74 = scmp.ne.s32.totalorder %s62, %s63
    %p75 = scmp.eq.s32.totalorder %s32, 1
    %p76 = por %p74, %p75
    %p78 = scmp.ne.s32.totalorder %s63, %s77
    %p79 = scmp.eq.s32.totalorder %s32, 0
    %p80 = por %p78, %p79
    %s82 = sadd.s32 %s81, 1
    %p85 = scmp.eq.s32.totalorder %s26, 1
    %p86 = scmp.ne.s32.totalorder %s81, %s83
    %p87 = scmp.eq.s32.totalorder %s26, 0
    %p88 = por %p86, %p87
    %p89 = scmp.ne.s32.totalorder %s81, %s83
    %p90 = scmp.eq.s32.totalorder %s31, 1
    %p91 = por %p89, %p90
    %p92 = scmp.ne.s32.totalorder %s83, %s84
    %p93 = scmp.eq.s32.totalorder %s31, 0
    %p94 = por %p92, %p93
    %p95 = scmp.ne.s32.totalorder %s83, %s84
    %p96 = scmp.eq.s32.totalorder %s32, 1
    %p97 = por %p95, %p96
    %p99 = scmp.ne.s32.totalorder %s84, %s98
    %p100 = scmp.eq.s32.totalorder %s32, 0
    %p101 = por %p99, %p100
    %s103 = sadd.s32 %s102, 1
    %p106 = scmp.eq.s32.totalorder %s26, 1
    %p107 = scmp.ne.s32.totalorder %s102, %s104
    %p108 = scmp.eq.s32.totalorder %s26, 0
    %p109 = por %p107, %p108
    %p110 = scmp.ne.s32.totalorder %s102, %s104
    %p111 = scmp.eq.s32.totalorder %s31, 1
    %p112 = por %p110, %p111
    %p113 = scmp.ne.s32.totalorder %s104, %s105
    %p114 = scmp.eq.s32.totalorder %s31, 0
    %p115 = por %p113, %p114
    %p116 = scmp.ne.s32.totalorder %s104, %s105
    %p117 = scmp.eq.s32.totalorder %s32, 1
    %p118 = por %p116, %p117
    %p120 = scmp.ne.s32.totalorder %s105, %s119
    %p121 = scmp.eq.s32.totalorder %s32, 0
    %p122 = por %p120, %p121
    %s124 = sadd.s32 %s123, 1
    %p127 = scmp.eq.s32.totalorder %s26, 1
    %p128 = scmp.ne.s32.totalorder %s123, %s125
    %p129 = scmp.eq.s32.totalorder %s26, 0
    %p130 = por %p128, %p129
    %p131 = scmp.ne.s32.totalorder %s123, %s125
    %p132 = scmp.eq.s32.totalorder %s31, 1
    %p133 = por %p131, %p132
    %p134 = scmp.ne.s32.totalorder %s125, %s126
    %p135 = scmp.eq.s32.totalorder %s31, 0
    %p136 = por %p134, %p135
    %p137 = scmp.ne.s32.totalorder %s125, %s126
    %p138 = scmp.eq.s32.totalorder %s32, 1
    %p139 = por %p137, %p138
    %p141 = scmp.ne.s32.totalorder %s126, %s140
    %p142 = scmp.eq.s32.totalorder %s32, 0
    %p143 = por %p141, %p142
    %s145 = sadd.s32 %s144, 1
    %p148 = scmp.eq.s32.totalorder %s26, 1
    %p149 = scmp.ne.s32.totalorder %s144, %s146
    %p150 = scmp.eq.s32.totalorder %s26, 0
    %p151 = por %p149, %p150
    %p152 = scmp.ne.s32.totalorder %s144, %s146
    %p153 = scmp.eq.s32.totalorder %s31, 1
    %p154 = por %p152, %p153
    %p155 = scmp.ne.s32.totalorder %s146, %s147
    %p156 = scmp.eq.s32.totalorder %s31, 0
    %p157 = por %p155, %p156
    %p158 = scmp.ne.s32.totalorder %s146, %s147
    %p159 = scmp.eq.s32.totalorder %s32, 1
    %p160 = por %p158, %p159
    %p162 = scmp.ne.s32.totalorder %s147, %s161
    %p163 = scmp.eq.s32.totalorder %s32, 0
    %p164 = por %p162, %p163
    %s166 = sadd.s32 %s165, 1
    %p169 = scmp.eq.s32.totalorder %s26, 1
    %p170 = scmp.ne.s32.totalorder %s165, %s167
    %p171 = scmp.eq.s32.totalorder %s26, 0
    %p172 = por %p170, %p171
    %p173 = scmp.ne.s32.totalorder %s165, %s167
    %p174 = scmp.eq.s32.totalorder %s31, 1
    %p175 = por %p173, %p174
    %p176 = scmp.ne.s32.totalorder %s167, %s168
    %p177 = scmp.eq.s32.totalorder %s31, 0
    %p178 = por %p176, %p177
    %p179 = scmp.ne.s32.totalorder %s167, %s168
    %p180 = scmp.eq.s32.totalorder %s32, 1
    %p181 = por %p179, %p180
    %p183 = scmp.ne.s32.totalorder %s168, %s182
    %p184 = scmp.eq.s32.totalorder %s32, 0
    %p185 = por %p183, %p184
    %s187 = sadd.s32 %s186, 1
    %p190 = scmp.eq.s32.totalorder %s26, 1
    %p191 = scmp.ne.s32.totalorder %s186, %s188
    %p192 = scmp.eq.s32.totalorder %s26, 0
    %p193 = por %p191, %p192
    %p194 = scmp.ne.s32.totalorder %s186, %s188
    %p195 = scmp.eq.s32.totalorder %s31, 1
    %p196 = por %p194, %p195
    %p197 = scmp.ne.s32.totalorder %s188, %s189
    %p198 = scmp.eq.s32.totalorder %s31, 0
    %p199 = por %p197, %p198
    %p200 = scmp.ne.s32.totalorder %s188, %s189
    %p201 = scmp.eq.s32.totalorder %s32, 1
    %p202 = por %p200, %p201
    %p204 = scmp.ne.s32.totalorder %s189, %s203
    %p205 = scmp.eq.s32.totalorder %s32, 0
    %p206 = por %p204, %p205
    %s208 = sadd.s32 %s207, 1
    %p211 = scmp.eq.s32.totalorder %s26, 1
    %p212 = scmp.ne.s32.totalorder %s207, %s209
    %p213 = scmp.eq.s32.totalorder %s26, 0
    %p214 = por %p212, %p213
    %p215 = scmp.ne.s32.totalorder %s207, %s209
    %p216 = scmp.eq.s32.totalorder %s31, 1
    %p217 = por %p215, %p216
    %p218 = scmp.ne.s32.totalorder %s209, %s210
    %p219 = scmp.eq.s32.totalorder %s31, 0
    %p220 = por %p218, %p219
    %p221 = scmp.ne.s32.totalorder %s209, %s210
    %p222 = scmp.eq.s32.totalorder %s32, 1
    %p223 = por %p221, %p222
    %p225 = scmp.ne.s32.totalorder %s210, %s224
    %p226 = scmp.eq.s32.totalorder %s32, 0
    %p227 = por %p225, %p226
    %s229 = sadd.s32 %s228, 1
    %p232 = scmp.eq.s32.totalorder %s26, 1
    %p233 = scmp.ne.s32.totalorder %s228, %s230
    %p234 = scmp.eq.s32.totalorder %s26, 0
    %p235 = por %p233, %p234
    %p236 = scmp.ne.s32.totalorder %s228, %s230
    %p237 = scmp.eq.s32.totalorder %s31, 1
    %p238 = por %p236, %p237
    %p239 = scmp.ne.s32.totalorder %s230, %s231
    %p240 = scmp.eq.s32.totalorder %s31, 0
    %p241 = por %p239, %p240
    %p242 = scmp.ne.s32.totalorder %s230, %s231
    %p243 = scmp.eq.s32.totalorder %s32, 1
    %p244 = por %p242, %p243
    %p246 = scmp.ne.s32.totalorder %s231, %s245
    %p247 = scmp.eq.s32.totalorder %s32, 0
    %p248 = por %p246, %p247
    %s250 = sadd.s32 %s249, 1
    %p253 = scmp.eq.s32.totalorder %s26, 1
    %p254 = scmp.ne.s32.totalorder %s249, %s251
    %p255 = scmp.eq.s32.totalorder %s26, 0
    %p256 = por %p254, %p255
    %p257 = scmp.ne.s32.totalorder %s249, %s251
    %p258 = scmp.eq.s32.totalorder %s31, 1
    %p259 = por %p257, %p258
    %p260 = scmp.ne.s32.totalorder %s251, %s252
    %p261 = scmp.eq.s32.totalorder %s31, 0
    %p262 = por %p260, %p261
    %p263 = scmp.ne.s32.totalorder %s251, %s252
    %p264 = scmp.eq.s32.totalorder %s32, 1
    %p265 = por %p263, %p264
    %p267 = scmp.ne.s32.totalorder %s252, %s266
    %p268 = scmp.eq.s32.totalorder %s32, 0
    %p269 = por %p267, %p268
    %s271 = sadd.s32 %s270, 1
    %p274 = scmp.eq.s32.totalorder %s26, 1
    %p275 = scmp.ne.s32.totalorder %s270, %s272
    %p276 = scmp.eq.s32.totalorder %s26, 0
    %p277 = por %p275, %p276
    %p278 = scmp.ne.s32.totalorder %s270, %s272
    %p279 = scmp.eq.s32.totalorder %s31, 1
    %p280 = por %p278, %p279
    %p281 = scmp.ne.s32.totalorder %s272, %s273
    %p282 = scmp.eq.s32.totalorder %s31, 0
    %p283 = por %p281, %p282
    %p284 = scmp.ne.s32.totalorder %s272, %s273
    %p285 = scmp.eq.s32.totalorder %s32, 1
    %p286 = por %p284, %p285
    %p288 = scmp.ne.s32.totalorder %s273, %s287
    %p289 = scmp.eq.s32.totalorder %s32, 0
    %p290 = por %p288, %p289
    %s292 = sadd.s32 %s291, 1
    %p295 = scmp.eq.s32.totalorder %s26, 1
    %p296 = scmp.ne.s32.totalorder %s291, %s293
    %p297 = scmp.eq.s32.totalorder %s26, 0
    %p298 = por %p296, %p297
    %p299 = scmp.ne.s32.totalorder %s291, %s293
    %p300 = scmp.eq.s32.totalorder %s31, 1
    %p301 = por %p299, %p300
    %p302 = scmp.ne.s32.totalorder %s293, %s294
    %p303 = scmp.eq.s32.totalorder %s31, 0
    %p304 = por %p302, %p303
    %p305 = scmp.ne.s32.totalorder %s293, %s294
    %p306 = scmp.eq.s32.totalorder %s32, 1
    %p307 = por %p305, %p306
    %p309 = scmp.ne.s32.totalorder %s294, %s308
    %p310 = scmp.eq.s32.totalorder %s32, 0
    %p311 = por %p309, %p310
    %s313 = sadd.s32 %s312, 1
    %p316 = scmp.eq.s32.totalorder %s26, 1
    %p317 = scmp.ne.s32.totalorder %s312, %s314
    %p318 = scmp.eq.s32.totalorder %s26, 0
    %p319 = por %p317, %p318
    %p320 = scmp.ne.s32.totalorder %s312, %s314
    %p321 = scmp.eq.s32.totalorder %s31, 1
    %p322 = por %p320, %p321
    %p323 = scmp.ne.s32.totalorder %s314, %s315
    %p324 = scmp.eq.s32.totalorder %s31, 0
    %p325 = por %p323, %p324
    %p326 = scmp.ne.s32.totalorder %s314, %s315
    %p327 = scmp.eq.s32.totalorder %s32, 1
    %p328 = por %p326, %p327
    %p330 = scmp.ne.s32.totalorder %s315, %s329
    %p331 = scmp.eq.s32.totalorder %s32, 0
    %p332 = por %p330, %p331
    %s334 = sadd.s32 %s333, 1
    %p337 = scmp.eq.s32.totalorder %s26, 1
    %p338 = scmp.ne.s32.totalorder %s333, %s335
    %p339 = scmp.eq.s32.totalorder %s26, 0
    %p340 = por %p338, %p339
    %p341 = scmp.ne.s32.totalorder %s333, %s335
    %p342 = scmp.eq.s32.totalorder %s31, 1
    %p343 = por %p341, %p342
    %p344 = scmp.ne.s32.totalorder %s335, %s336
    %p345 = scmp.eq.s32.totalorder %s31, 0
    %p346 = por %p344, %p345
    %p347 = scmp.ne.s32.totalorder %s335, %s336
    %p348 = scmp.eq.s32.totalorder %s32, 1
    %p349 = por %p347, %p348
    %p351 = scmp.ne.s32.totalorder %s336, %s350
    %p352 = scmp.eq.s32.totalorder %s32, 0
    %p353 = por %p351, %p352
    %s355 = sadd.s32 %s354, 1
    %p358 = scmp.eq.s32.totalorder %s26, 1
    %p359 = scmp.ne.s32.totalorder %s354, %s356
    %p360 = scmp.eq.s32.totalorder %s26, 0
    %p361 = por %p359, %p360
    %p362 = scmp.ne.s32.totalorder %s354, %s356
    %p363 = scmp.eq.s32.totalorder %s31, 1
    %p364 = por %p362, %p363
    %p365 = scmp.ne.s32.totalorder %s356, %s357
    %p366 = scmp.eq.s32.totalorder %s31, 0
    %p367 = por %p365, %p366
    %p368 = scmp.ne.s32.totalorder %s356, %s357
    %p369 = scmp.eq.s32.totalorder %s32, 1
    %p370 = por %p368, %p369
    %p372 = scmp.ne.s32.totalorder %s357, %s371
    %p373 = scmp.eq.s32.totalorder %s32, 0
    %p374 = por %p372, %p373
    %s376 = sadd.s32 %s375, 1
    %p379 = scmp.eq.s32.totalorder %s26, 1
    %p380 = scmp.ne.s32.totalorder %s375, %s377
    %p381 = scmp.eq.s32.totalorder %s26, 0
    %p382 = por %p380, %p381
    %p383 = scmp.ne.s32.totalorder %s375, %s377
    %p384 = scmp.eq.s32.totalorder %s31, 1
    %p385 = por %p383, %p384
    %p386 = scmp.ne.s32.totalorder %s377, %s378
    %p387 = scmp.eq.s32.totalorder %s31, 0
    %p388 = por %p386, %p387
    %p389 = scmp.ne.s32.totalorder %s377, %s378
    %p390 = scmp.eq.s32.totalorder %s32, 1
    %p391 = por %p389, %p390
    %p393 = scmp.ne.s32.totalorder %s378, %s392
    %p394 = scmp.eq.s32.totalorder %s32, 0
    %p395 = por %p393, %p394
    %s397 = sadd.s32 %s396, 1
    %p400 = scmp.eq.s32.totalorder %s26, 1
    %p401 = scmp.ne.s32.totalorder %s396, %s398
    %p402 = scmp.eq.s32.totalorder %s26, 0
    %p403 = por %p401, %p402
    %p404 = scmp.ne.s32.totalorder %s396, %s398
    %p405 = scmp.eq.s32.totalorder %s31, 1
    %p406 = por %p404, %p405
    %p407 = scmp.ne.s32.totalorder %s398, %s399
    %p408 = scmp.eq.s32.totalorder %s31, 0
    %p409 = por %p407, %p408
    %p410 = scmp.ne.s32.totalorder %s398, %s399
    %p411 = scmp.eq.s32.totalorder %s32, 1
    %p412 = por %p410, %p411
    %p414 = scmp.ne.s32.totalorder %s399, %s413
    %p415 = scmp.eq.s32.totalorder %s32, 0
    %p416 = por %p414, %p415
    %s418 = sadd.s32 %s417, 1
    %p421 = scmp.eq.s32.totalorder %s26, 1
    %p422 = scmp.ne.s32.totalorder %s417, %s419
    %p423 = scmp.eq.s32.totalorder %s26, 0
    %p424 = por %p422, %p423
    %p425 = scmp.ne.s32.totalorder %s417, %s419
    %p426 = scmp.eq.s32.totalorder %s31, 1
    %p427 = por %p425, %p426
    %p428 = scmp.ne.s32.totalorder %s419, %s420
    %p429 = scmp.eq.s32.totalorder %s31, 0
    %p430 = por %p428, %p429
    %p431 = scmp.ne.s32.totalorder %s419, %s420
    %p432 = scmp.eq.s32.totalorder %s32, 1
    %p433 = por %p431, %p432
    %p435 = scmp.ne.s32.totalorder %s420, %s434
    %p436 = scmp.eq.s32.totalorder %s32, 0
    %p437 = por %p435, %p436
    %s439 = sadd.s32 %s438, 1
    %p442 = scmp.eq.s32.totalorder %s26, 1
    %p443 = scmp.ne.s32.totalorder %s438, %s440
    %p444 = scmp.eq.s32.totalorder %s26, 0
    %p445 = por %p443, %p444
    %p446 = scmp.ne.s32.totalorder %s438, %s440
    %p447 = scmp.eq.s32.totalorder %s31, 1
    %p448 = por %p446, %p447
    %p449 = scmp.ne.s32.totalorder %s440, %s441
    %p450 = scmp.eq.s32.totalorder %s31, 0
    %p451 = por %p449, %p450
    %p452 = scmp.ne.s32.totalorder %s440, %s441
    %p453 = scmp.eq.s32.totalorder %s32, 1
    %p454 = por %p452, %p453
    %p456 = scmp.ne.s32.totalorder %s441, %s455
    %p457 = scmp.eq.s32.totalorder %s32, 0
    %p458 = por %p456, %p457
    %s459 = ssub.s32 %s26, %s33
    %p460 = scmp.eq.s32.totalorder %s459, 0
    %s462 = sadd.s32 %s461, 1
    %s463 = scalar_select %p460, %s461, %s462
    %p466 = pneg %p460
    %p467 = scmp.eq.s32.totalorder %s26, 1
    %p468 = por %p466, %p467
    %p469 = scmp.ne.s32.totalorder %s461, %s464
    %p470 = scmp.eq.s32.totalorder %s26, 0
    %p471 = por %p469, %p470
    %p472 = scmp.ne.s32.totalorder %s461, %s464
    %p473 = scmp.eq.s32.totalorder %s31, 1
    %p474 = por %p472, %p473
    %p475 = scmp.ne.s32.totalorder %s464, %s465
    %p476 = scmp.eq.s32.totalorder %s31, 0
    %p477 = por %p475, %p476
    %p478 = scmp.ne.s32.totalorder %s464, %s465
    %p479 = scmp.eq.s32.totalorder %s32, 1
    %p480 = por %p478, %p479
    %p482 = scmp.ne.s32.totalorder %s465, %s481
    %p483 = scmp.eq.s32.totalorder %s32, 0
    %p484 = por %p482, %p483
    %p485 = scmp.le.s32.totalorder 1, %s26
    %p486 = scmp.lt.s32.totalorder %s26, 3
    %p487 = pnand %p485, %p486
    %p488 = pneg %p487
    // Predicated region
    $region9: #{paligemma_forward.2} parent=5 // pred_check
      _
    $region10: #{paligemma_forward.2} parent=5 // pred_check_branch
      %490 = sbr.rel (%p487) target = $region12
    $region11: #{paligemma_forward.2} parent=5 // pred_region
      %s491 = ssub.s32 %s26, 1
      // Predicated region
      $region13: #{paligemma_forward.2} parent=11 // pred_check
        %p492 = pneg %p73
      $region14: #{paligemma_forward.2} parent=11 // pred_check_branch
        %494 = sbr.rel (%p492) target = $region16
      $region15: #{paligemma_forward.2} parent=11 // pred_region
        _
      $region16: #{paligemma_forward.2} parent=11 // pred_fallthru
        _
      // Predicated region
      $region17: #{paligemma_forward.2} parent=11 // pred_check
        %p495 = pneg %p94
      $region18: #{paligemma_forward.2} parent=11 // pred_check_branch
        %497 = sbr.rel (%p495) target = $region20
      $region19: #{paligemma_forward.2} parent=11 // pred_region
        _
      $region20: #{paligemma_forward.2} parent=11 // pred_fallthru
        _
      // Predicated region
      $region21: #{paligemma_forward.2} parent=11 // pred_check
        %p498 = pneg %p115
      $region22: #{paligemma_forward.2} parent=11 // pred_check_branch
        %500 = sbr.rel (%p498) target = $region24
      $region23: #{paligemma_forward.2} parent=11 // pred_region
        _
      $region24: #{paligemma_forward.2} parent=11 // pred_fallthru
        _
      // Predicated region
      $region25: #{paligemma_forward.2} parent=11 // pred_check
        %p501 = pneg %p136
      $region26: #{paligemma_forward.2} parent=11 // pred_check_branch
        %503 = sbr.rel (%p501) target = $region28
      $region27: #{paligemma_forward.2} parent=11 // pred_region
        _
      $region28: #{paligemma_forward.2} parent=11 // pred_fallthru
        _
      // Predicated region
      $region29: #{paligemma_forward.2} parent=11 // pred_check
        %p504 = pneg %p157
      $region30: #{paligemma_forward.2} parent=11 // pred_check_branch
        %506 = sbr.rel (%p504) target = $region32
      $region31: #{paligemma_forward.2} parent=11 // pred_region
        _
      $region32: #{paligemma_forward.2} parent=11 // pred_fallthru
        _
      // Predicated region
      $region33: #{paligemma_forward.2} parent=11 // pred_check
        %p507 = pneg %p178
      $region34: #{paligemma_forward.2} parent=11 // pred_check_branch
        %509 = sbr.rel (%p507) target = $region36
      $region35: #{paligemma_forward.2} parent=11 // pred_region
        _
      $region36: #{paligemma_forward.2} parent=11 // pred_fallthru
        _
      // Predicated region
      $region37: #{paligemma_forward.2} parent=11 // pred_check
        %p510 = pneg %p199
      $region38: #{paligemma_forward.2} parent=11 // pred_check_branch
        %512 = sbr.rel (%p510) target = $region40
      $region39: #{paligemma_forward.2} parent=11 // pred_region
        _
      $region40: #{paligemma_forward.2} parent=11 // pred_fallthru
        _
      // Predicated region
      $region41: #{paligemma_forward.2} parent=11 // pred_check
        %p513 = pneg %p220
      $region42: #{paligemma_forward.2} parent=11 // pred_check_branch
        %515 = sbr.rel (%p513) target = $region44
      $region43: #{paligemma_forward.2} parent=11 // pred_region
        _
      $region44: #{paligemma_forward.2} parent=11 // pred_fallthru
        _
      // Predicated region
      $region45: #{paligemma_forward.2} parent=11 // pred_check
        %p516 = pneg %p241
      $region46: #{paligemma_forward.2} parent=11 // pred_check_branch
        %518 = sbr.rel (%p516) target = $region48
      $region47: #{paligemma_forward.2} parent=11 // pred_region
        _
      $region48: #{paligemma_forward.2} parent=11 // pred_fallthru
        _
      // Predicated region
      $region49: #{paligemma_forward.2} parent=11 // pred_check
        %p519 = pneg %p262
      $region50: #{paligemma_forward.2} parent=11 // pred_check_branch
        %521 = sbr.rel (%p519) target = $region52
      $region51: #{paligemma_forward.2} parent=11 // pred_region
        _
      $region52: #{paligemma_forward.2} parent=11 // pred_fallthru
        _
      // Predicated region
      $region53: #{paligemma_forward.2} parent=11 // pred_check
        %p522 = pneg %p283
      $region54: #{paligemma_forward.2} parent=11 // pred_check_branch
        %524 = sbr.rel (%p522) target = $region56
      $region55: #{paligemma_forward.2} parent=11 // pred_region
        _
      $region56: #{paligemma_forward.2} parent=11 // pred_fallthru
        _
      // Predicated region
      $region57: #{paligemma_forward.2} parent=11 // pred_check
        %p525 = pneg %p304
      $region58: #{paligemma_forward.2} parent=11 // pred_check_branch
        %527 = sbr.rel (%p525) target = $region60
      $region59: #{paligemma_forward.2} parent=11 // pred_region
        _
      $region60: #{paligemma_forward.2} parent=11 // pred_fallthru
        _
      // Predicated region
      $region61: #{paligemma_forward.2} parent=11 // pred_check
        %p528 = pneg %p325
      $region62: #{paligemma_forward.2} parent=11 // pred_check_branch
        %530 = sbr.rel (%p528) target = $region64
      $region63: #{paligemma_forward.2} parent=11 // pred_region
        _
      $region64: #{paligemma_forward.2} parent=11 // pred_fallthru
        _
      // Predicated region
      $region65: #{paligemma_forward.2} parent=11 // pred_check
        %p531 = pneg %p346
      $region66: #{paligemma_forward.2} parent=11 // pred_check_branch
        %533 = sbr.rel (%p531) target = $region68
      $region67: #{paligemma_forward.2} parent=11 // pred_region
        _
      $region68: #{paligemma_forward.2} parent=11 // pred_fallthru
        _
      // Predicated region
      $region69: #{paligemma_forward.2} parent=11 // pred_check
        %p534 = pneg %p367
      $region70: #{paligemma_forward.2} parent=11 // pred_check_branch
        %536 = sbr.rel (%p534) target = $region72
      $region71: #{paligemma_forward.2} parent=11 // pred_region
        _
      $region72: #{paligemma_forward.2} parent=11 // pred_fallthru
        _
      // Predicated region
      $region73: #{paligemma_forward.2} parent=11 // pred_check
        %p537 = pneg %p388
      $region74: #{paligemma_forward.2} parent=11 // pred_check_branch
        %539 = sbr.rel (%p537) target = $region76
      $region75: #{paligemma_forward.2} parent=11 // pred_region
        _
      $region76: #{paligemma_forward.2} parent=11 // pred_fallthru
        _
      // Predicated region
      $region77: #{paligemma_forward.2} parent=11 // pred_check
        %p540 = pneg %p409
      $region78: #{paligemma_forward.2} parent=11 // pred_check_branch
        %542 = sbr.rel (%p540) target = $region80
      $region79: #{paligemma_forward.2} parent=11 // pred_region
        _
      $region80: #{paligemma_forward.2} parent=11 // pred_fallthru
        _
      // Predicated region
      $region81: #{paligemma_forward.2} parent=11 // pred_check
        %p543 = pneg %p430
      $region82: #{paligemma_forward.2} parent=11 // pred_check_branch
        %545 = sbr.rel (%p543) target = $region84
      $region83: #{paligemma_forward.2} parent=11 // pred_region
        _
      $region84: #{paligemma_forward.2} parent=11 // pred_fallthru
        _
      // Predicated region
      $region85: #{paligemma_forward.2} parent=11 // pred_check
        %p546 = pneg %p451
      $region86: #{paligemma_forward.2} parent=11 // pred_check_branch
        %548 = sbr.rel (%p546) target = $region88
      $region87: #{paligemma_forward.2} parent=11 // pred_region
        _
      $region88: #{paligemma_forward.2} parent=11 // pred_fallthru
        _
    $region12: #{paligemma_forward.2} parent=5 // pred_fallthru
      _
    %p549 = scmp.lt.s32.totalorder %s26, 2
    // Predicated region
    $region89: #{paligemma_forward.2} parent=5 // pred_check
      %p550 = pneg %p549
    $region90: #{paligemma_forward.2} parent=5 // pred_check_branch
      %552 = sbr.rel (%p550) target = $region92
    $region91: #{paligemma_forward.2} parent=5 // pred_region
      // Predicated region
      $region93: #{paligemma_forward.2} parent=91 // pred_check
        %p553 = pneg %p46
      $region94: #{paligemma_forward.2} parent=91 // pred_check_branch
        %555 = sbr.rel (%p553) target = $region96
      $region95: #{paligemma_forward.2} parent=91 // pred_region
        %p556 = scmp.lt.s32.totalorder %s26, 1
        %s557 = scalar_select %p556, %s26, 1
        %s558 = smul.addr %s557, 2
        %s559 = smul.addr %s558, 4
        %s560 = scalar_lea.vmem %s0, %s559
      $region96: #{paligemma_forward.2} parent=91 // pred_fallthru
        _
    $region92: #{paligemma_forward.2} parent=5 // pred_fallthru
      _
    %p561 = scmp.le.s32.totalorder 1, %s26
    %p562 = scmp.lt.s32.totalorder %s26, 3
    %p563 = pnand %p561, %p562
    %p564 = pneg %p563
    // Predicated region
    $region97: #{paligemma_forward.2} parent=5 // pred_check
      _
    $region98: #{paligemma_forward.2} parent=5 // pred_check_branch
      %566 = sbr.rel (%p563) target = $region100
    $region99: #{paligemma_forward.2} parent=5 // pred_region
      %s567 = ssub.s32 %s26, 1
      %p568 = scmp.lt.s32.totalorder %s31, 1
      %s569 = scalar_select %p568, %s31, 1
      %s570 = smul.addr %s569, 2
      %s571 = smul.addr %s570, 4
      %s572 = scalar_lea.vmem %s0, %s571
      %p573 = pneg %p52
      %p574 = pneg %p49
      %p575 = pneg %p73
      %p576 = pneg %p70
      %p577 = pneg %p94
      %p578 = pneg %p91
      %p579 = pneg %p115
      %p580 = pneg %p112
      %p581 = pneg %p136
      %p582 = pneg %p133
      %p583 = pneg %p157
      %p584 = pneg %p154
      %p585 = pneg %p178
      %p586 = pneg %p175
      %p587 = pneg %p199
      %p588 = pneg %p196
      %p589 = pneg %p220
      %p590 = pneg %p217
      %p591 = pneg %p241
      %p592 = pneg %p238
      %p593 = pneg %p262
      %p594 = pneg %p259
      %p595 = pneg %p283
      %p596 = pneg %p280
      %p597 = pneg %p304
      %p598 = pneg %p301
      %p599 = pneg %p325
      %p600 = pneg %p322
      %p601 = pneg %p346
      %p602 = pneg %p343
      %p603 = pneg %p367
      %p604 = pneg %p364
      %p605 = pneg %p388
      %p606 = pneg %p385
      %p607 = pneg %p409
      %p608 = pneg %p406
      %p609 = pneg %p430
      %p610 = pneg %p427
      %p611 = pneg %p451
      %p612 = pneg %p448
      %p613 = pneg %p477
      %p614 = pneg %p474
      %p615 = scmp.lt.s32.totalorder %s31, 1
      %s616 = scalar_select %p615, %s31, 1
      %s617 = smul.addr %s616, 4
      %s618 = scalar_lea.vmem %s20, %s617
      %p619 = scmp.lt.s32.totalorder %s31, 1
      %s620 = scalar_select %p619, %s31, 1
      %s621 = smul.addr %s620, 2
      %s622 = smul.addr %s621, 4
      %s623 = scalar_lea.vmem %s0, %s622
      %p624 = scmp.lt.s32.totalorder %s31, 1
      %s625 = scalar_select %p624, %s31, 1
      %s626 = smul.addr %s625, 4
      %s627 = scalar_lea.vmem %s20, %s626
      %v628 = vld [vmem:[%s623] sm:$0xff]
      %v629 = vld [vmem:[%s1] sm:$0xff]
      %v630 = vld [vmem:[%s1 + $0x8] sm:$0xff]
      %v631 = vld [vmem:[%s1 + $0x10] sm:$0xff]
      %v632 = vld [vmem:[%s1 + $0x18] sm:$0xff]
      %v633 = vld [vmem:[%s1 + $0x20] sm:$0xff]
      %v634 = vld [vmem:[%s1 + $0x28] sm:$0xff]
      %v635 = vld [vmem:[%s1 + $0x30] sm:$0xff]
      %v636 = vld [vmem:[%s1 + $0x38] sm:$0xff]
      %v637 = vld [vmem:[%s1 + $0x40] sm:$0xff]
      %v638 = vld [vmem:[%s1 + $0x48] sm:$0xff]
      %v639 = vld [vmem:[%s1 + $0x50] sm:$0xff]
      %v640 = vld [vmem:[%s1 + $0x58] sm:$0xff]
      %v641 = vld [vmem:[%s1 + $0x60] sm:$0xff]
      %v642 = vld [vmem:[%s1 + $0x68] sm:$0xff]
      %v643 = vld [vmem:[%s1 + $0x70] sm:$0xff]
      %v644 = vld [vmem:[%s1 + $0x78] sm:$0xff]
      %v645 = vld [vmem:[%s1 + $0x80] sm:$0xff]
      %v646 = vld [vmem:[%s1 + $0x88] sm:$0xff]
      %v647 = vld [vmem:[%s1 + $0x90] sm:$0xff]
      %v648 = vld [vmem:[%s1 + $0x98] sm:$0xff]
      %v649 = vld [vmem:[%s1 + $0xa0] sm:$0xff]
      %v650 = vld [vmem:[%s1 + $0xa8] sm:$0xff]
      %v651 = vld [vmem:[%s1 + $0xb0] sm:$0xff]
      %v652 = vld [vmem:[%s1 + $0xb8] sm:$0xff]
      %v653 = vld [vmem:[%s2] sm:$0x1]
      %v655 = vlaneseq
      %v656 = vshrl.u32 %v655, 7
      %v657 = vsub.s32 0, %v656
      %v658 = vrot.slane %v653, %v657
      %v661 = vcombine.high %v628, %v628
      %vm662 = vcmask 523264
      %v663 = vsel %vm662, %v661, 0
      %665 = vmatprep.subr.mxu0 0.0
      %666 = vmatpush1.msra.mxu0 %v629
      %667 = vmatprep.subr.mxu0 0.0
      %668 = vmatpush1.msra.mxu0 %v630
      %669 = vmatprep.subr.mxu0 0.0
      %670 = vmatpush1.msra.mxu0 %v631
      %671 = vmatprep.subr.mxu0 0.0
      %672 = vmatpush1.msra.mxu0 %v632
      %673 = vmatprep.subr.mxu0 0.0
      %674 = vmatpush1.msra.mxu0 %v633
      %675 = vmatprep.subr.mxu0 0.0
      %676 = vmatpush1.msra.mxu0 %v634
      %677 = vmatprep.subr.mxu0 0.0
      %678 = vmatpush1.msra.mxu0 %v635
      %679 = vmatprep.subr.mxu0 0.0
      %680 = vmatpush1.msra.mxu0 %v636
      %681 = vmatprep.subr.mxu0 0.0
      %682 = vmatpush1.msra.mxu0 %v637
      %683 = vmatprep.subr.mxu0 0.0
      %684 = vmatpush1.msra.mxu0 %v638
      %685 = vmatprep.subr.mxu0 0.0
      %686 = vmatpush1.msra.mxu0 %v639
      %687 = vmatprep.subr.mxu0 0.0
      %688 = vmatpush1.msra.mxu0 %v640
      %689 = vmatprep.subr.mxu0 0.0
      %690 = vmatpush1.msra.mxu0 %v641
      %691 = vmatprep.subr.mxu0 0.0
      %692 = vmatpush1.msra.mxu0 %v642
      %693 = vmatprep.subr.mxu0 0.0
      %694 = vmatpush1.msra.mxu0 %v643
      %695 = vmatprep.subr.mxu0 0.0
      %696 = vmatpush1.msra.mxu0 %v644
      %697 = vmatprep.subr.mxu0 0.0
      %698 = vmatpush1.msra.mxu0 %v645
      %699 = vmatprep.subr.mxu0 0.0
      %700 = vmatpush1.msra.mxu0 %v646
      %701 = vmatprep.subr.mxu0 0.0
      %702 = vmatpush1.msra.mxu0 %v647
      %703 = vmatprep.subr.mxu0 0.0
      %704 = vmatpush1.msra.mxu0 %v648
      %705 = vmatprep.subr.mxu0 0.0
      %706 = vmatpush1.msra.mxu0 %v649
      %707 = vmatprep.subr.mxu0 0.0
      %708 = vmatpush1.msra.mxu0 %v650
      %709 = vmatprep.subr.mxu0 0.0
      %710 = vmatpush1.msra.mxu0 %v651
      %711 = vmatprep.subr.mxu0 0.0
      %712 = vmatpush1.msra.mxu0 %v652
      %713 = vmatprep.subr.mxu0 0.0
      %714 = vmatpush1.msra.mxu0 0.0
      %715 = vmatprep.subr.mxu0 0.0
      %716 = vmatpush1.msra.mxu0 0.0
      %717 = vmatprep.subr.mxu0 0.0
      %718 = vmatpush1.msra.mxu0 0.0
      %719 = vmatprep.subr.mxu0 0.0
      %720 = vmatpush1.msra.mxu0 0.0
      %721 = vmatprep.subr.mxu0 0.0
      %722 = vmatpush1.msra.mxu0 0.0
      %723 = vmatprep.subr.mxu0 0.0
      %724 = vmatpush1.msra.mxu0 0.0
      %725 = vmatprep.subr.mxu0 0.0
      %726 = vmatpush1.msra.mxu0 0.0
      %727 = vmatprep.subr.mxu0 0.0
      %728 = vmatpush1.msra.mxu0 0.0
      %729 = vmatprep.mubr.f32.mxu0 %v663
      %730 = vmatmul.mubr.f32.gmra.mrb[0].mxu0 %v628
      %v731 = vpop.f32.mrb[0].mxu0
      %v732 = vadd.f32 %v658, %v731
      %v733 = vpop.f32.mrb[0].mxu0
      %734 = vdwg.mxu0
      %v735 = vld [vmem:[%s3] sm:$0xf]
      %v736 = vadd.f32 %v732, %v735
      %v737 = vld [vmem:[%s4] sm:$0x1]
      %v738 = vld [vmem:[%s5] sm:$0x1]
      %vm739 = vcmask 257024
      %v740 = vsel %vm739, %v736, 0.0
      %741 = vadd.xlane.f32.xlu0 %v740
      %v742 = vpop.xlane.xlu0 %741
      %v743 = vrcp.pop 32.0
      %v744 = vmul.f32 %v742, %v743
      %v745 = vsub.f32 %v736, %v744
      %v746 = vmul.f32 %v745, %v745
      %v747 = vsel %vm739, %v746, 0.0
      %748 = vadd.xlane.f32.xlu0 %v747
      %v749 = vpop.xlane.xlu0 %748
      %v750 = vmul.f32 %v749, %v743
      %v751 = vadd.f32 %v750, 1e-06
      %v752 = vrsqrt.pop %v751
      %v753 = vmul.f32 %v745, %v752
      %v755 = vlaneseq
      %v756 = vshrl.u32 %v755, 7
      %v757 = vsub.s32 0, %v756
      %v758 = vrot.slane %v737, %v757
      %v760 = vmul.f32 %v753, %v758
      %v762 = vlaneseq
      %v763 = vshrl.u32 %v762, 7
      %v764 = vsub.s32 0, %v763
      %v765 = vrot.slane %v738, %v764
      %v767 = vadd.f32 %v760, %v765
      %v768 = vld [vmem:[%s6] sm:$0xff]
      %v769 = vld [vmem:[%s6 + $0x8] sm:$0xff]
      %v770 = vld [vmem:[%s6 + $0x10] sm:$0xff]
      %v771 = vld [vmem:[%s6 + $0x18] sm:$0xff]
      %v772 = vld [vmem:[%s7] sm:$0x1]
      %v774 = vlaneseq
      %v775 = vshrl.u32 %v774, 7
      %v776 = vsub.s32 0, %v775
      %v777 = vrot.slane %v772, %v776
      %vm779 = vcmask 261120
      %v781 = vsel %vm779, %v767, 0
      %783 = vmatprep.subr.mxu0 0.0
      %784 = vmatpush1.msra.mxu0 %v768
      %785 = vmatprep.subr.mxu0 0.0
      %786 = vmatpush1.msra.mxu0 %v769
      %787 = vmatprep.subr.mxu0 0.0
      %788 = vmatpush1.msra.mxu0 %v770
      %789 = vmatprep.subr.mxu0 0.0
      %790 = vmatpush1.msra.mxu0 %v771
      %791 = vmatprep.subr.mxu0 0.0
      %792 = vmatpush1.msra.mxu0 0.0
      %793 = vmatprep.subr.mxu0 0.0
      %794 = vmatpush1.msra.mxu0 0.0
      %795 = vmatprep.subr.mxu0 0.0
      %796 = vmatpush1.msra.mxu0 0.0
      %797 = vmatprep.subr.mxu0 0.0
      %798 = vmatpush1.msra.mxu0 0.0
      %799 = vmatprep.subr.mxu0 0.0
      %800 = vmatpush1.msra.mxu0 0.0
      %801 = vmatprep.subr.mxu0 0.0
      %802 = vmatpush1.msra.mxu0 0.0
      %803 = vmatprep.subr.mxu0 0.0
      %804 = vmatpush1.msra.mxu0 0.0
      %805 = vmatprep.subr.mxu0 0.0
      %806 = vmatpush1.msra.mxu0 0.0
      %807 = vmatprep.subr.mxu0 0.0
      %808 = vmatpush1.msra.mxu0 0.0
      %809 = vmatprep.subr.mxu0 0.0
      %810 = vmatpush1.msra.mxu0 0.0
      %811 = vmatprep.subr.mxu0 0.0
      %812 = vmatpush1.msra.mxu0 0.0
      %813 = vmatprep.subr.mxu0 0.0
      %814 = vmatpush1.msra.mxu0 0.0
      %815 = vmatprep.subr.mxu0 0.0
      %816 = vmatpush1.msra.mxu0 0.0
      %817 = vmatprep.subr.mxu0 0.0
      %818 = vmatpush1.msra.mxu0 0.0
      %819 = vmatprep.subr.mxu0 0.0
      %820 = vmatpush1.msra.mxu0 0.0
      %821 = vmatprep.subr.mxu0 0.0
      %822 = vmatpush1.msra.mxu0 0.0
      %823 = vmatprep.subr.mxu0 0.0
      %824 = vmatpush1.msra.mxu0 0.0
      %825 = vmatprep.subr.mxu0 0.0
      %826 = vmatpush1.msra.mxu0 0.0
      %827 = vmatprep.subr.mxu0 0.0
      %828 = vmatpush1.msra.mxu0 0.0
      %829 = vmatprep.subr.mxu0 0.0
      %830 = vmatpush1.msra.mxu0 0.0
      %831 = vmatprep.subr.mxu0 0.0
      %832 = vmatpush1.msra.mxu0 0.0
      %833 = vmatprep.subr.mxu0 0.0
      %834 = vmatpush1.msra.mxu0 0.0
      %835 = vmatprep.subr.mxu0 0.0
      %836 = vmatpush1.msra.mxu0 0.0
      %837 = vmatprep.subr.mxu0 0.0
      %838 = vmatpush1.msra.mxu0 0.0
      %839 = vmatprep.subr.mxu0 0.0
      %840 = vmatpush1.msra.mxu0 0.0
      %841 = vmatprep.subr.mxu0 0.0
      %842 = vmatpush1.msra.mxu0 0.0
      %843 = vmatprep.subr.mxu0 0.0
      %844 = vmatpush1.msra.mxu0 0.0
      %845 = vmatprep.subr.mxu0 0.0
      %846 = vmatpush1.msra.mxu0 0.0
      %847 = vmatprep.mubr.f32.mxu0 0.0
      %848 = vmatmul.mubr.f32.gmra.mrb[0].mxu0 %v781
      %v849 = vpop.f32.mrb[0].mxu0
      %v850 = vadd.f32 %v777, %v849
      %v851 = vpop.f32.mrb[0].mxu0
      %852 = vdwg.mxu0
      %854 = vrot.lane.b32.xlu0 %v850, 96
      %v855 = vpop.permute.xlu0 %854
      %vm856 = vcmask 64512
      %v857 = vsel %vm856, %v850, 0
      %v859 = vsel %vm856, %v855, 0
      %861 = vmatprep.subr.mxu0 0.0
      %862 = vmatpush1.xpose.msra.mxu0 %v859
      %863 = vmatprep.subr.mxu0 0.0
      %864 = vmatpush1.xpose.msra.mxu0 0.0
      %865 = vmatprep.subr.mxu0 0.0
      %866 = vmatpush1.xpose.msra.mxu0 0.0
      %867 = vmatprep.subr.mxu0 0.0
      %868 = vmatpush1.xpose.msra.mxu0 0.0
      %869 = vmatprep.subr.mxu0 0.0
      %870 = vmatpush1.xpose.msra.mxu0 0.0
      %871 = vmatprep.subr.mxu0 0.0
      %872 = vmatpush1.xpose.msra.mxu0 0.0
      %873 = vmatprep.subr.mxu0 0.0
      %874 = vmatpush1.xpose.msra.mxu0 0.0
      %875 = vmatprep.subr.mxu0 0.0
      %876 = vmatpush1.xpose.msra.mxu0 0.0
      %877 = vmatprep.subr.mxu0 0.0
      %878 = vmatpush1.xpose.msra.mxu0 0.0
      %879 = vmatprep.subr.mxu0 0.0
      %880 = vmatpush1.xpose.msra.mxu0 0.0
      %881 = vmatprep.subr.mxu0 0.0
      %882 = vmatpush1.xpose.msra.mxu0 0.0
      %883 = vmatprep.subr.mxu0 0.0
      %884 = vmatpush1.xpose.msra.mxu0 0.0
      %885 = vmatprep.subr.mxu0 0.0
      %886 = vmatpush1.xpose.msra.mxu0 0.0
      %887 = vmatprep.subr.mxu0 0.0
      %888 = vmatpush1.xpose.msra.mxu0 0.0
      %889 = vmatprep.subr.mxu0 0.0
      %890 = vmatpush1.xpose.msra.mxu0 0.0
      %891 = vmatprep.subr.mxu0 0.0
      %892 = vmatpush1.xpose.msra.mxu0 0.0
      %893 = vmatprep.subr.mxu0 0.0
      %894 = vmatpush1.xpose.msra.mxu0 0.0
      %895 = vmatprep.subr.mxu0 0.0
      %896 = vmatpush1.xpose.msra.mxu0 0.0
      %897 = vmatprep.subr.mxu0 0.0
      %898 = vmatpush1.xpose.msra.mxu0 0.0
      %899 = vmatprep.subr.mxu0 0.0
      %900 = vmatpush1.xpose.msra.mxu0 0.0
      %901 = vmatprep.subr.mxu0 0.0
      %902 = vmatpush1.xpose.msra.mxu0 0.0
      %903 = vmatprep.subr.mxu0 0.0
      %904 = vmatpush1.xpose.msra.mxu0 0.0
      %905 = vmatprep.subr.mxu0 0.0
      %906 = vmatpush1.xpose.msra.mxu0 0.0
      %907 = vmatprep.subr.mxu0 0.0
      %908 = vmatpush1.xpose.msra.mxu0 0.0
      %909 = vmatprep.subr.mxu0 0.0
      %910 = vmatpush1.xpose.msra.mxu0 0.0
      %911 = vmatprep.subr.mxu0 0.0
      %912 = vmatpush1.xpose.msra.mxu0 0.0
      %913 = vmatprep.subr.mxu0 0.0
      %914 = vmatpush1.xpose.msra.mxu0 0.0
      %915 = vmatprep.subr.mxu0 0.0
      %916 = vmatpush1.xpose.msra.mxu0 0.0
      %917 = vmatprep.subr.mxu0 0.0
      %918 = vmatpush1.xpose.msra.mxu0 0.0
      %919 = vmatprep.subr.mxu0 0.0
      %920 = vmatpush1.xpose.msra.mxu0 0.0
      %921 = vmatprep.subr.mxu0 0.0
      %922 = vmatpush1.xpose.msra.mxu0 0.0
      %923 = vmatprep.subr.mxu0 0.0
      %924 = vmatpush1.xpose.msra.mxu0 0.0
      %925 = vmatprep.mubr.f32.mxu0 0.0
      %926 = vmatmul.mubr.f32.gmra.mrb[0].mxu0 %v857
      %v927 = vpop.f32.mrb[0].mxu0
      %v928 = vadd.f32 0.0, %v927
      %v929 = vpop.f32.mrb[0].mxu0
      %930 = vdwg.mxu0
      %vm931 = vcmask 27648
      %v932 = vsel %vm931, %v928, -inf
      %933 = vmax.xlane.f32.xlu0 %v932
      %v934 = vpop.xlane.xlu0 %933
      %v935 = vsub.f32 %v928, %v934
      %v936 = vmul.f32 %v935, 1.442695
      %v937 = vpow.pop %v936
      %v938 = vsel %vm931, %v937, 0.0
      %939 = vadd.xlane.f32.xlu0 %v938
      %v940 = vpop.xlane.xlu0 %939
      %v941 = vrcp.pop %v940
      %v942 = vmul.f32 %v937, %v941
      %943 = vrot.lane.b32.xlu0 %v850, 64
      %v944 = vpop.permute.xlu0 %943
      %vm945 = vcmask 31744
      %v947 = vsel %vm945, %v942, 0
      %vm949 = vcmask 1043456
      %v950 = vsel %vm949, %v944, 0
      %952 = vmatprep.subr.mxu0 0.0
      %953 = vmatpush1.msra.mxu0 %v950
      %954 = vmatprep.subr.mxu0 0.0
      %955 = vmatpush1.msra.mxu0 0.0
      %956 = vmatprep.subr.mxu0 0.0
      %957 = vmatpush1.msra.mxu0 0.0
      %958 = vmatprep.subr.mxu0 0.0
      %959 = vmatpush1.msra.mxu0 0.0
      %960 = vmatprep.subr.mxu0 0.0
      %961 = vmatpush1.msra.mxu0 0.0
      %962 = vmatprep.subr.mxu0 0.0
      %963 = vmatpush1.msra.mxu0 0.0
      %964 = vmatprep.subr.mxu0 0.0
      %965 = vmatpush1.msra.mxu0 0.0
      %966 = vmatprep.subr.mxu0 0.0
      %967 = vmatpush1.msra.mxu0 0.0
      %968 = vmatprep.subr.mxu0 0.0
      %969 = vmatpush1.msra.mxu0 0.0
      %970 = vmatprep.subr.mxu0 0.0
      %971 = vmatpush1.msra.mxu0 0.0
      %972 = vmatprep.subr.mxu0 0.0
      %973 = vmatpush1.msra.mxu0 0.0
      %974 = vmatprep.subr.mxu0 0.0
      %975 = vmatpush1.msra.mxu0 0.0
      %976 = vmatprep.subr.mxu0 0.0
      %977 = vmatpush1.msra.mxu0 0.0
      %978 = vmatprep.subr.mxu0 0.0
      %979 = vmatpush1.msra.mxu0 0.0
      %980 = vmatprep.subr.mxu0 0.0
      %981 = vmatpush1.msra.mxu0 0.0
      %982 = vmatprep.subr.mxu0 0.0
      %983 = vmatpush1.msra.mxu0 0.0
      %984 = vmatprep.subr.mxu0 0.0
      %985 = vmatpush1.msra.mxu0 0.0
      %986 = vmatprep.subr.mxu0 0.0
      %987 = vmatpush1.msra.mxu0 0.0
      %988 = vmatprep.subr.mxu0 0.0
      %989 = vmatpush1.msra.mxu0 0.0
      %990 = vmatprep.subr.mxu0 0.0
      %991 = vmatpush1.msra.mxu0 0.0
      %992 = vmatprep.subr.mxu0 0.0
      %993 = vmatpush1.msra.mxu0 0.0
      %994 = vmatprep.subr.mxu0 0.0
      %995 = vmatpush1.msra.mxu0 0.0
      %996 = vmatprep.subr.mxu0 0.0
      %997 = vmatpush1.msra.mxu0 0.0
      %998 = vmatprep.subr.mxu0 0.0
      %999 = vmatpush1.msra.mxu0 0.0
      %1000 = vmatprep.subr.mxu0 0.0
      %1001 = vmatpush1.msra.mxu0 0.0
      %1002 = vmatprep.subr.mxu0 0.0
      %1003 = vmatpush1.msra.mxu0 0.0
      %1004 = vmatprep.subr.mxu0 0.0
      %1005 = vmatpush1.msra.mxu0 0.0
      %1006 = vmatprep.subr.mxu0 0.0
      %1007 = vmatpush1.msra.mxu0 0.0
      %1008 = vmatprep.subr.mxu0 0.0
      %1009 = vmatpush1.msra.mxu0 0.0
      %1010 = vmatprep.subr.mxu0 0.0
      %1011 = vmatpush1.msra.mxu0 0.0
      %1012 = vmatprep.subr.mxu0 0.0
      %1013 = vmatpush1.msra.mxu0 0.0
      %1014 = vmatprep.subr.mxu0 0.0
      %1015 = vmatpush1.msra.mxu0 0.0
      %1016 = vmatprep.mubr.f32.mxu0 0.0
      %1017 = vmatmul.mubr.f32.gmra.mrb[0].mxu0 %v947
      %v1018 = vpop.f32.mrb[0].mxu0
      %v1019 = vadd.f32 0.0, %v1018
      %v1020 = vpop.f32.mrb[0].mxu0
      %1021 = vdwg.mxu0
      %1022 = vrot.lane.b32.xlu0 %v850, 120
      %v1023 = vpop.permute.xlu0 %1022
      %1024 = vrot.lane.b32.xlu0 %v850, 88
      %v1025 = vpop.permute.xlu0 %1024
      %v1026 = vsel %vm856, %v1023, 0
      %v1028 = vsel %vm856, %v1025, 0
      %1030 = vmatprep.subr.mxu0 0.0
      %1031 = vmatpush1.xpose.msra.mxu0 %v1028
      %1032 = vmatprep.subr.mxu0 0.0
      %1033 = vmatpush1.xpose.msra.mxu0 0.0
      %1034 = vmatprep.subr.mxu0 0.0
      %1035 = vmatpush1.xpose.msra.mxu0 0.0
      %1036 = vmatprep.subr.mxu0 0.0
      %1037 = vmatpush1.xpose.msra.mxu0 0.0
      %1038 = vmatprep.subr.mxu0 0.0
      %1039 = vmatpush1.xpose.msra.mxu0 0.0
      %1040 = vmatprep.subr.mxu0 0.0
      %1041 = vmatpush1.xpose.msra.mxu0 0.0
      %1042 = vmatprep.subr.mxu0 0.0
      %1043 = vmatpush1.xpose.msra.mxu0 0.0
      %1044 = vmatprep.subr.mxu0 0.0
      %1045 = vmatpush1.xpose.msra.mxu0 0.0
      %1046 = vmatprep.subr.mxu0 0.0
      %1047 = vmatpush1.xpose.msra.mxu0 0.0
      %1048 = vmatprep.subr.mxu0 0.0
      %1049 = vmatpush1.xpose.msra.mxu0 0.0
      %1050 = vmatprep.subr.mxu0 0.0
      %1051 = vmatpush1.xpose.msra.mxu0 0.0
      %1052 = vmatprep.subr.mxu0 0.0
      %1053 = vmatpush1.xpose.msra.mxu0 0.0
      %1054 = vmatprep.subr.mxu0 0.0
      %1055 = vmatpush1.xpose.msra.mxu0 0.0
      %1056 = vmatprep.subr.mxu0 0.0
      %1057 = vmatpush1.xpose.msra.mxu0 0.0
      %1058 = vmatprep.subr.mxu0 0.0
      %1059 = vmatpush1.xpose.msra.mxu0 0.0
      %1060 = vmatprep.subr.mxu0 0.0
      %1061 = vmatpush1.xpose.msra.mxu0 0.0
      %1062 = vmatprep.subr.mxu0 0.0
      %1063 = vmatpush1.xpose.msra.mxu0 0.0
      %1064 = vmatprep.subr.mxu0 0.0
      %1065 = vmatpush1.xpose.msra.mxu0 0.0
      %1066 = vmatprep.subr.mxu0 0.0
      %1067 = vmatpush1.xpose.msra.mxu0 0.0
      %1068 = vmatprep.subr.mxu0 0.0
      %1069 = vmatpush1.xpose.msra.mxu0 0.0
      %1070 = vmatprep.subr.mxu0 0.0
      %1071 = vmatpush1.xpose.msra.mxu0 0.0
      %1072 = vmatprep.subr.mxu0 0.0
      %1073 = vmatpush1.xpose.msra.mxu0 0.0
      %1074 = vmatprep.subr.mxu0 0.0
      %1075 = vmatpush1.xpose.msra.mxu0 0.0
      %1076 = vmatprep.subr.mxu0 0.0
      %1077 = vmatpush1.xpose.msra.mxu0 0.0
      %1078 = vmatprep.subr.mxu0 0.0
      %1079 = vmatpush1.xpose.msra.mxu0 0.0
      %1080 = vmatprep.subr.mxu0 0.0
      %1081 = vmatpush1.xpose.msra.mxu0 0.0
      %1082 = vmatprep.subr.mxu0 0.0
      %1083 = vmatpush1.xpose.msra.mxu0 0.0
      %1084 = vmatprep.subr.mxu0 0.0
      %1085 = vmatpush1.xpose.msra.mxu0 0.0
      %1086 = vmatprep.subr.mxu0 0.0
      %1087 = vmatpush1.xpose.msra.mxu0 0.0
      %1088 = vmatprep.subr.mxu0 0.0
      %1089 = vmatpush1.xpose.msra.mxu0 0.0
      %1090 = vmatprep.subr.mxu0 0.0
      %1091 = vmatpush1.xpose.msra.mxu0 0.0
      %1092 = vmatprep.subr.mxu0 0.0
      %1093 = vmatpush1.xpose.msra.mxu0 0.0
      %1094 = vmatprep.mubr.f32.mxu0 0.0
      %1095 = vmatmul.mubr.f32.gmra.mrb[0].mxu0 %v1026
      %v1096 = vpop.f32.mrb[0].mxu0
      %v1097 = vadd.f32 0.0, %v1096
      %v1098 = vpop.f32.mrb[0].mxu0
      %1099 = vdwg.mxu0
      %v1100 = vsel %vm931, %v1097, -inf
      %1101 = vmax.xlane.f32.xlu0 %v1100
      %v1102 = vpop.xlane.xlu0 %1101
      %v1103 = vsub.f32 %v1097, %v1102
      %v1104 = vmul.f32 %v1103, 1.442695
      %v1105 = vpow.pop %v1104
      %v1106 = vsel %vm931, %v1105, 0.0
      %1107 = vadd.xlane.f32.xlu0 %v1106
      %v1108 = vpop.xlane.xlu0 %1107
      %v1109 = vrcp.pop %v1108
      %v1110 = vmul.f32 %v1105, %v1109
      %1111 = vrot.lane.b32.xlu0 %v850, 56
      %v1112 = vpop.permute.xlu0 %1111
      %v1114 = vsel %vm945, %v1110, 0
      %v1116 = vsel %vm949, %v1112, 0
      %1118 = vmatprep.subr.mxu0 0.0
      %1119 = vmatpush1.msra.mxu0 %v1116
      %1120 = vmatprep.subr.mxu0 0.0
      %1121 = vmatpush1.msra.mxu0 0.0
      %1122 = vmatprep.subr.mxu0 0.0
      %1123 = vmatpush1.msra.mxu0 0.0
      %1124 = vmatprep.subr.mxu0 0.0
      %1125 = vmatpush1.msra.mxu0 0.0
      %1126 = vmatprep.subr.mxu0 0.0
      %1127 = vmatpush1.msra.mxu0 0.0
      %1128 = vmatprep.subr.mxu0 0.0
      %1129 = vmatpush1.msra.mxu0 0.0
      %1130 = vmatprep.subr.mxu0 0.0
      %1131 = vmatpush1.msra.mxu0 0.0
      %1132 = vmatprep.subr.mxu0 0.0
      %1133 = vmatpush1.msra.mxu0 0.0
      %1134 = vmatprep.subr.mxu0 0.0
      %1135 = vmatpush1.msra.mxu0 0.0
      %1136 = vmatprep.subr.mxu0 0.0
      %1137 = vmatpush1.msra.mxu0 0.0
      %1138 = vmatprep.subr.mxu0 0.0
      %1139 = vmatpush1.msra.mxu0 0.0
      %1140 = vmatprep.subr.mxu0 0.0
      %1141 = vmatpush1.msra.mxu0 0.0
      %1142 = vmatprep.subr.mxu0 0.0
      %1143 = vmatpush1.msra.mxu0 0.0
      %1144 = vmatprep.subr.mxu0 0.0
      %1145 = vmatpush1.msra.mxu0 0.0
      %1146 = vmatprep.subr.mxu0 0.0
      %1147 = vmatpush1.msra.mxu0 0.0
      %1148 = vmatprep.subr.mxu0 0.0
      %1149 = vmatpush1.msra.mxu0 0.0
      %1150 = vmatprep.subr.mxu0 0.0
      %1151 = vmatpush1.msra.mxu0 0.0
      %1152 = vmatprep.subr.mxu0 0.0
      %1153 = vmatpush1.msra.mxu0 0.0
      %1154 = vmatprep.subr.mxu0 0.0
      %1155 = vmatpush1.msra.mxu0 0.0
      %1156 = vmatprep.subr.mxu0 0.0
      %1157 = vmatpush1.msra.mxu0 0.0
      %1158 = vmatprep.subr.mxu0 0.0
      %1159 = vmatpush1.msra.mxu0 0.0
      %1160 = vmatprep.subr.mxu0 0.0
      %1161 = vmatpush1.msra.mxu0 0.0
      %1162 = vmatprep.subr.mxu0 0.0
      %1163 = vmatpush1.msra.mxu0 0.0
      %1164 = vmatprep.subr.mxu0 0.0
      %1165 = vmatpush1.msra.mxu0 0.0
      %1166 = vmatprep.subr.mxu0 0.0
      %1167 = vmatpush1.msra.mxu0 0.0
      %1168 = vmatprep.subr.mxu0 0.0
      %1169 = vmatpush1.msra.mxu0 0.0
      %1170 = vmatprep.subr.mxu0 0.0
      %1171 = vmatpush1.msra.mxu0 0.0
      %1172 = vmatprep.subr.mxu0 0.0
      %1173 = vmatpush1.msra.mxu0 0.0
      %1174 = vmatprep.subr.mxu0 0.0
      %1175 = vmatpush1.msra.mxu0 0.0
      %1176 = vmatprep.subr.mxu0 0.0
      %1177 = vmatpush1.msra.mxu0 0.0
      %1178 = vmatprep.subr.mxu0 0.0
      %1179 = vmatpush1.msra.mxu0 0.0
      %1180 = vmatprep.subr.mxu0 0.0
      %1181 = vmatpush1.msra.mxu0 0.0
      %1182 = vmatprep.mubr.f32.mxu0 0.0
      %1183 = vmatmul.mubr.f32.gmra.mrb[0].mxu0 %v1114
      %v1184 = vpop.f32.mrb[0].mxu0
      %v1185 = vadd.f32 0.0, %v1184
      %v1186 = vpop.f32.mrb[0].mxu0
      %1187 = vdwg.mxu0
      %1188 = vrot.lane.b32.xlu0 %v850, 112
      %v1189 = vpop.permute.xlu0 %1188
      %1190 = vrot.lane.b32.xlu0 %v850, 80
      %v1191 = vpop.permute.xlu0 %1190
      %v1192 = vsel %vm856, %v1189, 0
      %v1194 = vsel %vm856, %v1191, 0
      %1196 = vmatprep.subr.mxu0 0.0
      %1197 = vmatpush1.xpose.msra.mxu0 %v1194
      %1198 = vmatprep.subr.mxu0 0.0
      %1199 = vmatpush1.xpose.msra.mxu0 0.0
      %1200 = vmatprep.subr.mxu0 0.0
      %1201 = vmatpush1.xpose.msra.mxu0 0.0
      %1202 = vmatprep.subr.mxu0 0.0
      %1203 = vmatpush1.xpose.msra.mxu0 0.0
      %1204 = vmatprep.subr.mxu0 0.0
      %1205 = vmatpush1.xpose.msra.mxu0 0.0
      %1206 = vmatprep.subr.mxu0 0.0
      %1207 = vmatpush1.xpose.msra.mxu0 0.0
      %1208 = vmatprep.subr.mxu0 0.0
      %1209 = vmatpush1.xpose.msra.mxu0 0.0
      %1210 = vmatprep.subr.mxu0 0.0
      %1211 = vmatpush1.xpose.msra.mxu0 0.0
      %1212 = vmatprep.subr.mxu0 0.0
      %1213 = vmatpush1.xpose.msra.mxu0 0.0
      %1214 = vmatprep.subr.mxu0 0.0
      %1215 = vmatpush1.xpose.msra.mxu0 0.0
      %1216 = vmatprep.subr.mxu0 0.0
      %1217 = vmatpush1.xpose.msra.mxu0 0.0
      %1218 = vmatprep.subr.mxu0 0.0
      %1219 = vmatpush1.xpose.msra.mxu0 0.0
      %1220 = vmatprep.subr.mxu0 0.0
      %1221 = vmatpush1.xpose.msra.mxu0 0.0
      %1222 = vmatprep.subr.mxu0 0.0
      %1223 = vmatpush1.xpose.msra.mxu0 0.0
      %1224 = vmatprep.subr.mxu0 0.0
      %1225 = vmatpush1.xpose.msra.mxu0 0.0
      %1226 = vmatprep.subr.mxu0 0.0
      %1227 = vmatpush1.xpose.msra.mxu0 0.0
      %1228 = vmatprep.subr.mxu0 0.0
      %1229 = vmatpush1.xpose.msra.mxu0 0.0
      %1230 = vmatprep.subr.mxu0 0.0
      %1231 = vmatpush1.xpose.msra.mxu0 0.0
      %1232 = vmatprep.subr.mxu0 0.0
      %1233 = vmatpush1.xpose.msra.mxu0 0.0
      %1234 = vmatprep.subr.mxu0 0.0
      %1235 = vmatpush1.xpose.msra.mxu0 0.0
      %1236 = vmatprep.subr.mxu0 0.0
      %1237 = vmatpush1.xpose.msra.mxu0 0.0
      %1238 = vmatprep.subr.mxu0 0.0
      %1239 = vmatpush1.xpose.msra.mxu0 0.0
      %1240 = vmatprep.subr.mxu0 0.0
      %1241 = vmatpush1.xpose.msra.mxu0 0.0
      %1242 = vmatprep.subr.mxu0 0.0
      %1243 = vmatpush1.xpose.msra.mxu0 0.0
      %1244 = vmatprep.subr.mxu0 0.0
      %1245 = vmatpush1.xpose.msra.mxu0 0.0
      %1246 = vmatprep.subr.mxu0 0.0
      %1247 = vmatpush1.xpose.msra.mxu0 0.0
      %1248 = vmatprep.subr.mxu0 0.0
      %1249 = vmatpush1.xpose.msra.mxu0 0.0
      %1250 = vmatprep.subr.mxu0 0.0
      %1251 = vmatpush1.xpose.msra.mxu0 0.0
      %1252 = vmatprep.subr.mxu0 0.0
      %1253 = vmatpush1.xpose.msra.mxu0 0.0
      %1254 = vmatprep.subr.mxu0 0.0
      %1255 = vmatpush1.xpose.msra.mxu0 0.0
      %1256 = vmatprep.subr.mxu0 0.0
      %1257 = vmatpush1.xpose.msra.mxu0 0.0
      %1258 = vmatprep.subr.mxu0 0.0
      %1259 = vmatpush1.xpose.msra.mxu0 0.0
      %1260 = vmatprep.mubr.f32.mxu0 0.0
      %1261 = vmatmul.mubr.f32.gmra.mrb[0].mxu0 %v1192
      %v1262 = vpop.f32.mrb[0].mxu0
      %v1263 = vadd.f32 0.0, %v1262
      %v1264 = vpop.f32.mrb[0].mxu0
      %1265 = vdwg.mxu0
      %v1266 = vsel %vm931, %v1263, -inf
      %1267 = vmax.xlane.f32.xlu0 %v1266
      %v1268 = vpop.xlane.xlu0 %1267
      %v1269 = vsub.f32 %v1263, %v1268
      %v1270 = vmul.f32 %v1269, 1.442695
      %v1271 = vpow.pop %v1270
      %v1272 = vsel %vm931, %v1271, 0.0
      %1273 = vadd.xlane.f32.xlu0 %v1272
      %v1274 = vpop.xlane.xlu0 %1273
      %v1275 = vrcp.pop %v1274
      %v1276 = vmul.f32 %v1271, %v1275
      %1277 = vrot.lane.b32.xlu0 %v850, 48
      %v1278 = vpop.permute.xlu0 %1277
      %v1280 = vsel %vm945, %v1276, 0
      %v1282 = vsel %vm949, %v1278, 0
      %1284 = vmatprep.subr.mxu0 0.0
      %1285 = vmatpush1.msra.mxu0 %v1282
      %1286 = vmatprep.subr.mxu0 0.0
      %1287 = vmatpush1.msra.mxu0 0.0
      %1288 = vmatprep.subr.mxu0 0.0
      %1289 = vmatpush1.msra.mxu0 0.0
      %1290 = vmatprep.subr.mxu0 0.0
      %1291 = vmatpush1.msra.mxu0 0.0
      %1292 = vmatprep.subr.mxu0 0.0
      %1293 = vmatpush1.msra.mxu0 0.0
      %1294 = vmatprep.subr.mxu0 0.0
      %1295 = vmatpush1.msra.mxu0 0.0
      %1296 = vmatprep.subr.mxu0 0.0
      %1297 = vmatpush1.msra.mxu0 0.0
      %1298 = vmatprep.subr.mxu0 0.0
      %1299 = vmatpush1.msra.mxu0 0.0
      %1300 = vmatprep.subr.mxu0 0.0
      %1301 = vmatpush1.msra.mxu0 0.0
      %1302 = vmatprep.subr.mxu0 0.0
      %1303 = vmatpush1.msra.mxu0 0.0
      %1304 = vmatprep.subr.mxu0 0.0
      %1305 = vmatpush1.msra.mxu0 0.0
      %1306 = vmatprep.subr.mxu0 0.0
      %1307 = vmatpush1.msra.mxu0 0.0
      %1308 = vmatprep.subr.mxu0 0.0
      %1309 = vmatpush1.msra.mxu0 0.0
      %1310 = vmatprep.subr.mxu0 0.0
      %1311 = vmatpush1.msra.mxu0 0.0
      %1312 = vmatprep.subr.mxu0 0.0
      %1313 = vmatpush1.msra.mxu0 0.0
      %1314 = vmatprep.subr.mxu0 0.0
      %1315 = vmatpush1.msra.mxu0 0.0
      %1316 = vmatprep.subr.mxu0 0.0
      %1317 = vmatpush1.msra.mxu0 0.0
      %1318 = vmatprep.subr.mxu0 0.0
      %1319 = vmatpush1.msra.mxu0 0.0
      %1320 = vmatprep.subr.mxu0 0.0
      %1321 = vmatpush1.msra.mxu0 0.0
      %1322 = vmatprep.subr.mxu0 0.0
      %1323 = vmatpush1.msra.mxu0 0.0
      %1324 = vmatprep.subr.mxu0 0.0
      %1325 = vmatpush1.msra.mxu0 0.0
      %1326 = vmatprep.subr.mxu0 0.0
      %1327 = vmatpush1.msra.mxu0 0.0
      %1328 = vmatprep.subr.mxu0 0.0
      %1329 = vmatpush1.msra.mxu0 0.0
      %1330 = vmatprep.subr.mxu0 0.0
      %1331 = vmatpush1.msra.mxu0 0.0
      %1332 = vmatprep.subr.mxu0 0.0
      %1333 = vmatpush1.msra.mxu0 0.0
      %1334 = vmatprep.subr.mxu0 0.0
      %1335 = vmatpush1.msra.mxu0 0.0
      %1336 = vmatprep.subr.mxu0 0.0
      %1337 = vmatpush1.msra.mxu0 0.0
      %1338 = vmatprep.subr.mxu0 0.0
      %1339 = vmatpush1.msra.mxu0 0.0
      %1340 = vmatprep.subr.mxu0 0.0
      %1341 = vmatpush1.msra.mxu0 0.0
      %1342 = vmatprep.subr.mxu0 0.0
      %1343 = vmatpush1.msra.mxu0 0.0
      %1344 = vmatprep.subr.mxu0 0.0
      %1345 = vmatpush1.msra.mxu0 0.0
      %1346 = vmatprep.subr.mxu0 0.0
      %1347 = vmatpush1.msra.mxu0 0.0
      %1348 = vmatprep.mubr.f32.mxu0 0.0
      %1349 = vmatmul.mubr.f32.gmra.mrb[0].mxu0 %v1280
      %v1350 = vpop.f32.mrb[0].mxu0
      %v1351 = vadd.f32 0.0, %v1350
      %v1352 = vpop.f32.mrb[0].mxu0
      %1353 = vdwg.mxu0
      %1354 = vrot.lane.b32.xlu0 %v850, 104
      %v1355 = vpop.permute.xlu0 %1354
      %1356 = vrot.lane.b32.xlu0 %v850, 72
      %v1357 = vpop.permute.xlu0 %1356
      %v1358 = vsel %vm856, %v1355, 0
      %v1360 = vsel %vm856, %v1357, 0
      %1362 = vmatprep.subr.mxu0 0.0
      %1363 = vmatpush1.xpose.msra.mxu0 %v1360
      %1364 = vmatprep.subr.mxu0 0.0
      %1365 = vmatpush1.xpose.msra.mxu0 0.0
      %1366 = vmatprep.subr.mxu0 0.0
      %1367 = vmatpush1.xpose.msra.mxu0 0.0
      %1368 = vmatprep.subr.mxu0 0.0
      %1369 = vmatpush1.xpose.msra.mxu0 0.0
      %1370 = vmatprep.subr.mxu0 0.0
      %1371 = vmatpush1.xpose.msra.mxu0 0.0
      %1372 = vmatprep.subr.mxu0 0.0
      %1373 = vmatpush1.xpose.msra.mxu0 0.0
      %1374 = vmatprep.subr.mxu0 0.0
      %1375 = vmatpush1.xpose.msra.mxu0 0.0
      %1376 = vmatprep.subr.mxu0 0.0
      %1377 = vmatpush1.xpose.msra.mxu0 0.0
      %1378 = vmatprep.subr.mxu0 0.0
      %1379 = vmatpush1.xpose.msra.mxu0 0.0
      %1380 = vmatprep.subr.mxu0 0.0
      %1381 = vmatpush1.xpose.msra.mxu0 0.0
      %1382 = vmatprep.subr.mxu0 0.0
      %1383 = vmatpush1.xpose.msra.mxu0 0.0
      %1384 = vmatprep.subr.mxu0 0.0
      %1385 = vmatpush1.xpose.msra.mxu0 0.0
      %1386 = vmatprep.subr.mxu0 0.0
      %1387 = vmatpush1.xpose.msra.mxu0 0.0
      %1388 = vmatprep.subr.mxu0 0.0
      %1389 = vmatpush1.xpose.msra.mxu0 0.0
      %1390 = vmatprep.subr.mxu0 0.0
      %1391 = vmatpush1.xpose.msra.mxu0 0.0
      %1392 = vmatprep.subr.mxu0 0.0
      %1393 = vmatpush1.xpose.msra.mxu0 0.0
      %1394 = vmatprep.subr.mxu0 0.0
      %1395 = vmatpush1.xpose.msra.mxu0 0.0
      %1396 = vmatprep.subr.mxu0 0.0
      %1397 = vmatpush1.xpose.msra.mxu0 0.0
      %1398 = vmatprep.subr.mxu0 0.0
      %1399 = vmatpush1.xpose.msra.mxu0 0.0
      %1400 = vmatprep.subr.mxu0 0.0
      %1401 = vmatpush1.xpose.msra.mxu0 0.0
      %1402 = vmatprep.subr.mxu0 0.0
      %1403 = vmatpush1.xpose.msra.mxu0 0.0
      %1404 = vmatprep.subr.mxu0 0.0
      %1405 = vmatpush1.xpose.msra.mxu0 0.0
      %1406 = vmatprep.subr.mxu0 0.0
      %1407 = vmatpush1.xpose.msra.mxu0 0.0
      %1408 = vmatprep.subr.mxu0 0.0
      %1409 = vmatpush1.xpose.msra.mxu0 0.0
      %1410 = vmatprep.subr.mxu0 0.0
      %1411 = vmatpush1.xpose.msra.mxu0 0.0
      %1412 = vmatprep.subr.mxu0 0.0
      %1413 = vmatpush1.xpose.msra.mxu0 0.0
      %1414 = vmatprep.subr.mxu0 0.0
      %1415 = vmatpush1.xpose.msra.mxu0 0.0
      %1416 = vmatprep.subr.mxu0 0.0
      %1417 = vmatpush1.xpose.msra.mxu0 0.0
      %1418 = vmatprep.subr.mxu0 0.0
      %1419 = vmatpush1.xpose.msra.mxu0 0.0
      %1420 = vmatprep.subr.mxu0 0.0
      %1421 = vmatpush1.xpose.msra.mxu0 0.0
      %1422 = vmatprep.subr.mxu0 0.0
      %1423 = vmatpush1.xpose.msra.mxu0 0.0
      %1424 = vmatprep.subr.mxu0 0.0
      %1425 = vmatpush1.xpose.msra.mxu0 0.0
      %1426 = vmatprep.mubr.f32.mxu0 0.0
      %1427 = vmatmul.mubr.f32.gmra.mrb[0].mxu0 %v1358
      %v1428 = vpop.f32.mrb[0].mxu0
      %v1429 = vadd.f32 0.0, %v1428
      %v1430 = vpop.f32.mrb[0].mxu0
      %1431 = vdwg.mxu0
      %v1432 = vsel %vm931, %v1429, -inf
      %1433 = vmax.xlane.f32.xlu0 %v1432
      %v1434 = vpop.xlane.xlu0 %1433
      %v1435 = vsub.f32 %v1429, %v1434
      %v1436 = vmul.f32 %v1435, 1.442695
      %v1437 = vpow.pop %v1436
      %v1438 = vsel %vm931, %v1437, 0.0
      %1439 = vadd.xlane.f32.xlu0 %v1438
      %v1440 = vpop.xlane.xlu0 %1439
      %v1441 = vrcp.pop %v1440
      %v1442 = vmul.f32 %v1437, %v1441
      %1443 = vrot.lane.b32.xlu0 %v850, 40
      %v1444 = vpop.permute.xlu0 %1443
      %v1446 = vsel %vm945, %v1442, 0
      %v1448 = vsel %vm949, %v1444, 0
      %1450 = vmatprep.subr.mxu0 0.0
      %1451 = vmatpush1.msra.mxu0 %v1448
      %1452 = vmatprep.subr.mxu0 0.0
      %1453 = vmatpush1.msra.mxu0 0.0
      %1454 = vmatprep.subr.mxu0 0.0
      %1455 = vmatpush1.msra.mxu0 0.0
      %1456 = vmatprep.subr.mxu0 0.0
      %1457 = vmatpush1.msra.mxu0 0.0
      %1458 = vmatprep.subr.mxu0 0.0
      %1459 = vmatpush1.msra.mxu0 0.0
      %1460 = vmatprep.subr.mxu0 0.0
      %1461 = vmatpush1.msra.mxu0 0.0
      %1462 = vmatprep.subr.mxu0 0.0
      %1463 = vmatpush1.msra.mxu0 0.0
      %1464 = vmatprep.subr.mxu0 0.0
      %1465 = vmatpush1.msra.mxu0 0.0
      %1466 = vmatprep.subr.mxu0 0.0
      %1467 = vmatpush1.msra.mxu0 0.0
      %1468 = vmatprep.subr.mxu0 0.0
      %1469 = vmatpush1.msra.mxu0 0.0
      %1470 = vmatprep.subr.mxu0 0.0
      %1471 = vmatpush1.msra.mxu0 0.0
      %1472 = vmatprep.subr.mxu0 0.0
      %1473 = vmatpush1.msra.mxu0 0.0
      %1474 = vmatprep.subr.mxu0 0.0
      %1475 = vmatpush1.msra.mxu0 0.0
      %1476 = vmatprep.subr.mxu0 0.0
      %1477 = vmatpush1.msra.mxu0 0.0
      %1478 = vmatprep.subr.mxu0 0.0
      %1479 = vmatpush1.msra.mxu0 0.0
      %1480 = vmatprep.subr.mxu0 0.0
      %1481 = vmatpush1.msra.mxu0 0.0
      %1482 = vmatprep.subr.mxu0 0.0
      %1483 = vmatpush1.msra.mxu0 0.0
      %1484 = vmatprep.subr.mxu0 0.0
      %1485 = vmatpush1.msra.mxu0 0.0
      %1486 = vmatprep.subr.mxu0 0.0
      %1487 = vmatpush1.msra.mxu0 0.0
      %1488 = vmatprep.subr.mxu0 0.0
      %1489 = vmatpush1.msra.mxu0 0.0
      %1490 = vmatprep.subr.mxu0 0.0
      %1491 = vmatpush1.msra.mxu0 0.0
      %1492 = vmatprep.subr.mxu0 0.0
      %1493 = vmatpush1.msra.mxu0 0.0
      %1494 = vmatprep.subr.mxu0 0.0
      %1495 = vmatpush1.msra.mxu0 0.0
      %1496 = vmatprep.subr.mxu0 0.0
      %1497 = vmatpush1.msra.mxu0 0.0
      %1498 = vmatprep.subr.mxu0 0.0
      %1499 = vmatpush1.msra.mxu0 0.0
      %1500 = vmatprep.subr.mxu0 0.0
      %1501 = vmatpush1.msra.mxu0 0.0
      %1502 = vmatprep.subr.mxu0 0.0
      %1503 = vmatpush1.msra.mxu0 0.0
      %1504 = vmatprep.subr.mxu0 0.0
      %1505 = vmatpush1.msra.mxu0 0.0
      %1506 = vmatprep.subr.mxu0 0.0
      %1507 = vmatpush1.msra.mxu0 0.0
      %1508 = vmatprep.subr.mxu0 0.0
      %1509 = vmatpush1.msra.mxu0 0.0
      %1510 = vmatprep.subr.mxu0 0.0
      %1511 = vmatpush1.msra.mxu0 0.0
      %1512 = vmatprep.subr.mxu0 0.0
      %1513 = vmatpush1.msra.mxu0 0.0
      %1514 = vmatprep.mubr.f32.mxu0 0.0
      %1515 = vmatmul.mubr.f32.gmra.mrb[0].mxu0 %v1446
      %v1516 = vpop.f32.mrb[0].mxu0
      %v1517 = vadd.f32 0.0, %v1516
      %v1518 = vpop.f32.mrb[0].mxu0
      %1519 = vdwg.mxu0
      %1521 = vrot.lane.b32.xlu0 %v1185, 8
      %v1522 = vpop.permute.xlu0 %1521
      %1525 = vrot.lane.b32.xlu0 %v1351, 16
      %v1526 = vpop.permute.xlu0 %1525
      %1529 = vrot.lane.b32.xlu0 %v1517, 24
      %v1530 = vpop.permute.xlu0 %1529
      %v1532 = vsel %vm856, %v1019, %v1522
      %vm1533 = vcmask 130048
      %v1534 = vsel %vm1533, %v1532, %v1526
      %vm1535 = vcmask 195584
      %v1536 = vsel %vm1535, %v1534, %v1530
      %v1537 = vld [vmem:[%s8] sm:$0xff]
      %v1538 = vld [vmem:[%s8 + $0x8] sm:$0xff]
      %v1539 = vld [vmem:[%s8 + $0x10] sm:$0xff]
      %v1540 = vld [vmem:[%s8 + $0x18] sm:$0xff]
      %v1541 = vld [vmem:[%s9] sm:$0x1]
      %v1543 = vlaneseq
      %v1544 = vshrl.u32 %v1543, 7
      %v1545 = vsub.s32 0, %v1544
      %v1546 = vrot.slane %v1541, %v1545
      %v1549 = vsel %vm779, %v1536, 0
      %1551 = vmatprep.subr.mxu0 0.0
      %1552 = vmatpush1.msra.mxu0 %v1537
      %1553 = vmatprep.subr.mxu0 0.0
      %1554 = vmatpush1.msra.mxu0 %v1538
      %1555 = vmatprep.subr.mxu0 0.0
      %1556 = vmatpush1.msra.mxu0 %v1539
      %1557 = vmatprep.subr.mxu0 0.0
      %1558 = vmatpush1.msra.mxu0 %v1540
      %1559 = vmatprep.subr.mxu0 0.0
      %1560 = vmatpush1.msra.mxu0 0.0
      %1561 = vmatprep.subr.mxu0 0.0
      %1562 = vmatpush1.msra.mxu0 0.0
      %1563 = vmatprep.subr.mxu0 0.0
      %1564 = vmatpush1.msra.mxu0 0.0
      %1565 = vmatprep.subr.mxu0 0.0
      %1566 = vmatpush1.msra.mxu0 0.0
      %1567 = vmatprep.subr.mxu0 0.0
      %1568 = vmatpush1.msra.mxu0 0.0
      %1569 = vmatprep.subr.mxu0 0.0
      %1570 = vmatpush1.msra.mxu0 0.0
      %1571 = vmatprep.subr.mxu0 0.0
      %1572 = vmatpush1.msra.mxu0 0.0
      %1573 = vmatprep.subr.mxu0 0.0
      %1574 = vmatpush1.msra.mxu0 0.0
      %1575 = vmatprep.subr.mxu0 0.0
      %1576 = vmatpush1.msra.mxu0 0.0
      %1577 = vmatprep.subr.mxu0 0.0
      %1578 = vmatpush1.msra.mxu0 0.0
      %1579 = vmatprep.subr.mxu0 0.0
      %1580 = vmatpush1.msra.mxu0 0.0
      %1581 = vmatprep.subr.mxu0 0.0
      %1582 = vmatpush1.msra.mxu0 0.0
      %1583 = vmatprep.subr.mxu0 0.0
      %1584 = vmatpush1.msra.mxu0 0.0
      %1585 = vmatprep.subr.mxu0 0.0
      %1586 = vmatpush1.msra.mxu0 0.0
      %1587 = vmatprep.subr.mxu0 0.0
      %1588 = vmatpush1.msra.mxu0 0.0
      %1589 = vmatprep.subr.mxu0 0.0
      %1590 = vmatpush1.msra.mxu0 0.0
      %1591 = vmatprep.subr.mxu0 0.0
      %1592 = vmatpush1.msra.mxu0 0.0
      %1593 = vmatprep.subr.mxu0 0.0
      %1594 = vmatpush1.msra.mxu0 0.0
      %1595 = vmatprep.subr.mxu0 0.0
      %1596 = vmatpush1.msra.mxu0 0.0
      %1597 = vmatprep.subr.mxu0 0.0
      %1598 = vmatpush1.msra.mxu0 0.0
      %1599 = vmatprep.subr.mxu0 0.0
      %1600 = vmatpush1.msra.mxu0 0.0
      %1601 = vmatprep.subr.mxu0 0.0
      %1602 = vmatpush1.msra.mxu0 0.0
      %1603 = vmatprep.subr.mxu0 0.0
      %1604 = vmatpush1.msra.mxu0 0.0
      %1605 = vmatprep.subr.mxu0 0.0
      %1606 = vmatpush1.msra.mxu0 0.0
      %1607 = vmatprep.subr.mxu0 0.0
      %1608 = vmatpush1.msra.mxu0 0.0
      %1609 = vmatprep.subr.mxu0 0.0
      %1610 = vmatpush1.msra.mxu0 0.0
      %1611 = vmatprep.subr.mxu0 0.0
      %1612 = vmatpush1.msra.mxu0 0.0
      %1613 = vmatprep.subr.mxu0 0.0
      %1614 = vmatpush1.msra.mxu0 0.0
      %1615 = vmatprep.mubr.f32.mxu0 0.0
      %1616 = vmatmul.mubr.f32.gmra.mrb[0].mxu0 %v1549
      %v1617 = vpop.f32.mrb[0].mxu0
      %v1618 = vadd.f32 %v1546, %v1617
      %v1619 = vpop.f32.mrb[0].mxu0
      %1620 = vdwg.mxu0
      %v1621 = vadd.f32 %v736, %v1618
      %v1622 = vld [vmem:[%s10] sm:$0x1]
      %v1623 = vld [vmem:[%s11] sm:$0x1]
      %v1624 = vsel %vm739, %v1621, 0.0
      %1625 = vadd.xlane.f32.xlu0 %v1624
      %v1626 = vpop.xlane.xlu0 %1625
      %v1627 = vmul.f32 %v1626, %v743
      %v1628 = vsub.f32 %v1621, %v1627
      %v1629 = vmul.f32 %v1628, %v1628
      %v1630 = vsel %vm739, %v1629, 0.0
      %1631 = vadd.xlane.f32.xlu0 %v1630
      %v1632 = vpop.xlane.xlu0 %1631
      %v1633 = vmul.f32 %v1632, %v743
      %v1634 = vadd.f32 %v1633, 1e-06
      %v1635 = vrsqrt.pop %v1634
      %v1636 = vmul.f32 %v1628, %v1635
      %v1638 = vlaneseq
      %v1639 = vshrl.u32 %v1638, 7
      %v1640 = vsub.s32 0, %v1639
      %v1641 = vrot.slane %v1622, %v1640
      %v1643 = vmul.f32 %v1636, %v1641
      %v1645 = vlaneseq
      %v1646 = vshrl.u32 %v1645, 7
      %v1647 = vsub.s32 0, %v1646
      %v1648 = vrot.slane %v1623, %v1647
      %v1650 = vadd.f32 %v1643, %v1648
      %v1651 = vld [vmem:[%s12] sm:$0xff]
      %v1652 = vld [vmem:[%s12 + $0x8] sm:$0xff]
      %v1653 = vld [vmem:[%s12 + $0x10] sm:$0xff]
      %v1654 = vld [vmem:[%s12 + $0x18] sm:$0xff]
      %v1655 = vld [vmem:[%s13] sm:$0x1]
      %v1657 = vlaneseq
      %v1658 = vshrl.u32 %v1657, 7
      %v1659 = vsub.s32 0, %v1658
      %v1660 = vrot.slane %v1655, %v1659
      %v1663 = vsel %vm779, %v1650, 0
      %1665 = vmatprep.subr.mxu0 0.0
      %1666 = vmatpush1.msra.mxu0 %v1651
      %1667 = vmatprep.subr.mxu0 0.0
      %1668 = vmatpush1.msra.mxu0 %v1652
      %1669 = vmatprep.subr.mxu0 0.0
      %1670 = vmatpush1.msra.mxu0 %v1653
      %1671 = vmatprep.subr.mxu0 0.0
      %1672 = vmatpush1.msra.mxu0 %v1654
      %1673 = vmatprep.subr.mxu0 0.0
      %1674 = vmatpush1.msra.mxu0 0.0
      %1675 = vmatprep.subr.mxu0 0.0
      %1676 = vmatpush1.msra.mxu0 0.0
      %1677 = vmatprep.subr.mxu0 0.0
      %1678 = vmatpush1.msra.mxu0 0.0
      %1679 = vmatprep.subr.mxu0 0.0
      %1680 = vmatpush1.msra.mxu0 0.0
      %1681 = vmatprep.subr.mxu0 0.0
      %1682 = vmatpush1.msra.mxu0 0.0
      %1683 = vmatprep.subr.mxu0 0.0
      %1684 = vmatpush1.msra.mxu0 0.0
      %1685 = vmatprep.subr.mxu0 0.0
      %1686 = vmatpush1.msra.mxu0 0.0
      %1687 = vmatprep.subr.mxu0 0.0
      %1688 = vmatpush1.msra.mxu0 0.0
      %1689 = vmatprep.subr.mxu0 0.0
      %1690 = vmatpush1.msra.mxu0 0.0
      %1691 = vmatprep.subr.mxu0 0.0
      %1692 = vmatpush1.msra.mxu0 0.0
      %1693 = vmatprep.subr.mxu0 0.0
      %1694 = vmatpush1.msra.mxu0 0.0
      %1695 = vmatprep.subr.mxu0 0.0
      %1696 = vmatpush1.msra.mxu0 0.0
      %1697 = vmatprep.subr.mxu0 0.0
      %1698 = vmatpush1.msra.mxu0 0.0
      %1699 = vmatprep.subr.mxu0 0.0
      %1700 = vmatpush1.msra.mxu0 0.0
      %1701 = vmatprep.subr.mxu0 0.0
      %1702 = vmatpush1.msra.mxu0 0.0
      %1703 = vmatprep.subr.mxu0 0.0
      %1704 = vmatpush1.msra.mxu0 0.0
      %1705 = vmatprep.subr.mxu0 0.0
      %1706 = vmatpush1.msra.mxu0 0.0
      %1707 = vmatprep.subr.mxu0 0.0
      %1708 = vmatpush1.msra.mxu0 0.0
      %1709 = vmatprep.subr.mxu0 0.0
      %1710 = vmatpush1.msra.mxu0 0.0
      %1711 = vmatprep.subr.mxu0 0.0
      %1712 = vmatpush1.msra.mxu0 0.0
      %1713 = vmatprep.subr.mxu0 0.0
      %1714 = vmatpush1.msra.mxu0 0.0
      %1715 = vmatprep.subr.mxu0 0.0
      %1716 = vmatpush1.msra.mxu0 0.0
      %1717 = vmatprep.subr.mxu0 0.0
      %1718 = vmatpush1.msra.mxu0 0.0
      %1719 = vmatprep.subr.mxu0 0.0
      %1720 = vmatpush1.msra.mxu0 0.0
      %1721 = vmatprep.subr.mxu0 0.0
      %1722 = vmatpush1.msra.mxu0 0.0
      %1723 = vmatprep.subr.mxu0 0.0
      %1724 = vmatpush1.msra.mxu0 0.0
      %1725 = vmatprep.subr.mxu0 0.0
      %1726 = vmatpush1.msra.mxu0 0.0
      %1727 = vmatprep.subr.mxu0 0.0
      %1728 = vmatpush1.msra.mxu0 0.0
      %1729 = vmatprep.mubr.f32.mxu0 0.0
      %1730 = vmatmul.mubr.f32.gmra.mrb[0].mxu0 %v1663
      %v1731 = vpop.f32.mrb[0].mxu0
      %v1732 = vadd.f32 %v1660, %v1731
      %v1733 = vpop.f32.mrb[0].mxu0
      %1734 = vdwg.mxu0
      %v1735 = vmul.f32 %v1732, 0.5
      %v1736 = vmul.f32 %v1732, 0.044715
      %v1737 = vmul.f32 %v1736, %v1732
      %v1738 = vmul.f32 %v1737, %v1732
      %v1739 = vadd.f32 %v1732, %v1738
      %v1740 = vmul.f32 %v1739, 0.7978846
      %v1741 = vtanh.pop %v1740
      %v1742 = vadd.f32 %v1741, 1.0
      %v1743 = vmul.f32 %v1735, %v1742
      %v1744 = vld [vmem:[%s14] sm:$0xff]
      %v1745 = vld [vmem:[%s14 + $0x8] sm:$0xff]
      %v1746 = vld [vmem:[%s14 + $0x10] sm:$0xff]
      %v1747 = vld [vmem:[%s14 + $0x18] sm:$0xff]
      %v1748 = vld [vmem:[%s14 + $0x20] sm:$0xff]
      %v1749 = vld [vmem:[%s14 + $0x28] sm:$0xff]
      %v1750 = vld [vmem:[%s14 + $0x30] sm:$0xff]
      %v1751 = vld [vmem:[%s14 + $0x38] sm:$0xff]
      %v1753 = vsel %vm662, %v1743, 0
      %1755 = vmatprep.subr.mxu0 0.0
      %1756 = vmatpush1.msra.mxu0 %v1744
      %1757 = vmatprep.subr.mxu0 0.0
      %1758 = vmatpush1.msra.mxu0 %v1745
      %1759 = vmatprep.subr.mxu0 0.0
      %1760 = vmatpush1.msra.mxu0 %v1746
      %1761 = vmatprep.subr.mxu0 0.0
      %1762 = vmatpush1.msra.mxu0 %v1747
      %1763 = vmatprep.subr.mxu0 0.0
      %1764 = vmatpush1.msra.mxu0 %v1748
      %1765 = vmatprep.subr.mxu0 0.0
      %1766 = vmatpush1.msra.mxu0 %v1749
      %1767 = vmatprep.subr.mxu0 0.0
      %1768 = vmatpush1.msra.mxu0 %v1750
      %1769 = vmatprep.subr.mxu0 0.0
      %1770 = vmatpush1.msra.mxu0 %v1751
      %1771 = vmatprep.subr.mxu0 0.0
      %1772 = vmatpush1.msra.mxu0 0.0
      %1773 = vmatprep.subr.mxu0 0.0
      %1774 = vmatpush1.msra.mxu0 0.0
      %1775 = vmatprep.subr.mxu0 0.0
      %1776 = vmatpush1.msra.mxu0 0.0
      %1777 = vmatprep.subr.mxu0 0.0
      %1778 = vmatpush1.msra.mxu0 0.0
      %1779 = vmatprep.subr.mxu0 0.0
      %1780 = vmatpush1.msra.mxu0 0.0
      %1781 = vmatprep.subr.mxu0 0.0
      %1782 = vmatpush1.msra.mxu0 0.0
      %1783 = vmatprep.subr.mxu0 0.0
      %1784 = vmatpush1.msra.mxu0 0.0
      %1785 = vmatprep.subr.mxu0 0.0
      %1786 = vmatpush1.msra.mxu0 0.0
      %1787 = vmatprep.subr.mxu0 0.0
      %1788 = vmatpush1.msra.mxu0 0.0
      %1789 = vmatprep.subr.mxu0 0.0
      %1790 = vmatpush1.msra.mxu0 0.0
      %1791 = vmatprep.subr.mxu0 0.0
      %1792 = vmatpush1.msra.mxu0 0.0
      %1793 = vmatprep.subr.mxu0 0.0
      %1794 = vmatpush1.msra.mxu0 0.0
      %1795 = vmatprep.subr.mxu0 0.0
      %1796 = vmatpush1.msra.mxu0 0.0
      %1797 = vmatprep.subr.mxu0 0.0
      %1798 = vmatpush1.msra.mxu0 0.0
      %1799 = vmatprep.subr.mxu0 0.0
      %1800 = vmatpush1.msra.mxu0 0.0
      %1801 = vmatprep.subr.mxu0 0.0
      %1802 = vmatpush1.msra.mxu0 0.0
      %1803 = vmatprep.subr.mxu0 0.0
      %1804 = vmatpush1.msra.mxu0 0.0
      %1805 = vmatprep.subr.mxu0 0.0
      %1806 = vmatpush1.msra.mxu0 0.0
      %1807 = vmatprep.subr.mxu0 0.0
      %1808 = vmatpush1.msra.mxu0 0.0
      %1809 = vmatprep.subr.mxu0 0.0
      %1810 = vmatpush1.msra.mxu0 0.0
      %1811 = vmatprep.subr.mxu0 0.0
      %1812 = vmatpush1.msra.mxu0 0.0
      %1813 = vmatprep.subr.mxu0 0.0
      %1814 = vmatpush1.msra.mxu0 0.0
      %1815 = vmatprep.subr.mxu0 0.0
      %1816 = vmatpush1.msra.mxu0 0.0
      %1817 = vmatprep.subr.mxu0 0.0
      %1818 = vmatpush1.msra.mxu0 0.0
      %1819 = vmatprep.mubr.f32.mxu0 0.0
      %1820 = vmatmul.mubr.f32.gmra.mrb[0].mxu0 %v1753
      %v1821 = vpop.f32.mrb[0].mxu0
      %v1822 = vadd.f32 0.0, %v1821
      %v1823 = vpop.f32.mrb[0].mxu0
      %1824 = vdwg.mxu0
      %v1825 = vadd.f32 %v1621, %v1822
      %v1826 = vld [vmem:[%s15] sm:$0x1]
      %v1828 = vlaneseq
      %v1829 = vshrl.u32 %v1828, 7
      %v1830 = vsub.s32 0, %v1829
      %v1831 = vrot.slane %v1826, %v1830
      %v1833 = vadd.f32 %v1825, %v1831
      %s1834 = scalar_lea.vmem %s4, 1
      %v1835 = vld [vmem:[%s1834] sm:$0x1]
      %s1836 = scalar_lea.vmem %s5, 1
      %v1837 = vld [vmem:[%s1836] sm:$0x1]
      %v1838 = vsel %vm739, %v1833, 0.0
      %1839 = vadd.xlane.f32.xlu0 %v1838
      %v1840 = vpop.xlane.xlu0 %1839
      %v1841 = vmul.f32 %v1840, %v743
      %v1842 = vsub.f32 %v1833, %v1841
      %v1843 = vmul.f32 %v1842, %v1842
      %v1844 = vsel %vm739, %v1843, 0.0
      %1845 = vadd.xlane.f32.xlu0 %v1844
      %v1846 = vpop.xlane.xlu0 %1845
      %v1847 = vmul.f32 %v1846, %v743
      %v1848 = vadd.f32 %v1847, 1e-06
      %v1849 = vrsqrt.pop %v1848
      %v1850 = vmul.f32 %v1842, %v1849
      %v1852 = vlaneseq
      %v1853 = vshrl.u32 %v1852, 7
      %v1854 = vsub.s32 0, %v1853
      %v1855 = vrot.slane %v1835, %v1854
      %v1857 = vmul.f32 %v1850, %v1855
      %v1859 = vlaneseq
      %v1860 = vshrl.u32 %v1859, 7
      %v1861 = vsub.s32 0, %v1860
      %v1862 = vrot.slane %v1837, %v1861
      %v1864 = vadd.f32 %v1857, %v1862
      %s1865 = scalar_lea.vmem %s6, 32
      %v1866 = vld [vmem:[%s1865] sm:$0xff]
      %v1867 = vld [vmem:[%s1865 + $0x8] sm:$0xff]
      %v1868 = vld [vmem:[%s1865 + $0x10] sm:$0xff]
      %v1869 = vld [vmem:[%s1865 + $0x18] sm:$0xff]
      %s1870 = scalar_lea.vmem %s7, 1
      %v1871 = vld [vmem:[%s1870] sm:$0x1]
      %v1873 = vlaneseq
      %v1874 = vshrl.u32 %v1873, 7
      %v1875 = vsub.s32 0, %v1874
      %v1876 = vrot.slane %v1871, %v1875
      %v1879 = vsel %vm779, %v1864, 0
      %1881 = vmatprep.subr.mxu0 0.0
      %1882 = vmatpush1.msra.mxu0 %v1866
      %1883 = vmatprep.subr.mxu0 0.0
      %1884 = vmatpush1.msra.mxu0 %v1867
      %1885 = vmatprep.subr.mxu0 0.0
      %1886 = vmatpush1.msra.mxu0 %v1868
      %1887 = vmatprep.subr.mxu0 0.0
      %1888 = vmatpush1.msra.mxu0 %v1869
      %1889 = vmatprep.subr.mxu0 0.0
      %1890 = vmatpush1.msra.mxu0 0.0
      %1891 = vmatprep.subr.mxu0 0.0
      %1892 = vmatpush1.msra.mxu0 0.0
      %1893 = vmatprep.subr.mxu0 0.0
      %1894 = vmatpush1.msra.mxu0 0.0
      %1895 = vmatprep.subr.mxu0 0.0
      %1896 = vmatpush1.msra.mxu0 0.0
      %1897 = vmatprep.subr.mxu0 0.0
      %1898 = vmatpush1.msra.mxu0 0.0
      %1899 = vmatprep.subr.mxu0 0.0
      %1900 = vmatpush1.msra.mxu0 0.0
      %1901 = vmatprep.subr.mxu0 0.0
      %1902 = vmatpush1.msra.mxu0 0.0
      %1903 = vmatprep.subr.mxu0 0.0
      %1904 = vmatpush1.msra.mxu0 0.0
      %1905 = vmatprep.subr.mxu0 0.0
      %1906 = vmatpush1.msra.mxu0 0.0
      %1907 = vmatprep.subr.mxu0 0.0
      %1908 = vmatpush1.msra.mxu0 0.0
      %1909 = vmatprep.subr.mxu0 0.0
      %1910 = vmatpush1.msra.mxu0 0.0
      %1911 = vmatprep.subr.mxu0 0.0
      %1912 = vmatpush1.msra.mxu0 0.0
      %1913 = vmatprep.subr.mxu0 0.0
      %1914 = vmatpush1.msra.mxu0 0.0
      %1915 = vmatprep.subr.mxu0 0.0
      %1916 = vmatpush1.msra.mxu0 0.0
      %1917 = vmatprep.subr.mxu0 0.0
      %1918 = vmatpush1.msra.mxu0 0.0
      %1919 = vmatprep.subr.mxu0 0.0
      %1920 = vmatpush1.msra.mxu0 0.0
      %1921 = vmatprep.subr.mxu0 0.0
      %1922 = vmatpush1.msra.mxu0 0.0
      %1923 = vmatprep.subr.mxu0 0.0
      %1924 = vmatpush1.msra.mxu0 0.0
      %1925 = vmatprep.subr.mxu0 0.0
      %1926 = vmatpush1.msra.mxu0 0.0
      %1927 = vmatprep.subr.mxu0 0.0
      %1928 = vmatpush1.msra.mxu0 0.0
      %1929 = vmatprep.subr.mxu0 0.0
      %1930 = vmatpush1.msra.mxu0 0.0
      %1931 = vmatprep.subr.mxu0 0.0
      %1932 = vmatpush1.msra.mxu0 0.0
      %1933 = vmatprep.subr.mxu0 0.0
      %1934 = vmatpush1.msra.mxu0 0.0
      %1935 = vmatprep.subr.mxu0 0.0
      %1936 = vmatpush1.msra.mxu0 0.0
      %1937 = vmatprep.subr.mxu0 0.0
      %1938 = vmatpush1.msra.mxu0 0.0
      %1939 = vmatprep.subr.mxu0 0.0
      %1940 = vmatpush1.msra.mxu0 0.0
      %1941 = vmatprep.subr.mxu0 0.0
      %1942 = vmatpush1.msra.mxu0 0.0
      %1943 = vmatprep.subr.mxu0 0.0
      %1944 = vmatpush1.msra.mxu0 0.0
      %1945 = vmatprep.mubr.f32.mxu0 0.0
      %1946 = vmatmul.mubr.f32.gmra.mrb[0].mxu0 %v1879
      %v1947 = vpop.f32.mrb[0].mxu0
      %v1948 = vadd.f32 %v1876, %v1947
      %v1949 = vpop.f32.mrb[0].mxu0
      %1950 = vdwg.mxu0
      %1952 = vrot.lane.b32.xlu0 %v1948, 96
      %v1953 = vpop.permute.xlu0 %1952
      %v1954 = vsel %vm856, %v1948, 0
      %v1956 = vsel %vm856, %v1953, 0
      %1958 = vmatprep.subr.mxu0 0.0
      %1959 = vmatpush1.xpose.msra.mxu0 %v1956
      %1960 = vmatprep.subr.mxu0 0.0
      %1961 = vmatpush1.xpose.msra.mxu0 0.0
      %1962 = vmatprep.subr.mxu0 0.0
      %1963 = vmatpush1.xpose.msra.mxu0 0.0
      %1964 = vmatprep.subr.mxu0 0.0
      %1965 = vmatpush1.xpose.msra.mxu0 0.0
      %1966 = vmatprep.subr.mxu0 0.0
      %1967 = vmatpush1.xpose.msra.mxu0 0.0
      %1968 = vmatprep.subr.mxu0 0.0
      %1969 = vmatpush1.xpose.msra.mxu0 0.0
      %1970 = vmatprep.subr.mxu0 0.0
      %1971 = vmatpush1.xpose.msra.mxu0 0.0
      %1972 = vmatprep.subr.mxu0 0.0
      %1973 = vmatpush1.xpose.msra.mxu0 0.0
      %1974 = vmatprep.subr.mxu0 0.0
      %1975 = vmatpush1.xpose.msra.mxu0 0.0
      %1976 = vmatprep.subr.mxu0 0.0
      %1977 = vmatpush1.xpose.msra.mxu0 0.0
      %1978 = vmatprep.subr.mxu0 0.0
      %1979 = vmatpush1.xpose.msra.mxu0 0.0
      %1980 = vmatprep.subr.mxu0 0.0
      %1981 = vmatpush1.xpose.msra.mxu0 0.0
      %1982 = vmatprep.subr.mxu0 0.0
      %1983 = vmatpush1.xpose.msra.mxu0 0.0
      %1984 = vmatprep.subr.mxu0 0.0
      %1985 = vmatpush1.xpose.msra.mxu0 0.0
      %1986 = vmatprep.subr.mxu0 0.0
      %1987 = vmatpush1.xpose.msra.mxu0 0.0
      %1988 = vmatprep.subr.mxu0 0.0
      %1989 = vmatpush1.xpose.msra.mxu0 0.0
      %1990 = vmatprep.subr.mxu0 0.0
      %1991 = vmatpush1.xpose.msra.mxu0 0.0
      %1992 = vmatprep.subr.mxu0 0.0
      %1993 = vmatpush1.xpose.msra.mxu0 0.0
      %1994 = vmatprep.subr.mxu0 0.0
      %1995 = vmatpush1.xpose.msra.mxu0 0.0
      %1996 = vmatprep.subr.mxu0 0.0
      %1997 = vmatpush1.xpose.msra.mxu0 0.0
      %1998 = vmatprep.subr.mxu0 0.0
      %1999 = vmatpush1.xpose.msra.mxu0 0.0
      %2000 = vmatprep.subr.mxu0 0.0
      %2001 = vmatpush1.xpose.msra.mxu0 0.0
      %2002 = vmatprep.subr.mxu0 0.0
      %2003 = vmatpush1.xpose.msra.mxu0 0.0
      %2004 = vmatprep.subr.mxu0 0.0
      %2005 = vmatpush1.xpose.msra.mxu0 0.0
      %2006 = vmatprep.subr.mxu0 0.0
      %2007 = vmatpush1.xpose.msra.mxu0 0.0
      %2008 = vmatprep.subr.mxu0 0.0
      %2009 = vmatpush1.xpose.msra.mxu0 0.0
      %2010 = vmatprep.subr.mxu0 0.0
      %2011 = vmatpush1.xpose.msra.mxu0 0.0
      %2012 = vmatprep.subr.mxu0 0.0
      %2013 = vmatpush1.xpose.msra.mxu0 0.0
      %2014 = vmatprep.subr.mxu0 0.0
      %2015 = vmatpush1.xpose.msra.mxu0 0.0
      %2016 = vmatprep.subr.mxu0 0.0
      %2017 = vmatpush1.xpose.msra.mxu0 0.0
      %2018 = vmatprep.subr.mxu0 0.0
      %2019 = vmatpush1.xpose.msra.mxu0 0.0
      %2020 = vmatprep.subr.mxu0 0.0
      %2021 = vmatpush1.xpose.msra.mxu0 0.0
      %2022 = vmatprep.mubr.f32.mxu0 0.0
      %2023 = vmatmul.mubr.f32.gmra.mrb[0].mxu0 %v1954
      %v2024 = vpop.f32.mrb[0].mxu0
      %v2025 = vadd.f32 0.0, %v2024
      %v2026 = vpop.f32.mrb[0].mxu0
      %2027 = vdwg.mxu0
      %v2028 = vsel %vm931, %v2025, -inf
      %2029 = vmax.xlane.f32.xlu0 %v2028
      %v2030 = vpop.xlane.xlu0 %2029
      %v2031 = vsub.f32 %v2025, %v2030
      %v2032 = vmul.f32 %v2031, 1.442695
      %v2033 = vpow.pop %v2032
      %v2034 = vsel %vm931, %v2033, 0.0
      %2035 = vadd.xlane.f32.xlu0 %v2034
      %v2036 = vpop.xlane.xlu0 %2035
      %v2037 = vrcp.pop %v2036
      %v2038 = vmul.f32 %v2033, %v2037
      %2039 = vrot.lane.b32.xlu0 %v1948, 64
      %v2040 = vpop.permute.xlu0 %2039
      %v2042 = vsel %vm945, %v2038, 0
      %v2044 = vsel %vm949, %v2040, 0
      %2046 = vmatprep.subr.mxu0 0.0
      %2047 = vmatpush1.msra.mxu0 %v2044
      %2048 = vmatprep.subr.mxu0 0.0
      %2049 = vmatpush1.msra.mxu0 0.0
      %2050 = vmatprep.subr.mxu0 0.0
      %2051 = vmatpush1.msra.mxu0 0.0
      %2052 = vmatprep.subr.mxu0 0.0
      %2053 = vmatpush1.msra.mxu0 0.0
      %2054 = vmatprep.subr.mxu0 0.0
      %2055 = vmatpush1.msra.mxu0 0.0
      %2056 = vmatprep.subr.mxu0 0.0
      %2057 = vmatpush1.msra.mxu0 0.0
      %2058 = vmatprep.subr.mxu0 0.0
      %2059 = vmatpush1.msra.mxu0 0.0
      %2060 = vmatprep.subr.mxu0 0.0
      %2061 = vmatpush1.msra.mxu0 0.0
      %2062 = vmatprep.subr.mxu0 0.0
      %2063 = vmatpush1.msra.mxu0 0.0
      %2064 = vmatprep.subr.mxu0 0.0
      %2065 = vmatpush1.msra.mxu0 0.0
      %2066 = vmatprep.subr.mxu0 0.0
      %2067 = vmatpush1.msra.mxu0 0.0
      %2068 = vmatprep.subr.mxu0 0.0
      %2069 = vmatpush1.msra.mxu0 0.0
      %2070 = vmatprep.subr.mxu0 0.0
      %2071 = vmatpush1.msra.mxu0 0.0
      %2072 = vmatprep.subr.mxu0 0.0
      %2073 = vmatpush1.msra.mxu0 0.0
      %2074 = vmatprep.subr.mxu0 0.0
      %2075 = vmatpush1.msra.mxu0 0.0
      %2076 = vmatprep.subr.mxu0 0.0
      %2077 = vmatpush1.msra.mxu0 0.0
      %2078 = vmatprep.subr.mxu0 0.0
      %2079 = vmatpush1.msra.mxu0 0.0
      %2080 = vmatprep.subr.mxu0 0.0
      %2081 = vmatpush1.msra.mxu0 0.0
      %2082 = vmatprep.subr.mxu0 0.0
      %2083 = vmatpush1.msra.mxu0 0.0
      %2084 = vmatprep.subr.mxu0 0.0
      %2085 = vmatpush1.msra.mxu0 0.0
      %2086 = vmatprep.subr.mxu0 0.0
      %2087 = vmatpush1.msra.mxu0 0.0
      %2088 = vmatprep.subr.mxu0 0.0
      %2089 = vmatpush1.msra.mxu0 0.0
      %2090 = vmatprep.subr.mxu0 0.0
      %2091 = vmatpush1.msra.mxu0 0.0
      %2092 = vmatprep.subr.mxu0 0.0
      %2093 = vmatpush1.msra.mxu0 0.0
      %2094 = vmatprep.subr.mxu0 0.0
      %2095 = vmatpush1.msra.mxu0 0.0
      %2096 = vmatprep.subr.mxu0 0.0
      %2097 = vmatpush1.msra.mxu0 0.0
      %2098 = vmatprep.subr.mxu0 0.0
      %2099 = vmatpush1.msra.mxu0 0.0
      %2100 = vmatprep.subr.mxu0 0.0
      %2101 = vmatpush1.msra.mxu0 0.0
      %2102 = vmatprep.subr.mxu0 0.0
      %2103 = vmatpush1.msra.mxu0 0.0
      %2104 = vmatprep.subr.mxu0 0.0
      %2105 = vmatpush1.msra.mxu0 0.0
      %2106 = vmatprep.subr.mxu0 0.0
      %2107 = vmatpush1.msra.mxu0 0.0
      %2108 = vmatprep.subr.mxu0 0.0
      %2109 = vmatpush1.msra.mxu0 0.0
      %2110 = vmatprep.mubr.f32.mxu0 0.0
      %2111 = vmatmul.mubr.f32.gmra.mrb[0].mxu0 %v2042
      %v2112 = vpop.f32.mrb[0].mxu0
      %v2113 = vadd.f32 0.0, %v2112
      %v2114 = vpop.f32.mrb[0].mxu0
      %2115 = vdwg.mxu0
      %2116 = vrot.lane.b32.xlu0 %v1948, 120
      %v2117 = vpop.permute.xlu0 %2116
      %2118 = vrot.lane.b32.xlu0 %v1948, 88
      %v2119 = vpop.permute.xlu0 %2118
      %v2120 = vsel %vm856, %v2117, 0
      %v2122 = vsel %vm856, %v2119, 0
      %2124 = vmatprep.subr.mxu0 0.0
      %2125 = vmatpush1.xpose.msra.mxu0 %v2122
      %2126 = vmatprep.subr.mxu0 0.0
      %2127 = vmatpush1.xpose.msra.mxu0 0.0
      %2128 = vmatprep.subr.mxu0 0.0
      %2129 = vmatpush1.xpose.msra.mxu0 0.0
      %2130 = vmatprep.subr.mxu0 0.0
      %2131 = vmatpush1.xpose.msra.mxu0 0.0
      %2132 = vmatprep.subr.mxu0 0.0
      %2133 = vmatpush1.xpose.msra.mxu0 0.0
      %2134 = vmatprep.subr.mxu0 0.0
      %2135 = vmatpush1.xpose.msra.mxu0 0.0
      %2136 = vmatprep.subr.mxu0 0.0
      %2137 = vmatpush1.xpose.msra.mxu0 0.0
      %2138 = vmatprep.subr.mxu0 0.0
      %2139 = vmatpush1.xpose.msra.mxu0 0.0
      %2140 = vmatprep.subr.mxu0 0.0
      %2141 = vmatpush1.xpose.msra.mxu0 0.0
      %2142 = vmatprep.subr.mxu0 0.0
      %2143 = vmatpush1.xpose.msra.mxu0 0.0
      %2144 = vmatprep.subr.mxu0 0.0
      %2145 = vmatpush1.xpose.msra.mxu0 0.0
      %2146 = vmatprep.subr.mxu0 0.0
      %2147 = vmatpush1.xpose.msra.mxu0 0.0
      %2148 = vmatprep.subr.mxu0 0.0
      %2149 = vmatpush1.xpose.msra.mxu0 0.0
      %2150 = vmatprep.subr.mxu0 0.0
      %2151 = vmatpush1.xpose.msra.mxu0 0.0
      %2152 = vmatprep.subr.mxu0 0.0
      %2153 = vmatpush1.xpose.msra.mxu0 0.0
      %2154 = vmatprep.subr.mxu0 0.0
      %2155 = vmatpush1.xpose.msra.mxu0 0.0
      %2156 = vmatprep.subr.mxu0 0.0
      %2157 = vmatpush1.xpose.msra.mxu0 0.0
      %2158 = vmatprep.subr.mxu0 0.0
      %2159 = vmatpush1.xpose.msra.mxu0 0.0
      %2160 = vmatprep.subr.mxu0 0.0
      %2161 = vmatpush1.xpose.msra.mxu0 0.0
      %2162 = vmatprep.subr.mxu0 0.0
      %2163 = vmatpush1.xpose.msra.mxu0 0.0
      %2164 = vmatprep.subr.mxu0 0.0
      %2165 = vmatpush1.xpose.msra.mxu0 0.0
      %2166 = vmatprep.subr.mxu0 0.0
      %2167 = vmatpush1.xpose.msra.mxu0 0.0
      %2168 = vmatprep.subr.mxu0 0.0
      %2169 = vmatpush1.xpose.msra.mxu0 0.0
      %2170 = vmatprep.subr.mxu0 0.0
      %2171 = vmatpush1.xpose.msra.mxu0 0.0
      %2172 = vmatprep.subr.mxu0 0.0
      %2173 = vmatpush1.xpose.msra.mxu0 0.0
      %2174 = vmatprep.subr.mxu0 0.0
      %2175 = vmatpush1.xpose.msra.mxu0 0.0
      %2176 = vmatprep.subr.mxu0 0.0
      %2177 = vmatpush1.xpose.msra.mxu0 0.0
      %2178 = vmatprep.subr.mxu0 0.0
      %2179 = vmatpush1.xpose.msra.mxu0 0.0
      %2180 = vmatprep.subr.mxu0 0.0
      %2181 = vmatpush1.xpose.msra.mxu0 0.0
      %2182 = vmatprep.subr.mxu0 0.0
      %2183 = vmatpush1.xpose.msra.mxu0 0.0
      %2184 = vmatprep.subr.mxu0 0.0
      %2185 = vmatpush1.xpose.msra.mxu0 0.0
      %2186 = vmatprep.subr.mxu0 0.0
      %2187 = vmatpush1.xpose.msra.mxu0 0.0
      %2188 = vmatprep.mubr.f32.mxu0 0.0
      %2189 = vmatmul.mubr.f32.gmra.mrb[0].mxu0 %v2120
      %v2190 = vpop.f32.mrb[0].mxu0
      %v2191 = vadd.f32 0.0, %v2190
      %v2192 = vpop.f32.mrb[0].mxu0
      %2193 = vdwg.mxu0
      %v2194 = vsel %vm931, %v2191, -inf
      %2195 = vmax.xlane.f32.xlu0 %v2194
      %v2196 = vpop.xlane.xlu0 %2195
      %v2197 = vsub.f32 %v2191, %v2196
      %v2198 = vmul.f32 %v2197, 1.442695
      %v2199 = vpow.pop %v2198
      %v2200 = vsel %vm931, %v2199, 0.0
      %2201 = vadd.xlane.f32.xlu0 %v2200
      %v2202 = vpop.xlane.xlu0 %2201
      %v2203 = vrcp.pop %v2202
      %v2204 = vmul.f32 %v2199, %v2203
      %2205 = vrot.lane.b32.xlu0 %v1948, 56
      %v2206 = vpop.permute.xlu0 %2205
      %v2208 = vsel %vm945, %v2204, 0
      %v2210 = vsel %vm949, %v2206, 0
      %2212 = vmatprep.subr.mxu0 0.0
      %2213 = vmatpush1.msra.mxu0 %v2210
      %2214 = vmatprep.subr.mxu0 0.0
      %2215 = vmatpush1.msra.mxu0 0.0
      %2216 = vmatprep.subr.mxu0 0.0
      %2217 = vmatpush1.msra.mxu0 0.0
      %2218 = vmatprep.subr.mxu0 0.0
      %2219 = vmatpush1.msra.mxu0 0.0
      %2220 = vmatprep.subr.mxu0 0.0
      %2221 = vmatpush1.msra.mxu0 0.0
      %2222 = vmatprep.subr.mxu0 0.0
      %2223 = vmatpush1.msra.mxu0 0.0
      %2224 = vmatprep.subr.mxu0 0.0
      %2225 = vmatpush1.msra.mxu0 0.0
      %2226 = vmatprep.subr.mxu0 0.0
      %2227 = vmatpush1.msra.mxu0 0.0
      %2228 = vmatprep.subr.mxu0 0.0
      %2229 = vmatpush1.msra.mxu0 0.0
      %2230 = vmatprep.subr.mxu0 0.0
      %2231 = vmatpush1.msra.mxu0 0.0
      %2232 = vmatprep.subr.mxu0 0.0
      %2233 = vmatpush1.msra.mxu0 0.0
      %2234 = vmatprep.subr.mxu0 0.0
      %2235 = vmatpush1.msra.mxu0 0.0
      %2236 = vmatprep.subr.mxu0 0.0
      %2237 = vmatpush1.msra.mxu0 0.0
      %2238 = vmatprep.subr.mxu0 0.0
      %2239 = vmatpush1.msra.mxu0 0.0
      %2240 = vmatprep.subr.mxu0 0.0
      %2241 = vmatpush1.msra.mxu0 0.0
      %2242 = vmatprep.subr.mxu0 0.0
      %2243 = vmatpush1.msra.mxu0 0.0
      %2244 = vmatprep.subr.mxu0 0.0
      %2245 = vmatpush1.msra.mxu0 0.0
      %2246 = vmatprep.subr.mxu0 0.0
      %2247 = vmatpush1.msra.mxu0 0.0
      %2248 = vmatprep.subr.mxu0 0.0
      %2249 = vmatpush1.msra.mxu0 0.0
      %2250 = vmatprep.subr.mxu0 0.0
      %2251 = vmatpush1.msra.mxu0 0.0
      %2252 = vmatprep.subr.mxu0 0.0
      %2253 = vmatpush1.msra.mxu0 0.0
      %2254 = vmatprep.subr.mxu0 0.0
      %2255 = vmatpush1.msra.mxu0 0.0
      %2256 = vmatprep.subr.mxu0 0.0
      %2257 = vmatpush1.msra.mxu0 0.0
      %2258 = vmatprep.subr.mxu0 0.0
      %2259 = vmatpush1.msra.mxu0 0.0
      %2260 = vmatprep.subr.mxu0 0.0
      %2261 = vmatpush1.msra.mxu0 0.0
      %2262 = vmatprep.subr.mxu0 0.0
      %2263 = vmatpush1.msra.mxu0 0.0
      %2264 = vmatprep.subr.mxu0 0.0
      %2265 = vmatpush1.msra.mxu0 0.0
      %2266 = vmatprep.subr.mxu0 0.0
      %2267 = vmatpush1.msra.mxu0 0.0
      %2268 = vmatprep.subr.mxu0 0.0
      %2269 = vmatpush1.msra.mxu0 0.0
      %2270 = vmatprep.subr.mxu0 0.0
      %2271 = vmatpush1.msra.mxu0 0.0
      %2272 = vmatprep.subr.mxu0 0.0
      %2273 = vmatpush1.msra.mxu0 0.0
      %2274 = vmatprep.subr.mxu0 0.0
      %2275 = vmatpush1.msra.mxu0 0.0
      %2276 = vmatprep.mubr.f32.mxu0 0.0
      %2277 = vmatmul.mubr.f32.gmra.mrb[0].mxu0 %v2208
      %v2278 = vpop.f32.mrb[0].mxu0
      %v2279 = vadd.f32 0.0, %v2278
      %v2280 = vpop.f32.mrb[0].mxu0
      %2281 = vdwg.mxu0
      %2282 = vrot.lane.b32.xlu0 %v1948, 112
      %v2283 = vpop.permute.xlu0 %2282
      %2284 = vrot.lane.b32.xlu0 %v1948, 80
      %v2285 = vpop.permute.xlu0 %2284
      %v2286 = vsel %vm856, %v2283, 0
      %v2288 = vsel %vm856, %v2285, 0
      %2290 = vmatprep.subr.mxu0 0.0
      %2291 = vmatpush1.xpose.msra.mxu0 %v2288
      %2292 = vmatprep.subr.mxu0 0.0
      %2293 = vmatpush1.xpose.msra.mxu0 0.0
      %2294 = vmatprep.subr.mxu0 0.0
      %2295 = vmatpush1.xpose.msra.mxu0 0.0
      %2296 = vmatprep.subr.mxu0 0.0
      %2297 = vmatpush1.xpose.msra.mxu0 0.0
      %2298 = vmatprep.subr.mxu0 0.0
      %2299 = vmatpush1.xpose.msra.mxu0 0.0
      %2300 = vmatprep.subr.mxu0 0.0
      %2301 = vmatpush1.xpose.msra.mxu0 0.0
      %2302 = vmatprep.subr.mxu0 0.0
      %2303 = vmatpush1.xpose.msra.mxu0 0.0
      %2304 = vmatprep.subr.mxu0 0.0
      %2305 = vmatpush1.xpose.msra.mxu0 0.0
      %2306 = vmatprep.subr.mxu0 0.0
      %2307 = vmatpush1.xpose.msra.mxu0 0.0
      %2308 = vmatprep.subr.mxu0 0.0
      %2309 = vmatpush1.xpose.msra.mxu0 0.0
      %2310 = vmatprep.subr.mxu0 0.0
      %2311 = vmatpush1.xpose.msra.mxu0 0.0
      %2312 = vmatprep.subr.mxu0 0.0
      %2313 = vmatpush1.xpose.msra.mxu0 0.0
      %2314 = vmatprep.subr.mxu0 0.0
      %2315 = vmatpush1.xpose.msra.mxu0 0.0
      %2316 = vmatprep.subr.mxu0 0.0
      %2317 = vmatpush1.xpose.msra.mxu0 0.0
      %2318 = vmatprep.subr.mxu0 0.0
      %2319 = vmatpush1.xpose.msra.mxu0 0.0
      %2320 = vmatprep.subr.mxu0 0.0
      %2321 = vmatpush1.xpose.msra.mxu0 0.0
      %2322 = vmatprep.subr.mxu0 0.0
      %2323 = vmatpush1.xpose.msra.mxu0 0.0
      %2324 = vmatprep.subr.mxu0 0.0
      %2325 = vmatpush1.xpose.msra.mxu0 0.0
      %2326 = vmatprep.subr.mxu0 0.0
      %2327 = vmatpush1.xpose.msra.mxu0 0.0
      %2328 = vmatprep.subr.mxu0 0.0
      %2329 = vmatpush1.xpose.msra.mxu0 0.0
      %2330 = vmatprep.subr.mxu0 0.0
      %2331 = vmatpush1.xpose.msra.mxu0 0.0
      %2332 = vmatprep.subr.mxu0 0.0
      %2333 = vmatpush1.xpose.msra.mxu0 0.0
      %2334 = vmatprep.subr.mxu0 0.0
      %2335 = vmatpush1.xpose.msra.mxu0 0.0
      %2336 = vmatprep.subr.mxu0 0.0
      %2337 = vmatpush1.xpose.msra.mxu0 0.0
      %2338 = vmatprep.subr.mxu0 0.0
      %2339 = vmatpush1.xpose.msra.mxu0 0.0
      %2340 = vmatprep.subr.mxu0 0.0
      %2341 = vmatpush1.xpose.msra.mxu0 0.0
      %2342 = vmatprep.subr.mxu0 0.0
      %2343 = vmatpush1.xpose.msra.mxu0 0.0
      %2344 = vmatprep.subr.mxu0 0.0
      %2345 = vmatpush1.xpose.msra.mxu0 0.0
      %2346 = vmatprep.subr.mxu0 0.0
      %2347 = vmatpush1.xpose.msra.mxu0 0.0
      %2348 = vmatprep.subr.mxu0 0.0
      %2349 = vmatpush1.xpose.msra.mxu0 0.0
      %2350 = vmatprep.subr.mxu0 0.0
      %2351 = vmatpush1.xpose.msra.mxu0 0.0
      %2352 = vmatprep.subr.mxu0 0.0
      %2353 = vmatpush1.xpose.msra.mxu0 0.0
      %2354 = vmatprep.mubr.f32.mxu0 0.0
      %2355 = vmatmul.mubr.f32.gmra.mrb[0].mxu0 %v2286
      %v2356 = vpop.f32.mrb[0].mxu0
      %v2357 = vadd.f32 0.0, %v2356
      %v2358 = vpop.f32.mrb[0].mxu0
      %2359 = vdwg.mxu0
      %v2360 = vsel %vm931, %v2357, -inf
      %2361 = vmax.xlane.f32.xlu0 %v2360
      %v2362 = vpop.xlane.xlu0 %2361
      %v2363 = vsub.f32 %v2357, %v2362
      %v2364 = vmul.f32 %v2363, 1.442695
      %v2365 = vpow.pop %v2364
      %v2366 = vsel %vm931, %v2365, 0.0
      %2367 = vadd.xlane.f32.xlu0 %v2366
      %v2368 = vpop.xlane.xlu0 %2367
      %v2369 = vrcp.pop %v2368
      %v2370 = vmul.f32 %v2365, %v2369
      %2371 = vrot.lane.b32.xlu0 %v1948, 48
      %v2372 = vpop.permute.xlu0 %2371
      %v2374 = vsel %vm945, %v2370, 0
      %v2376 = vsel %vm949, %v2372, 0
      %2378 = vmatprep.subr.mxu0 0.0
      %2379 = vmatpush1.msra.mxu0 %v2376
      %2380 = vmatprep.subr.mxu0 0.0
      %2381 = vmatpush1.msra.mxu0 0.0
      %2382 = vmatprep.subr.mxu0 0.0
      %2383 = vmatpush1.msra.mxu0 0.0
      %2384 = vmatprep.subr.mxu0 0.0
      %2385 = vmatpush1.msra.mxu0 0.0
      %2386 = vmatprep.subr.mxu0 0.0
      %2387 = vmatpush1.msra.mxu0 0.0
      %2388 = vmatprep.subr.mxu0 0.0
      %2389 = vmatpush1.msra.mxu0 0.0
      %2390 = vmatprep.subr.mxu0 0.0
      %2391 = vmatpush1.msra.mxu0 0.0
      %2392 = vmatprep.subr.mxu0 0.0
      %2393 = vmatpush1.msra.mxu0 0.0
      %2394 = vmatprep.subr.mxu0 0.0
      %2395 = vmatpush1.msra.mxu0 0.0
      %2396 = vmatprep.subr.mxu0 0.0
      %2397 = vmatpush1.msra.mxu0 0.0
      %2398 = vmatprep.subr.mxu0 0.0
      %2399 = vmatpush1.msra.mxu0 0.0
      %2400 = vmatprep.subr.mxu0 0.0
      %2401 = vmatpush1.msra.mxu0 0.0
      %2402 = vmatprep.subr.mxu0 0.0
      %2403 = vmatpush1.msra.mxu0 0.0
      %2404 = vmatprep.subr.mxu0 0.0
      %2405 = vmatpush1.msra.mxu0 0.0
      %2406 = vmatprep.subr.mxu0 0.0
      %2407 = vmatpush1.msra.mxu0 0.0
      %2408 = vmatprep.subr.mxu0 0.0
      %2409 = vmatpush1.msra.mxu0 0.0
      %2410 = vmatprep.subr.mxu0 0.0
      %2411 = vmatpush1.msra.mxu0 0.0
      %2412 = vmatprep.subr.mxu0 0.0
      %2413 = vmatpush1.msra.mxu0 0.0
      %2414 = vmatprep.subr.mxu0 0.0
      %2415 = vmatpush1.msra.mxu0 0.0
      %2416 = vmatprep.subr.mxu0 0.0
      %2417 = vmatpush1.msra.mxu0 0.0
      %2418 = vmatprep.subr.mxu0 0.0
      %2419 = vmatpush1.msra.mxu0 0.0
      %2420 = vmatprep.subr.mxu0 0.0
      %2421 = vmatpush1.msra.mxu0 0.0
      %2422 = vmatprep.subr.mxu0 0.0
      %2423 = vmatpush1.msra.mxu0 0.0
      %2424 = vmatprep.subr.mxu0 0.0
      %2425 = vmatpush1.msra.mxu0 0.0
      %2426 = vmatprep.subr.mxu0 0.0
      %2427 = vmatpush1.msra.mxu0 0.0
      %2428 = vmatprep.subr.mxu0 0.0
      %2429 = vmatpush1.msra.mxu0 0.0
      %2430 = vmatprep.subr.mxu0 0.0
      %2431 = vmatpush1.msra.mxu0 0.0
      %2432 = vmatprep.subr.mxu0 0.0
      %2433 = vmatpush1.msra.mxu0 0.0
      %2434 = vmatprep.subr.mxu0 0.0
      %2435 = vmatpush1.msra.mxu0 0.0
      %2436 = vmatprep.subr.mxu0 0.0
      %2437 = vmatpush1.msra.mxu0 0.0
      %2438 = vmatprep.subr.mxu0 0.0
      %2439 = vmatpush1.msra.mxu0 0.0
      %2440 = vmatprep.subr.mxu0 0.0
      %2441 = vmatpush1.msra.mxu0 0.0
      %2442 = vmatprep.mubr.f32.mxu0 0.0
      %2443 = vmatmul.mubr.f32.gmra.mrb[0].mxu0 %v2374
      %v2444 = vpop.f32.mrb[0].mxu0
      %v2445 = vadd.f32 0.0, %v2444
      %v2446 = vpop.f32.mrb[0].mxu0
      %2447 = vdwg.mxu0
      %2448 = vrot.lane.b32.xlu0 %v1948, 104
      %v2449 = vpop.permute.xlu0 %2448
      %2450 = vrot.lane.b32.xlu0 %v1948, 72
      %v2451 = vpop.permute.xlu0 %2450
      %v2452 = vsel %vm856, %v2449, 0
      %v2454 = vsel %vm856, %v2451, 0
      %2456 = vmatprep.subr.mxu0 0.0
      %2457 = vmatpush1.xpose.msra.mxu0 %v2454
      %2458 = vmatprep.subr.mxu0 0.0
      %2459 = vmatpush1.xpose.msra.mxu0 0.0
      %2460 = vmatprep.subr.mxu0 0.0
      %2461 = vmatpush1.xpose.msra.mxu0 0.0
      %2462 = vmatprep.subr.mxu0 0.0
      %2463 = vmatpush1.xpose.msra.mxu0 0.0
      %2464 = vmatprep.subr.mxu0 0.0
      %2465 = vmatpush1.xpose.msra.mxu0 0.0
      %2466 = vmatprep.subr.mxu0 0.0
      %2467 = vmatpush1.xpose.msra.mxu0 0.0
      %2468 = vmatprep.subr.mxu0 0.0
      %2469 = vmatpush1.xpose.msra.mxu0 0.0
      %2470 = vmatprep.subr.mxu0 0.0
      %2471 = vmatpush1.xpose.msra.mxu0 0.0
      %2472 = vmatprep.subr.mxu0 0.0
      %2473 = vmatpush1.xpose.msra.mxu0 0.0
      %2474 = vmatprep.subr.mxu0 0.0
      %2475 = vmatpush1.xpose.msra.mxu0 0.0
      %2476 = vmatprep.subr.mxu0 0.0
      %2477 = vmatpush1.xpose.msra.mxu0 0.0
      %2478 = vmatprep.subr.mxu0 0.0
      %2479 = vmatpush1.xpose.msra.mxu0 0.0
      %2480 = vmatprep.subr.mxu0 0.0
      %2481 = vmatpush1.xpose.msra.mxu0 0.0
      %2482 = vmatprep.subr.mxu0 0.0
      %2483 = vmatpush1.xpose.msra.mxu0 0.0
      %2484 = vmatprep.subr.mxu0 0.0
      %2485 = vmatpush1.xpose.msra.mxu0 0.0
      %2486 = vmatprep.subr.mxu0 0.0
      %2487 = vmatpush1.xpose.msra.mxu0 0.0
      %2488 = vmatprep.subr.mxu0 0.0
      %2489 = vmatpush1.xpose.msra.mxu0 0.0
      %2490 = vmatprep.subr.mxu0 0.0
      %2491 = vmatpush1.xpose.msra.mxu0 0.0
      %2492 = vmatprep.subr.mxu0 0.0
      %2493 = vmatpush1.xpose.msra.mxu0 0.0
      %2494 = vmatprep.subr.mxu0 0.0
      %2495 = vmatpush1.xpose.msra.mxu0 0.0
      %2496 = vmatprep.subr.mxu0 0.0
      %2497 = vmatpush1.xpose.msra.mxu0 0.0
      %2498 = vmatprep.subr.mxu0 0.0
      %2499 = vmatpush1.xpose.msra.mxu0 0.0
      %2500 = vmatprep.subr.mxu0 0.0
      %2501 = vmatpush1.xpose.msra.mxu0 0.0
      %2502 = vmatprep.subr.mxu0 0.0
      %2503 = vmatpush1.xpose.msra.mxu0 0.0
      %2504 = vmatprep.subr.mxu0 0.0
      %2505 = vmatpush1.xpose.msra.mxu0 0.0
      %2506 = vmatprep.subr.mxu0 0.0
      %2507 = vmatpush1.xpose.msra.mxu0 0.0
      %2508 = vmatprep.subr.mxu0 0.0
      %2509 = vmatpush1.xpose.msra.mxu0 0.0
      %2510 = vmatprep.subr.mxu0 0.0
      %2511 = vmatpush1.xpose.msra.mxu0 0.0
      %2512 = vmatprep.subr.mxu0 0.0
      %2513 = vmatpush1.xpose.msra.mxu0 0.0
      %2514 = vmatprep.subr.mxu0 0.0
      %2515 = vmatpush1.xpose.msra.mxu0 0.0
      %2516 = vmatprep.subr.mxu0 0.0
      %2517 = vmatpush1.xpose.msra.mxu0 0.0
      %2518 = vmatprep.subr.mxu0 0.0
      %2519 = vmatpush1.xpose.msra.mxu0 0.0
      %2520 = vmatprep.mubr.f32.mxu0 0.0
      %2521 = vmatmul.mubr.f32.gmra.mrb[0].mxu0 %v2452
      %v2522 = vpop.f32.mrb[0].mxu0
      %v2523 = vadd.f32 0.0, %v2522
      %v2524 = vpop.f32.mrb[0].mxu0
      %2525 = vdwg.mxu0
      %v2526 = vsel %vm931, %v2523, -inf
      %2527 = vmax.xlane.f32.xlu0 %v2526
      %v2528 = vpop.xlane.xlu0 %2527
      %v2529 = vsub.f32 %v2523, %v2528
      %v2530 = vmul.f32 %v2529, 1.442695
      %v2531 = vpow.pop %v2530
      %v2532 = vsel %vm931, %v2531, 0.0
      %2533 = vadd.xlane.f32.xlu0 %v2532
      %v2534 = vpop.xlane.xlu0 %2533
      %v2535 = vrcp.pop %v2534
      %v2536 = vmul.f32 %v2531, %v2535
      %2537 = vrot.lane.b32.xlu0 %v1948, 40
      %v2538 = vpop.permute.xlu0 %2537
      %v2540 = vsel %vm945, %v2536, 0
      %v2542 = vsel %vm949, %v2538, 0
      %2544 = vmatprep.subr.mxu0 0.0
      %2545 = vmatpush1.msra.mxu0 %v2542
      %2546 = vmatprep.subr.mxu0 0.0
      %2547 = vmatpush1.msra.mxu0 0.0
      %2548 = vmatprep.subr.mxu0 0.0
      %2549 = vmatpush1.msra.mxu0 0.0
      %2550 = vmatprep.subr.mxu0 0.0
      %2551 = vmatpush1.msra.mxu0 0.0
      %2552 = vmatprep.subr.mxu0 0.0
      %2553 = vmatpush1.msra.mxu0 0.0
      %2554 = vmatprep.subr.mxu0 0.0
      %2555 = vmatpush1.msra.mxu0 0.0
      %2556 = vmatprep.subr.mxu0 0.0
      %2557 = vmatpush1.msra.mxu0 0.0
      %2558 = vmatprep.subr.mxu0 0.0
      %2559 = vmatpush1.msra.mxu0 0.0
      %2560 = vmatprep.subr.mxu0 0.0
      %2561 = vmatpush1.msra.mxu0 0.0
      %2562 = vmatprep.subr.mxu0 0.0
      %2563 = vmatpush1.msra.mxu0 0.0
      %2564 = vmatprep.subr.mxu0 0.0
      %2565 = vmatpush1.msra.mxu0 0.0
      %2566 = vmatprep.subr.mxu0 0.0
      %2567 = vmatpush1.msra.mxu0 0.0
      %2568 = vmatprep.subr.mxu0 0.0
      %2569 = vmatpush1.msra.mxu0 0.0
      %2570 = vmatprep.subr.mxu0 0.0
      %2571 = vmatpush1.msra.mxu0 0.0
      %2572 = vmatprep.subr.mxu0 0.0
      %2573 = vmatpush1.msra.mxu0 0.0
      %2574 = vmatprep.subr.mxu0 0.0
      %2575 = vmatpush1.msra.mxu0 0.0
      %2576 = vmatprep.subr.mxu0 0.0
      %2577 = vmatpush1.msra.mxu0 0.0
      %2578 = vmatprep.subr.mxu0 0.0
      %2579 = vmatpush1.msra.mxu0 0.0
      %2580 = vmatprep.subr.mxu0 0.0
      %2581 = vmatpush1.msra.mxu0 0.0
      %2582 = vmatprep.subr.mxu0 0.0
      %2583 = vmatpush1.msra.mxu0 0.0
      %2584 = vmatprep.subr.mxu0 0.0
      %2585 = vmatpush1.msra.mxu0 0.0
      %2586 = vmatprep.subr.mxu0 0.0
      %2587 = vmatpush1.msra.mxu0 0.0
      %2588 = vmatprep.subr.mxu0 0.0
      %2589 = vmatpush1.msra.mxu0 0.0
      %2590 = vmatprep.subr.mxu0 0.0
      %2591 = vmatpush1.msra.mxu0 0.0
      %2592 = vmatprep.subr.mxu0 0.0
      %2593 = vmatpush1.msra.mxu0 0.0
      %2594 = vmatprep.subr.mxu0 0.0
      %2595 = vmatpush1.msra.mxu0 0.0
      %2596 = vmatprep.subr.mxu0 0.0
      %2597 = vmatpush1.msra.mxu0 0.0
      %2598 = vmatprep.subr.mxu0 0.0
      %2599 = vmatpush1.msra.mxu0 0.0
      %2600 = vmatprep.subr.mxu0 0.0
      %2601 = vmatpush1.msra.mxu0 0.0
      %2602 = vmatprep.subr.mxu0 0.0
      %2603 = vmatpush1.msra.mxu0 0.0
      %2604 = vmatprep.subr.mxu0 0.0
      %2605 = vmatpush1.msra.mxu0 0.0
      %2606 = vmatprep.subr.mxu0 0.0
      %2607 = vmatpush1.msra.mxu0 0.0
      %2608 = vmatprep.mubr.f32.mxu0 0.0
      %2609 = vmatmul.mubr.f32.gmra.mrb[0].mxu0 %v2540
      %v2610 = vpop.f32.mrb[0].mxu0
      %v2611 = vadd.f32 0.0, %v2610
      %v2612 = vpop.f32.mrb[0].mxu0
      %2613 = vdwg.mxu0
      %2615 = vrot.lane.b32.xlu0 %v2279, 8
      %v2616 = vpop.permute.xlu0 %2615
      %2619 = vrot.lane.b32.xlu0 %v2445, 16
      %v2620 = vpop.permute.xlu0 %2619
      %2623 = vrot.lane.b32.xlu0 %v2611, 24
      %v2624 = vpop.permute.xlu0 %2623
      %v2626 = vsel %vm856, %v2113, %v2616
      %v2627 = vsel %vm1533, %v2626, %v2620
      %v2628 = vsel %vm1535, %v2627, %v2624
      %s2629 = scalar_lea.vmem %s8, 32
      %v2630 = vld [vmem:[%s2629] sm:$0xff]
      %v2631 = vld [vmem:[%s2629 + $0x8] sm:$0xff]
      %v2632 = vld [vmem:[%s2629 + $0x10] sm:$0xff]
      %v2633 = vld [vmem:[%s2629 + $0x18] sm:$0xff]
      %s2634 = scalar_lea.vmem %s9, 1
      %v2635 = vld [vmem:[%s2634] sm:$0x1]
      %v2637 = vlaneseq
      %v2638 = vshrl.u32 %v2637, 7
      %v2639 = vsub.s32 0, %v2638
      %v2640 = vrot.slane %v2635, %v2639
      %v2643 = vsel %vm779, %v2628, 0
      %2645 = vmatprep.subr.mxu0 0.0
      %2646 = vmatpush1.msra.mxu0 %v2630
      %2647 = vmatprep.subr.mxu0 0.0
      %2648 = vmatpush1.msra.mxu0 %v2631
      %2649 = vmatprep.subr.mxu0 0.0
      %2650 = vmatpush1.msra.mxu0 %v2632
      %2651 = vmatprep.subr.mxu0 0.0
      %2652 = vmatpush1.msra.mxu0 %v2633
      %2653 = vmatprep.subr.mxu0 0.0
      %2654 = vmatpush1.msra.mxu0 0.0
      %2655 = vmatprep.subr.mxu0 0.0
      %2656 = vmatpush1.msra.mxu0 0.0
      %2657 = vmatprep.subr.mxu0 0.0
      %2658 = vmatpush1.msra.mxu0 0.0
      %2659 = vmatprep.subr.mxu0 0.0
      %2660 = vmatpush1.msra.mxu0 0.0
      %2661 = vmatprep.subr.mxu0 0.0
      %2662 = vmatpush1.msra.mxu0 0.0
      %2663 = vmatprep.subr.mxu0 0.0
      %2664 = vmatpush1.msra.mxu0 0.0
      %2665 = vmatprep.subr.mxu0 0.0
      %2666 = vmatpush1.msra.mxu0 0.0
      %2667 = vmatprep.subr.mxu0 0.0
      %2668 = vmatpush1.msra.mxu0 0.0
      %2669 = vmatprep.subr.mxu0 0.0
      %2670 = vmatpush1.msra.mxu0 0.0
      %2671 = vmatprep.subr.mxu0 0.0
      %2672 = vmatpush1.msra.mxu0 0.0
      %2673 = vmatprep.subr.mxu0 0.0
      %2674 = vmatpush1.msra.mxu0 0.0
      %2675 = vmatprep.subr.mxu0 0.0
      %2676 = vmatpush1.msra.mxu0 0.0
      %2677 = vmatprep.subr.mxu0 0.0
      %2678 = vmatpush1.msra.mxu0 0.0
      %2679 = vmatprep.subr.mxu0 0.0
      %2680 = vmatpush1.msra.mxu0 0.0
      %2681 = vmatprep.subr.mxu0 0.0
      %2682 = vmatpush1.msra.mxu0 0.0
      %2683 = vmatprep.subr.mxu0 0.0
      %2684 = vmatpush1.msra.mxu0 0.0
      %2685 = vmatprep.subr.mxu0 0.0
      %2686 = vmatpush1.msra.mxu0 0.0
      %2687 = vmatprep.subr.mxu0 0.0
      %2688 = vmatpush1.msra.mxu0 0.0
      %2689 = vmatprep.subr.mxu0 0.0
      %2690 = vmatpush1.msra.mxu0 0.0
      %2691 = vmatprep.subr.mxu0 0.0
      %2692 = vmatpush1.msra.mxu0 0.0
      %2693 = vmatprep.subr.mxu0 0.0
      %2694 = vmatpush1.msra.mxu0 0.0
      %2695 = vmatprep.subr.mxu0 0.0
      %2696 = vmatpush1.msra.mxu0 0.0
      %2697 = vmatprep.subr.mxu0 0.0
      %2698 = vmatpush1.msra.mxu0 0.0
      %2699 = vmatprep.subr.mxu0 0.0
      %2700 = vmatpush1.msra.mxu0 0.0
      %2701 = vmatprep.subr.mxu0 0.0
      %2702 = vmatpush1.msra.mxu0 0.0
      %2703 = vmatprep.subr.mxu0 0.0
      %2704 = vmatpush1.msra.mxu0 0.0
      %2705 = vmatprep.subr.mxu0 0.0
      %2706 = vmatpush1.msra.mxu0 0.0
      %2707 = vmatprep.subr.mxu0 0.0
      %2708 = vmatpush1.msra.mxu0 0.0
      %2709 = vmatprep.mubr.f32.mxu0 0.0
      %2710 = vmatmul.mubr.f32.gmra.mrb[0].mxu0 %v2643
      %v2711 = vpop.f32.mrb[0].mxu0
      %v2712 = vadd.f32 %v2640, %v2711
      %v2713 = vpop.f32.mrb[0].mxu0
      %2714 = vdwg.mxu0
      %v2715 = vadd.f32 %v1833, %v2712
      %s2716 = scalar_lea.vmem %s10, 1
      %v2717 = vld [vmem:[%s2716] sm:$0x1]
      %s2718 = scalar_lea.vmem %s11, 1
      %v2719 = vld [vmem:[%s2718] sm:$0x1]
      %v2720 = vsel %vm739, %v2715, 0.0
      %2721 = vadd.xlane.f32.xlu0 %v2720
      %v2722 = vpop.xlane.xlu0 %2721
      %v2723 = vmul.f32 %v2722, %v743
      %v2724 = vsub.f32 %v2715, %v2723
      %v2725 = vmul.f32 %v2724, %v2724
      %v2726 = vsel %vm739, %v2725, 0.0
      %2727 = vadd.xlane.f32.xlu0 %v2726
      %v2728 = vpop.xlane.xlu0 %2727
      %v2729 = vmul.f32 %v2728, %v743
      %v2730 = vadd.f32 %v2729, 1e-06
      %v2731 = vrsqrt.pop %v2730
      %v2732 = vmul.f32 %v2724, %v2731
      %v2734 = vlaneseq
      %v2735 = vshrl.u32 %v2734, 7
      %v2736 = vsub.s32 0, %v2735
      %v2737 = vrot.slane %v2717, %v2736
      %v2739 = vmul.f32 %v2732, %v2737
      %v2741 = vlaneseq
      %v2742 = vshrl.u32 %v2741, 7
      %v2743 = vsub.s32 0, %v2742
      %v2744 = vrot.slane %v2719, %v2743
      %v2746 = vadd.f32 %v2739, %v2744
      %s2747 = scalar_lea.vmem %s12, 32
      %v2748 = vld [vmem:[%s2747] sm:$0xff]
      %v2749 = vld [vmem:[%s2747 + $0x8] sm:$0xff]
      %v2750 = vld [vmem:[%s2747 + $0x10] sm:$0xff]
      %v2751 = vld [vmem:[%s2747 + $0x18] sm:$0xff]
      %s2752 = scalar_lea.vmem %s13, 1
      %v2753 = vld [vmem:[%s2752] sm:$0x1]
      %v2755 = vlaneseq
      %v2756 = vshrl.u32 %v2755, 7
      %v2757 = vsub.s32 0, %v2756
      %v2758 = vrot.slane %v2753, %v2757
      %v2761 = vsel %vm779, %v2746, 0
      %2763 = vmatprep.subr.mxu0 0.0
      %2764 = vmatpush1.msra.mxu0 %v2748
      %2765 = vmatprep.subr.mxu0 0.0
      %2766 = vmatpush1.msra.mxu0 %v2749
      %2767 = vmatprep.subr.mxu0 0.0
      %2768 = vmatpush1.msra.mxu0 %v2750
      %2769 = vmatprep.subr.mxu0 0.0
      %2770 = vmatpush1.msra.mxu0 %v2751
      %2771 = vmatprep.subr.mxu0 0.0
      %2772 = vmatpush1.msra.mxu0 0.0
      %2773 = vmatprep.subr.mxu0 0.0
      %2774 = vmatpush1.msra.mxu0 0.0
      %2775 = vmatprep.subr.mxu0 0.0
      %2776 = vmatpush1.msra.mxu0 0.0
      %2777 = vmatprep.subr.mxu0 0.0
      %2778 = vmatpush1.msra.mxu0 0.0
      %2779 = vmatprep.subr.mxu0 0.0
      %2780 = vmatpush1.msra.mxu0 0.0
      %2781 = vmatprep.subr.mxu0 0.0
      %2782 = vmatpush1.msra.mxu0 0.0
      %2783 = vmatprep.subr.mxu0 0.0
      %2784 = vmatpush1.msra.mxu0 0.0
      %2785 = vmatprep.subr.mxu0 0.0
      %2786 = vmatpush1.msra.mxu0 0.0
      %2787 = vmatprep.subr.mxu0 0.0
      %2788 = vmatpush1.msra.mxu0 0.0
      %2789 = vmatprep.subr.mxu0 0.0
      %2790 = vmatpush1.msra.mxu0 0.0
      %2791 = vmatprep.subr.mxu0 0.0
      %2792 = vmatpush1.msra.mxu0 0.0
      %2793 = vmatprep.subr.mxu0 0.0
      %2794 = vmatpush1.msra.mxu0 0.0
      %2795 = vmatprep.subr.mxu0 0.0
      %2796 = vmatpush1.msra.mxu0 0.0
      %2797 = vmatprep.subr.mxu0 0.0
      %2798 = vmatpush1.msra.mxu0 0.0
      %2799 = vmatprep.subr.mxu0 0.0
      %2800 = vmatpush1.msra.mxu0 0.0
      %2801 = vmatprep.subr.mxu0 0.0
      %2802 = vmatpush1.msra.mxu0 0.0
      %2803 = vmatprep.subr.mxu0 0.0
      %2804 = vmatpush1.msra.mxu0 0.0
      %2805 = vmatprep.subr.mxu0 0.0
      %2806 = vmatpush1.msra.mxu0 0.0
      %2807 = vmatprep.subr.mxu0 0.0
      %2808 = vmatpush1.msra.mxu0 0.0
      %2809 = vmatprep.subr.mxu0 0.0
      %2810 = vmatpush1.msra.mxu0 0.0
      %2811 = vmatprep.subr.mxu0 0.0
      %2812 = vmatpush1.msra.mxu0 0.0
      %2813 = vmatprep.subr.mxu0 0.0
      %2814 = vmatpush1.msra.mxu0 0.0
      %2815 = vmatprep.subr.mxu0 0.0
      %2816 = vmatpush1.msra.mxu0 0.0
      %2817 = vmatprep.subr.mxu0 0.0
      %2818 = vmatpush1.msra.mxu0 0.0
      %2819 = vmatprep.subr.mxu0 0.0
      %2820 = vmatpush1.msra.mxu0 0.0
      %2821 = vmatprep.subr.mxu0 0.0
      %2822 = vmatpush1.msra.mxu0 0.0
      %2823 = vmatprep.subr.mxu0 0.0
      %2824 = vmatpush1.msra.mxu0 0.0
      %2825 = vmatprep.subr.mxu0 0.0
      %2826 = vmatpush1.msra.mxu0 0.0
      %2827 = vmatprep.mubr.f32.mxu0 0.0
      %2828 = vmatmul.mubr.f32.gmra.mrb[0].mxu0 %v2761
      %v2829 = vpop.f32.mrb[0].mxu0
      %v2830 = vadd.f32 %v2758, %v2829
      %v2831 = vpop.f32.mrb[0].mxu0
      %2832 = vdwg.mxu0
      %v2833 = vmul.f32 %v2830, 0.5
      %v2834 = vmul.f32 %v2830, 0.044715
      %v2835 = vmul.f32 %v2834, %v2830
      %v2836 = vmul.f32 %v2835, %v2830
      %v2837 = vadd.f32 %v2830, %v2836
      %v2838 = vmul.f32 %v2837, 0.7978846
      %v2839 = vtanh.pop %v2838
      %v2840 = vadd.f32 %v2839, 1.0
      %v2841 = vmul.f32 %v2833, %v2840
      %s2842 = scalar_lea.vmem %s14, 64
      %v2843 = vld [vmem:[%s2842] sm:$0xff]
      %v2844 = vld [vmem:[%s2842 + $0x8] sm:$0xff]
      %v2845 = vld [vmem:[%s2842 + $0x10] sm:$0xff]
      %v2846 = vld [vmem:[%s2842 + $0x18] sm:$0xff]
      %v2847 = vld [vmem:[%s2842 + $0x20] sm:$0xff]
      %v2848 = vld [vmem:[%s2842 + $0x28] sm:$0xff]
      %v2849 = vld [vmem:[%s2842 + $0x30] sm:$0xff]
      %v2850 = vld [vmem:[%s2842 + $0x38] sm:$0xff]
      %v2852 = vsel %vm662, %v2841, 0
      %2854 = vmatprep.subr.mxu0 0.0
      %2855 = vmatpush1.msra.mxu0 %v2843
      %2856 = vmatprep.subr.mxu0 0.0
      %2857 = vmatpush1.msra.mxu0 %v2844
      %2858 = vmatprep.subr.mxu0 0.0
      %2859 = vmatpush1.msra.mxu0 %v2845
      %2860 = vmatprep.subr.mxu0 0.0
      %2861 = vmatpush1.msra.mxu0 %v2846
      %2862 = vmatprep.subr.mxu0 0.0
      %2863 = vmatpush1.msra.mxu0 %v2847
      %2864 = vmatprep.subr.mxu0 0.0
      %2865 = vmatpush1.msra.mxu0 %v2848
      %2866 = vmatprep.subr.mxu0 0.0
      %2867 = vmatpush1.msra.mxu0 %v2849
      %2868 = vmatprep.subr.mxu0 0.0
      %2869 = vmatpush1.msra.mxu0 %v2850
      %2870 = vmatprep.subr.mxu0 0.0
      %2871 = vmatpush1.msra.mxu0 0.0
      %2872 = vmatprep.subr.mxu0 0.0
      %2873 = vmatpush1.msra.mxu0 0.0
      %2874 = vmatprep.subr.mxu0 0.0
      %2875 = vmatpush1.msra.mxu0 0.0
      %2876 = vmatprep.subr.mxu0 0.0
      %2877 = vmatpush1.msra.mxu0 0.0
      %2878 = vmatprep.subr.mxu0 0.0
      %2879 = vmatpush1.msra.mxu0 0.0
      %2880 = vmatprep.subr.mxu0 0.0
      %2881 = vmatpush1.msra.mxu0 0.0
      %2882 = vmatprep.subr.mxu0 0.0
      %2883 = vmatpush1.msra.mxu0 0.0
      %2884 = vmatprep.subr.mxu0 0.0
      %2885 = vmatpush1.msra.mxu0 0.0
      %2886 = vmatprep.subr.mxu0 0.0
      %2887 = vmatpush1.msra.mxu0 0.0
      %2888 = vmatprep.subr.mxu0 0.0
      %2889 = vmatpush1.msra.mxu0 0.0
      %2890 = vmatprep.subr.mxu0 0.0
      %2891 = vmatpush1.msra.mxu0 0.0
      %2892 = vmatprep.subr.mxu0 0.0
      %2893 = vmatpush1.msra.mxu0 0.0
      %2894 = vmatprep.subr.mxu0 0.0
      %2895 = vmatpush1.msra.mxu0 0.0
      %2896 = vmatprep.subr.mxu0 0.0
      %2897 = vmatpush1.msra.mxu0 0.0
      %2898 = vmatprep.subr.mxu0 0.0
      %2899 = vmatpush1.msra.mxu0 0.0
      %2900 = vmatprep.subr.mxu0 0.0
      %2901 = vmatpush1.msra.mxu0 0.0
      %2902 = vmatprep.subr.mxu0 0.0
      %2903 = vmatpush1.msra.mxu0 0.0
      %2904 = vmatprep.subr.mxu0 0.0
      %2905 = vmatpush1.msra.mxu0 0.0
      %2906 = vmatprep.subr.mxu0 0.0
      %2907 = vmatpush1.msra.mxu0 0.0
      %2908 = vmatprep.subr.mxu0 0.0
      %2909 = vmatpush1.msra.mxu0 0.0
      %2910 = vmatprep.subr.mxu0 0.0
      %2911 = vmatpush1.msra.mxu0 0.0
      %2912 = vmatprep.subr.mxu0 0.0
      %2913 = vmatpush1.msra.mxu0 0.0
      %2914 = vmatprep.subr.mxu0 0.0
      %2915 = vmatpush1.msra.mxu0 0.0
      %2916 = vmatprep.subr.mxu0 0.0
      %2917 = vmatpush1.msra.mxu0 0.0
      %2918 = vmatprep.mubr.f32.mxu0 0.0
      %2919 = vmatmul.mubr.f32.gmra.mrb[0].mxu0 %v2852
      %v2920 = vpop.f32.mrb[0].mxu0
      %v2921 = vadd.f32 0.0, %v2920
      %v2922 = vpop.f32.mrb[0].mxu0
      %2923 = vdwg.mxu0
      %v2924 = vadd.f32 %v2715, %v2921
      %s2925 = scalar_lea.vmem %s15, 1
      %v2926 = vld [vmem:[%s2925] sm:$0x1]
      %v2928 = vlaneseq
      %v2929 = vshrl.u32 %v2928, 7
      %v2930 = vsub.s32 0, %v2929
      %v2931 = vrot.slane %v2926, %v2930
      %v2933 = vadd.f32 %v2924, %v2931
      %v2934 = vld [vmem:[%s16] sm:$0x1]
      %v2935 = vld [vmem:[%s17] sm:$0x1]
      %v2936 = vsel %vm739, %v2933, 0.0
      %2937 = vadd.xlane.f32.xlu0 %v2936
      %v2938 = vpop.xlane.xlu0 %2937
      %v2939 = vmul.f32 %v2938, %v743
      %v2940 = vsub.f32 %v2933, %v2939
      %v2941 = vmul.f32 %v2940, %v2940
      %v2942 = vsel %vm739, %v2941, 0.0
      %2943 = vadd.xlane.f32.xlu0 %v2942
      %v2944 = vpop.xlane.xlu0 %2943
      %v2945 = vmul.f32 %v2944, %v743
      %v2946 = vadd.f32 %v2945, 1e-06
      %v2947 = vrsqrt.pop %v2946
      %v2948 = vmul.f32 %v2940, %v2947
      %v2950 = vlaneseq
      %v2951 = vshrl.u32 %v2950, 7
      %v2952 = vsub.s32 0, %v2951
      %v2953 = vrot.slane %v2934, %v2952
      %v2955 = vmul.f32 %v2948, %v2953
      %v2957 = vlaneseq
      %v2958 = vshrl.u32 %v2957, 7
      %v2959 = vsub.s32 0, %v2958
      %v2960 = vrot.slane %v2935, %v2959
      %v2962 = vadd.f32 %v2955, %v2960
      %v2963 = vld [vmem:[%s18] sm:$0xff]
      %v2964 = vld [vmem:[%s18 + $0x8] sm:$0xff]
      %v2965 = vld [vmem:[%s18 + $0x10] sm:$0xff]
      %v2966 = vld [vmem:[%s18 + $0x18] sm:$0xff]
      %v2967 = vld [vmem:[%s19] sm:$0x1]
      %v2969 = vlaneseq
      %v2970 = vshrl.u32 %v2969, 7
      %v2971 = vsub.s32 0, %v2970
      %v2972 = vrot.slane %v2967, %v2971
      %v2975 = vsel %vm779, %v2962, 0
      %2977 = vmatprep.subr.mxu0 0.0
      %2978 = vmatpush1.msra.mxu0 %v2963
      %2979 = vmatprep.subr.mxu0 0.0
      %2980 = vmatpush1.msra.mxu0 %v2964
      %2981 = vmatprep.subr.mxu0 0.0
      %2982 = vmatpush1.msra.mxu0 %v2965
      %2983 = vmatprep.subr.mxu0 0.0
      %2984 = vmatpush1.msra.mxu0 %v2966
      %2985 = vmatprep.subr.mxu0 0.0
      %2986 = vmatpush1.msra.mxu0 0.0
      %2987 = vmatprep.subr.mxu0 0.0
      %2988 = vmatpush1.msra.mxu0 0.0
      %2989 = vmatprep.subr.mxu0 0.0
      %2990 = vmatpush1.msra.mxu0 0.0
      %2991 = vmatprep.subr.mxu0 0.0
      %2992 = vmatpush1.msra.mxu0 0.0
      %2993 = vmatprep.subr.mxu0 0.0
      %2994 = vmatpush1.msra.mxu0 0.0
      %2995 = vmatprep.subr.mxu0 0.0
      %2996 = vmatpush1.msra.mxu0 0.0
      %2997 = vmatprep.subr.mxu0 0.0
      %2998 = vmatpush1.msra.mxu0 0.0
      %2999 = vmatprep.subr.mxu0 0.0
      %3000 = vmatpush1.msra.mxu0 0.0
      %3001 = vmatprep.subr.mxu0 0.0
      %3002 = vmatpush1.msra.mxu0 0.0
      %3003 = vmatprep.subr.mxu0 0.0
      %3004 = vmatpush1.msra.mxu0 0.0
      %3005 = vmatprep.subr.mxu0 0.0
      %3006 = vmatpush1.msra.mxu0 0.0
      %3007 = vmatprep.subr.mxu0 0.0
      %3008 = vmatpush1.msra.mxu0 0.0
      %3009 = vmatprep.subr.mxu0 0.0
      %3010 = vmatpush1.msra.mxu0 0.0
      %3011 = vmatprep.subr.mxu0 0.0
      %3012 = vmatpush1.msra.mxu0 0.0
      %3013 = vmatprep.subr.mxu0 0.0
      %3014 = vmatpush1.msra.mxu0 0.0
      %3015 = vmatprep.subr.mxu0 0.0
      %3016 = vmatpush1.msra.mxu0 0.0
      %3017 = vmatprep.subr.mxu0 0.0
      %3018 = vmatpush1.msra.mxu0 0.0
      %3019 = vmatprep.subr.mxu0 0.0
      %3020 = vmatpush1.msra.mxu0 0.0
      %3021 = vmatprep.subr.mxu0 0.0
      %3022 = vmatpush1.msra.mxu0 0.0
      %3023 = vmatprep.subr.mxu0 0.0
      %3024 = vmatpush1.msra.mxu0 0.0
      %3025 = vmatprep.subr.mxu0 0.0
      %3026 = vmatpush1.msra.mxu0 0.0
      %3027 = vmatprep.subr.mxu0 0.0
      %3028 = vmatpush1.msra.mxu0 0.0
      %3029 = vmatprep.subr.mxu0 0.0
      %3030 = vmatpush1.msra.mxu0 0.0
      %3031 = vmatprep.subr.mxu0 0.0
      %3032 = vmatpush1.msra.mxu0 0.0
      %3033 = vmatprep.subr.mxu0 0.0
      %3034 = vmatpush1.msra.mxu0 0.0
      %3035 = vmatprep.subr.mxu0 0.0
      %3036 = vmatpush1.msra.mxu0 0.0
      %3037 = vmatprep.subr.mxu0 0.0
      %3038 = vmatpush1.msra.mxu0 0.0
      %3039 = vmatprep.subr.mxu0 0.0
      %3040 = vmatpush1.msra.mxu0 0.0
      %3041 = vmatprep.mubr.f32.mxu0 0.0
      %3042 = vmatmul.mubr.f32.gmra.mrb[0].mxu0 %v2975
      %v3043 = vpop.f32.mrb[0].mxu0
      %v3044 = vadd.f32 %v2972, %v3043
      %v3045 = vpop.f32.mrb[0].mxu0
      %3046 = vdwg.mxu0
      %v3047 = vmul.f32 %v3044, 0.17677669
      %3048 = vst.msk [vmem:[%s627] sm:$0xf] %vm739, %v3047
      %p3049 = scmp.lt.s32.totalorder %s31, 1
      %s3050 = scalar_select %p3049, %s31, 1
      %s3051 = smul.addr %s3050, 4
      %s3052 = scalar_lea.vmem %s20, %s3051
      // Predicated region
      $region101: #{paligemma_forward.2} parent=99 // pred_check
        %p3053 = pneg %p474
      $region102: #{paligemma_forward.2} parent=99 // pred_check_branch
        %3055 = sbr.rel (%p3053) target = $region104
      $region103: #{paligemma_forward.2} parent=99 // pred_region
        _
      $region104: #{paligemma_forward.2} parent=99 // pred_fallthru
        _
    $region100: #{paligemma_forward.2} parent=5 // pred_fallthru
      _
    %p3056 = scmp.le.s32.totalorder 2, %s26
    // Predicated region
    $region105: #{paligemma_forward.2} parent=5 // pred_check
      %p3057 = pneg %p3056
    $region106: #{paligemma_forward.2} parent=5 // pred_check_branch
      %3059 = sbr.rel (%p3057) target = $region108
    $region107: #{paligemma_forward.2} parent=5 // pred_region
      %s3060 = ssub.s32 %s26, 2
      // Predicated region
      $region109: #{paligemma_forward.2} parent=107 // pred_check
        %p3061 = pneg %p480
      $region110: #{paligemma_forward.2} parent=107 // pred_check_branch
        %3063 = sbr.rel (%p3061) target = $region112
      $region111: #{paligemma_forward.2} parent=107 // pred_region
        %p3064 = scmp.lt.s32.totalorder %s32, 1
        %s3065 = scalar_select %p3064, %s32, 1
        %s3066 = smul.addr %s3065, 4
        %s3067 = scalar_lea.vmem %s20, %s3066
      $region112: #{paligemma_forward.2} parent=107 // pred_fallthru
        _
    $region108: #{paligemma_forward.2} parent=5 // pred_fallthru
      _
  $region6: #{paligemma_forward.2} parent=0 // loop_footer
    %s30 = sadd.s32 1, %s26
  $region7: #{paligemma_forward.2} parent=0 // loop_footer_branch
    %25 = sbr.rel target = $region3
  $region8: #{paligemma_forward.2} parent=0 // loop_exit
    _

// kernel: paligemma_forward.3
$region0: #{paligemma_forward.3}
  #allocation0 [shape = 'u32[]', space=smem, size = 0x4, offset = 0x4, fixed_abs, tag = 'smem constant byte address 0x4 - core index']
  #allocation1 [shape = 'u32[144,128]{1,0:T(1,128)}', space=vmem, size = 0x12000, scoped, tag = 'internal scratch']
  %s0 = inlined_call_operand.vmem [shape: f32[2,8,32], index: 0, kind: input, shape index: {}]
  %s1 = inlined_call_operand.vmem [shape: f32[2,8,16], index: 1, kind: input, shape index: {}]
  %s2 = inlined_call_operand.vmem [shape: f32[2,1,32], index: 2, kind: input, shape index: {}]
  %s3 = inlined_call_operand.vmem [shape: f32[2,32,64], index: 3, kind: input, shape index: {}]
  %s4 = inlined_call_operand.vmem [shape: f32[2,32,32], index: 4, kind: input, shape index: {}]
  %s5 = inlined_call_operand.vmem [shape: f32[2,1,32], index: 5, kind: input, shape index: {}]
  %s6 = inlined_call_operand.vmem [shape: f32[2,32,128], index: 6, kind: input, shape index: {}]
  %s7 = inlined_call_operand.vmem [shape: f32[2,64,32], index: 7, kind: input, shape index: {}]
  %s8 = inlined_call_operand.vmem [shape: f32[1,32], index: 8, kind: input, shape index: {}]
  %s9 = inlined_call_operand.vmem [shape: f32[32,128], index: 9, kind: input, shape index: {}]
  %s10 = inlined_call_operand.vmem [shape: f32[1,128], index: 10, kind: input, shape index: {}]
  %s11 = inlined_call_operand.hbm [shape: f32[2,8,128], index: 11, kind: output, shape index: {}]
  %s12 = sld [smem:[#allocation0]]
  $region77: #{paligemma_forward.3} parent=0
    _
  %s14 = ssub.s32 1, %s12
  %s15 = scalar_select 0, %s14, %s12
  $region1: #{paligemma_forward.3} parent=0
    #allocation2 [shape = 'u8[8192]{0}', space=vmem, size = 0x2000, scoped, tag = 'output window, operand 0']
    #allocation3 [shape = 's32[2]{0}', space=sflag, size = 0x8, scoped, tag = 'scoped memory for paligemma_forward.3']
    %16 = vsyncpa [#allocation3], 0
    %s17 = scalar_lea.sflag [#allocation3], 1
    %18 = vsyncpa %s17, 0
    loop: start=0, step=1, limit=4
    $region2: #{paligemma_forward.3} parent=1 // loop_pre_header
      _
    $region3: #{paligemma_forward.3} parent=1 // loop_header
      %s20 = sphi 0, %s24
      %p21 = scmp.ge.s32.totalorder %s20, 4
      %s30 = sphi 0, %s32
      %s33 = sphi 0, %s30
      %s34 = sphi 0, %s33
      %s50 = sphi 0, %s34
      %s56 = sphi 0, %s58
      %s59 = sphi 0, %s56
      %s60 = sphi 0, %s59
      %s76 = sphi 0, %s60
      %s80 = sphi 0, %s80
      %s82 = sphi 0, %s80
      %s83 = sphi 0, %s82
      %s97 = sphi 0, %s83
      %s101 = sphi 0, %s101
      %s103 = sphi 0, %s101
      %s104 = sphi 0, %s103
      %s118 = sphi 0, %s104
      %s122 = sphi 0, %s122
      %s124 = sphi 0, %s122
      %s125 = sphi 0, %s124
      %s139 = sphi 0, %s125
      %s143 = sphi 0, %s143
      %s145 = sphi 0, %s143
      %s146 = sphi 0, %s145
      %s160 = sphi 0, %s146
      %s164 = sphi 0, %s164
      %s166 = sphi 0, %s164
      %s167 = sphi 0, %s166
      %s181 = sphi 0, %s167
      %s185 = sphi 0, %s185
      %s187 = sphi 0, %s185
      %s188 = sphi 0, %s187
      %s202 = sphi 0, %s188
      %s206 = sphi 0, %s206
      %s208 = sphi 0, %s206
      %s209 = sphi 0, %s208
      %s223 = sphi 0, %s209
      %s227 = sphi 0, %s227
      %s229 = sphi 0, %s227
      %s230 = sphi 0, %s229
      %s244 = sphi 0, %s230
      %s248 = sphi 0, %s248
      %s250 = sphi 0, %s248
      %s251 = sphi 0, %s250
      %s265 = sphi 0, %s251
      %s271 = sphi 0, %s273
      %s274 = sphi 0, %s271
      %s275 = sphi 0, %s274
      %s291 = sphi 0, %s275
    $region4: #{paligemma_forward.3} parent=1 // loop_header_branch
      %23 = sbr.rel (%p21) target = $region8
    $region5: #{paligemma_forward.3} parent=1 // loop_body
      %s25 = ssub.s32 %s20, 1
      %s26 = ssub.s32 %s20, 2
      %s27 = sadd.s32 %s20, 1
      %s28 = ssub.s32 %s20, %s27
      %p29 = scmp.eq.s32.totalorder %s28, 0
      %s31 = sadd.s32 %s30, 1
      %s32 = scalar_select %p29, %s30, %s31
      %p35 = pneg %p29
      %p36 = scmp.eq.s32.totalorder %s20, 1
      %p37 = por %p35, %p36
      %p38 = scmp.ne.s32.totalorder %s30, %s33
      %p39 = scmp.eq.s32.totalorder %s20, 0
      %p40 = por %p38, %p39
      %p41 = scmp.ne.s32.totalorder %s30, %s33
      %p42 = scmp.eq.s32.totalorder %s25, 1
      %p43 = por %p41, %p42
      %p44 = scmp.ne.s32.totalorder %s33, %s34
      %p45 = scmp.eq.s32.totalorder %s25, 0
      %p46 = por %p44, %p45
      %p47 = scmp.ne.s32.totalorder %s33, %s34
      %p48 = scmp.eq.s32.totalorder %s26, 1
      %p49 = por %p47, %p48
      %p51 = scmp.ne.s32.totalorder %s34, %s50
      %p52 = scmp.eq.s32.totalorder %s26, 0
      %p53 = por %p51, %p52
      %s54 = ssub.s32 %s20, %s27
      %p55 = scmp.eq.s32.totalorder %s54, 0
      %s57 = sadd.s32 %s56, 1
      %s58 = scalar_select %p55, %s56, %s57
      %p61 = pneg %p55
      %p62 = scmp.eq.s32.totalorder %s20, 1
      %p63 = por %p61, %p62
      %p64 = scmp.ne.s32.totalorder %s56, %s59
      %p65 = scmp.eq.s32.totalorder %s20, 0
      %p66 = por %p64, %p65
      %p67 = scmp.ne.s32.totalorder %s56, %s59
      %p68 = scmp.eq.s32.totalorder %s25, 1
      %p69 = por %p67, %p68
      %p70 = scmp.ne.s32.totalorder %s59, %s60
      %p71 = scmp.eq.s32.totalorder %s25, 0
      %p72 = por %p70, %p71
      %p73 = scmp.ne.s32.totalorder %s59, %s60
      %p74 = scmp.eq.s32.totalorder %s26, 1
      %p75 = por %p73, %p74
      %p77 = scmp.ne.s32.totalorder %s60, %s76
      %p78 = scmp.eq.s32.totalorder %s26, 0
      %p79 = por %p77, %p78
      %s81 = sadd.s32 %s80, 1
      %p84 = scmp.eq.s32.totalorder %s20, 1
      %p85 = scmp.ne.s32.totalorder %s80, %s82
      %p86 = scmp.eq.s32.totalorder %s20, 0
      %p87 = por %p85, %p86
      %p88 = scmp.ne.s32.totalorder %s80, %s82
      %p89 = scmp.eq.s32.totalorder %s25, 1
      %p90 = por %p88, %p89
      %p91 = scmp.ne.s32.totalorder %s82, %s83
      %p92 = scmp.eq.s32.totalorder %s25, 0
      %p93 = por %p91, %p92
      %p94 = scmp.ne.s32.totalorder %s82, %s83
      %p95 = scmp.eq.s32.totalorder %s26, 1
      %p96 = por %p94, %p95
      %p98 = scmp.ne.s32.totalorder %s83, %s97
      %p99 = scmp.eq.s32.totalorder %s26, 0
      %p100 = por %p98, %p99
      %s102 = sadd.s32 %s101, 1
      %p105 = scmp.eq.s32.totalorder %s20, 1
      %p106 = scmp.ne.s32.totalorder %s101, %s103
      %p107 = scmp.eq.s32.totalorder %s20, 0
      %p108 = por %p106, %p107
      %p109 = scmp.ne.s32.totalorder %s101, %s103
      %p110 = scmp.eq.s32.totalorder %s25, 1
      %p111 = por %p109, %p110
      %p112 = scmp.ne.s32.totalorder %s103, %s104
      %p113 = scmp.eq.s32.totalorder %s25, 0
      %p114 = por %p112, %p113
      %p115 = scmp.ne.s32.totalorder %s103, %s104
      %p116 = scmp.eq.s32.totalorder %s26, 1
      %p117 = por %p115, %p116
      %p119 = scmp.ne.s32.totalorder %s104, %s118
      %p120 = scmp.eq.s32.totalorder %s26, 0
      %p121 = por %p119, %p120
      %s123 = sadd.s32 %s122, 1
      %p126 = scmp.eq.s32.totalorder %s20, 1
      %p127 = scmp.ne.s32.totalorder %s122, %s124
      %p128 = scmp.eq.s32.totalorder %s20, 0
      %p129 = por %p127, %p128
      %p130 = scmp.ne.s32.totalorder %s122, %s124
      %p131 = scmp.eq.s32.totalorder %s25, 1
      %p132 = por %p130, %p131
      %p133 = scmp.ne.s32.totalorder %s124, %s125
      %p134 = scmp.eq.s32.totalorder %s25, 0
      %p135 = por %p133, %p134
      %p136 = scmp.ne.s32.totalorder %s124, %s125
      %p137 = scmp.eq.s32.totalorder %s26, 1
      %p138 = por %p136, %p137
      %p140 = scmp.ne.s32.totalorder %s125, %s139
      %p141 = scmp.eq.s32.totalorder %s26, 0
      %p142 = por %p140, %p141
      %s144 = sadd.s32 %s143, 1
      %p147 = scmp.eq.s32.totalorder %s20, 1
      %p148 = scmp.ne.s32.totalorder %s143, %s145
      %p149 = scmp.eq.s32.totalorder %s20, 0
      %p150 = por %p148, %p149
      %p151 = scmp.ne.s32.totalorder %s143, %s145
      %p152 = scmp.eq.s32.totalorder %s25, 1
      %p153 = por %p151, %p152
      %p154 = scmp.ne.s32.totalorder %s145, %s146
      %p155 = scmp.eq.s32.totalorder %s25, 0
      %p156 = por %p154, %p155
      %p157 = scmp.ne.s32.totalorder %s145, %s146
      %p158 = scmp.eq.s32.totalorder %s26, 1
      %p159 = por %p157, %p158
      %p161 = scmp.ne.s32.totalorder %s146, %s160
      %p162 = scmp.eq.s32.totalorder %s26, 0
      %p163 = por %p161, %p162
      %s165 = sadd.s32 %s164, 1
      %p168 = scmp.eq.s32.totalorder %s20, 1
      %p169 = scmp.ne.s32.totalorder %s164, %s166
      %p170 = scmp.eq.s32.totalorder %s20, 0
      %p171 = por %p169, %p170
      %p172 = scmp.ne.s32.totalorder %s164, %s166
      %p173 = scmp.eq.s32.totalorder %s25, 1
      %p174 = por %p172, %p173
      %p175 = scmp.ne.s32.totalorder %s166, %s167
      %p176 = scmp.eq.s32.totalorder %s25, 0
      %p177 = por %p175, %p176
      %p178 = scmp.ne.s32.totalorder %s166, %s167
      %p179 = scmp.eq.s32.totalorder %s26, 1
      %p180 = por %p178, %p179
      %p182 = scmp.ne.s32.totalorder %s167, %s181
      %p183 = scmp.eq.s32.totalorder %s26, 0
      %p184 = por %p182, %p183
      %s186 = sadd.s32 %s185, 1
      %p189 = scmp.eq.s32.totalorder %s20, 1
      %p190 = scmp.ne.s32.totalorder %s185, %s187
      %p191 = scmp.eq.s32.totalorder %s20, 0
      %p192 = por %p190, %p191
      %p193 = scmp.ne.s32.totalorder %s185, %s187
      %p194 = scmp.eq.s32.totalorder %s25, 1
      %p195 = por %p193, %p194
      %p196 = scmp.ne.s32.totalorder %s187, %s188
      %p197 = scmp.eq.s32.totalorder %s25, 0
      %p198 = por %p196, %p197
      %p199 = scmp.ne.s32.totalorder %s187, %s188
      %p200 = scmp.eq.s32.totalorder %s26, 1
      %p201 = por %p199, %p200
      %p203 = scmp.ne.s32.totalorder %s188, %s202
      %p204 = scmp.eq.s32.totalorder %s26, 0
      %p205 = por %p203, %p204
      %s207 = sadd.s32 %s206, 1
      %p210 = scmp.eq.s32.totalorder %s20, 1
      %p211 = scmp.ne.s32.totalorder %s206, %s208
      %p212 = scmp.eq.s32.totalorder %s20, 0
      %p213 = por %p211, %p212
      %p214 = scmp.ne.s32.totalorder %s206, %s208
      %p215 = scmp.eq.s32.totalorder %s25, 1
      %p216 = por %p214, %p215
      %p217 = scmp.ne.s32.totalorder %s208, %s209
      %p218 = scmp.eq.s32.totalorder %s25, 0
      %p219 = por %p217, %p218
      %p220 = scmp.ne.s32.totalorder %s208, %s209
      %p221 = scmp.eq.s32.totalorder %s26, 1
      %p222 = por %p220, %p221
      %p224 = scmp.ne.s32.totalorder %s209, %s223
      %p225 = scmp.eq.s32.totalorder %s26, 0
      %p226 = por %p224, %p225
      %s228 = sadd.s32 %s227, 1
      %p231 = scmp.eq.s32.totalorder %s20, 1
      %p232 = scmp.ne.s32.totalorder %s227, %s229
      %p233 = scmp.eq.s32.totalorder %s20, 0
      %p234 = por %p232, %p233
      %p235 = scmp.ne.s32.totalorder %s227, %s229
      %p236 = scmp.eq.s32.totalorder %s25, 1
      %p237 = por %p235, %p236
      %p238 = scmp.ne.s32.totalorder %s229, %s230
      %p239 = scmp.eq.s32.totalorder %s25, 0
      %p240 = por %p238, %p239
      %p241 = scmp.ne.s32.totalorder %s229, %s230
      %p242 = scmp.eq.s32.totalorder %s26, 1
      %p243 = por %p241, %p242
      %p245 = scmp.ne.s32.totalorder %s230, %s244
      %p246 = scmp.eq.s32.totalorder %s26, 0
      %p247 = por %p245, %p246
      %s249 = sadd.s32 %s248, 1
      %p252 = scmp.eq.s32.totalorder %s20, 1
      %p253 = scmp.ne.s32.totalorder %s248, %s250
      %p254 = scmp.eq.s32.totalorder %s20, 0
      %p255 = por %p253, %p254
      %p256 = scmp.ne.s32.totalorder %s248, %s250
      %p257 = scmp.eq.s32.totalorder %s25, 1
      %p258 = por %p256, %p257
      %p259 = scmp.ne.s32.totalorder %s250, %s251
      %p260 = scmp.eq.s32.totalorder %s25, 0
      %p261 = por %p259, %p260
      %p262 = scmp.ne.s32.totalorder %s250, %s251
      %p263 = scmp.eq.s32.totalorder %s26, 1
      %p264 = por %p262, %p263
      %p266 = scmp.ne.s32.totalorder %s251, %s265
      %p267 = scmp.eq.s32.totalorder %s26, 0
      %p268 = por %p266, %p267
      %s269 = ssub.s32 %s20, %s27
      %p270 = scmp.eq.s32.totalorder %s269, 0
      %s272 = sadd.s32 %s271, 1
      %s273 = scalar_select %p270, %s271, %s272
      %p276 = pneg %p270
      %p277 = scmp.eq.s32.totalorder %s20, 1
      %p278 = por %p276, %p277
      %p279 = scmp.ne.s32.totalorder %s271, %s274
      %p280 = scmp.eq.s32.totalorder %s20, 0
      %p281 = por %p279, %p280
      %p282 = scmp.ne.s32.totalorder %s271, %s274
      %p283 = scmp.eq.s32.totalorder %s25, 1
      %p284 = por %p282, %p283
      %p285 = scmp.ne.s32.totalorder %s274, %s275
      %p286 = scmp.eq.s32.totalorder %s25, 0
      %p287 = por %p285, %p286
      %p288 = scmp.ne.s32.totalorder %s274, %s275
      %p289 = scmp.eq.s32.totalorder %s26, 1
      %p290 = por %p288, %p289
      %p292 = scmp.ne.s32.totalorder %s275, %s291
      %p293 = scmp.eq.s32.totalorder %s26, 0
      %p294 = por %p292, %p293
      %p295 = scmp.le.s32.totalorder 1, %s20
      %p296 = scmp.lt.s32.totalorder %s20, 3
      %p297 = pnand %p295, %p296
      %p298 = pneg %p297
      // Predicated region
      $region9: #{paligemma_forward.3} parent=5 // pred_check
        _
      $region10: #{paligemma_forward.3} parent=5 // pred_check_branch
        %300 = sbr.rel (%p297) target = $region12
      $region11: #{paligemma_forward.3} parent=5 // pred_region
        %s301 = ssub.s32 %s20, 1
        // Predicated region
        $region13: #{paligemma_forward.3} parent=11 // pred_check
          %p302 = pneg %p93
        $region14: #{paligemma_forward.3} parent=11 // pred_check_branch
          %304 = sbr.rel (%p302) target = $region16
        $region15: #{paligemma_forward.3} parent=11 // pred_region
          _
        $region16: #{paligemma_forward.3} parent=11 // pred_fallthru
          _
        // Predicated region
        $region17: #{paligemma_forward.3} parent=11 // pred_check
          %p305 = pneg %p114
        $region18: #{paligemma_forward.3} parent=11 // pred_check_branch
          %307 = sbr.rel (%p305) target = $region20
        $region19: #{paligemma_forward.3} parent=11 // pred_region
          _
        $region20: #{paligemma_forward.3} parent=11 // pred_fallthru
          _
        // Predicated region
        $region21: #{paligemma_forward.3} parent=11 // pred_check
          %p308 = pneg %p135
        $region22: #{paligemma_forward.3} parent=11 // pred_check_branch
          %310 = sbr.rel (%p308) target = $region24
        $region23: #{paligemma_forward.3} parent=11 // pred_region
          _
        $region24: #{paligemma_forward.3} parent=11 // pred_fallthru
          _
        // Predicated region
        $region25: #{paligemma_forward.3} parent=11 // pred_check
          %p311 = pneg %p156
        $region26: #{paligemma_forward.3} parent=11 // pred_check_branch
          %313 = sbr.rel (%p311) target = $region28
        $region27: #{paligemma_forward.3} parent=11 // pred_region
          _
        $region28: #{paligemma_forward.3} parent=11 // pred_fallthru
          _
        // Predicated region
        $region29: #{paligemma_forward.3} parent=11 // pred_check
          %p314 = pneg %p177
        $region30: #{paligemma_forward.3} parent=11 // pred_check_branch
          %316 = sbr.rel (%p314) target = $region32
        $region31: #{paligemma_forward.3} parent=11 // pred_region
          _
        $region32: #{paligemma_forward.3} parent=11 // pred_fallthru
          _
        // Predicated region
        $region33: #{paligemma_forward.3} parent=11 // pred_check
          %p317 = pneg %p198
        $region34: #{paligemma_forward.3} parent=11 // pred_check_branch
          %319 = sbr.rel (%p317) target = $region36
        $region35: #{paligemma_forward.3} parent=11 // pred_region
          _
        $region36: #{paligemma_forward.3} parent=11 // pred_fallthru
          _
        // Predicated region
        $region37: #{paligemma_forward.3} parent=11 // pred_check
          %p320 = pneg %p219
        $region38: #{paligemma_forward.3} parent=11 // pred_check_branch
          %322 = sbr.rel (%p320) target = $region40
        $region39: #{paligemma_forward.3} parent=11 // pred_region
          _
        $region40: #{paligemma_forward.3} parent=11 // pred_fallthru
          _
        // Predicated region
        $region41: #{paligemma_forward.3} parent=11 // pred_check
          %p323 = pneg %p240
        $region42: #{paligemma_forward.3} parent=11 // pred_check_branch
          %325 = sbr.rel (%p323) target = $region44
        $region43: #{paligemma_forward.3} parent=11 // pred_region
          _
        $region44: #{paligemma_forward.3} parent=11 // pred_fallthru
          _
        // Predicated region
        $region45: #{paligemma_forward.3} parent=11 // pred_check
          %p326 = pneg %p261
        $region46: #{paligemma_forward.3} parent=11 // pred_check_branch
          %328 = sbr.rel (%p326) target = $region48
        $region47: #{paligemma_forward.3} parent=11 // pred_region
          _
        $region48: #{paligemma_forward.3} parent=11 // pred_fallthru
          _
      $region12: #{paligemma_forward.3} parent=5 // pred_fallthru
        _
      %p329 = scmp.lt.s32.totalorder %s20, 2
      // Predicated region
      $region49: #{paligemma_forward.3} parent=5 // pred_check
        %p330 = pneg %p329
      $region50: #{paligemma_forward.3} parent=5 // pred_check_branch
        %332 = sbr.rel (%p330) target = $region52
      $region51: #{paligemma_forward.3} parent=5 // pred_region
        // Predicated region
        $region53: #{paligemma_forward.3} parent=51 // pred_check
          %p333 = pneg %p40
        $region54: #{paligemma_forward.3} parent=51 // pred_check_branch
          %335 = sbr.rel (%p333) target = $region56
        $region55: #{paligemma_forward.3} parent=51 // pred_region
          %p336 = scmp.lt.s32.totalorder %s20, 1
          %s337 = scalar_select %p336, %s20, 1
          %s338 = smul.addr %s337, 8
          %s339 = scalar_lea.vmem %s0, %s338
        $region56: #{paligemma_forward.3} parent=51 // pred_fallthru
          _
        // Predicated region
        $region57: #{paligemma_forward.3} parent=51 // pred_check
          %p340 = pneg %p66
        $region58: #{paligemma_forward.3} parent=51 // pred_check_branch
          %342 = sbr.rel (%p340) target = $region60
        $region59: #{paligemma_forward.3} parent=51 // pred_region
          %p343 = scmp.lt.s32.totalorder %s20, 1
          %s344 = scalar_select %p343, %s20, 1
          %s345 = smul.addr %s344, 8
          %s346 = scalar_lea.vmem %s1, %s345
        $region60: #{paligemma_forward.3} parent=51 // pred_fallthru
          _
      $region52: #{paligemma_forward.3} parent=5 // pred_fallthru
        _
      %p347 = scmp.le.s32.totalorder 1, %s20
      %p348 = scmp.lt.s32.totalorder %s20, 3
      %p349 = pnand %p347, %p348
      %p350 = pneg %p349
      // Predicated region
      $region61: #{paligemma_forward.3} parent=5 // pred_check
        _
      $region62: #{paligemma_forward.3} parent=5 // pred_check_branch
        %352 = sbr.rel (%p349) target = $region64
      $region63: #{paligemma_forward.3} parent=5 // pred_region
        %s353 = ssub.s32 %s20, 1
        %p354 = scmp.lt.s32.totalorder %s25, 1
        %s355 = scalar_select %p354, %s25, 1
        %s356 = smul.addr %s355, 8
        %s357 = scalar_lea.vmem %s0, %s356
        %p358 = pneg %p46
        %p359 = pneg %p43
        %p360 = scmp.lt.s32.totalorder %s25, 1
        %s361 = scalar_select %p360, %s25, 1
        %s362 = smul.addr %s361, 8
        %s363 = scalar_lea.vmem %s1, %s362
        %p364 = pneg %p72
        %p365 = pneg %p69
        %p366 = pneg %p93
        %p367 = pneg %p90
        %p368 = pneg %p114
        %p369 = pneg %p111
        %p370 = pneg %p135
        %p371 = pneg %p132
        %p372 = pneg %p156
        %p373 = pneg %p153
        %p374 = pneg %p177
        %p375 = pneg %p174
        %p376 = pneg %p198
        %p377 = pneg %p195
        %p378 = pneg %p219
        %p379 = pneg %p216
        %p380 = pneg %p240
        %p381 = pneg %p237
        %p382 = pneg %p261
        %p383 = pneg %p258
        %p384 = pneg %p287
        %p385 = pneg %p284
        %s386 = sand.u32 %s274, 1
        %s387 = scalar_lea.sflag [#allocation3], %s386
        %s388 = sand.u32 %s274, 1
        %s389 = smul.addr %s388, 8
        %s390 = scalar_lea.vmem [#allocation2], %s389
        %p391 = scmp.lt.s32.totalorder %s25, 1
        %s392 = scalar_select %p391, %s25, 1
        %s393 = smul.addr %s392, 8
        %s394 = scalar_lea.vmem %s0, %s393
        %p395 = scmp.lt.s32.totalorder %s25, 1
        %s396 = scalar_select %p395, %s25, 1
        %s397 = smul.addr %s396, 8
        %s398 = scalar_lea.vmem %s1, %s397
        %v399 = vld [vmem:[%s394] sm:$0xff]
        %v400 = vmul.f32 %v399, 5.656854
        %v401 = vld [vmem:[%s398] sm:$0xff]
        %v402 = vld [vmem:[%s2] sm:$0x1]
        %v403 = vmul.f32 %v400, %v400
        %vm404 = vcmask 261120
        %v405 = vsel %vm404, %v403, 0.0
        %406 = vadd.xlane.f32.xlu0 %v405
        %v407 = vpop.xlane.xlu0 %406
        %v408 = vrcp.pop 32.0
        %v409 = vmul.f32 %v407, %v408
        %v410 = vadd.f32 %v409, 1e-06
        %v411 = vrsqrt.pop %v410
        %v412 = vmul.f32 %v400, %v411
        %v413 = vadd.f32 %v402, 1.0
        %v415 = vlaneseq
        %v416 = vshrl.u32 %v415, 7
        %v417 = vsub.s32 0, %v416
        %v418 = vrot.slane %v413, %v417
        %v420 = vmul.f32 %v412, %v418
        %v421 = vld [vmem:[%s3] sm:$0xff]
        %v422 = vld [vmem:[%s3 + $0x8] sm:$0xff]
        %v423 = vld [vmem:[%s3 + $0x10] sm:$0xff]
        %v424 = vld [vmem:[%s3 + $0x18] sm:$0xff]
        %v426 = vsel %vm404, %v420, 0
        %428 = vmatprep.subr.mxu0 0.0
        %429 = vmatpush1.msra.mxu0 %v421
        %430 = vmatprep.subr.mxu0 0.0
        %431 = vmatpush1.msra.mxu0 %v422
        %432 = vmatprep.subr.mxu0 0.0
        %433 = vmatpush1.msra.mxu0 %v423
        %434 = vmatprep.subr.mxu0 0.0
        %435 = vmatpush1.msra.mxu0 %v424
        %436 = vmatprep.subr.mxu0 0.0
        %437 = vmatpush1.msra.mxu0 0.0
        %438 = vmatprep.subr.mxu0 0.0
        %439 = vmatpush1.msra.mxu0 0.0
        %440 = vmatprep.subr.mxu0 0.0
        %441 = vmatpush1.msra.mxu0 0.0
        %442 = vmatprep.subr.mxu0 0.0
        %443 = vmatpush1.msra.mxu0 0.0
        %444 = vmatprep.subr.mxu0 0.0
        %445 = vmatpush1.msra.mxu0 0.0
        %446 = vmatprep.subr.mxu0 0.0
        %447 = vmatpush1.msra.mxu0 0.0
        %448 = vmatprep.subr.mxu0 0.0
        %449 = vmatpush1.msra.mxu0 0.0
        %450 = vmatprep.subr.mxu0 0.0
        %451 = vmatpush1.msra.mxu0 0.0
        %452 = vmatprep.subr.mxu0 0.0
        %453 = vmatpush1.msra.mxu0 0.0
        %454 = vmatprep.subr.mxu0 0.0
        %455 = vmatpush1.msra.mxu0 0.0
        %456 = vmatprep.subr.mxu0 0.0
        %457 = vmatpush1.msra.mxu0 0.0
        %458 = vmatprep.subr.mxu0 0.0
        %459 = vmatpush1.msra.mxu0 0.0
        %460 = vmatprep.subr.mxu0 0.0
        %461 = vmatpush1.msra.mxu0 0.0
        %462 = vmatprep.subr.mxu0 0.0
        %463 = vmatpush1.msra.mxu0 0.0
        %464 = vmatprep.subr.mxu0 0.0
        %465 = vmatpush1.msra.mxu0 0.0
        %466 = vmatprep.subr.mxu0 0.0
        %467 = vmatpush1.msra.mxu0 0.0
        %468 = vmatprep.subr.mxu0 0.0
        %469 = vmatpush1.msra.mxu0 0.0
        %470 = vmatprep.subr.mxu0 0.0
        %471 = vmatpush1.msra.mxu0 0.0
        %472 = vmatprep.subr.mxu0 0.0
        %473 = vmatpush1.msra.mxu0 0.0
        %474 = vmatprep.subr.mxu0 0.0
        %475 = vmatpush1.msra.mxu0 0.0
        %476 = vmatprep.subr.mxu0 0.0
        %477 = vmatpush1.msra.mxu0 0.0
        %478 = vmatprep.subr.mxu0 0.0
        %479 = vmatpush1.msra.mxu0 0.0
        %480 = vmatprep.subr.mxu0 0.0
        %481 = vmatpush1.msra.mxu0 0.0
        %482 = vmatprep.subr.mxu0 0.0
        %483 = vmatpush1.msra.mxu0 0.0
        %484 = vmatprep.subr.mxu0 0.0
        %485 = vmatpush1.msra.mxu0 0.0
        %486 = vmatprep.subr.mxu0 0.0
        %487 = vmatpush1.msra.mxu0 0.0
        %488 = vmatprep.subr.mxu0 0.0
        %489 = vmatpush1.msra.mxu0 0.0
        %490 = vmatprep.subr.mxu0 0.0
        %491 = vmatpush1.msra.mxu0 0.0
        %492 = vmatprep.mubr.f32.mxu0 0.0
        %493 = vmatmul.mubr.f32.gmra.mrb[0].mxu0 %v426
        %v494 = vpop.f32.mrb[0].mxu0
        %v495 = vadd.f32 0.0, %v494
        %v496 = vpop.f32.mrb[0].mxu0
        %497 = vdwg.mxu0
        %499 = vrot.lane.b32.xlu0 %v401, 32
        %v500 = vpop.permute.xlu0 %499
        %v502 = vmul.f32 %v495, %v500
        %504 = vrot.lane.b32.xlu0 %v495, 96
        %v505 = vpop.permute.xlu0 %504
        %507 = vrot.lane.b32.xlu0 %v495, 100
        %v508 = vpop.permute.xlu0 %507
        %vm510 = vcmask 31744
        %v511 = vsel %vm510, %v505, %v508
        %512 = vrot.lane.b32.xlu0 %v401, 120
        %v513 = vpop.permute.xlu0 %512
        %v515 = vmul.f32 %v511, %v513
        %517 = vrot.lane.b32.xlu0 %v515, 32
        %v518 = vpop.permute.xlu0 %517
        %v520 = vadd.f32 %v502, %v518
        %521 = vrot.lane.b32.xlu0 %v401, 40
        %v522 = vpop.permute.xlu0 %521
        %v524 = vmul.f32 %v495, %v522
        %525 = vrot.lane.b32.xlu0 %v495, 88
        %v526 = vpop.permute.xlu0 %525
        %528 = vrot.lane.b32.xlu0 %v495, 92
        %v529 = vpop.permute.xlu0 %528
        %v531 = vsel %vm510, %v526, %v529
        %v532 = vmul.f32 %v531, %v513
        %534 = vrot.lane.b32.xlu0 %v532, 40
        %v535 = vpop.permute.xlu0 %534
        %v537 = vadd.f32 %v524, %v535
        %v538 = vmul.f32 %v495, %v401
        %539 = vrot.lane.b32.xlu0 %v495, 4
        %v540 = vpop.permute.xlu0 %539
        %v542 = vsel %vm510, %v495, %v540
        %v543 = vmul.f32 %v542, %v513
        %v544 = vadd.f32 %v538, %v543
        %546 = vrot.lane.b32.xlu0 %v520, 96
        %v547 = vpop.permute.xlu0 %546
        %vm548 = vcmask 64512
        %v550 = vsel %vm548, %v544, 0
        %v552 = vsel %vm548, %v547, 0
        %554 = vmatprep.subr.mxu0 0.0
        %555 = vmatpush1.xpose.msra.mxu0 %v552
        %556 = vmatprep.subr.mxu0 0.0
        %557 = vmatpush1.xpose.msra.mxu0 0.0
        %558 = vmatprep.subr.mxu0 0.0
        %559 = vmatpush1.xpose.msra.mxu0 0.0
        %560 = vmatprep.subr.mxu0 0.0
        %561 = vmatpush1.xpose.msra.mxu0 0.0
        %562 = vmatprep.subr.mxu0 0.0
        %563 = vmatpush1.xpose.msra.mxu0 0.0
        %564 = vmatprep.subr.mxu0 0.0
        %565 = vmatpush1.xpose.msra.mxu0 0.0
        %566 = vmatprep.subr.mxu0 0.0
        %567 = vmatpush1.xpose.msra.mxu0 0.0
        %568 = vmatprep.subr.mxu0 0.0
        %569 = vmatpush1.xpose.msra.mxu0 0.0
        %570 = vmatprep.subr.mxu0 0.0
        %571 = vmatpush1.xpose.msra.mxu0 0.0
        %572 = vmatprep.subr.mxu0 0.0
        %573 = vmatpush1.xpose.msra.mxu0 0.0
        %574 = vmatprep.subr.mxu0 0.0
        %575 = vmatpush1.xpose.msra.mxu0 0.0
        %576 = vmatprep.subr.mxu0 0.0
        %577 = vmatpush1.xpose.msra.mxu0 0.0
        %578 = vmatprep.subr.mxu0 0.0
        %579 = vmatpush1.xpose.msra.mxu0 0.0
        %580 = vmatprep.subr.mxu0 0.0
        %581 = vmatpush1.xpose.msra.mxu0 0.0
        %582 = vmatprep.subr.mxu0 0.0
        %583 = vmatpush1.xpose.msra.mxu0 0.0
        %584 = vmatprep.subr.mxu0 0.0
        %585 = vmatpush1.xpose.msra.mxu0 0.0
        %586 = vmatprep.subr.mxu0 0.0
        %587 = vmatpush1.xpose.msra.mxu0 0.0
        %588 = vmatprep.subr.mxu0 0.0
        %589 = vmatpush1.xpose.msra.mxu0 0.0
        %590 = vmatprep.subr.mxu0 0.0
        %591 = vmatpush1.xpose.msra.mxu0 0.0
        %592 = vmatprep.subr.mxu0 0.0
        %593 = vmatpush1.xpose.msra.mxu0 0.0
        %594 = vmatprep.subr.mxu0 0.0
        %595 = vmatpush1.xpose.msra.mxu0 0.0
        %596 = vmatprep.subr.mxu0 0.0
        %597 = vmatpush1.xpose.msra.mxu0 0.0
        %598 = vmatprep.subr.mxu0 0.0
        %599 = vmatpush1.xpose.msra.mxu0 0.0
        %600 = vmatprep.subr.mxu0 0.0
        %601 = vmatpush1.xpose.msra.mxu0 0.0
        %602 = vmatprep.subr.mxu0 0.0
        %603 = vmatpush1.xpose.msra.mxu0 0.0
        %604 = vmatprep.subr.mxu0 0.0
        %605 = vmatpush1.xpose.msra.mxu0 0.0
        %606 = vmatprep.subr.mxu0 0.0
        %607 = vmatpush1.xpose.msra.mxu0 0.0
        %608 = vmatprep.subr.mxu0 0.0
        %609 = vmatpush1.xpose.msra.mxu0 0.0
        %610 = vmatprep.subr.mxu0 0.0
        %611 = vmatpush1.xpose.msra.mxu0 0.0
        %612 = vmatprep.subr.mxu0 0.0
        %613 = vmatpush1.xpose.msra.mxu0 0.0
        %614 = vmatprep.subr.mxu0 0.0
        %615 = vmatpush1.xpose.msra.mxu0 0.0
        %616 = vmatprep.subr.mxu0 0.0
        %617 = vmatpush1.xpose.msra.mxu0 0.0
        %618 = vmatprep.mubr.f32.mxu0 0.0
        %619 = vmatmul.mubr.f32.gmra.mrb[0].mxu0 %v550
        %v620 = vpop.f32.mrb[0].mxu0
        %v621 = vadd.f32 0.0, %v620
        %v622 = vpop.f32.mrb[0].mxu0
        %623 = vdwg.mxu0
        %v624 = vsel %vm548, %v621, -inf
        %625 = vmax.xlane.f32.xlu0 %v624
        %v626 = vpop.xlane.xlu0 %625
        %v627 = vsub.f32 %v621, %v626
        %v628 = vmul.f32 %v627, 1.442695
        %v629 = vpow.pop %v628
        %v630 = vsel %vm548, %v629, 0.0
        %631 = vadd.xlane.f32.xlu0 %v630
        %v632 = vpop.xlane.xlu0 %631
        %v633 = vrcp.pop %v632
        %v634 = vmul.f32 %v629, %v633
        %635 = vrot.lane.b32.xlu0 %v495, 80
        %v636 = vpop.permute.xlu0 %635
        %v639 = vsel %vm548, %v634, 0
        %641 = vmatprep.subr.mxu0 0.0
        %642 = vmatpush1.msra.mxu0 %v636
        %643 = vmatprep.subr.mxu0 0.0
        %644 = vmatpush1.msra.mxu0 0.0
        %645 = vmatprep.subr.mxu0 0.0
        %646 = vmatpush1.msra.mxu0 0.0
        %647 = vmatprep.subr.mxu0 0.0
        %648 = vmatpush1.msra.mxu0 0.0
        %649 = vmatprep.subr.mxu0 0.0
        %650 = vmatpush1.msra.mxu0 0.0
        %651 = vmatprep.subr.mxu0 0.0
        %652 = vmatpush1.msra.mxu0 0.0
        %653 = vmatprep.subr.mxu0 0.0
        %654 = vmatpush1.msra.mxu0 0.0
        %655 = vmatprep.subr.mxu0 0.0
        %656 = vmatpush1.msra.mxu0 0.0
        %657 = vmatprep.subr.mxu0 0.0
        %658 = vmatpush1.msra.mxu0 0.0
        %659 = vmatprep.subr.mxu0 0.0
        %660 = vmatpush1.msra.mxu0 0.0
        %661 = vmatprep.subr.mxu0 0.0
        %662 = vmatpush1.msra.mxu0 0.0
        %663 = vmatprep.subr.mxu0 0.0
        %664 = vmatpush1.msra.mxu0 0.0
        %665 = vmatprep.subr.mxu0 0.0
        %666 = vmatpush1.msra.mxu0 0.0
        %667 = vmatprep.subr.mxu0 0.0
        %668 = vmatpush1.msra.mxu0 0.0
        %669 = vmatprep.subr.mxu0 0.0
        %670 = vmatpush1.msra.mxu0 0.0
        %671 = vmatprep.subr.mxu0 0.0
        %672 = vmatpush1.msra.mxu0 0.0
        %673 = vmatprep.subr.mxu0 0.0
        %674 = vmatpush1.msra.mxu0 0.0
        %675 = vmatprep.subr.mxu0 0.0
        %676 = vmatpush1.msra.mxu0 0.0
        %677 = vmatprep.subr.mxu0 0.0
        %678 = vmatpush1.msra.mxu0 0.0
        %679 = vmatprep.subr.mxu0 0.0
        %680 = vmatpush1.msra.mxu0 0.0
        %681 = vmatprep.subr.mxu0 0.0
        %682 = vmatpush1.msra.mxu0 0.0
        %683 = vmatprep.subr.mxu0 0.0
        %684 = vmatpush1.msra.mxu0 0.0
        %685 = vmatprep.subr.mxu0 0.0
        %686 = vmatpush1.msra.mxu0 0.0
        %687 = vmatprep.subr.mxu0 0.0
        %688 = vmatpush1.msra.mxu0 0.0
        %689 = vmatprep.subr.mxu0 0.0
        %690 = vmatpush1.msra.mxu0 0.0
        %691 = vmatprep.subr.mxu0 0.0
        %692 = vmatpush1.msra.mxu0 0.0
        %693 = vmatprep.subr.mxu0 0.0
        %694 = vmatpush1.msra.mxu0 0.0
        %695 = vmatprep.subr.mxu0 0.0
        %696 = vmatpush1.msra.mxu0 0.0
        %697 = vmatprep.subr.mxu0 0.0
        %698 = vmatpush1.msra.mxu0 0.0
        %699 = vmatprep.subr.mxu0 0.0
        %700 = vmatpush1.msra.mxu0 0.0
        %701 = vmatprep.subr.mxu0 0.0
        %702 = vmatpush1.msra.mxu0 0.0
        %703 = vmatprep.subr.mxu0 0.0
        %704 = vmatpush1.msra.mxu0 0.0
        %705 = vmatprep.mubr.f32.mxu0 0.0
        %706 = vmatmul.mubr.f32.gmra.mrb[0].mxu0 %v639
        %v707 = vpop.f32.mrb[0].mxu0
        %v708 = vadd.f32 0.0, %v707
        %v709 = vpop.f32.mrb[0].mxu0
        %710 = vdwg.mxu0
        %711 = vrot.lane.b32.xlu0 %v401, 8
        %v712 = vpop.permute.xlu0 %711
        %v714 = vmul.f32 %v495, %v712
        %715 = vrot.lane.b32.xlu0 %v495, 120
        %v716 = vpop.permute.xlu0 %715
        %718 = vrot.lane.b32.xlu0 %v495, 124
        %v719 = vpop.permute.xlu0 %718
        %v721 = vsel %vm510, %v716, %v719
        %v722 = vmul.f32 %v721, %v513
        %724 = vrot.lane.b32.xlu0 %v722, 8
        %v725 = vpop.permute.xlu0 %724
        %v727 = vadd.f32 %v714, %v725
        %729 = vrot.lane.b32.xlu0 %v727, 120
        %v730 = vpop.permute.xlu0 %729
        %v731 = vsel %vm548, %v730, 0
        %733 = vmatprep.subr.mxu0 0.0
        %734 = vmatpush1.xpose.msra.mxu0 %v552
        %735 = vmatprep.subr.mxu0 0.0
        %736 = vmatpush1.xpose.msra.mxu0 0.0
        %737 = vmatprep.subr.mxu0 0.0
        %738 = vmatpush1.xpose.msra.mxu0 0.0
        %739 = vmatprep.subr.mxu0 0.0
        %740 = vmatpush1.xpose.msra.mxu0 0.0
        %741 = vmatprep.subr.mxu0 0.0
        %742 = vmatpush1.xpose.msra.mxu0 0.0
        %743 = vmatprep.subr.mxu0 0.0
        %744 = vmatpush1.xpose.msra.mxu0 0.0
        %745 = vmatprep.subr.mxu0 0.0
        %746 = vmatpush1.xpose.msra.mxu0 0.0
        %747 = vmatprep.subr.mxu0 0.0
        %748 = vmatpush1.xpose.msra.mxu0 0.0
        %749 = vmatprep.subr.mxu0 0.0
        %750 = vmatpush1.xpose.msra.mxu0 0.0
        %751 = vmatprep.subr.mxu0 0.0
        %752 = vmatpush1.xpose.msra.mxu0 0.0
        %753 = vmatprep.subr.mxu0 0.0
        %754 = vmatpush1.xpose.msra.mxu0 0.0
        %755 = vmatprep.subr.mxu0 0.0
        %756 = vmatpush1.xpose.msra.mxu0 0.0
        %757 = vmatprep.subr.mxu0 0.0
        %758 = vmatpush1.xpose.msra.mxu0 0.0
        %759 = vmatprep.subr.mxu0 0.0
        %760 = vmatpush1.xpose.msra.mxu0 0.0
        %761 = vmatprep.subr.mxu0 0.0
        %762 = vmatpush1.xpose.msra.mxu0 0.0
        %763 = vmatprep.subr.mxu0 0.0
        %764 = vmatpush1.xpose.msra.mxu0 0.0
        %765 = vmatprep.subr.mxu0 0.0
        %766 = vmatpush1.xpose.msra.mxu0 0.0
        %767 = vmatprep.subr.mxu0 0.0
        %768 = vmatpush1.xpose.msra.mxu0 0.0
        %769 = vmatprep.subr.mxu0 0.0
        %770 = vmatpush1.xpose.msra.mxu0 0.0
        %771 = vmatprep.subr.mxu0 0.0
        %772 = vmatpush1.xpose.msra.mxu0 0.0
        %773 = vmatprep.subr.mxu0 0.0
        %774 = vmatpush1.xpose.msra.mxu0 0.0
        %775 = vmatprep.subr.mxu0 0.0
        %776 = vmatpush1.xpose.msra.mxu0 0.0
        %777 = vmatprep.subr.mxu0 0.0
        %778 = vmatpush1.xpose.msra.mxu0 0.0
        %779 = vmatprep.subr.mxu0 0.0
        %780 = vmatpush1.xpose.msra.mxu0 0.0
        %781 = vmatprep.subr.mxu0 0.0
        %782 = vmatpush1.xpose.msra.mxu0 0.0
        %783 = vmatprep.subr.mxu0 0.0
        %784 = vmatpush1.xpose.msra.mxu0 0.0
        %785 = vmatprep.subr.mxu0 0.0
        %786 = vmatpush1.xpose.msra.mxu0 0.0
        %787 = vmatprep.subr.mxu0 0.0
        %788 = vmatpush1.xpose.msra.mxu0 0.0
        %789 = vmatprep.subr.mxu0 0.0
        %790 = vmatpush1.xpose.msra.mxu0 0.0
        %791 = vmatprep.subr.mxu0 0.0
        %792 = vmatpush1.xpose.msra.mxu0 0.0
        %793 = vmatprep.subr.mxu0 0.0
        %794 = vmatpush1.xpose.msra.mxu0 0.0
        %795 = vmatprep.subr.mxu0 0.0
        %796 = vmatpush1.xpose.msra.mxu0 0.0
        %797 = vmatprep.mubr.f32.mxu0 0.0
        %798 = vmatmul.mubr.f32.gmra.mrb[0].mxu0 %v731
        %v799 = vpop.f32.mrb[0].mxu0
        %v800 = vadd.f32 0.0, %v799
        %v801 = vpop.f32.mrb[0].mxu0
        %802 = vdwg.mxu0
        %v803 = vsel %vm548, %v800, -inf
        %804 = vmax.xlane.f32.xlu0 %v803
        %v805 = vpop.xlane.xlu0 %804
        %v806 = vsub.f32 %v800, %v805
        %v807 = vmul.f32 %v806, 1.442695
        %v808 = vpow.pop %v807
        %v809 = vsel %vm548, %v808, 0.0
        %810 = vadd.xlane.f32.xlu0 %v809
        %v811 = vpop.xlane.xlu0 %810
        %v812 = vrcp.pop %v811
        %v813 = vmul.f32 %v808, %v812
        %v815 = vsel %vm548, %v813, 0
        %817 = vmatprep.subr.mxu0 0.0
        %818 = vmatpush1.msra.mxu0 %v636
        %819 = vmatprep.subr.mxu0 0.0
        %820 = vmatpush1.msra.mxu0 0.0
        %821 = vmatprep.subr.mxu0 0.0
        %822 = vmatpush1.msra.mxu0 0.0
        %823 = vmatprep.subr.mxu0 0.0
        %824 = vmatpush1.msra.mxu0 0.0
        %825 = vmatprep.subr.mxu0 0.0
        %826 = vmatpush1.msra.mxu0 0.0
        %827 = vmatprep.subr.mxu0 0.0
        %828 = vmatpush1.msra.mxu0 0.0
        %829 = vmatprep.subr.mxu0 0.0
        %830 = vmatpush1.msra.mxu0 0.0
        %831 = vmatprep.subr.mxu0 0.0
        %832 = vmatpush1.msra.mxu0 0.0
        %833 = vmatprep.subr.mxu0 0.0
        %834 = vmatpush1.msra.mxu0 0.0
        %835 = vmatprep.subr.mxu0 0.0
        %836 = vmatpush1.msra.mxu0 0.0
        %837 = vmatprep.subr.mxu0 0.0
        %838 = vmatpush1.msra.mxu0 0.0
        %839 = vmatprep.subr.mxu0 0.0
        %840 = vmatpush1.msra.mxu0 0.0
        %841 = vmatprep.subr.mxu0 0.0
        %842 = vmatpush1.msra.mxu0 0.0
        %843 = vmatprep.subr.mxu0 0.0
        %844 = vmatpush1.msra.mxu0 0.0
        %845 = vmatprep.subr.mxu0 0.0
        %846 = vmatpush1.msra.mxu0 0.0
        %847 = vmatprep.subr.mxu0 0.0
        %848 = vmatpush1.msra.mxu0 0.0
        %849 = vmatprep.subr.mxu0 0.0
        %850 = vmatpush1.msra.mxu0 0.0
        %851 = vmatprep.subr.mxu0 0.0
        %852 = vmatpush1.msra.mxu0 0.0
        %853 = vmatprep.subr.mxu0 0.0
        %854 = vmatpush1.msra.mxu0 0.0
        %855 = vmatprep.subr.mxu0 0.0
        %856 = vmatpush1.msra.mxu0 0.0
        %857 = vmatprep.subr.mxu0 0.0
        %858 = vmatpush1.msra.mxu0 0.0
        %859 = vmatprep.subr.mxu0 0.0
        %860 = vmatpush1.msra.mxu0 0.0
        %861 = vmatprep.subr.mxu0 0.0
        %862 = vmatpush1.msra.mxu0 0.0
        %863 = vmatprep.subr.mxu0 0.0
        %864 = vmatpush1.msra.mxu0 0.0
        %865 = vmatprep.subr.mxu0 0.0
        %866 = vmatpush1.msra.mxu0 0.0
        %867 = vmatprep.subr.mxu0 0.0
        %868 = vmatpush1.msra.mxu0 0.0
        %869 = vmatprep.subr.mxu0 0.0
        %870 = vmatpush1.msra.mxu0 0.0
        %871 = vmatprep.subr.mxu0 0.0
        %872 = vmatpush1.msra.mxu0 0.0
        %873 = vmatprep.subr.mxu0 0.0
        %874 = vmatpush1.msra.mxu0 0.0
        %875 = vmatprep.subr.mxu0 0.0
        %876 = vmatpush1.msra.mxu0 0.0
        %877 = vmatprep.subr.mxu0 0.0
        %878 = vmatpush1.msra.mxu0 0.0
        %879 = vmatprep.subr.mxu0 0.0
        %880 = vmatpush1.msra.mxu0 0.0
        %881 = vmatprep.mubr.f32.mxu0 0.0
        %882 = vmatmul.mubr.f32.gmra.mrb[0].mxu0 %v815
        %v883 = vpop.f32.mrb[0].mxu0
        %v884 = vadd.f32 0.0, %v883
        %v885 = vpop.f32.mrb[0].mxu0
        %886 = vdwg.mxu0
        %887 = vrot.lane.b32.xlu0 %v401, 16
        %v888 = vpop.permute.xlu0 %887
        %v890 = vmul.f32 %v495, %v888
        %891 = vrot.lane.b32.xlu0 %v495, 112
        %v892 = vpop.permute.xlu0 %891
        %894 = vrot.lane.b32.xlu0 %v495, 116
        %v895 = vpop.permute.xlu0 %894
        %v897 = vsel %vm510, %v892, %v895
        %v898 = vmul.f32 %v897, %v513
        %900 = vrot.lane.b32.xlu0 %v898, 16
        %v901 = vpop.permute.xlu0 %900
        %v903 = vadd.f32 %v890, %v901
        %905 = vrot.lane.b32.xlu0 %v903, 112
        %v906 = vpop.permute.xlu0 %905
        %908 = vrot.lane.b32.xlu0 %v537, 88
        %v909 = vpop.permute.xlu0 %908
        %v910 = vsel %vm548, %v906, 0
        %v912 = vsel %vm548, %v909, 0
        %914 = vmatprep.subr.mxu0 0.0
        %915 = vmatpush1.xpose.msra.mxu0 %v912
        %916 = vmatprep.subr.mxu0 0.0
        %917 = vmatpush1.xpose.msra.mxu0 0.0
        %918 = vmatprep.subr.mxu0 0.0
        %919 = vmatpush1.xpose.msra.mxu0 0.0
        %920 = vmatprep.subr.mxu0 0.0
        %921 = vmatpush1.xpose.msra.mxu0 0.0
        %922 = vmatprep.subr.mxu0 0.0
        %923 = vmatpush1.xpose.msra.mxu0 0.0
        %924 = vmatprep.subr.mxu0 0.0
        %925 = vmatpush1.xpose.msra.mxu0 0.0
        %926 = vmatprep.subr.mxu0 0.0
        %927 = vmatpush1.xpose.msra.mxu0 0.0
        %928 = vmatprep.subr.mxu0 0.0
        %929 = vmatpush1.xpose.msra.mxu0 0.0
        %930 = vmatprep.subr.mxu0 0.0
        %931 = vmatpush1.xpose.msra.mxu0 0.0
        %932 = vmatprep.subr.mxu0 0.0
        %933 = vmatpush1.xpose.msra.mxu0 0.0
        %934 = vmatprep.subr.mxu0 0.0
        %935 = vmatpush1.xpose.msra.mxu0 0.0
        %936 = vmatprep.subr.mxu0 0.0
        %937 = vmatpush1.xpose.msra.mxu0 0.0
        %938 = vmatprep.subr.mxu0 0.0
        %939 = vmatpush1.xpose.msra.mxu0 0.0
        %940 = vmatprep.subr.mxu0 0.0
        %941 = vmatpush1.xpose.msra.mxu0 0.0
        %942 = vmatprep.subr.mxu0 0.0
        %943 = vmatpush1.xpose.msra.mxu0 0.0
        %944 = vmatprep.subr.mxu0 0.0
        %945 = vmatpush1.xpose.msra.mxu0 0.0
        %946 = vmatprep.subr.mxu0 0.0
        %947 = vmatpush1.xpose.msra.mxu0 0.0
        %948 = vmatprep.subr.mxu0 0.0
        %949 = vmatpush1.xpose.msra.mxu0 0.0
        %950 = vmatprep.subr.mxu0 0.0
        %951 = vmatpush1.xpose.msra.mxu0 0.0
        %952 = vmatprep.subr.mxu0 0.0
        %953 = vmatpush1.xpose.msra.mxu0 0.0
        %954 = vmatprep.subr.mxu0 0.0
        %955 = vmatpush1.xpose.msra.mxu0 0.0
        %956 = vmatprep.subr.mxu0 0.0
        %957 = vmatpush1.xpose.msra.mxu0 0.0
        %958 = vmatprep.subr.mxu0 0.0
        %959 = vmatpush1.xpose.msra.mxu0 0.0
        %960 = vmatprep.subr.mxu0 0.0
        %961 = vmatpush1.xpose.msra.mxu0 0.0
        %962 = vmatprep.subr.mxu0 0.0
        %963 = vmatpush1.xpose.msra.mxu0 0.0
        %964 = vmatprep.subr.mxu0 0.0
        %965 = vmatpush1.xpose.msra.mxu0 0.0
        %966 = vmatprep.subr.mxu0 0.0
        %967 = vmatpush1.xpose.msra.mxu0 0.0
        %968 = vmatprep.subr.mxu0 0.0
        %969 = vmatpush1.xpose.msra.mxu0 0.0
        %970 = vmatprep.subr.mxu0 0.0
        %971 = vmatpush1.xpose.msra.mxu0 0.0
        %972 = vmatprep.subr.mxu0 0.0
        %973 = vmatpush1.xpose.msra.mxu0 0.0
        %974 = vmatprep.subr.mxu0 0.0
        %975 = vmatpush1.xpose.msra.mxu0 0.0
        %976 = vmatprep.subr.mxu0 0.0
        %977 = vmatpush1.xpose.msra.mxu0 0.0
        %978 = vmatprep.mubr.f32.mxu0 0.0
        %979 = vmatmul.mubr.f32.gmra.mrb[0].mxu0 %v910
        %v980 = vpop.f32.mrb[0].mxu0
        %v981 = vadd.f32 0.0, %v980
        %v982 = vpop.f32.mrb[0].mxu0
        %983 = vdwg.mxu0
        %v984 = vsel %vm548, %v981, -inf
        %985 = vmax.xlane.f32.xlu0 %v984
        %v986 = vpop.xlane.xlu0 %985
        %v987 = vsub.f32 %v981, %v986
        %v988 = vmul.f32 %v987, 1.442695
        %v989 = vpow.pop %v988
        %v990 = vsel %vm548, %v989, 0.0
        %991 = vadd.xlane.f32.xlu0 %v990
        %v992 = vpop.xlane.xlu0 %991
        %v993 = vrcp.pop %v992
        %v994 = vmul.f32 %v989, %v993
        %995 = vrot.lane.b32.xlu0 %v495, 72
        %v996 = vpop.permute.xlu0 %995
        %v999 = vsel %vm548, %v994, 0
        %1001 = vmatprep.subr.mxu0 0.0
        %1002 = vmatpush1.msra.mxu0 %v996
        %1003 = vmatprep.subr.mxu0 0.0
        %1004 = vmatpush1.msra.mxu0 0.0
        %1005 = vmatprep.subr.mxu0 0.0
        %1006 = vmatpush1.msra.mxu0 0.0
        %1007 = vmatprep.subr.mxu0 0.0
        %1008 = vmatpush1.msra.mxu0 0.0
        %1009 = vmatprep.subr.mxu0 0.0
        %1010 = vmatpush1.msra.mxu0 0.0
        %1011 = vmatprep.subr.mxu0 0.0
        %1012 = vmatpush1.msra.mxu0 0.0
        %1013 = vmatprep.subr.mxu0 0.0
        %1014 = vmatpush1.msra.mxu0 0.0
        %1015 = vmatprep.subr.mxu0 0.0
        %1016 = vmatpush1.msra.mxu0 0.0
        %1017 = vmatprep.subr.mxu0 0.0
        %1018 = vmatpush1.msra.mxu0 0.0
        %1019 = vmatprep.subr.mxu0 0.0
        %1020 = vmatpush1.msra.mxu0 0.0
        %1021 = vmatprep.subr.mxu0 0.0
        %1022 = vmatpush1.msra.mxu0 0.0
        %1023 = vmatprep.subr.mxu0 0.0
        %1024 = vmatpush1.msra.mxu0 0.0
        %1025 = vmatprep.subr.mxu0 0.0
        %1026 = vmatpush1.msra.mxu0 0.0
        %1027 = vmatprep.subr.mxu0 0.0
        %1028 = vmatpush1.msra.mxu0 0.0
        %1029 = vmatprep.subr.mxu0 0.0
        %1030 = vmatpush1.msra.mxu0 0.0
        %1031 = vmatprep.subr.mxu0 0.0
        %1032 = vmatpush1.msra.mxu0 0.0
        %1033 = vmatprep.subr.mxu0 0.0
        %1034 = vmatpush1.msra.mxu0 0.0
        %1035 = vmatprep.subr.mxu0 0.0
        %1036 = vmatpush1.msra.mxu0 0.0
        %1037 = vmatprep.subr.mxu0 0.0
        %1038 = vmatpush1.msra.mxu0 0.0
        %1039 = vmatprep.subr.mxu0 0.0
        %1040 = vmatpush1.msra.mxu0 0.0
        %1041 = vmatprep.subr.mxu0 0.0
        %1042 = vmatpush1.msra.mxu0 0.0
        %1043 = vmatprep.subr.mxu0 0.0
        %1044 = vmatpush1.msra.mxu0 0.0
        %1045 = vmatprep.subr.mxu0 0.0
        %1046 = vmatpush1.msra.mxu0 0.0
        %1047 = vmatprep.subr.mxu0 0.0
        %1048 = vmatpush1.msra.mxu0 0.0
        %1049 = vmatprep.subr.mxu0 0.0
        %1050 = vmatpush1.msra.mxu0 0.0
        %1051 = vmatprep.subr.mxu0 0.0
        %1052 = vmatpush1.msra.mxu0 0.0
        %1053 = vmatprep.subr.mxu0 0.0
        %1054 = vmatpush1.msra.mxu0 0.0
        %1055 = vmatprep.subr.mxu0 0.0
        %1056 = vmatpush1.msra.mxu0 0.0
        %1057 = vmatprep.subr.mxu0 0.0
        %1058 = vmatpush1.msra.mxu0 0.0
        %1059 = vmatprep.subr.mxu0 0.0
        %1060 = vmatpush1.msra.mxu0 0.0
        %1061 = vmatprep.subr.mxu0 0.0
        %1062 = vmatpush1.msra.mxu0 0.0
        %1063 = vmatprep.subr.mxu0 0.0
        %1064 = vmatpush1.msra.mxu0 0.0
        %1065 = vmatprep.mubr.f32.mxu0 0.0
        %1066 = vmatmul.mubr.f32.gmra.mrb[0].mxu0 %v999
        %v1067 = vpop.f32.mrb[0].mxu0
        %v1068 = vadd.f32 0.0, %v1067
        %v1069 = vpop.f32.mrb[0].mxu0
        %1070 = vdwg.mxu0
        %1071 = vrot.lane.b32.xlu0 %v401, 24
        %v1072 = vpop.permute.xlu0 %1071
        %v1074 = vmul.f32 %v495, %v1072
        %1075 = vrot.lane.b32.xlu0 %v495, 104
        %v1076 = vpop.permute.xlu0 %1075
        %1078 = vrot.lane.b32.xlu0 %v495, 108
        %v1079 = vpop.permute.xlu0 %1078
        %v1081 = vsel %vm510, %v1076, %v1079
        %v1082 = vmul.f32 %v1081, %v513
        %1084 = vrot.lane.b32.xlu0 %v1082, 24
        %v1085 = vpop.permute.xlu0 %1084
        %v1087 = vadd.f32 %v1074, %v1085
        %1089 = vrot.lane.b32.xlu0 %v1087, 104
        %v1090 = vpop.permute.xlu0 %1089
        %v1091 = vsel %vm548, %v1090, 0
        %1093 = vmatprep.subr.mxu0 0.0
        %1094 = vmatpush1.xpose.msra.mxu0 %v912
        %1095 = vmatprep.subr.mxu0 0.0
        %1096 = vmatpush1.xpose.msra.mxu0 0.0
        %1097 = vmatprep.subr.mxu0 0.0
        %1098 = vmatpush1.xpose.msra.mxu0 0.0
        %1099 = vmatprep.subr.mxu0 0.0
        %1100 = vmatpush1.xpose.msra.mxu0 0.0
        %1101 = vmatprep.subr.mxu0 0.0
        %1102 = vmatpush1.xpose.msra.mxu0 0.0
        %1103 = vmatprep.subr.mxu0 0.0
        %1104 = vmatpush1.xpose.msra.mxu0 0.0
        %1105 = vmatprep.subr.mxu0 0.0
        %1106 = vmatpush1.xpose.msra.mxu0 0.0
        %1107 = vmatprep.subr.mxu0 0.0
        %1108 = vmatpush1.xpose.msra.mxu0 0.0
        %1109 = vmatprep.subr.mxu0 0.0
        %1110 = vmatpush1.xpose.msra.mxu0 0.0
        %1111 = vmatprep.subr.mxu0 0.0
        %1112 = vmatpush1.xpose.msra.mxu0 0.0
        %1113 = vmatprep.subr.mxu0 0.0
        %1114 = vmatpush1.xpose.msra.mxu0 0.0
        %1115 = vmatprep.subr.mxu0 0.0
        %1116 = vmatpush1.xpose.msra.mxu0 0.0
        %1117 = vmatprep.subr.mxu0 0.0
        %1118 = vmatpush1.xpose.msra.mxu0 0.0
        %1119 = vmatprep.subr.mxu0 0.0
        %1120 = vmatpush1.xpose.msra.mxu0 0.0
        %1121 = vmatprep.subr.mxu0 0.0
        %1122 = vmatpush1.xpose.msra.mxu0 0.0
        %1123 = vmatprep.subr.mxu0 0.0
        %1124 = vmatpush1.xpose.msra.mxu0 0.0
        %1125 = vmatprep.subr.mxu0 0.0
        %1126 = vmatpush1.xpose.msra.mxu0 0.0
        %1127 = vmatprep.subr.mxu0 0.0
        %1128 = vmatpush1.xpose.msra.mxu0 0.0
        %1129 = vmatprep.subr.mxu0 0.0
        %1130 = vmatpush1.xpose.msra.mxu0 0.0
        %1131 = vmatprep.subr.mxu0 0.0
        %1132 = vmatpush1.xpose.msra.mxu0 0.0
        %1133 = vmatprep.subr.mxu0 0.0
        %1134 = vmatpush1.xpose.msra.mxu0 0.0
        %1135 = vmatprep.subr.mxu0 0.0
        %1136 = vmatpush1.xpose.msra.mxu0 0.0
        %1137 = vmatprep.subr.mxu0 0.0
        %1138 = vmatpush1.xpose.msra.mxu0 0.0
        %1139 = vmatprep.subr.mxu0 0.0
        %1140 = vmatpush1.xpose.msra.mxu0 0.0
        %1141 = vmatprep.subr.mxu0 0.0
        %1142 = vmatpush1.xpose.msra.mxu0 0.0
        %1143 = vmatprep.subr.mxu0 0.0
        %1144 = vmatpush1.xpose.msra.mxu0 0.0
        %1145 = vmatprep.subr.mxu0 0.0
        %1146 = vmatpush1.xpose.msra.mxu0 0.0
        %1147 = vmatprep.subr.mxu0 0.0
        %1148 = vmatpush1.xpose.msra.mxu0 0.0
        %1149 = vmatprep.subr.mxu0 0.0
        %1150 = vmatpush1.xpose.msra.mxu0 0.0
        %1151 = vmatprep.subr.mxu0 0.0
        %1152 = vmatpush1.xpose.msra.mxu0 0.0
        %1153 = vmatprep.subr.mxu0 0.0
        %1154 = vmatpush1.xpose.msra.mxu0 0.0
        %1155 = vmatprep.subr.mxu0 0.0
        %1156 = vmatpush1.xpose.msra.mxu0 0.0
        %1157 = vmatprep.mubr.f32.mxu0 0.0
        %1158 = vmatmul.mubr.f32.gmra.mrb[0].mxu0 %v1091
        %v1159 = vpop.f32.mrb[0].mxu0
        %v1160 = vadd.f32 0.0, %v1159
        %v1161 = vpop.f32.mrb[0].mxu0
        %1162 = vdwg.mxu0
        %v1163 = vsel %vm548, %v1160, -inf
        %1164 = vmax.xlane.f32.xlu0 %v1163
        %v1165 = vpop.xlane.xlu0 %1164
        %v1166 = vsub.f32 %v1160, %v1165
        %v1167 = vmul.f32 %v1166, 1.442695
        %v1168 = vpow.pop %v1167
        %v1169 = vsel %vm548, %v1168, 0.0
        %1170 = vadd.xlane.f32.xlu0 %v1169
        %v1171 = vpop.xlane.xlu0 %1170
        %v1172 = vrcp.pop %v1171
        %v1173 = vmul.f32 %v1168, %v1172
        %v1175 = vsel %vm548, %v1173, 0
        %1177 = vmatprep.subr.mxu0 0.0
        %1178 = vmatpush1.msra.mxu0 %v996
        %1179 = vmatprep.subr.mxu0 0.0
        %1180 = vmatpush1.msra.mxu0 0.0
        %1181 = vmatprep.subr.mxu0 0.0
        %1182 = vmatpush1.msra.mxu0 0.0
        %1183 = vmatprep.subr.mxu0 0.0
        %1184 = vmatpush1.msra.mxu0 0.0
        %1185 = vmatprep.subr.mxu0 0.0
        %1186 = vmatpush1.msra.mxu0 0.0
        %1187 = vmatprep.subr.mxu0 0.0
        %1188 = vmatpush1.msra.mxu0 0.0
        %1189 = vmatprep.subr.mxu0 0.0
        %1190 = vmatpush1.msra.mxu0 0.0
        %1191 = vmatprep.subr.mxu0 0.0
        %1192 = vmatpush1.msra.mxu0 0.0
        %1193 = vmatprep.subr.mxu0 0.0
        %1194 = vmatpush1.msra.mxu0 0.0
        %1195 = vmatprep.subr.mxu0 0.0
        %1196 = vmatpush1.msra.mxu0 0.0
        %1197 = vmatprep.subr.mxu0 0.0
        %1198 = vmatpush1.msra.mxu0 0.0
        %1199 = vmatprep.subr.mxu0 0.0
        %1200 = vmatpush1.msra.mxu0 0.0
        %1201 = vmatprep.subr.mxu0 0.0
        %1202 = vmatpush1.msra.mxu0 0.0
        %1203 = vmatprep.subr.mxu0 0.0
        %1204 = vmatpush1.msra.mxu0 0.0
        %1205 = vmatprep.subr.mxu0 0.0
        %1206 = vmatpush1.msra.mxu0 0.0
        %1207 = vmatprep.subr.mxu0 0.0
        %1208 = vmatpush1.msra.mxu0 0.0
        %1209 = vmatprep.subr.mxu0 0.0
        %1210 = vmatpush1.msra.mxu0 0.0
        %1211 = vmatprep.subr.mxu0 0.0
        %1212 = vmatpush1.msra.mxu0 0.0
        %1213 = vmatprep.subr.mxu0 0.0
        %1214 = vmatpush1.msra.mxu0 0.0
        %1215 = vmatprep.subr.mxu0 0.0
        %1216 = vmatpush1.msra.mxu0 0.0
        %1217 = vmatprep.subr.mxu0 0.0
        %1218 = vmatpush1.msra.mxu0 0.0
        %1219 = vmatprep.subr.mxu0 0.0
        %1220 = vmatpush1.msra.mxu0 0.0
        %1221 = vmatprep.subr.mxu0 0.0
        %1222 = vmatpush1.msra.mxu0 0.0
        %1223 = vmatprep.subr.mxu0 0.0
        %1224 = vmatpush1.msra.mxu0 0.0
        %1225 = vmatprep.subr.mxu0 0.0
        %1226 = vmatpush1.msra.mxu0 0.0
        %1227 = vmatprep.subr.mxu0 0.0
        %1228 = vmatpush1.msra.mxu0 0.0
        %1229 = vmatprep.subr.mxu0 0.0
        %1230 = vmatpush1.msra.mxu0 0.0
        %1231 = vmatprep.subr.mxu0 0.0
        %1232 = vmatpush1.msra.mxu0 0.0
        %1233 = vmatprep.subr.mxu0 0.0
        %1234 = vmatpush1.msra.mxu0 0.0
        %1235 = vmatprep.subr.mxu0 0.0
        %1236 = vmatpush1.msra.mxu0 0.0
        %1237 = vmatprep.subr.mxu0 0.0
        %1238 = vmatpush1.msra.mxu0 0.0
        %1239 = vmatprep.subr.mxu0 0.0
        %1240 = vmatpush1.msra.mxu0 0.0
        %1241 = vmatprep.mubr.f32.mxu0 0.0
        %1242 = vmatmul.mubr.f32.gmra.mrb[0].mxu0 %v1175
        %v1243 = vpop.f32.mrb[0].mxu0
        %v1244 = vadd.f32 0.0, %v1243
        %v1245 = vpop.f32.mrb[0].mxu0
        %1246 = vdwg.mxu0
        %1248 = vrot.lane.b32.xlu0 %v884, 8
        %v1249 = vpop.permute.xlu0 %1248
        %1252 = vrot.lane.b32.xlu0 %v1068, 16
        %v1253 = vpop.permute.xlu0 %1252
        %1256 = vrot.lane.b32.xlu0 %v1244, 24
        %v1257 = vpop.permute.xlu0 %1256
        %v1259 = vsel %vm548, %v708, %v1249
        %vm1260 = vcmask 130048
        %v1261 = vsel %vm1260, %v1259, %v1253
        %vm1262 = vcmask 195584
        %v1263 = vsel %vm1262, %v1261, %v1257
        %v1264 = vld [vmem:[%s4] sm:$0xff]
        %v1265 = vld [vmem:[%s4 + $0x8] sm:$0xff]
        %v1266 = vld [vmem:[%s4 + $0x10] sm:$0xff]
        %v1267 = vld [vmem:[%s4 + $0x18] sm:$0xff]
        %v1269 = vsel %vm404, %v1263, 0
        %1271 = vmatprep.subr.mxu0 0.0
        %1272 = vmatpush1.msra.mxu0 %v1264
        %1273 = vmatprep.subr.mxu0 0.0
        %1274 = vmatpush1.msra.mxu0 %v1265
        %1275 = vmatprep.subr.mxu0 0.0
        %1276 = vmatpush1.msra.mxu0 %v1266
        %1277 = vmatprep.subr.mxu0 0.0
        %1278 = vmatpush1.msra.mxu0 %v1267
        %1279 = vmatprep.subr.mxu0 0.0
        %1280 = vmatpush1.msra.mxu0 0.0
        %1281 = vmatprep.subr.mxu0 0.0
        %1282 = vmatpush1.msra.mxu0 0.0
        %1283 = vmatprep.subr.mxu0 0.0
        %1284 = vmatpush1.msra.mxu0 0.0
        %1285 = vmatprep.subr.mxu0 0.0
        %1286 = vmatpush1.msra.mxu0 0.0
        %1287 = vmatprep.subr.mxu0 0.0
        %1288 = vmatpush1.msra.mxu0 0.0
        %1289 = vmatprep.subr.mxu0 0.0
        %1290 = vmatpush1.msra.mxu0 0.0
        %1291 = vmatprep.subr.mxu0 0.0
        %1292 = vmatpush1.msra.mxu0 0.0
        %1293 = vmatprep.subr.mxu0 0.0
        %1294 = vmatpush1.msra.mxu0 0.0
        %1295 = vmatprep.subr.mxu0 0.0
        %1296 = vmatpush1.msra.mxu0 0.0
        %1297 = vmatprep.subr.mxu0 0.0
        %1298 = vmatpush1.msra.mxu0 0.0
        %1299 = vmatprep.subr.mxu0 0.0
        %1300 = vmatpush1.msra.mxu0 0.0
        %1301 = vmatprep.subr.mxu0 0.0
        %1302 = vmatpush1.msra.mxu0 0.0
        %1303 = vmatprep.subr.mxu0 0.0
        %1304 = vmatpush1.msra.mxu0 0.0
        %1305 = vmatprep.subr.mxu0 0.0
        %1306 = vmatpush1.msra.mxu0 0.0
        %1307 = vmatprep.subr.mxu0 0.0
        %1308 = vmatpush1.msra.mxu0 0.0
        %1309 = vmatprep.subr.mxu0 0.0
        %1310 = vmatpush1.msra.mxu0 0.0
        %1311 = vmatprep.subr.mxu0 0.0
        %1312 = vmatpush1.msra.mxu0 0.0
        %1313 = vmatprep.subr.mxu0 0.0
        %1314 = vmatpush1.msra.mxu0 0.0
        %1315 = vmatprep.subr.mxu0 0.0
        %1316 = vmatpush1.msra.mxu0 0.0
        %1317 = vmatprep.subr.mxu0 0.0
        %1318 = vmatpush1.msra.mxu0 0.0
        %1319 = vmatprep.subr.mxu0 0.0
        %1320 = vmatpush1.msra.mxu0 0.0
        %1321 = vmatprep.subr.mxu0 0.0
        %1322 = vmatpush1.msra.mxu0 0.0
        %1323 = vmatprep.subr.mxu0 0.0
        %1324 = vmatpush1.msra.mxu0 0.0
        %1325 = vmatprep.subr.mxu0 0.0
        %1326 = vmatpush1.msra.mxu0 0.0
        %1327 = vmatprep.subr.mxu0 0.0
        %1328 = vmatpush1.msra.mxu0 0.0
        %1329 = vmatprep.subr.mxu0 0.0
        %1330 = vmatpush1.msra.mxu0 0.0
        %1331 = vmatprep.subr.mxu0 0.0
        %1332 = vmatpush1.msra.mxu0 0.0
        %1333 = vmatprep.subr.mxu0 0.0
        %1334 = vmatpush1.msra.mxu0 0.0
        %1335 = vmatprep.mubr.f32.mxu0 0.0
        %1336 = vmatmul.mubr.f32.gmra.mrb[0].mxu0 %v1269
        %v1337 = vpop.f32.mrb[0].mxu0
        %v1338 = vadd.f32 0.0, %v1337
        %v1339 = vpop.f32.mrb[0].mxu0
        %1340 = vdwg.mxu0
        %v1341 = vadd.f32 %v400, %v1338
        %v1342 = vld [vmem:[%s5] sm:$0x1]
        %v1343 = vmul.f32 %v1341, %v1341
        %v1344 = vsel %vm404, %v1343, 0.0
        %1345 = vadd.xlane.f32.xlu0 %v1344
        %v1346 = vpop.xlane.xlu0 %1345
        %v1347 = vmul.f32 %v1346, %v408
        %v1348 = vadd.f32 %v1347, 1e-06
        %v1349 = vrsqrt.pop %v1348
        %v1350 = vmul.f32 %v1341, %v1349
        %v1351 = vadd.f32 %v1342, 1.0
        %v1353 = vlaneseq
        %v1354 = vshrl.u32 %v1353, 7
        %v1355 = vsub.s32 0, %v1354
        %v1356 = vrot.slane %v1351, %v1355
        %v1358 = vmul.f32 %v1350, %v1356
        %v1359 = vld [vmem:[%s6] sm:$0xff]
        %v1360 = vld [vmem:[%s6 + $0x8] sm:$0xff]
        %v1361 = vld [vmem:[%s6 + $0x10] sm:$0xff]
        %v1362 = vld [vmem:[%s6 + $0x18] sm:$0xff]
        %v1364 = vsel %vm404, %v1358, 0
        %1366 = vmatprep.subr.mxu0 0.0
        %1367 = vmatpush1.msra.mxu0 %v1359
        %1368 = vmatprep.subr.mxu0 0.0
        %1369 = vmatpush1.msra.mxu0 %v1360
        %1370 = vmatprep.subr.mxu0 0.0
        %1371 = vmatpush1.msra.mxu0 %v1361
        %1372 = vmatprep.subr.mxu0 0.0
        %1373 = vmatpush1.msra.mxu0 %v1362
        %1374 = vmatprep.subr.mxu0 0.0
        %1375 = vmatpush1.msra.mxu0 0.0
        %1376 = vmatprep.subr.mxu0 0.0
        %1377 = vmatpush1.msra.mxu0 0.0
        %1378 = vmatprep.subr.mxu0 0.0
        %1379 = vmatpush1.msra.mxu0 0.0
        %1380 = vmatprep.subr.mxu0 0.0
        %1381 = vmatpush1.msra.mxu0 0.0
        %1382 = vmatprep.subr.mxu0 0.0
        %1383 = vmatpush1.msra.mxu0 0.0
        %1384 = vmatprep.subr.mxu0 0.0
        %1385 = vmatpush1.msra.mxu0 0.0
        %1386 = vmatprep.subr.mxu0 0.0
        %1387 = vmatpush1.msra.mxu0 0.0
        %1388 = vmatprep.subr.mxu0 0.0
        %1389 = vmatpush1.msra.mxu0 0.0
        %1390 = vmatprep.subr.mxu0 0.0
        %1391 = vmatpush1.msra.mxu0 0.0
        %1392 = vmatprep.subr.mxu0 0.0
        %1393 = vmatpush1.msra.mxu0 0.0
        %1394 = vmatprep.subr.mxu0 0.0
        %1395 = vmatpush1.msra.mxu0 0.0
        %1396 = vmatprep.subr.mxu0 0.0
        %1397 = vmatpush1.msra.mxu0 0.0
        %1398 = vmatprep.subr.mxu0 0.0
        %1399 = vmatpush1.msra.mxu0 0.0
        %1400 = vmatprep.subr.mxu0 0.0
        %1401 = vmatpush1.msra.mxu0 0.0
        %1402 = vmatprep.subr.mxu0 0.0
        %1403 = vmatpush1.msra.mxu0 0.0
        %1404 = vmatprep.subr.mxu0 0.0
        %1405 = vmatpush1.msra.mxu0 0.0
        %1406 = vmatprep.subr.mxu0 0.0
        %1407 = vmatpush1.msra.mxu0 0.0
        %1408 = vmatprep.subr.mxu0 0.0
        %1409 = vmatpush1.msra.mxu0 0.0
        %1410 = vmatprep.subr.mxu0 0.0
        %1411 = vmatpush1.msra.mxu0 0.0
        %1412 = vmatprep.subr.mxu0 0.0
        %1413 = vmatpush1.msra.mxu0 0.0
        %1414 = vmatprep.subr.mxu0 0.0
        %1415 = vmatpush1.msra.mxu0 0.0
        %1416 = vmatprep.subr.mxu0 0.0
        %1417 = vmatpush1.msra.mxu0 0.0
        %1418 = vmatprep.subr.mxu0 0.0
        %1419 = vmatpush1.msra.mxu0 0.0
        %1420 = vmatprep.subr.mxu0 0.0
        %1421 = vmatpush1.msra.mxu0 0.0
        %1422 = vmatprep.subr.mxu0 0.0
        %1423 = vmatpush1.msra.mxu0 0.0
        %1424 = vmatprep.subr.mxu0 0.0
        %1425 = vmatpush1.msra.mxu0 0.0
        %1426 = vmatprep.subr.mxu0 0.0
        %1427 = vmatpush1.msra.mxu0 0.0
        %1428 = vmatprep.subr.mxu0 0.0
        %1429 = vmatpush1.msra.mxu0 0.0
        %1430 = vmatprep.mubr.f32.mxu0 0.0
        %1431 = vmatmul.mubr.f32.gmra.mrb[0].mxu0 %v1364
        %v1432 = vpop.f32.mrb[0].mxu0
        %v1433 = vadd.f32 0.0, %v1432
        %v1434 = vpop.f32.mrb[0].mxu0
        %1435 = vdwg.mxu0
        %v1436 = vmul.f32 %v1433, 0.5
        %v1437 = vmul.f32 %v1433, 0.044715
        %v1438 = vmul.f32 %v1437, %v1433
        %v1439 = vmul.f32 %v1438, %v1433
        %v1440 = vadd.f32 %v1433, %v1439
        %v1441 = vmul.f32 %v1440, 0.7978846
        %v1442 = vtanh.pop %v1441
        %v1443 = vadd.f32 %v1442, 1.0
        %v1444 = vmul.f32 %v1436, %v1443
        %1446 = vrot.lane.b32.xlu0 %v1433, 64
        %v1447 = vpop.permute.xlu0 %1446
        %v1449 = vmul.f32 %v1444, %v1447
        %v1450 = vld [vmem:[%s7] sm:$0xff]
        %v1451 = vld [vmem:[%s7 + $0x8] sm:$0xff]
        %v1452 = vld [vmem:[%s7 + $0x10] sm:$0xff]
        %v1453 = vld [vmem:[%s7 + $0x18] sm:$0xff]
        %v1454 = vld [vmem:[%s7 + $0x20] sm:$0xff]
        %v1455 = vld [vmem:[%s7 + $0x28] sm:$0xff]
        %v1456 = vld [vmem:[%s7 + $0x30] sm:$0xff]
        %v1457 = vld [vmem:[%s7 + $0x38] sm:$0xff]
        %vm1458 = vcmask 523264
        %v1460 = vsel %vm1458, %v1449, 0
        %1462 = vmatprep.subr.mxu0 0.0
        %1463 = vmatpush1.msra.mxu0 %v1450
        %1464 = vmatprep.subr.mxu0 0.0
        %1465 = vmatpush1.msra.mxu0 %v1451
        %1466 = vmatprep.subr.mxu0 0.0
        %1467 = vmatpush1.msra.mxu0 %v1452
        %1468 = vmatprep.subr.mxu0 0.0
        %1469 = vmatpush1.msra.mxu0 %v1453
        %1470 = vmatprep.subr.mxu0 0.0
        %1471 = vmatpush1.msra.mxu0 %v1454
        %1472 = vmatprep.subr.mxu0 0.0
        %1473 = vmatpush1.msra.mxu0 %v1455
        %1474 = vmatprep.subr.mxu0 0.0
        %1475 = vmatpush1.msra.mxu0 %v1456
        %1476 = vmatprep.subr.mxu0 0.0
        %1477 = vmatpush1.msra.mxu0 %v1457
        %1478 = vmatprep.subr.mxu0 0.0
        %1479 = vmatpush1.msra.mxu0 0.0
        %1480 = vmatprep.subr.mxu0 0.0
        %1481 = vmatpush1.msra.mxu0 0.0
        %1482 = vmatprep.subr.mxu0 0.0
        %1483 = vmatpush1.msra.mxu0 0.0
        %1484 = vmatprep.subr.mxu0 0.0
        %1485 = vmatpush1.msra.mxu0 0.0
        %1486 = vmatprep.subr.mxu0 0.0
        %1487 = vmatpush1.msra.mxu0 0.0
        %1488 = vmatprep.subr.mxu0 0.0
        %1489 = vmatpush1.msra.mxu0 0.0
        %1490 = vmatprep.subr.mxu0 0.0
        %1491 = vmatpush1.msra.mxu0 0.0
        %1492 = vmatprep.subr.mxu0 0.0
        %1493 = vmatpush1.msra.mxu0 0.0
        %1494 = vmatprep.subr.mxu0 0.0
        %1495 = vmatpush1.msra.mxu0 0.0
        %1496 = vmatprep.subr.mxu0 0.0
        %1497 = vmatpush1.msra.mxu0 0.0
        %1498 = vmatprep.subr.mxu0 0.0
        %1499 = vmatpush1.msra.mxu0 0.0
        %1500 = vmatprep.subr.mxu0 0.0
        %1501 = vmatpush1.msra.mxu0 0.0
        %1502 = vmatprep.subr.mxu0 0.0
        %1503 = vmatpush1.msra.mxu0 0.0
        %1504 = vmatprep.subr.mxu0 0.0
        %1505 = vmatpush1.msra.mxu0 0.0
        %1506 = vmatprep.subr.mxu0 0.0
        %1507 = vmatpush1.msra.mxu0 0.0
        %1508 = vmatprep.subr.mxu0 0.0
        %1509 = vmatpush1.msra.mxu0 0.0
        %1510 = vmatprep.subr.mxu0 0.0
        %1511 = vmatpush1.msra.mxu0 0.0
        %1512 = vmatprep.subr.mxu0 0.0
        %1513 = vmatpush1.msra.mxu0 0.0
        %1514 = vmatprep.subr.mxu0 0.0
        %1515 = vmatpush1.msra.mxu0 0.0
        %1516 = vmatprep.subr.mxu0 0.0
        %1517 = vmatpush1.msra.mxu0 0.0
        %1518 = vmatprep.subr.mxu0 0.0
        %1519 = vmatpush1.msra.mxu0 0.0
        %1520 = vmatprep.subr.mxu0 0.0
        %1521 = vmatpush1.msra.mxu0 0.0
        %1522 = vmatprep.subr.mxu0 0.0
        %1523 = vmatpush1.msra.mxu0 0.0
        %1524 = vmatprep.subr.mxu0 0.0
        %1525 = vmatpush1.msra.mxu0 0.0
        %1526 = vmatprep.mubr.f32.mxu0 0.0
        %1527 = vmatmul.mubr.f32.gmra.mrb[0].mxu0 %v1460
        %v1528 = vpop.f32.mrb[0].mxu0
        %v1529 = vadd.f32 0.0, %v1528
        %v1530 = vpop.f32.mrb[0].mxu0
        %1531 = vdwg.mxu0
        %v1532 = vadd.f32 %v1341, %v1529
        %s1533 = scalar_lea.vmem %s2, 1
        %v1534 = vld [vmem:[%s1533] sm:$0x1]
        %v1535 = vmul.f32 %v1532, %v1532
        %v1536 = vsel %vm404, %v1535, 0.0
        %1537 = vadd.xlane.f32.xlu0 %v1536
        %v1538 = vpop.xlane.xlu0 %1537
        %v1539 = vmul.f32 %v1538, %v408
        %v1540 = vadd.f32 %v1539, 1e-06
        %v1541 = vrsqrt.pop %v1540
        %v1542 = vmul.f32 %v1532, %v1541
        %v1543 = vadd.f32 %v1534, 1.0
        %v1545 = vlaneseq
        %v1546 = vshrl.u32 %v1545, 7
        %v1547 = vsub.s32 0, %v1546
        %v1548 = vrot.slane %v1543, %v1547
        %v1550 = vmul.f32 %v1542, %v1548
        %s1551 = scalar_lea.vmem %s3, 32
        %v1552 = vld [vmem:[%s1551] sm:$0xff]
        %v1553 = vld [vmem:[%s1551 + $0x8] sm:$0xff]
        %v1554 = vld [vmem:[%s1551 + $0x10] sm:$0xff]
        %v1555 = vld [vmem:[%s1551 + $0x18] sm:$0xff]
        %v1557 = vsel %vm404, %v1550, 0
        %1559 = vmatprep.subr.mxu0 0.0
        %1560 = vmatpush1.msra.mxu0 %v1552
        %1561 = vmatprep.subr.mxu0 0.0
        %1562 = vmatpush1.msra.mxu0 %v1553
        %1563 = vmatprep.subr.mxu0 0.0
        %1564 = vmatpush1.msra.mxu0 %v1554
        %1565 = vmatprep.subr.mxu0 0.0
        %1566 = vmatpush1.msra.mxu0 %v1555
        %1567 = vmatprep.subr.mxu0 0.0
        %1568 = vmatpush1.msra.mxu0 0.0
        %1569 = vmatprep.subr.mxu0 0.0
        %1570 = vmatpush1.msra.mxu0 0.0
        %1571 = vmatprep.subr.mxu0 0.0
        %1572 = vmatpush1.msra.mxu0 0.0
        %1573 = vmatprep.subr.mxu0 0.0
        %1574 = vmatpush1.msra.mxu0 0.0
        %1575 = vmatprep.subr.mxu0 0.0
        %1576 = vmatpush1.msra.mxu0 0.0
        %1577 = vmatprep.subr.mxu0 0.0
        %1578 = vmatpush1.msra.mxu0 0.0
        %1579 = vmatprep.subr.mxu0 0.0
        %1580 = vmatpush1.msra.mxu0 0.0
        %1581 = vmatprep.subr.mxu0 0.0
        %1582 = vmatpush1.msra.mxu0 0.0
        %1583 = vmatprep.subr.mxu0 0.0
        %1584 = vmatpush1.msra.mxu0 0.0
        %1585 = vmatprep.subr.mxu0 0.0
        %1586 = vmatpush1.msra.mxu0 0.0
        %1587 = vmatprep.subr.mxu0 0.0
        %1588 = vmatpush1.msra.mxu0 0.0
        %1589 = vmatprep.subr.mxu0 0.0
        %1590 = vmatpush1.msra.mxu0 0.0
        %1591 = vmatprep.subr.mxu0 0.0
        %1592 = vmatpush1.msra.mxu0 0.0
        %1593 = vmatprep.subr.mxu0 0.0
        %1594 = vmatpush1.msra.mxu0 0.0
        %1595 = vmatprep.subr.mxu0 0.0
        %1596 = vmatpush1.msra.mxu0 0.0
        %1597 = vmatprep.subr.mxu0 0.0
        %1598 = vmatpush1.msra.mxu0 0.0
        %1599 = vmatprep.subr.mxu0 0.0
        %1600 = vmatpush1.msra.mxu0 0.0
        %1601 = vmatprep.subr.mxu0 0.0
        %1602 = vmatpush1.msra.mxu0 0.0
        %1603 = vmatprep.subr.mxu0 0.0
        %1604 = vmatpush1.msra.mxu0 0.0
        %1605 = vmatprep.subr.mxu0 0.0
        %1606 = vmatpush1.msra.mxu0 0.0
        %1607 = vmatprep.subr.mxu0 0.0
        %1608 = vmatpush1.msra.mxu0 0.0
        %1609 = vmatprep.subr.mxu0 0.0
        %1610 = vmatpush1.msra.mxu0 0.0
        %1611 = vmatprep.subr.mxu0 0.0
        %1612 = vmatpush1.msra.mxu0 0.0
        %1613 = vmatprep.subr.mxu0 0.0
        %1614 = vmatpush1.msra.mxu0 0.0
        %1615 = vmatprep.subr.mxu0 0.0
        %1616 = vmatpush1.msra.mxu0 0.0
        %1617 = vmatprep.subr.mxu0 0.0
        %1618 = vmatpush1.msra.mxu0 0.0
        %1619 = vmatprep.subr.mxu0 0.0
        %1620 = vmatpush1.msra.mxu0 0.0
        %1621 = vmatprep.subr.mxu0 0.0
        %1622 = vmatpush1.msra.mxu0 0.0
        %1623 = vmatprep.mubr.f32.mxu0 0.0
        %1624 = vmatmul.mubr.f32.gmra.mrb[0].mxu0 %v1557
        %v1625 = vpop.f32.mrb[0].mxu0
        %v1626 = vadd.f32 0.0, %v1625
        %v1627 = vpop.f32.mrb[0].mxu0
        %1628 = vdwg.mxu0
        %v1629 = vmul.f32 %v1626, %v500
        %1631 = vrot.lane.b32.xlu0 %v1626, 96
        %v1632 = vpop.permute.xlu0 %1631
        %1634 = vrot.lane.b32.xlu0 %v1626, 100
        %v1635 = vpop.permute.xlu0 %1634
        %v1637 = vsel %vm510, %v1632, %v1635
        %v1638 = vmul.f32 %v1637, %v513
        %1640 = vrot.lane.b32.xlu0 %v1638, 32
        %v1641 = vpop.permute.xlu0 %1640
        %v1643 = vadd.f32 %v1629, %v1641
        %v1644 = vmul.f32 %v1626, %v522
        %1645 = vrot.lane.b32.xlu0 %v1626, 88
        %v1646 = vpop.permute.xlu0 %1645
        %1648 = vrot.lane.b32.xlu0 %v1626, 92
        %v1649 = vpop.permute.xlu0 %1648
        %v1651 = vsel %vm510, %v1646, %v1649
        %v1652 = vmul.f32 %v1651, %v513
        %1654 = vrot.lane.b32.xlu0 %v1652, 40
        %v1655 = vpop.permute.xlu0 %1654
        %v1657 = vadd.f32 %v1644, %v1655
        %v1658 = vmul.f32 %v1626, %v401
        %1659 = vrot.lane.b32.xlu0 %v1626, 4
        %v1660 = vpop.permute.xlu0 %1659
        %v1662 = vsel %vm510, %v1626, %v1660
        %v1663 = vmul.f32 %v1662, %v513
        %v1664 = vadd.f32 %v1658, %v1663
        %1666 = vrot.lane.b32.xlu0 %v1643, 96
        %v1667 = vpop.permute.xlu0 %1666
        %v1669 = vsel %vm548, %v1664, 0
        %v1671 = vsel %vm548, %v1667, 0
        %1673 = vmatprep.subr.mxu0 0.0
        %1674 = vmatpush1.xpose.msra.mxu0 %v1671
        %1675 = vmatprep.subr.mxu0 0.0
        %1676 = vmatpush1.xpose.msra.mxu0 0.0
        %1677 = vmatprep.subr.mxu0 0.0
        %1678 = vmatpush1.xpose.msra.mxu0 0.0
        %1679 = vmatprep.subr.mxu0 0.0
        %1680 = vmatpush1.xpose.msra.mxu0 0.0
        %1681 = vmatprep.subr.mxu0 0.0
        %1682 = vmatpush1.xpose.msra.mxu0 0.0
        %1683 = vmatprep.subr.mxu0 0.0
        %1684 = vmatpush1.xpose.msra.mxu0 0.0
        %1685 = vmatprep.subr.mxu0 0.0
        %1686 = vmatpush1.xpose.msra.mxu0 0.0
        %1687 = vmatprep.subr.mxu0 0.0
        %1688 = vmatpush1.xpose.msra.mxu0 0.0
        %1689 = vmatprep.subr.mxu0 0.0
        %1690 = vmatpush1.xpose.msra.mxu0 0.0
        %1691 = vmatprep.subr.mxu0 0.0
        %1692 = vmatpush1.xpose.msra.mxu0 0.0
        %1693 = vmatprep.subr.mxu0 0.0
        %1694 = vmatpush1.xpose.msra.mxu0 0.0
        %1695 = vmatprep.subr.mxu0 0.0
        %1696 = vmatpush1.xpose.msra.mxu0 0.0
        %1697 = vmatprep.subr.mxu0 0.0
        %1698 = vmatpush1.xpose.msra.mxu0 0.0
        %1699 = vmatprep.subr.mxu0 0.0
        %1700 = vmatpush1.xpose.msra.mxu0 0.0
        %1701 = vmatprep.subr.mxu0 0.0
        %1702 = vmatpush1.xpose.msra.mxu0 0.0
        %1703 = vmatprep.subr.mxu0 0.0
        %1704 = vmatpush1.xpose.msra.mxu0 0.0
        %1705 = vmatprep.subr.mxu0 0.0
        %1706 = vmatpush1.xpose.msra.mxu0 0.0
        %1707 = vmatprep.subr.mxu0 0.0
        %1708 = vmatpush1.xpose.msra.mxu0 0.0
        %1709 = vmatprep.subr.mxu0 0.0
        %1710 = vmatpush1.xpose.msra.mxu0 0.0
        %1711 = vmatprep.subr.mxu0 0.0
        %1712 = vmatpush1.xpose.msra.mxu0 0.0
        %1713 = vmatprep.subr.mxu0 0.0
        %1714 = vmatpush1.xpose.msra.mxu0 0.0
        %1715 = vmatprep.subr.mxu0 0.0
        %1716 = vmatpush1.xpose.msra.mxu0 0.0
        %1717 = vmatprep.subr.mxu0 0.0
        %1718 = vmatpush1.xpose.msra.mxu0 0.0
        %1719 = vmatprep.subr.mxu0 0.0
        %1720 = vmatpush1.xpose.msra.mxu0 0.0
        %1721 = vmatprep.subr.mxu0 0.0
        %1722 = vmatpush1.xpose.msra.mxu0 0.0
        %1723 = vmatprep.subr.mxu0 0.0
        %1724 = vmatpush1.xpose.msra.mxu0 0.0
        %1725 = vmatprep.subr.mxu0 0.0
        %1726 = vmatpush1.xpose.msra.mxu0 0.0
        %1727 = vmatprep.subr.mxu0 0.0
        %1728 = vmatpush1.xpose.msra.mxu0 0.0
        %1729 = vmatprep.subr.mxu0 0.0
        %1730 = vmatpush1.xpose.msra.mxu0 0.0
        %1731 = vmatprep.subr.mxu0 0.0
        %1732 = vmatpush1.xpose.msra.mxu0 0.0
        %1733 = vmatprep.subr.mxu0 0.0
        %1734 = vmatpush1.xpose.msra.mxu0 0.0
        %1735 = vmatprep.subr.mxu0 0.0
        %1736 = vmatpush1.xpose.msra.mxu0 0.0
        %1737 = vmatprep.mubr.f32.mxu0 0.0
        %1738 = vmatmul.mubr.f32.gmra.mrb[0].mxu0 %v1669
        %v1739 = vpop.f32.mrb[0].mxu0
        %v1740 = vadd.f32 0.0, %v1739
        %v1741 = vpop.f32.mrb[0].mxu0
        %1742 = vdwg.mxu0
        %v1743 = vsel %vm548, %v1740, -inf
        %1744 = vmax.xlane.f32.xlu0 %v1743
        %v1745 = vpop.xlane.xlu0 %1744
        %v1746 = vsub.f32 %v1740, %v1745
        %v1747 = vmul.f32 %v1746, 1.442695
        %v1748 = vpow.pop %v1747
        %v1749 = vsel %vm548, %v1748, 0.0
        %1750 = vadd.xlane.f32.xlu0 %v1749
        %v1751 = vpop.xlane.xlu0 %1750
        %v1752 = vrcp.pop %v1751
        %v1753 = vmul.f32 %v1748, %v1752
        %1754 = vrot.lane.b32.xlu0 %v1626, 80
        %v1755 = vpop.permute.xlu0 %1754
        %v1758 = vsel %vm548, %v1753, 0
        %1760 = vmatprep.subr.mxu0 0.0
        %1761 = vmatpush1.msra.mxu0 %v1755
        %1762 = vmatprep.subr.mxu0 0.0
        %1763 = vmatpush1.msra.mxu0 0.0
        %1764 = vmatprep.subr.mxu0 0.0
        %1765 = vmatpush1.msra.mxu0 0.0
        %1766 = vmatprep.subr.mxu0 0.0
        %1767 = vmatpush1.msra.mxu0 0.0
        %1768 = vmatprep.subr.mxu0 0.0
        %1769 = vmatpush1.msra.mxu0 0.0
        %1770 = vmatprep.subr.mxu0 0.0
        %1771 = vmatpush1.msra.mxu0 0.0
        %1772 = vmatprep.subr.mxu0 0.0
        %1773 = vmatpush1.msra.mxu0 0.0
        %1774 = vmatprep.subr.mxu0 0.0
        %1775 = vmatpush1.msra.mxu0 0.0
        %1776 = vmatprep.subr.mxu0 0.0
        %1777 = vmatpush1.msra.mxu0 0.0
        %1778 = vmatprep.subr.mxu0 0.0
        %1779 = vmatpush1.msra.mxu0 0.0
        %1780 = vmatprep.subr.mxu0 0.0
        %1781 = vmatpush1.msra.mxu0 0.0
        %1782 = vmatprep.subr.mxu0 0.0
        %1783 = vmatpush1.msra.mxu0 0.0
        %1784 = vmatprep.subr.mxu0 0.0
        %1785 = vmatpush1.msra.mxu0 0.0
        %1786 = vmatprep.subr.mxu0 0.0
        %1787 = vmatpush1.msra.mxu0 0.0
        %1788 = vmatprep.subr.mxu0 0.0
        %1789 = vmatpush1.msra.mxu0 0.0
        %1790 = vmatprep.subr.mxu0 0.0
        %1791 = vmatpush1.msra.mxu0 0.0
        %1792 = vmatprep.subr.mxu0 0.0
        %1793 = vmatpush1.msra.mxu0 0.0
        %1794 = vmatprep.subr.mxu0 0.0
        %1795 = vmatpush1.msra.mxu0 0.0
        %1796 = vmatprep.subr.mxu0 0.0
        %1797 = vmatpush1.msra.mxu0 0.0
        %1798 = vmatprep.subr.mxu0 0.0
        %1799 = vmatpush1.msra.mxu0 0.0
        %1800 = vmatprep.subr.mxu0 0.0
        %1801 = vmatpush1.msra.mxu0 0.0
        %1802 = vmatprep.subr.mxu0 0.0
        %1803 = vmatpush1.msra.mxu0 0.0
        %1804 = vmatprep.subr.mxu0 0.0
        %1805 = vmatpush1.msra.mxu0 0.0
        %1806 = vmatprep.subr.mxu0 0.0
        %1807 = vmatpush1.msra.mxu0 0.0
        %1808 = vmatprep.subr.mxu0 0.0
        %1809 = vmatpush1.msra.mxu0 0.0
        %1810 = vmatprep.subr.mxu0 0.0
        %1811 = vmatpush1.msra.mxu0 0.0
        %1812 = vmatprep.subr.mxu0 0.0
        %1813 = vmatpush1.msra.mxu0 0.0
        %1814 = vmatprep.subr.mxu0 0.0
        %1815 = vmatpush1.msra.mxu0 0.0
        %1816 = vmatprep.subr.mxu0 0.0
        %1817 = vmatpush1.msra.mxu0 0.0
        %1818 = vmatprep.subr.mxu0 0.0
        %1819 = vmatpush1.msra.mxu0 0.0
        %1820 = vmatprep.subr.mxu0 0.0
        %1821 = vmatpush1.msra.mxu0 0.0
        %1822 = vmatprep.subr.mxu0 0.0
        %1823 = vmatpush1.msra.mxu0 0.0
        %1824 = vmatprep.mubr.f32.mxu0 0.0
        %1825 = vmatmul.mubr.f32.gmra.mrb[0].mxu0 %v1758
        %v1826 = vpop.f32.mrb[0].mxu0
        %v1827 = vadd.f32 0.0, %v1826
        %v1828 = vpop.f32.mrb[0].mxu0
        %1829 = vdwg.mxu0
        %v1830 = vmul.f32 %v1626, %v712
        %1831 = vrot.lane.b32.xlu0 %v1626, 120
        %v1832 = vpop.permute.xlu0 %1831
        %1834 = vrot.lane.b32.xlu0 %v1626, 124
        %v1835 = vpop.permute.xlu0 %1834
        %v1837 = vsel %vm510, %v1832, %v1835
        %v1838 = vmul.f32 %v1837, %v513
        %1840 = vrot.lane.b32.xlu0 %v1838, 8
        %v1841 = vpop.permute.xlu0 %1840
        %v1843 = vadd.f32 %v1830, %v1841
        %1845 = vrot.lane.b32.xlu0 %v1843, 120
        %v1846 = vpop.permute.xlu0 %1845
        %v1847 = vsel %vm548, %v1846, 0
        %1849 = vmatprep.subr.mxu0 0.0
        %1850 = vmatpush1.xpose.msra.mxu0 %v1671
        %1851 = vmatprep.subr.mxu0 0.0
        %1852 = vmatpush1.xpose.msra.mxu0 0.0
        %1853 = vmatprep.subr.mxu0 0.0
        %1854 = vmatpush1.xpose.msra.mxu0 0.0
        %1855 = vmatprep.subr.mxu0 0.0
        %1856 = vmatpush1.xpose.msra.mxu0 0.0
        %1857 = vmatprep.subr.mxu0 0.0
        %1858 = vmatpush1.xpose.msra.mxu0 0.0
        %1859 = vmatprep.subr.mxu0 0.0
        %1860 = vmatpush1.xpose.msra.mxu0 0.0
        %1861 = vmatprep.subr.mxu0 0.0
        %1862 = vmatpush1.xpose.msra.mxu0 0.0
        %1863 = vmatprep.subr.mxu0 0.0
        %1864 = vmatpush1.xpose.msra.mxu0 0.0
        %1865 = vmatprep.subr.mxu0 0.0
        %1866 = vmatpush1.xpose.msra.mxu0 0.0
        %1867 = vmatprep.subr.mxu0 0.0
        %1868 = vmatpush1.xpose.msra.mxu0 0.0
        %1869 = vmatprep.subr.mxu0 0.0
        %1870 = vmatpush1.xpose.msra.mxu0 0.0
        %1871 = vmatprep.subr.mxu0 0.0
        %1872 = vmatpush1.xpose.msra.mxu0 0.0
        %1873 = vmatprep.subr.mxu0 0.0
        %1874 = vmatpush1.xpose.msra.mxu0 0.0
        %1875 = vmatprep.subr.mxu0 0.0
        %1876 = vmatpush1.xpose.msra.mxu0 0.0
        %1877 = vmatprep.subr.mxu0 0.0
        %1878 = vmatpush1.xpose.msra.mxu0 0.0
        %1879 = vmatprep.subr.mxu0 0.0
        %1880 = vmatpush1.xpose.msra.mxu0 0.0
        %1881 = vmatprep.subr.mxu0 0.0
        %1882 = vmatpush1.xpose.msra.mxu0 0.0
        %1883 = vmatprep.subr.mxu0 0.0
        %1884 = vmatpush1.xpose.msra.mxu0 0.0
        %1885 = vmatprep.subr.mxu0 0.0
        %1886 = vmatpush1.xpose.msra.mxu0 0.0
        %1887 = vmatprep.subr.mxu0 0.0
        %1888 = vmatpush1.xpose.msra.mxu0 0.0
        %1889 = vmatprep.subr.mxu0 0.0
        %1890 = vmatpush1.xpose.msra.mxu0 0.0
        %1891 = vmatprep.subr.mxu0 0.0
        %1892 = vmatpush1.xpose.msra.mxu0 0.0
        %1893 = vmatprep.subr.mxu0 0.0
        %1894 = vmatpush1.xpose.msra.mxu0 0.0
        %1895 = vmatprep.subr.mxu0 0.0
        %1896 = vmatpush1.xpose.msra.mxu0 0.0
        %1897 = vmatprep.subr.mxu0 0.0
        %1898 = vmatpush1.xpose.msra.mxu0 0.0
        %1899 = vmatprep.subr.mxu0 0.0
        %1900 = vmatpush1.xpose.msra.mxu0 0.0
        %1901 = vmatprep.subr.mxu0 0.0
        %1902 = vmatpush1.xpose.msra.mxu0 0.0
        %1903 = vmatprep.subr.mxu0 0.0
        %1904 = vmatpush1.xpose.msra.mxu0 0.0
        %1905 = vmatprep.subr.mxu0 0.0
        %1906 = vmatpush1.xpose.msra.mxu0 0.0
        %1907 = vmatprep.subr.mxu0 0.0
        %1908 = vmatpush1.xpose.msra.mxu0 0.0
        %1909 = vmatprep.subr.mxu0 0.0
        %1910 = vmatpush1.xpose.msra.mxu0 0.0
        %1911 = vmatprep.subr.mxu0 0.0
        %1912 = vmatpush1.xpose.msra.mxu0 0.0
        %1913 = vmatprep.mubr.f32.mxu0 0.0
        %1914 = vmatmul.mubr.f32.gmra.mrb[0].mxu0 %v1847
        %v1915 = vpop.f32.mrb[0].mxu0
        %v1916 = vadd.f32 0.0, %v1915
        %v1917 = vpop.f32.mrb[0].mxu0
        %1918 = vdwg.mxu0
        %v1919 = vsel %vm548, %v1916, -inf
        %1920 = vmax.xlane.f32.xlu0 %v1919
        %v1921 = vpop.xlane.xlu0 %1920
        %v1922 = vsub.f32 %v1916, %v1921
        %v1923 = vmul.f32 %v1922, 1.442695
        %v1924 = vpow.pop %v1923
        %v1925 = vsel %vm548, %v1924, 0.0
        %1926 = vadd.xlane.f32.xlu0 %v1925
        %v1927 = vpop.xlane.xlu0 %1926
        %v1928 = vrcp.pop %v1927
        %v1929 = vmul.f32 %v1924, %v1928
        %v1931 = vsel %vm548, %v1929, 0
        %1933 = vmatprep.subr.mxu0 0.0
        %1934 = vmatpush1.msra.mxu0 %v1755
        %1935 = vmatprep.subr.mxu0 0.0
        %1936 = vmatpush1.msra.mxu0 0.0
        %1937 = vmatprep.subr.mxu0 0.0
        %1938 = vmatpush1.msra.mxu0 0.0
        %1939 = vmatprep.subr.mxu0 0.0
        %1940 = vmatpush1.msra.mxu0 0.0
        %1941 = vmatprep.subr.mxu0 0.0
        %1942 = vmatpush1.msra.mxu0 0.0
        %1943 = vmatprep.subr.mxu0 0.0
        %1944 = vmatpush1.msra.mxu0 0.0
        %1945 = vmatprep.subr.mxu0 0.0
        %1946 = vmatpush1.msra.mxu0 0.0
        %1947 = vmatprep.subr.mxu0 0.0
        %1948 = vmatpush1.msra.mxu0 0.0
        %1949 = vmatprep.subr.mxu0 0.0
        %1950 = vmatpush1.msra.mxu0 0.0
        %1951 = vmatprep.subr.mxu0 0.0
        %1952 = vmatpush1.msra.mxu0 0.0
        %1953 = vmatprep.subr.mxu0 0.0
        %1954 = vmatpush1.msra.mxu0 0.0
        %1955 = vmatprep.subr.mxu0 0.0
        %1956 = vmatpush1.msra.mxu0 0.0
        %1957 = vmatprep.subr.mxu0 0.0
        %1958 = vmatpush1.msra.mxu0 0.0
        %1959 = vmatprep.subr.mxu0 0.0
        %1960 = vmatpush1.msra.mxu0 0.0
        %1961 = vmatprep.subr.mxu0 0.0
        %1962 = vmatpush1.msra.mxu0 0.0
        %1963 = vmatprep.subr.mxu0 0.0
        %1964 = vmatpush1.msra.mxu0 0.0
        %1965 = vmatprep.subr.mxu0 0.0
        %1966 = vmatpush1.msra.mxu0 0.0
        %1967 = vmatprep.subr.mxu0 0.0
        %1968 = vmatpush1.msra.mxu0 0.0
        %1969 = vmatprep.subr.mxu0 0.0
        %1970 = vmatpush1.msra.mxu0 0.0
        %1971 = vmatprep.subr.mxu0 0.0
        %1972 = vmatpush1.msra.mxu0 0.0
        %1973 = vmatprep.subr.mxu0 0.0
        %1974 = vmatpush1.msra.mxu0 0.0
        %1975 = vmatprep.subr.mxu0 0.0
        %1976 = vmatpush1.msra.mxu0 0.0
        %1977 = vmatprep.subr.mxu0 0.0
        %1978 = vmatpush1.msra.mxu0 0.0
        %1979 = vmatprep.subr.mxu0 0.0
        %1980 = vmatpush1.msra.mxu0 0.0
        %1981 = vmatprep.subr.mxu0 0.0
        %1982 = vmatpush1.msra.mxu0 0.0
        %1983 = vmatprep.subr.mxu0 0.0
        %1984 = vmatpush1.msra.mxu0 0.0
        %1985 = vmatprep.subr.mxu0 0.0
        %1986 = vmatpush1.msra.mxu0 0.0
        %1987 = vmatprep.subr.mxu0 0.0
        %1988 = vmatpush1.msra.mxu0 0.0
        %1989 = vmatprep.subr.mxu0 0.0
        %1990 = vmatpush1.msra.mxu0 0.0
        %1991 = vmatprep.subr.mxu0 0.0
        %1992 = vmatpush1.msra.mxu0 0.0
        %1993 = vmatprep.subr.mxu0 0.0
        %1994 = vmatpush1.msra.mxu0 0.0
        %1995 = vmatprep.subr.mxu0 0.0
        %1996 = vmatpush1.msra.mxu0 0.0
        %1997 = vmatprep.mubr.f32.mxu0 0.0
        %1998 = vmatmul.mubr.f32.gmra.mrb[0].mxu0 %v1931
        %v1999 = vpop.f32.mrb[0].mxu0
        %v2000 = vadd.f32 0.0, %v1999
        %v2001 = vpop.f32.mrb[0].mxu0
        %2002 = vdwg.mxu0
        %v2003 = vmul.f32 %v1626, %v888
        %2004 = vrot.lane.b32.xlu0 %v1626, 112
        %v2005 = vpop.permute.xlu0 %2004
        %2007 = vrot.lane.b32.xlu0 %v1626, 116
        %v2008 = vpop.permute.xlu0 %2007
        %v2010 = vsel %vm510, %v2005, %v2008
        %v2011 = vmul.f32 %v2010, %v513
        %2013 = vrot.lane.b32.xlu0 %v2011, 16
        %v2014 = vpop.permute.xlu0 %2013
        %v2016 = vadd.f32 %v2003, %v2014
        %2018 = vrot.lane.b32.xlu0 %v2016, 112
        %v2019 = vpop.permute.xlu0 %2018
        %2021 = vrot.lane.b32.xlu0 %v1657, 88
        %v2022 = vpop.permute.xlu0 %2021
        %v2023 = vsel %vm548, %v2019, 0
        %v2025 = vsel %vm548, %v2022, 0
        %2027 = vmatprep.subr.mxu0 0.0
        %2028 = vmatpush1.xpose.msra.mxu0 %v2025
        %2029 = vmatprep.subr.mxu0 0.0
        %2030 = vmatpush1.xpose.msra.mxu0 0.0
        %2031 = vmatprep.subr.mxu0 0.0
        %2032 = vmatpush1.xpose.msra.mxu0 0.0
        %2033 = vmatprep.subr.mxu0 0.0
        %2034 = vmatpush1.xpose.msra.mxu0 0.0
        %2035 = vmatprep.subr.mxu0 0.0
        %2036 = vmatpush1.xpose.msra.mxu0 0.0
        %2037 = vmatprep.subr.mxu0 0.0
        %2038 = vmatpush1.xpose.msra.mxu0 0.0
        %2039 = vmatprep.subr.mxu0 0.0
        %2040 = vmatpush1.xpose.msra.mxu0 0.0
        %2041 = vmatprep.subr.mxu0 0.0
        %2042 = vmatpush1.xpose.msra.mxu0 0.0
        %2043 = vmatprep.subr.mxu0 0.0
        %2044 = vmatpush1.xpose.msra.mxu0 0.0
        %2045 = vmatprep.subr.mxu0 0.0
        %2046 = vmatpush1.xpose.msra.mxu0 0.0
        %2047 = vmatprep.subr.mxu0 0.0
        %2048 = vmatpush1.xpose.msra.mxu0 0.0
        %2049 = vmatprep.subr.mxu0 0.0
        %2050 = vmatpush1.xpose.msra.mxu0 0.0
        %2051 = vmatprep.subr.mxu0 0.0
        %2052 = vmatpush1.xpose.msra.mxu0 0.0
        %2053 = vmatprep.subr.mxu0 0.0
        %2054 = vmatpush1.xpose.msra.mxu0 0.0
        %2055 = vmatprep.subr.mxu0 0.0
        %2056 = vmatpush1.xpose.msra.mxu0 0.0
        %2057 = vmatprep.subr.mxu0 0.0
        %2058 = vmatpush1.xpose.msra.mxu0 0.0
        %2059 = vmatprep.subr.mxu0 0.0
        %2060 = vmatpush1.xpose.msra.mxu0 0.0
        %2061 = vmatprep.subr.mxu0 0.0
        %2062 = vmatpush1.xpose.msra.mxu0 0.0
        %2063 = vmatprep.subr.mxu0 0.0
        %2064 = vmatpush1.xpose.msra.mxu0 0.0
        %2065 = vmatprep.subr.mxu0 0.0
        %2066 = vmatpush1.xpose.msra.mxu0 0.0
        %2067 = vmatprep.subr.mxu0 0.0
        %2068 = vmatpush1.xpose.msra.mxu0 0.0
        %2069 = vmatprep.subr.mxu0 0.0
        %2070 = vmatpush1.xpose.msra.mxu0 0.0
        %2071 = vmatprep.subr.mxu0 0.0
        %2072 = vmatpush1.xpose.msra.mxu0 0.0
        %2073 = vmatprep.subr.mxu0 0.0
        %2074 = vmatpush1.xpose.msra.mxu0 0.0
        %2075 = vmatprep.subr.mxu0 0.0
        %2076 = vmatpush1.xpose.msra.mxu0 0.0
        %2077 = vmatprep.subr.mxu0 0.0
        %2078 = vmatpush1.xpose.msra.mxu0 0.0
        %2079 = vmatprep.subr.mxu0 0.0
        %2080 = vmatpush1.xpose.msra.mxu0 0.0
        %2081 = vmatprep.subr.mxu0 0.0
        %2082 = vmatpush1.xpose.msra.mxu0 0.0
        %2083 = vmatprep.subr.mxu0 0.0
        %2084 = vmatpush1.xpose.msra.mxu0 0.0
        %2085 = vmatprep.subr.mxu0 0.0
        %2086 = vmatpush1.xpose.msra.mxu0 0.0
        %2087 = vmatprep.subr.mxu0 0.0
        %2088 = vmatpush1.xpose.msra.mxu0 0.0
        %2089 = vmatprep.subr.mxu0 0.0
        %2090 = vmatpush1.xpose.msra.mxu0 0.0
        %2091 = vmatprep.mubr.f32.mxu0 0.0
        %2092 = vmatmul.mubr.f32.gmra.mrb[0].mxu0 %v2023
        %v2093 = vpop.f32.mrb[0].mxu0
        %v2094 = vadd.f32 0.0, %v2093
        %v2095 = vpop.f32.mrb[0].mxu0
        %2096 = vdwg.mxu0
        %v2097 = vsel %vm548, %v2094, -inf
        %2098 = vmax.xlane.f32.xlu0 %v2097
        %v2099 = vpop.xlane.xlu0 %2098
        %v2100 = vsub.f32 %v2094, %v2099
        %v2101 = vmul.f32 %v2100, 1.442695
        %v2102 = vpow.pop %v2101
        %v2103 = vsel %vm548, %v2102, 0.0
        %2104 = vadd.xlane.f32.xlu0 %v2103
        %v2105 = vpop.xlane.xlu0 %2104
        %v2106 = vrcp.pop %v2105
        %v2107 = vmul.f32 %v2102, %v2106
        %2108 = vrot.lane.b32.xlu0 %v1626, 72
        %v2109 = vpop.permute.xlu0 %2108
        %v2112 = vsel %vm548, %v2107, 0
        %2114 = vmatprep.subr.mxu0 0.0
        %2115 = vmatpush1.msra.mxu0 %v2109
        %2116 = vmatprep.subr.mxu0 0.0
        %2117 = vmatpush1.msra.mxu0 0.0
        %2118 = vmatprep.subr.mxu0 0.0
        %2119 = vmatpush1.msra.mxu0 0.0
        %2120 = vmatprep.subr.mxu0 0.0
        %2121 = vmatpush1.msra.mxu0 0.0
        %2122 = vmatprep.subr.mxu0 0.0
        %2123 = vmatpush1.msra.mxu0 0.0
        %2124 = vmatprep.subr.mxu0 0.0
        %2125 = vmatpush1.msra.mxu0 0.0
        %2126 = vmatprep.subr.mxu0 0.0
        %2127 = vmatpush1.msra.mxu0 0.0
        %2128 = vmatprep.subr.mxu0 0.0
        %2129 = vmatpush1.msra.mxu0 0.0
        %2130 = vmatprep.subr.mxu0 0.0
        %2131 = vmatpush1.msra.mxu0 0.0
        %2132 = vmatprep.subr.mxu0 0.0
        %2133 = vmatpush1.msra.mxu0 0.0
        %2134 = vmatprep.subr.mxu0 0.0
        %2135 = vmatpush1.msra.mxu0 0.0
        %2136 = vmatprep.subr.mxu0 0.0
        %2137 = vmatpush1.msra.mxu0 0.0
        %2138 = vmatprep.subr.mxu0 0.0
        %2139 = vmatpush1.msra.mxu0 0.0
        %2140 = vmatprep.subr.mxu0 0.0
        %2141 = vmatpush1.msra.mxu0 0.0
        %2142 = vmatprep.subr.mxu0 0.0
        %2143 = vmatpush1.msra.mxu0 0.0
        %2144 = vmatprep.subr.mxu0 0.0
        %2145 = vmatpush1.msra.mxu0 0.0
        %2146 = vmatprep.subr.mxu0 0.0
        %2147 = vmatpush1.msra.mxu0 0.0
        %2148 = vmatprep.subr.mxu0 0.0
        %2149 = vmatpush1.msra.mxu0 0.0
        %2150 = vmatprep.subr.mxu0 0.0
        %2151 = vmatpush1.msra.mxu0 0.0
        %2152 = vmatprep.subr.mxu0 0.0
        %2153 = vmatpush1.msra.mxu0 0.0
        %2154 = vmatprep.subr.mxu0 0.0
        %2155 = vmatpush1.msra.mxu0 0.0
        %2156 = vmatprep.subr.mxu0 0.0
        %2157 = vmatpush1.msra.mxu0 0.0
        %2158 = vmatprep.subr.mxu0 0.0
        %2159 = vmatpush1.msra.mxu0 0.0
        %2160 = vmatprep.subr.mxu0 0.0
        %2161 = vmatpush1.msra.mxu0 0.0
        %2162 = vmatprep.subr.mxu0 0.0
        %2163 = vmatpush1.msra.mxu0 0.0
        %2164 = vmatprep.subr.mxu0 0.0
        %2165 = vmatpush1.msra.mxu0 0.0
        %2166 = vmatprep.subr.mxu0 0.0
        %2167 = vmatpush1.msra.mxu0 0.0
        %2168 = vmatprep.subr.mxu0 0.0
        %2169 = vmatpush1.msra.mxu0 0.0
        %2170 = vmatprep.subr.mxu0 0.0
        %2171 = vmatpush1.msra.mxu0 0.0
        %2172 = vmatprep.subr.mxu0 0.0
        %2173 = vmatpush1.msra.mxu0 0.0
        %2174 = vmatprep.subr.mxu0 0.0
        %2175 = vmatpush1.msra.mxu0 0.0
        %2176 = vmatprep.subr.mxu0 0.0
        %2177 = vmatpush1.msra.mxu0 0.0
        %2178 = vmatprep.mubr.f32.mxu0 0.0
        %2179 = vmatmul.mubr.f32.gmra.mrb[0].mxu0 %v2112
        %v2180 = vpop.f32.mrb[0].mxu0
        %v2181 = vadd.f32 0.0, %v2180
        %v2182 = vpop.f32.mrb[0].mxu0
        %2183 = vdwg.mxu0
        %v2184 = vmul.f32 %v1626, %v1072
        %2185 = vrot.lane.b32.xlu0 %v1626, 104
        %v2186 = vpop.permute.xlu0 %2185
        %2188 = vrot.lane.b32.xlu0 %v1626, 108
        %v2189 = vpop.permute.xlu0 %2188
        %v2191 = vsel %vm510, %v2186, %v2189
        %v2192 = vmul.f32 %v2191, %v513
        %2194 = vrot.lane.b32.xlu0 %v2192, 24
        %v2195 = vpop.permute.xlu0 %2194
        %v2197 = vadd.f32 %v2184, %v2195
        %2199 = vrot.lane.b32.xlu0 %v2197, 104
        %v2200 = vpop.permute.xlu0 %2199
        %v2201 = vsel %vm548, %v2200, 0
        %2203 = vmatprep.subr.mxu0 0.0
        %2204 = vmatpush1.xpose.msra.mxu0 %v2025
        %2205 = vmatprep.subr.mxu0 0.0
        %2206 = vmatpush1.xpose.msra.mxu0 0.0
        %2207 = vmatprep.subr.mxu0 0.0
        %2208 = vmatpush1.xpose.msra.mxu0 0.0
        %2209 = vmatprep.subr.mxu0 0.0
        %2210 = vmatpush1.xpose.msra.mxu0 0.0
        %2211 = vmatprep.subr.mxu0 0.0
        %2212 = vmatpush1.xpose.msra.mxu0 0.0
        %2213 = vmatprep.subr.mxu0 0.0
        %2214 = vmatpush1.xpose.msra.mxu0 0.0
        %2215 = vmatprep.subr.mxu0 0.0
        %2216 = vmatpush1.xpose.msra.mxu0 0.0
        %2217 = vmatprep.subr.mxu0 0.0
        %2218 = vmatpush1.xpose.msra.mxu0 0.0
        %2219 = vmatprep.subr.mxu0 0.0
        %2220 = vmatpush1.xpose.msra.mxu0 0.0
        %2221 = vmatprep.subr.mxu0 0.0
        %2222 = vmatpush1.xpose.msra.mxu0 0.0
        %2223 = vmatprep.subr.mxu0 0.0
        %2224 = vmatpush1.xpose.msra.mxu0 0.0
        %2225 = vmatprep.subr.mxu0 0.0
        %2226 = vmatpush1.xpose.msra.mxu0 0.0
        %2227 = vmatprep.subr.mxu0 0.0
        %2228 = vmatpush1.xpose.msra.mxu0 0.0
        %2229 = vmatprep.subr.mxu0 0.0
        %2230 = vmatpush1.xpose.msra.mxu0 0.0
        %2231 = vmatprep.subr.mxu0 0.0
        %2232 = vmatpush1.xpose.msra.mxu0 0.0
        %2233 = vmatprep.subr.mxu0 0.0
        %2234 = vmatpush1.xpose.msra.mxu0 0.0
        %2235 = vmatprep.subr.mxu0 0.0
        %2236 = vmatpush1.xpose.msra.mxu0 0.0
        %2237 = vmatprep.subr.mxu0 0.0
        %2238 = vmatpush1.xpose.msra.mxu0 0.0
        %2239 = vmatprep.subr.mxu0 0.0
        %2240 = vmatpush1.xpose.msra.mxu0 0.0
        %2241 = vmatprep.subr.mxu0 0.0
        %2242 = vmatpush1.xpose.msra.mxu0 0.0
        %2243 = vmatprep.subr.mxu0 0.0
        %2244 = vmatpush1.xpose.msra.mxu0 0.0
        %2245 = vmatprep.subr.mxu0 0.0
        %2246 = vmatpush1.xpose.msra.mxu0 0.0
        %2247 = vmatprep.subr.mxu0 0.0
        %2248 = vmatpush1.xpose.msra.mxu0 0.0
        %2249 = vmatprep.subr.mxu0 0.0
        %2250 = vmatpush1.xpose.msra.mxu0 0.0
        %2251 = vmatprep.subr.mxu0 0.0
        %2252 = vmatpush1.xpose.msra.mxu0 0.0
        %2253 = vmatprep.subr.mxu0 0.0
        %2254 = vmatpush1.xpose.msra.mxu0 0.0
        %2255 = vmatprep.subr.mxu0 0.0
        %2256 = vmatpush1.xpose.msra.mxu0 0.0
        %2257 = vmatprep.subr.mxu0 0.0
        %2258 = vmatpush1.xpose.msra.mxu0 0.0
        %2259 = vmatprep.subr.mxu0 0.0
        %2260 = vmatpush1.xpose.msra.mxu0 0.0
        %2261 = vmatprep.subr.mxu0 0.0
        %2262 = vmatpush1.xpose.msra.mxu0 0.0
        %2263 = vmatprep.subr.mxu0 0.0
        %2264 = vmatpush1.xpose.msra.mxu0 0.0
        %2265 = vmatprep.subr.mxu0 0.0
        %2266 = vmatpush1.xpose.msra.mxu0 0.0
        %2267 = vmatprep.mubr.f32.mxu0 0.0
        %2268 = vmatmul.mubr.f32.gmra.mrb[0].mxu0 %v2201
        %v2269 = vpop.f32.mrb[0].mxu0
        %v2270 = vadd.f32 0.0, %v2269
        %v2271 = vpop.f32.mrb[0].mxu0
        %2272 = vdwg.mxu0
        %v2273 = vsel %vm548, %v2270, -inf
        %2274 = vmax.xlane.f32.xlu0 %v2273
        %v2275 = vpop.xlane.xlu0 %2274
        %v2276 = vsub.f32 %v2270, %v2275
        %v2277 = vmul.f32 %v2276, 1.442695
        %v2278 = vpow.pop %v2277
        %v2279 = vsel %vm548, %v2278, 0.0
        %2280 = vadd.xlane.f32.xlu0 %v2279
        %v2281 = vpop.xlane.xlu0 %2280
        %v2282 = vrcp.pop %v2281
        %v2283 = vmul.f32 %v2278, %v2282
        %v2285 = vsel %vm548, %v2283, 0
        %2287 = vmatprep.subr.mxu0 0.0
        %2288 = vmatpush1.msra.mxu0 %v2109
        %2289 = vmatprep.subr.mxu0 0.0
        %2290 = vmatpush1.msra.mxu0 0.0
        %2291 = vmatprep.subr.mxu0 0.0
        %2292 = vmatpush1.msra.mxu0 0.0
        %2293 = vmatprep.subr.mxu0 0.0
        %2294 = vmatpush1.msra.mxu0 0.0
        %2295 = vmatprep.subr.mxu0 0.0
        %2296 = vmatpush1.msra.mxu0 0.0
        %2297 = vmatprep.subr.mxu0 0.0
        %2298 = vmatpush1.msra.mxu0 0.0
        %2299 = vmatprep.subr.mxu0 0.0
        %2300 = vmatpush1.msra.mxu0 0.0
        %2301 = vmatprep.subr.mxu0 0.0
        %2302 = vmatpush1.msra.mxu0 0.0
        %2303 = vmatprep.subr.mxu0 0.0
        %2304 = vmatpush1.msra.mxu0 0.0
        %2305 = vmatprep.subr.mxu0 0.0
        %2306 = vmatpush1.msra.mxu0 0.0
        %2307 = vmatprep.subr.mxu0 0.0
        %2308 = vmatpush1.msra.mxu0 0.0
        %2309 = vmatprep.subr.mxu0 0.0
        %2310 = vmatpush1.msra.mxu0 0.0
        %2311 = vmatprep.subr.mxu0 0.0
        %2312 = vmatpush1.msra.mxu0 0.0
        %2313 = vmatprep.subr.mxu0 0.0
        %2314 = vmatpush1.msra.mxu0 0.0
        %2315 = vmatprep.subr.mxu0 0.0
        %2316 = vmatpush1.msra.mxu0 0.0
        %2317 = vmatprep.subr.mxu0 0.0
        %2318 = vmatpush1.msra.mxu0 0.0
        %2319 = vmatprep.subr.mxu0 0.0
        %2320 = vmatpush1.msra.mxu0 0.0
        %2321 = vmatprep.subr.mxu0 0.0
        %2322 = vmatpush1.msra.mxu0 0.0
        %2323 = vmatprep.subr.mxu0 0.0
        %2324 = vmatpush1.msra.mxu0 0.0
        %2325 = vmatprep.subr.mxu0 0.0
        %2326 = vmatpush1.msra.mxu0 0.0
        %2327 = vmatprep.subr.mxu0 0.0
        %2328 = vmatpush1.msra.mxu0 0.0
        %2329 = vmatprep.subr.mxu0 0.0
        %2330 = vmatpush1.msra.mxu0 0.0
        %2331 = vmatprep.subr.mxu0 0.0
        %2332 = vmatpush1.msra.mxu0 0.0
        %2333 = vmatprep.subr.mxu0 0.0
        %2334 = vmatpush1.msra.mxu0 0.0
        %2335 = vmatprep.subr.mxu0 0.0
        %2336 = vmatpush1.msra.mxu0 0.0
        %2337 = vmatprep.subr.mxu0 0.0
        %2338 = vmatpush1.msra.mxu0 0.0
        %2339 = vmatprep.subr.mxu0 0.0
        %2340 = vmatpush1.msra.mxu0 0.0
        %2341 = vmatprep.subr.mxu0 0.0
        %2342 = vmatpush1.msra.mxu0 0.0
        %2343 = vmatprep.subr.mxu0 0.0
        %2344 = vmatpush1.msra.mxu0 0.0
        %2345 = vmatprep.subr.mxu0 0.0
        %2346 = vmatpush1.msra.mxu0 0.0
        %2347 = vmatprep.subr.mxu0 0.0
        %2348 = vmatpush1.msra.mxu0 0.0
        %2349 = vmatprep.subr.mxu0 0.0
        %2350 = vmatpush1.msra.mxu0 0.0
        %2351 = vmatprep.mubr.f32.mxu0 0.0
        %2352 = vmatmul.mubr.f32.gmra.mrb[0].mxu0 %v2285
        %v2353 = vpop.f32.mrb[0].mxu0
        %v2354 = vadd.f32 0.0, %v2353
        %v2355 = vpop.f32.mrb[0].mxu0
        %2356 = vdwg.mxu0
        %2358 = vrot.lane.b32.xlu0 %v2000, 8
        %v2359 = vpop.permute.xlu0 %2358
        %2362 = vrot.lane.b32.xlu0 %v2181, 16
        %v2363 = vpop.permute.xlu0 %2362
        %2366 = vrot.lane.b32.xlu0 %v2354, 24
        %v2367 = vpop.permute.xlu0 %2366
        %v2369 = vsel %vm548, %v1827, %v2359
        %v2370 = vsel %vm1260, %v2369, %v2363
        %v2371 = vsel %vm1262, %v2370, %v2367
        %s2372 = scalar_lea.vmem %s4, 32
        %v2373 = vld [vmem:[%s2372] sm:$0xff]
        %v2374 = vld [vmem:[%s2372 + $0x8] sm:$0xff]
        %v2375 = vld [vmem:[%s2372 + $0x10] sm:$0xff]
        %v2376 = vld [vmem:[%s2372 + $0x18] sm:$0xff]
        %v2378 = vsel %vm404, %v2371, 0
        %2380 = vmatprep.subr.mxu0 0.0
        %2381 = vmatpush1.msra.mxu0 %v2373
        %2382 = vmatprep.subr.mxu0 0.0
        %2383 = vmatpush1.msra.mxu0 %v2374
        %2384 = vmatprep.subr.mxu0 0.0
        %2385 = vmatpush1.msra.mxu0 %v2375
        %2386 = vmatprep.subr.mxu0 0.0
        %2387 = vmatpush1.msra.mxu0 %v2376
        %2388 = vmatprep.subr.mxu0 0.0
        %2389 = vmatpush1.msra.mxu0 0.0
        %2390 = vmatprep.subr.mxu0 0.0
        %2391 = vmatpush1.msra.mxu0 0.0
        %2392 = vmatprep.subr.mxu0 0.0
        %2393 = vmatpush1.msra.mxu0 0.0
        %2394 = vmatprep.subr.mxu0 0.0
        %2395 = vmatpush1.msra.mxu0 0.0
        %2396 = vmatprep.subr.mxu0 0.0
        %2397 = vmatpush1.msra.mxu0 0.0
        %2398 = vmatprep.subr.mxu0 0.0
        %2399 = vmatpush1.msra.mxu0 0.0
        %2400 = vmatprep.subr.mxu0 0.0
        %2401 = vmatpush1.msra.mxu0 0.0
        %2402 = vmatprep.subr.mxu0 0.0
        %2403 = vmatpush1.msra.mxu0 0.0
        %2404 = vmatprep.subr.mxu0 0.0
        %2405 = vmatpush1.msra.mxu0 0.0
        %2406 = vmatprep.subr.mxu0 0.0
        %2407 = vmatpush1.msra.mxu0 0.0
        %2408 = vmatprep.subr.mxu0 0.0
        %2409 = vmatpush1.msra.mxu0 0.0
        %2410 = vmatprep.subr.mxu0 0.0
        %2411 = vmatpush1.msra.mxu0 0.0
        %2412 = vmatprep.subr.mxu0 0.0
        %2413 = vmatpush1.msra.mxu0 0.0
        %2414 = vmatprep.subr.mxu0 0.0
        %2415 = vmatpush1.msra.mxu0 0.0
        %2416 = vmatprep.subr.mxu0 0.0
        %2417 = vmatpush1.msra.mxu0 0.0
        %2418 = vmatprep.subr.mxu0 0.0
        %2419 = vmatpush1.msra.mxu0 0.0
        %2420 = vmatprep.subr.mxu0 0.0
        %2421 = vmatpush1.msra.mxu0 0.0
        %2422 = vmatprep.subr.mxu0 0.0
        %2423 = vmatpush1.msra.mxu0 0.0
        %2424 = vmatprep.subr.mxu0 0.0
        %2425 = vmatpush1.msra.mxu0 0.0
        %2426 = vmatprep.subr.mxu0 0.0
        %2427 = vmatpush1.msra.mxu0 0.0
        %2428 = vmatprep.subr.mxu0 0.0
        %2429 = vmatpush1.msra.mxu0 0.0
        %2430 = vmatprep.subr.mxu0 0.0
        %2431 = vmatpush1.msra.mxu0 0.0
        %2432 = vmatprep.subr.mxu0 0.0
        %2433 = vmatpush1.msra.mxu0 0.0
        %2434 = vmatprep.subr.mxu0 0.0
        %2435 = vmatpush1.msra.mxu0 0.0
        %2436 = vmatprep.subr.mxu0 0.0
        %2437 = vmatpush1.msra.mxu0 0.0
        %2438 = vmatprep.subr.mxu0 0.0
        %2439 = vmatpush1.msra.mxu0 0.0
        %2440 = vmatprep.subr.mxu0 0.0
        %2441 = vmatpush1.msra.mxu0 0.0
        %2442 = vmatprep.subr.mxu0 0.0
        %2443 = vmatpush1.msra.mxu0 0.0
        %2444 = vmatprep.mubr.f32.mxu0 0.0
        %2445 = vmatmul.mubr.f32.gmra.mrb[0].mxu0 %v2378
        %v2446 = vpop.f32.mrb[0].mxu0
        %v2447 = vadd.f32 0.0, %v2446
        %v2448 = vpop.f32.mrb[0].mxu0
        %2449 = vdwg.mxu0
        %v2450 = vadd.f32 %v1532, %v2447
        %s2451 = scalar_lea.vmem %s5, 1
        %v2452 = vld [vmem:[%s2451] sm:$0x1]
        %v2453 = vmul.f32 %v2450, %v2450
        %v2454 = vsel %vm404, %v2453, 0.0
        %2455 = vadd.xlane.f32.xlu0 %v2454
        %v2456 = vpop.xlane.xlu0 %2455
        %v2457 = vmul.f32 %v2456, %v408
        %v2458 = vadd.f32 %v2457, 1e-06
        %v2459 = vrsqrt.pop %v2458
        %v2460 = vmul.f32 %v2450, %v2459
        %v2461 = vadd.f32 %v2452, 1.0
        %v2463 = vlaneseq
        %v2464 = vshrl.u32 %v2463, 7
        %v2465 = vsub.s32 0, %v2464
        %v2466 = vrot.slane %v2461, %v2465
        %v2468 = vmul.f32 %v2460, %v2466
        %s2469 = scalar_lea.vmem %s6, 32
        %v2470 = vld [vmem:[%s2469] sm:$0xff]
        %v2471 = vld [vmem:[%s2469 + $0x8] sm:$0xff]
        %v2472 = vld [vmem:[%s2469 + $0x10] sm:$0xff]
        %v2473 = vld [vmem:[%s2469 + $0x18] sm:$0xff]
        %v2475 = vsel %vm404, %v2468, 0
        %2477 = vmatprep.subr.mxu0 0.0
        %2478 = vmatpush1.msra.mxu0 %v2470
        %2479 = vmatprep.subr.mxu0 0.0
        %2480 = vmatpush1.msra.mxu0 %v2471
        %2481 = vmatprep.subr.mxu0 0.0
        %2482 = vmatpush1.msra.mxu0 %v2472
        %2483 = vmatprep.subr.mxu0 0.0
        %2484 = vmatpush1.msra.mxu0 %v2473
        %2485 = vmatprep.subr.mxu0 0.0
        %2486 = vmatpush1.msra.mxu0 0.0
        %2487 = vmatprep.subr.mxu0 0.0
        %2488 = vmatpush1.msra.mxu0 0.0
        %2489 = vmatprep.subr.mxu0 0.0
        %2490 = vmatpush1.msra.mxu0 0.0
        %2491 = vmatprep.subr.mxu0 0.0
        %2492 = vmatpush1.msra.mxu0 0.0
        %2493 = vmatprep.subr.mxu0 0.0
        %2494 = vmatpush1.msra.mxu0 0.0
        %2495 = vmatprep.subr.mxu0 0.0
        %2496 = vmatpush1.msra.mxu0 0.0
        %2497 = vmatprep.subr.mxu0 0.0
        %2498 = vmatpush1.msra.mxu0 0.0
        %2499 = vmatprep.subr.mxu0 0.0
        %2500 = vmatpush1.msra.mxu0 0.0
        %2501 = vmatprep.subr.mxu0 0.0
        %2502 = vmatpush1.msra.mxu0 0.0
        %2503 = vmatprep.subr.mxu0 0.0
        %2504 = vmatpush1.msra.mxu0 0.0
        %2505 = vmatprep.subr.mxu0 0.0
        %2506 = vmatpush1.msra.mxu0 0.0
        %2507 = vmatprep.subr.mxu0 0.0
        %2508 = vmatpush1.msra.mxu0 0.0
        %2509 = vmatprep.subr.mxu0 0.0
        %2510 = vmatpush1.msra.mxu0 0.0
        %2511 = vmatprep.subr.mxu0 0.0
        %2512 = vmatpush1.msra.mxu0 0.0
        %2513 = vmatprep.subr.mxu0 0.0
        %2514 = vmatpush1.msra.mxu0 0.0
        %2515 = vmatprep.subr.mxu0 0.0
        %2516 = vmatpush1.msra.mxu0 0.0
        %2517 = vmatprep.subr.mxu0 0.0
        %2518 = vmatpush1.msra.mxu0 0.0
        %2519 = vmatprep.subr.mxu0 0.0
        %2520 = vmatpush1.msra.mxu0 0.0
        %2521 = vmatprep.subr.mxu0 0.0
        %2522 = vmatpush1.msra.mxu0 0.0
        %2523 = vmatprep.subr.mxu0 0.0
        %2524 = vmatpush1.msra.mxu0 0.0
        %2525 = vmatprep.subr.mxu0 0.0
        %2526 = vmatpush1.msra.mxu0 0.0
        %2527 = vmatprep.subr.mxu0 0.0
        %2528 = vmatpush1.msra.mxu0 0.0
        %2529 = vmatprep.subr.mxu0 0.0
        %2530 = vmatpush1.msra.mxu0 0.0
        %2531 = vmatprep.subr.mxu0 0.0
        %2532 = vmatpush1.msra.mxu0 0.0
        %2533 = vmatprep.subr.mxu0 0.0
        %2534 = vmatpush1.msra.mxu0 0.0
        %2535 = vmatprep.subr.mxu0 0.0
        %2536 = vmatpush1.msra.mxu0 0.0
        %2537 = vmatprep.subr.mxu0 0.0
        %2538 = vmatpush1.msra.mxu0 0.0
        %2539 = vmatprep.subr.mxu0 0.0
        %2540 = vmatpush1.msra.mxu0 0.0
        %2541 = vmatprep.mubr.f32.mxu0 0.0
        %2542 = vmatmul.mubr.f32.gmra.mrb[0].mxu0 %v2475
        %v2543 = vpop.f32.mrb[0].mxu0
        %v2544 = vadd.f32 0.0, %v2543
        %v2545 = vpop.f32.mrb[0].mxu0
        %2546 = vdwg.mxu0
        %v2547 = vmul.f32 %v2544, 0.5
        %v2548 = vmul.f32 %v2544, 0.044715
        %v2549 = vmul.f32 %v2548, %v2544
        %v2550 = vmul.f32 %v2549, %v2544
        %v2551 = vadd.f32 %v2544, %v2550
        %v2552 = vmul.f32 %v2551, 0.7978846
        %v2553 = vtanh.pop %v2552
        %v2554 = vadd.f32 %v2553, 1.0
        %v2555 = vmul.f32 %v2547, %v2554
        %2557 = vrot.lane.b32.xlu0 %v2544, 64
        %v2558 = vpop.permute.xlu0 %2557
        %v2560 = vmul.f32 %v2555, %v2558
        %s2561 = scalar_lea.vmem %s7, 64
        %v2562 = vld [vmem:[%s2561] sm:$0xff]
        %v2563 = vld [vmem:[%s2561 + $0x8] sm:$0xff]
        %v2564 = vld [vmem:[%s2561 + $0x10] sm:$0xff]
        %v2565 = vld [vmem:[%s2561 + $0x18] sm:$0xff]
        %v2566 = vld [vmem:[%s2561 + $0x20] sm:$0xff]
        %v2567 = vld [vmem:[%s2561 + $0x28] sm:$0xff]
        %v2568 = vld [vmem:[%s2561 + $0x30] sm:$0xff]
        %v2569 = vld [vmem:[%s2561 + $0x38] sm:$0xff]
        %v2571 = vsel %vm1458, %v2560, 0
        %2573 = vmatprep.subr.mxu0 0.0
        %2574 = vmatpush1.msra.mxu0 %v2562
        %2575 = vmatprep.subr.mxu0 0.0
        %2576 = vmatpush1.msra.mxu0 %v2563
        %2577 = vmatprep.subr.mxu0 0.0
        %2578 = vmatpush1.msra.mxu0 %v2564
        %2579 = vmatprep.subr.mxu0 0.0
        %2580 = vmatpush1.msra.mxu0 %v2565
        %2581 = vmatprep.subr.mxu0 0.0
        %2582 = vmatpush1.msra.mxu0 %v2566
        %2583 = vmatprep.subr.mxu0 0.0
        %2584 = vmatpush1.msra.mxu0 %v2567
        %2585 = vmatprep.subr.mxu0 0.0
        %2586 = vmatpush1.msra.mxu0 %v2568
        %2587 = vmatprep.subr.mxu0 0.0
        %2588 = vmatpush1.msra.mxu0 %v2569
        %2589 = vmatprep.subr.mxu0 0.0
        %2590 = vmatpush1.msra.mxu0 0.0
        %2591 = vmatprep.subr.mxu0 0.0
        %2592 = vmatpush1.msra.mxu0 0.0
        %2593 = vmatprep.subr.mxu0 0.0
        %2594 = vmatpush1.msra.mxu0 0.0
        %2595 = vmatprep.subr.mxu0 0.0
        %2596 = vmatpush1.msra.mxu0 0.0
        %2597 = vmatprep.subr.mxu0 0.0
        %2598 = vmatpush1.msra.mxu0 0.0
        %2599 = vmatprep.subr.mxu0 0.0
        %2600 = vmatpush1.msra.mxu0 0.0
        %2601 = vmatprep.subr.mxu0 0.0
        %2602 = vmatpush1.msra.mxu0 0.0
        %2603 = vmatprep.subr.mxu0 0.0
        %2604 = vmatpush1.msra.mxu0 0.0
        %2605 = vmatprep.subr.mxu0 0.0
        %2606 = vmatpush1.msra.mxu0 0.0
        %2607 = vmatprep.subr.mxu0 0.0
        %2608 = vmatpush1.msra.mxu0 0.0
        %2609 = vmatprep.subr.mxu0 0.0
        %2610 = vmatpush1.msra.mxu0 0.0
        %2611 = vmatprep.subr.mxu0 0.0
        %2612 = vmatpush1.msra.mxu0 0.0
        %2613 = vmatprep.subr.mxu0 0.0
        %2614 = vmatpush1.msra.mxu0 0.0
        %2615 = vmatprep.subr.mxu0 0.0
        %2616 = vmatpush1.msra.mxu0 0.0
        %2617 = vmatprep.subr.mxu0 0.0
        %2618 = vmatpush1.msra.mxu0 0.0
        %2619 = vmatprep.subr.mxu0 0.0
        %2620 = vmatpush1.msra.mxu0 0.0
        %2621 = vmatprep.subr.mxu0 0.0
        %2622 = vmatpush1.msra.mxu0 0.0
        %2623 = vmatprep.subr.mxu0 0.0
        %2624 = vmatpush1.msra.mxu0 0.0
        %2625 = vmatprep.subr.mxu0 0.0
        %2626 = vmatpush1.msra.mxu0 0.0
        %2627 = vmatprep.subr.mxu0 0.0
        %2628 = vmatpush1.msra.mxu0 0.0
        %2629 = vmatprep.subr.mxu0 0.0
        %2630 = vmatpush1.msra.mxu0 0.0
        %2631 = vmatprep.subr.mxu0 0.0
        %2632 = vmatpush1.msra.mxu0 0.0
        %2633 = vmatprep.subr.mxu0 0.0
        %2634 = vmatpush1.msra.mxu0 0.0
        %2635 = vmatprep.subr.mxu0 0.0
        %2636 = vmatpush1.msra.mxu0 0.0
        %2637 = vmatprep.mubr.f32.mxu0 0.0
        %2638 = vmatmul.mubr.f32.gmra.mrb[0].mxu0 %v2571
        %v2639 = vpop.f32.mrb[0].mxu0
        %v2640 = vadd.f32 0.0, %v2639
        %v2641 = vpop.f32.mrb[0].mxu0
        %2642 = vdwg.mxu0
        %v2643 = vadd.f32 %v2450, %v2640
        %v2644 = vld [vmem:[%s8] sm:$0x1]
        %v2645 = vmul.f32 %v2643, %v2643
        %v2646 = vsel %vm404, %v2645, 0.0
        %2647 = vadd.xlane.f32.xlu0 %v2646
        %v2648 = vpop.xlane.xlu0 %2647
        %v2649 = vmul.f32 %v2648, %v408
        %v2650 = vadd.f32 %v2649, 1e-06
        %v2651 = vrsqrt.pop %v2650
        %v2652 = vmul.f32 %v2643, %v2651
        %v2653 = vadd.f32 %v2644, 1.0
        %v2655 = vlaneseq
        %v2656 = vshrl.u32 %v2655, 7
        %v2657 = vsub.s32 0, %v2656
        %v2658 = vrot.slane %v2653, %v2657
        %v2660 = vmul.f32 %v2652, %v2658
        %v2661 = vld [vmem:[%s9] sm:$0xff]
        %v2662 = vld [vmem:[%s9 + $0x8] sm:$0xff]
        %v2663 = vld [vmem:[%s9 + $0x10] sm:$0xff]
        %v2664 = vld [vmem:[%s9 + $0x18] sm:$0xff]
        %v2665 = vld [vmem:[%s10] sm:$0x1]
        %v2667 = vlaneseq
        %v2668 = vshrl.u32 %v2667, 7
        %v2669 = vsub.s32 0, %v2668
        %v2670 = vrot.slane %v2665, %v2669
        %v2673 = vsel %vm404, %v2660, 0
        %2675 = vmatprep.subr.mxu0 0.0
        %2676 = vmatpush1.msra.mxu0 %v2661
        %2677 = vmatprep.subr.mxu0 0.0
        %2678 = vmatpush1.msra.mxu0 %v2662
        %2679 = vmatprep.subr.mxu0 0.0
        %2680 = vmatpush1.msra.mxu0 %v2663
        %2681 = vmatprep.subr.mxu0 0.0
        %2682 = vmatpush1.msra.mxu0 %v2664
        %2683 = vmatprep.subr.mxu0 0.0
        %2684 = vmatpush1.msra.mxu0 0.0
        %2685 = vmatprep.subr.mxu0 0.0
        %2686 = vmatpush1.msra.mxu0 0.0
        %2687 = vmatprep.subr.mxu0 0.0
        %2688 = vmatpush1.msra.mxu0 0.0
        %2689 = vmatprep.subr.mxu0 0.0
        %2690 = vmatpush1.msra.mxu0 0.0
        %2691 = vmatprep.subr.mxu0 0.0
        %2692 = vmatpush1.msra.mxu0 0.0
        %2693 = vmatprep.subr.mxu0 0.0
        %2694 = vmatpush1.msra.mxu0 0.0
        %2695 = vmatprep.subr.mxu0 0.0
        %2696 = vmatpush1.msra.mxu0 0.0
        %2697 = vmatprep.subr.mxu0 0.0
        %2698 = vmatpush1.msra.mxu0 0.0
        %2699 = vmatprep.subr.mxu0 0.0
        %2700 = vmatpush1.msra.mxu0 0.0
        %2701 = vmatprep.subr.mxu0 0.0
        %2702 = vmatpush1.msra.mxu0 0.0
        %2703 = vmatprep.subr.mxu0 0.0
        %2704 = vmatpush1.msra.mxu0 0.0
        %2705 = vmatprep.subr.mxu0 0.0
        %2706 = vmatpush1.msra.mxu0 0.0
        %2707 = vmatprep.subr.mxu0 0.0
        %2708 = vmatpush1.msra.mxu0 0.0
        %2709 = vmatprep.subr.mxu0 0.0
        %2710 = vmatpush1.msra.mxu0 0.0
        %2711 = vmatprep.subr.mxu0 0.0
        %2712 = vmatpush1.msra.mxu0 0.0
        %2713 = vmatprep.subr.mxu0 0.0
        %2714 = vmatpush1.msra.mxu0 0.0
        %2715 = vmatprep.subr.mxu0 0.0
        %2716 = vmatpush1.msra.mxu0 0.0
        %2717 = vmatprep.subr.mxu0 0.0
        %2718 = vmatpush1.msra.mxu0 0.0
        %2719 = vmatprep.subr.mxu0 0.0
        %2720 = vmatpush1.msra.mxu0 0.0
        %2721 = vmatprep.subr.mxu0 0.0
        %2722 = vmatpush1.msra.mxu0 0.0
        %2723 = vmatprep.subr.mxu0 0.0
        %2724 = vmatpush1.msra.mxu0 0.0
        %2725 = vmatprep.subr.mxu0 0.0
        %2726 = vmatpush1.msra.mxu0 0.0
        %2727 = vmatprep.subr.mxu0 0.0
        %2728 = vmatpush1.msra.mxu0 0.0
        %2729 = vmatprep.subr.mxu0 0.0
        %2730 = vmatpush1.msra.mxu0 0.0
        %2731 = vmatprep.subr.mxu0 0.0
        %2732 = vmatpush1.msra.mxu0 0.0
        %2733 = vmatprep.subr.mxu0 0.0
        %2734 = vmatpush1.msra.mxu0 0.0
        %2735 = vmatprep.subr.mxu0 0.0
        %2736 = vmatpush1.msra.mxu0 0.0
        %2737 = vmatprep.subr.mxu0 0.0
        %2738 = vmatpush1.msra.mxu0 0.0
        %2739 = vmatprep.mubr.f32.mxu0 0.0
        %2740 = vmatmul.mubr.f32.gmra.mrb[0].mxu0 %v2673
        %v2741 = vpop.f32.mrb[0].mxu0
        %v2742 = vadd.f32 %v2670, %v2741
        %v2743 = vpop.f32.mrb[0].mxu0
        %2744 = vdwg.mxu0
        %2745 = vst [vmem:[%s390] sm:$0xff] %v2742
        %s2746 = sand.u32 %s274, 1
        %s2747 = scalar_lea.sflag [#allocation3], %s2746
        %s2748 = sand.u32 %s274, 1
        %s2749 = smul.addr %s2748, 8
        %s2750 = scalar_lea.vmem [#allocation2], %s2749
        // Predicated region
        $region65: #{paligemma_forward.3} parent=63 // pred_check
          %p2751 = pneg %p284
        $region66: #{paligemma_forward.3} parent=63 // pred_check_branch
          %2753 = sbr.rel (%p2751) target = $region68
        $region67: #{paligemma_forward.3} parent=63 // pred_region
          %s2755 = ssub.s32 128, 128
          %2756 = vsyncadd %s2747, %s2755
          %s2757 = smul.addr %s25, 128
          %s2758 = scalar_lea.hbm %s11, %s2757
          %s2760 = sshll.u32 %s2750, 4
          %s2761 = int_to_ptr.vmem [resolvable:$true] %s2760
          %2763 = dma.vmem_to_hbm [thread:$0]  %s2761, 128, %s2758, %s2747
        $region68: #{paligemma_forward.3} parent=63 // pred_fallthru
          _
      $region64: #{paligemma_forward.3} parent=5 // pred_fallthru
        _
      %p2764 = scmp.le.s32.totalorder 2, %s20
      // Predicated region
      $region69: #{paligemma_forward.3} parent=5 // pred_check
        %p2765 = pneg %p2764
      $region70: #{paligemma_forward.3} parent=5 // pred_check_branch
        %2767 = sbr.rel (%p2765) target = $region72
      $region71: #{paligemma_forward.3} parent=5 // pred_region
        %s2768 = ssub.s32 %s20, 2
        // Predicated region
        $region73: #{paligemma_forward.3} parent=71 // pred_check
          %p2769 = pneg %p290
        $region74: #{paligemma_forward.3} parent=71 // pred_check_branch
          %2771 = sbr.rel (%p2769) target = $region76
        $region75: #{paligemma_forward.3} parent=71 // pred_region
          %s2772 = sand.u32 %s275, 1
          %s2773 = scalar_lea.sflag [#allocation3], %s2772
          %s2774 = sand.u32 %s275, 1
          %s2775 = smul.addr %s2774, 8
          %s2776 = scalar_lea.vmem [#allocation2], %s2775
          %2777 = dma.done %s2773, 128
        $region76: #{paligemma_forward.3} parent=71 // pred_fallthru
          _
      $region72: #{paligemma_forward.3} parent=5 // pred_fallthru
        _
    $region6: #{paligemma_forward.3} parent=1 // loop_footer
      %s24 = sadd.s32 1, %s20
    $region7: #{paligemma_forward.3} parent=1 // loop_footer_branch
      %19 = sbr.rel target = $region3
    $region8: #{paligemma_forward.3} parent=1 // loop_exit
      _
    %2778 = vsyncpa [#allocation3], 1
    %s2779 = scalar_lea.sflag [#allocation3], 1
    %2780 = vsyncpa %s2779, 1

</llo_original>
